<compile_context>
chip_gen: v7x
topology: tpu7x:2x2x1
jax: 0.10.0
libtpu: 0.0.40
codegen_flags: <defaults>
</compile_context>

<pallas_src>
import functools
import math

import jax
import jax.numpy as jnp
from jax import lax
from jax.experimental import pallas as pl
from jax.experimental.pallas import tpu as pltpu


# ----------------------------------------------------------------------------
# Kernel 1: fused input projection (Linear -> ReLU -> [Dropout=id] -> Linear)
#           + layer-0 LSTM x-gate precompute.
#   x       : (T*B, F)      time-major
#   output  : (T*B, 8H)     cols 0:4H = fwd gates, 4H:8H = bwd gates (biases folded)
# ----------------------------------------------------------------------------
def _input_proj_gates_kernel(x_ref, w1_ref, b1_ref, w2_ref, b2_ref,
                             wih_ref, bih_ref, o_ref):
    h = jnp.dot(x_ref[...].astype(jnp.bfloat16), w1_ref[...],
                preferred_element_type=jnp.float32) + b1_ref[...]
    h = jnp.maximum(h, 0.0)
    h = jnp.dot(h.astype(jnp.bfloat16), w2_ref[...],
                preferred_element_type=jnp.float32) + b2_ref[...]
    g = jnp.dot(h.astype(jnp.bfloat16), wih_ref[...],
                preferred_element_type=jnp.float32) + bih_ref[...]
    o_ref[...] = g.astype(o_ref.dtype)


def input_proj_gates(x2d, w1, b1, w2, b2, wih, bih):
    M, F = x2d.shape
    Hh = w1.shape[1]
    G = wih.shape[1]
    return pl.pallas_call(
        _input_proj_gates_kernel,
        out_shape=jax.ShapeDtypeStruct((M, G), jnp.float32),
        grid=(1,),
        in_specs=[pl.BlockSpec((M, F), lambda i: (0, 0)),
                  pl.BlockSpec((F, Hh), lambda i: (0, 0)),
                  pl.BlockSpec((1, Hh), lambda i: (0, 0)),
                  pl.BlockSpec((Hh, Hh), lambda i: (0, 0)),
                  pl.BlockSpec((1, Hh), lambda i: (0, 0)),
                  pl.BlockSpec((Hh, G), lambda i: (0, 0)),
                  pl.BlockSpec((1, G), lambda i: (0, 0))],
        out_specs=pl.BlockSpec((M, G), lambda i: (0, 0)),
    )(x2d, w1, b1, w2, b2, wih, bih)


# ----------------------------------------------------------------------------
# Kernel 2: x-gate precompute for LSTM layers >= 1.
#   y_prev  : (T*B, 2H)   previous layer output, time-major
#   output  : (T*B, 8H)   fwd | bwd gate pre-activations (biases folded)
# ----------------------------------------------------------------------------
def _gate_precompute_kernel(x_ref, w_ref, b_ref, o_ref):
    g = jnp.dot(x_ref[...].astype(jnp.bfloat16), w_ref[...],
                preferred_element_type=jnp.float32) + b_ref[...]
    o_ref[...] = g.astype(o_ref.dtype)


def gate_precompute(x2d, w, b):
    M, D = x2d.shape
    G = w.shape[1]
    return pl.pallas_call(
        _gate_precompute_kernel,
        out_shape=jax.ShapeDtypeStruct((M, G), jnp.float32),
        grid=(1,),
        in_specs=[pl.BlockSpec((M, D), lambda i: (0, 0)),
                  pl.BlockSpec((D, G), lambda i: (0, 0)),
                  pl.BlockSpec((1, G), lambda i: (0, 0))],
        out_specs=pl.BlockSpec((M, G), lambda i: (0, 0)),
    )(x2d, w, b)


# ----------------------------------------------------------------------------
# Kernel 3: one bidirectional LSTM layer (both directions), grid=(T,).
#   gx      : (T, B, 8H)  precomputed x-gates; read twice, time-blocked:
#             forward read at block t, backward read at block T-1-t.
#   whh_f/b : (H, 4H)     recurrent weights per direction (bf16)
#   out     : (T, B, 2H)  PyTorch bidirectional concat [fwd | bwd]; this block
#             is VMEM-resident (constant out index) so we write hidden states
#             into it directly — no scratch copy, no final-store pass.
# Gate order matches PyTorch: [i, f, g, o].
# ----------------------------------------------------------------------------
def _bilstm_layer_kernel(gxf_ref, gxb_ref, whhf_ref, whhb_ref, o_ref,
                         hf_sc, cf_sc, hb_sc, cb_sc, *, T, B, H):
    s = pl.program_id(0)

    @pl.when(s == 0)
    def _():
        hf_sc[...] = jnp.zeros_like(hf_sc)
        cf_sc[...] = jnp.zeros_like(cf_sc)
        hb_sc[...] = jnp.zeros_like(hb_sc)
        cb_sc[...] = jnp.zeros_like(cb_sc)

    # x-side gates were precomputed; only h @ W_hh (K = H) remains per step.
    gf = gxf_ref[0, :, 0:4 * H]            # (B, 4H) forward gates at time s
    gb = gxb_ref[0, :, 4 * H:8 * H]        # (B, 4H) backward gates at time T-1-s
    zf = gf + jnp.dot(hf_sc[...].astype(jnp.bfloat16), whhf_ref[...],
                      preferred_element_type=jnp.float32)
    zb = gb + jnp.dot(hb_sc[...].astype(jnp.bfloat16), whhb_ref[...],
                      preferred_element_type=jnp.float32)

    def cell(z, c_prev):
        i = jax.nn.sigmoid(z[:, 0 * H:1 * H])
        f = jax.nn.sigmoid(z[:, 1 * H:2 * H])
        g = jnp.tanh(z[:, 2 * H:3 * H])
        o = jax.nn.sigmoid(z[:, 3 * H:4 * H])
        c = f * c_prev + i * g
        h = o * jnp.tanh(c)
        return h, c

    hf, cf = cell(zf, cf_sc[...])
    hb, cb = cell(zb, cb_sc[...])
    hf_sc[...] = hf
    cf_sc[...] = cf
    hb_sc[...] = hb
    cb_sc[...] = cb

    # write directly into the VMEM-resident output accumulator
    o_ref[s, :, 0:H] = hf                  # forward hidden -> time s
    o_ref[T - 1 - s, :, H:2 * H] = hb      # backward hidden -> time T-1-s


def bilstm_layer(gx, whh_f, whh_b, H):
    T, B, G = gx.shape                     # G = 8H
    return pl.pallas_call(
        functools.partial(_bilstm_layer_kernel, T=T, B=B, H=H),
        out_shape=jax.ShapeDtypeStruct((T, B, 2 * H), jnp.float32),
        grid=(T,),
        in_specs=[pl.BlockSpec((1, B, G), lambda t: (t, 0, 0)),
                  pl.BlockSpec((1, B, G), lambda t: (T - 1 - t, 0, 0)),
                  pl.BlockSpec((H, 4 * H), lambda t: (0, 0)),
                  pl.BlockSpec((H, 4 * H), lambda t: (0, 0))],
        out_specs=pl.BlockSpec((T, B, 2 * H), lambda t: (0, 0, 0)),
        scratch_shapes=[pltpu.VMEM((B, H), jnp.float32),    # h fwd
                        pltpu.VMEM((B, H), jnp.float32),    # c fwd
                        pltpu.VMEM((B, H), jnp.float32),    # h bwd
                        pltpu.VMEM((B, H), jnp.float32)],   # c bwd
        compiler_params=pltpu.CompilerParams(dimension_semantics=("arbitrary",)),
    )(gx, gx, whh_f, whh_b)


# ----------------------------------------------------------------------------
# Kernel 4: fused multi-head self-attention + temporal mean pooling
#           + feature_extractor + classifier (eval-mode BN).
#   x       : (B*T, E)   LSTM output, batch-major so per-b slices are static
#   output  : (B, NCP)   classifier logits padded to a lane-dense width
# QKV in_proj / out_proj are computed once for all batches; only the small
# per-(batch, head) softmax(QK^T)V runs in a static Python loop.
# ----------------------------------------------------------------------------
def _attn_head_kernel(x_ref, wqkv_ref, bqkv_ref, wo_ref, bo_ref,
                      f1w_ref, f1b_ref, f2w_ref, f2b_ref,
                      c1w_ref, c1b_ref, c2w_ref, c2b_ref, o_ref,
                      *, T, B, E, nh, scale, bn_scale):
    dh = E // nh
    x = x_ref[...]                                          # (B*T, E) f32

    # hoisted projections: each weight streamed through the MXU exactly once
    qkv = jnp.dot(x.astype(jnp.bfloat16), wqkv_ref[...],
                  preferred_element_type=jnp.float32) + bqkv_ref[...]   # (B*T, 3E)

    att_rows = []
    for b in range(B):                                      # static, B small
        r0 = b * T
        q = qkv[r0:r0 + T, 0:E]
        k = qkv[r0:r0 + T, E:2 * E]
        v = qkv[r0:r0 + T, 2 * E:3 * E]
        heads = []
        for hh in range(nh):                                # static, nh small
            c0 = hh * dh
            qh = q[:, c0:c0 + dh]
            kh = k[:, c0:c0 + dh]
            vh = v[:, c0:c0 + dh]
            s = lax.dot_general(qh, kh, (((1,), (1,)), ((), ())),
                                preferred_element_type=jnp.float32) * scale  # (T,T)
            s = s - jnp.max(s, axis=-1, keepdims=True)
            p = jnp.exp(s)
            p = p / jnp.sum(p, axis=-1, keepdims=True)      # exact softmax
            heads.append(jnp.dot(p, vh, preferred_element_type=jnp.float32))
        att_rows.append(jnp.concatenate(heads, axis=1))     # (T, E)
    att = jnp.concatenate(att_rows, axis=0)                 # (B*T, E)

    att_out = jnp.dot(att.astype(jnp.bfloat16), wo_ref[...],
                      preferred_element_type=jnp.float32) + bo_ref[...]  # (B*T, E)

    # temporal mean pooling of both streams, then combine
    inv_T = 1.0 / float(T)
    pooled = []
    for b in range(B):
        r0 = b * T
        pooled.append((jnp.sum(x[r0:r0 + T], axis=0, keepdims=True) +
                       jnp.sum(att_out[r0:r0 + T], axis=0, keepdims=True)) * inv_T)
    comb = jnp.concatenate(pooled, axis=0)                  # (B, E)

    # feature_extractor + classifier (Dropout = identity in eval)
    h = jnp.dot(comb.astype(jnp.bfloat16), f1w_ref[...],
                preferred_element_type=jnp.float32) + f1b_ref[...]
    h = jnp.maximum(h, 0.0)
    h = jnp.dot(h.astype(jnp.bfloat16), f2w_ref[...],
                preferred_element_type=jnp.float32) + f2b_ref[...]
    h = jnp.maximum(h, 0.0)
    h = jnp.dot(h.astype(jnp.bfloat16), c1w_ref[...],
                preferred_element_type=jnp.float32) + c1b_ref[...]
    h = jnp.maximum(h * bn_scale, 0.0)                      # BatchNorm1d (eval) + ReLU
    y = jnp.dot(h.astype(jnp.bfloat16), c2w_ref[...],
                preferred_element_type=jnp.float32) + c2b_ref[...]
    o_ref[...] = y.astype(o_ref.dtype)                      # lane-dense (B, NCP)


def attn_head(x_bt, p, *, T, B, E, nh, bn_scale):
    M = B * T
    H = p["f1_w"].shape[1]
    Hh = p["f2_w"].shape[1]
    Hq = p["c1_w"].shape[1]
    NCP = p["c2_w"].shape[1]
    scale = 1.0 / math.sqrt(E // nh)
    return pl.pallas_call(
        functools.partial(_attn_head_kernel, T=T, B=B, E=E, nh=nh,
                          scale=scale, bn_scale=bn_scale),
        out_shape=jax.ShapeDtypeStruct((B, NCP), jnp.float32),
        grid=(1,),
        in_specs=[pl.BlockSpec((M, E), lambda i: (0, 0)),
                  pl.BlockSpec((E, 3 * E), lambda i: (0, 0)),
                  pl.BlockSpec((1, 3 * E), lambda i: (0, 0)),
                  pl.BlockSpec((E, E), lambda i: (0, 0)),
                  pl.BlockSpec((1, E), lambda i: (0, 0)),
                  pl.BlockSpec((E, H), lambda i: (0, 0)),
                  pl.BlockSpec((1, H), lambda i: (0, 0)),
                  pl.BlockSpec((H, Hh), lambda i: (0, 0)),
                  pl.BlockSpec((1, Hh), lambda i: (0, 0)),
                  pl.BlockSpec((Hh, Hq), lambda i: (0, 0)),
                  pl.BlockSpec((1, Hq), lambda i: (0, 0)),
                  pl.BlockSpec((Hq, NCP), lambda i: (0, 0)),
                  pl.BlockSpec((1, NCP), lambda i: (0, 0))],
        out_specs=pl.BlockSpec((B, NCP), lambda i: (0, 0)),
    )(x_bt, p["in_proj_w"], p["in_proj_b"], p["out_proj_w"], p["out_proj_b"],
      p["f1_w"], p["f1_b"], p["f2_w"], p["f2_b"],
      p["c1_w"], p["c1_b"], p["c2_w"], p["c2_b"])


# ----------------------------------------------------------------------------
# Parameter construction (deterministic xavier-uniform, zero biases).
# Matmul weights are stored in bf16 (accumulation stays f32); LSTM per-layer
# weights are pre-arranged as w_ih (D, 8H) [fwd | bwd] and w_hh per direction.
# ----------------------------------------------------------------------------
def _xavier(key, fan_in, fan_out):
    bound = math.sqrt(6.0 / (fan_in + fan_out))
    return jax.random.uniform(key, (fan_in, fan_out), jnp.float32, -bound, bound)


def make_params(key, input_size, hidden_size, num_layers, num_classes, num_heads):
    H = hidden_size
    Hh = H // 2
    E = 2 * H
    nc_pad = ((num_classes + 127) // 128) * 128
    keys = iter(jax.random.split(key, 64))
    bf16 = jnp.bfloat16
    p = {}

    # input projection
    p["p1_w"] = _xavier(next(keys), input_size, Hh).astype(bf16)
    p["p1_b"] = jnp.zeros((1, Hh), jnp.float32)
    p["p2_w"] = _xavier(next(keys), Hh, Hh).astype(bf16)
    p["p2_b"] = jnp.zeros((1, Hh), jnp.float32)

    # bidirectional LSTM layers
    # TODO(synk): when importing trained PyTorch weights, set b = b_ih + b_hh.
    p["lstm"] = []
    for l in range(num_layers):
        in_dim = Hh if l == 0 else E
        w_ih_f = _xavier(next(keys), in_dim, 4 * H)
        w_ih_b = _xavier(next(keys), in_dim, 4 * H)
        p["lstm"].append({
            "w_ih": jnp.concatenate([w_ih_f, w_ih_b], axis=1).astype(bf16),  # (D, 8H)
            "b": jnp.zeros((1, 8 * H), jnp.float32),                         # b_ih + b_hh
            "whh_f": _xavier(next(keys), H, 4 * H).astype(bf16),
            "whh_b": _xavier(next(keys), H, 4 * H).astype(bf16),
        })

    # multihead attention (embed_dim = 2H)
    p["in_proj_w"] = _xavier(next(keys), E, 3 * E).astype(bf16)
    p["in_proj_b"] = jnp.zeros((1, 3 * E), jnp.float32)
    p["out_proj_w"] = _xavier(next(keys), E, E).astype(bf16)
    p["out_proj_b"] = jnp.zeros((1, E), jnp.float32)

    # feature extractor
    p["f1_w"] = _xavier(next(keys), E, H).astype(bf16)
    p["f1_b"] = jnp.zeros((1, H), jnp.float32)
    p["f2_w"] = _xavier(next(keys), H, Hh).astype(bf16)
    p["f2_b"] = jnp.zeros((1, Hh), jnp.float32)

    # classifier (final weight zero-padded to a lane-dense 128-wide output)
    p["c1_w"] = _xavier(next(keys), Hh, H // 4).astype(bf16)
    p["c1_b"] = jnp.zeros((1, H // 4), jnp.float32)
    c2 = _xavier(next(keys), H // 4, num_classes)
    c2_pad = jnp.zeros((H // 4, nc_pad), jnp.float32).at[:, :num_classes].set(c2)
    p["c2_w"] = c2_pad.astype(bf16)
    p["c2_b"] = jnp.zeros((1, nc_pad), jnp.float32)
    return p


# ----------------------------------------------------------------------------
# Forward pass
# ----------------------------------------------------------------------------
def forward(params, x, *, hidden_size, num_layers, num_heads, num_classes):
    B, T, F = x.shape
    H = hidden_size
    E = 2 * H

    # single tiny transpose to time-major; everything stays (T, B, .) until attention
    x_tb = jnp.transpose(x, (1, 0, 2)).reshape(T * B, F)

    # input projection fused with layer-0 x-gate precompute
    l0 = params["lstm"][0]
    gx = input_proj_gates(x_tb, params["p1_w"], params["p1_b"],
                          params["p2_w"], params["p2_b"],
                          l0["w_ih"], l0["b"])                        # (T*B, 8H)

    y = None
    for l in range(num_layers):
        lp = params["lstm"][l]
        if l > 0:
            gx = gate_precompute(y.reshape(T * B, E), lp["w_ih"], lp["b"])  # (T*B, 8H)
        y = bilstm_layer(gx.reshape(T, B, 8 * H), lp["whh_f"], lp["whh_b"], H)  # (T,B,2H)

    # batch-major for attention + pooling + MLP head (tiny transpose)
    x_bt = jnp.transpose(y, (1, 0, 2)).reshape(B * T, E)
    bn_scale = 1.0 / math.sqrt(1.0 + 1e-5)                            # eval-mode BatchNorm1d
    logits = attn_head(x_bt, params, T=T, B=B, E=E, nh=num_heads, bn_scale=bn_scale)
    return logits[:, :num_classes]                                    # (B, num_classes)


if __name__ == "__main__":
    INPUT_SIZE = 66      # skeleton features
    HIDDEN_SIZE = 128    # module default is 256; kept small for the demo
    NUM_LAYERS = 3
    NUM_CLASSES = 5
    NUM_HEADS = 4
    BATCH = 2
    SEQ = 8

    key = jax.random.PRNGKey(0)
    kx, kp = jax.random.split(key)
    x = jax.random.normal(kx, (BATCH, SEQ, INPUT_SIZE), jnp.float32)
    params = make_params(kp, INPUT_SIZE, HIDDEN_SIZE, NUM_LAYERS, NUM_CLASSES, NUM_HEADS)

    fwd = jax.jit(functools.partial(forward, hidden_size=HIDDEN_SIZE,
                                    num_layers=NUM_LAYERS, num_heads=NUM_HEADS,
                                    num_classes=NUM_CLASSES))
    out = jax.block_until_ready(fwd(params, x))
    assert out.shape == (BATCH, NUM_CLASSES) and out.dtype == jnp.float32
    assert bool(jnp.all(jnp.isfinite(out)))
    print("KERNEL_OK")
</pallas_src>

<mosaic_0001>
module attributes {stable_mosaic.version = 11 : i64} {
  func.func @_input_proj_gates_kernel(%arg0: i32, %arg1: memref<16x66xf32, #tpu.memory_space<vmem>>, %arg2: memref<66x64xbf16, #tpu.memory_space<vmem>>, %arg3: memref<1x64xf32, #tpu.memory_space<vmem>>, %arg4: memref<64x64xbf16, #tpu.memory_space<vmem>>, %arg5: memref<1x64xf32, #tpu.memory_space<vmem>>, %arg6: memref<64x1024xbf16, #tpu.memory_space<vmem>>, %arg7: memref<1x1024xf32, #tpu.memory_space<vmem>>, %arg8: memref<16x1024xf32, #tpu.memory_space<vmem>>) attributes {dimension_semantics = [#tpu.dimension_semantics<arbitrary>], iteration_bounds = array<i64: 1>, scalar_prefetch = 0 : i64, scratch_operands = 0 : i64, tpu.core_type = #tpu.core_type<tc>, window_params = [{pipeline_mode = #tpu.pipeline_mode<synchronous>, transform_indices = @transform_0, window_bounds = array<i64: 16, 66>}, {pipeline_mode = #tpu.pipeline_mode<synchronous>, transform_indices = @transform_1, window_bounds = array<i64: 66, 64>}, {pipeline_mode = #tpu.pipeline_mode<synchronous>, transform_indices = @transform_2, window_bounds = array<i64: 1, 64>}, {pipeline_mode = #tpu.pipeline_mode<synchronous>, transform_indices = @transform_3, window_bounds = array<i64: 64, 64>}, {pipeline_mode = #tpu.pipeline_mode<synchronous>, transform_indices = @transform_4, window_bounds = array<i64: 1, 64>}, {pipeline_mode = #tpu.pipeline_mode<synchronous>, transform_indices = @transform_5, window_bounds = array<i64: 64, 1024>}, {pipeline_mode = #tpu.pipeline_mode<synchronous>, transform_indices = @transform_6, window_bounds = array<i64: 1, 1024>}, {pipeline_mode = #tpu.pipeline_mode<synchronous>, transform_indices = @transform_7, window_bounds = array<i64: 16, 1024>}]} {
    %c0 = arith.constant 0 : index
    %c0_0 = arith.constant 0 : index
    %0 = vector.load %arg1[%c0, %c0_0] : memref<16x66xf32, #tpu.memory_space<vmem>>, vector<16x66xf32>
    %1 = arith.truncf %0 : vector<16x66xf32> to vector<16x66xbf16>
    %c0_1 = arith.constant 0 : index
    %c0_2 = arith.constant 0 : index
    %2 = vector.load %arg2[%c0_1, %c0_2] : memref<66x64xbf16, #tpu.memory_space<vmem>>, vector<66x64xbf16>
    %cst = arith.constant dense<0.000000e+00> : vector<16x64xf32>
    %3 = tpu.matmul %1, %2, %cst {dimension_numbers = #tpu.dot_dimension_numbers<[1], [0], [0], [1], [0, 0, 1, 1], [], []>} : vector<16x66xbf16>, vector<66x64xbf16>, vector<16x64xf32> -> vector<16x64xf32>
    %c0_3 = arith.constant 0 : index
    %c0_4 = arith.constant 0 : index
    %4 = vector.load %arg3[%c0_3, %c0_4] : memref<1x64xf32, #tpu.memory_space<vmem>>, vector<1x64xf32>
    %5 = vector.broadcast %4 : vector<1x64xf32> to vector<16x64xf32>
    %6 = arith.addf %3, %5 : vector<16x64xf32>
    %cst_5 = arith.constant 0.000000e+00 : f32
    %7 = vector.broadcast %cst_5 : f32 to vector<16x64xf32>
    %8 = arith.maximumf %6, %7 : vector<16x64xf32>
    %9 = arith.truncf %8 : vector<16x64xf32> to vector<16x64xbf16>
    %c0_6 = arith.constant 0 : index
    %c0_7 = arith.constant 0 : index
    %10 = vector.load %arg4[%c0_6, %c0_7] : memref<64x64xbf16, #tpu.memory_space<vmem>>, vector<64x64xbf16>
    %cst_8 = arith.constant dense<0.000000e+00> : vector<16x64xf32>
    %11 = tpu.matmul %9, %10, %cst_8 {dimension_numbers = #tpu.dot_dimension_numbers<[1], [0], [0], [1], [0, 0, 1, 1], [], []>} : vector<16x64xbf16>, vector<64x64xbf16>, vector<16x64xf32> -> vector<16x64xf32>
    %c0_9 = arith.constant 0 : index
    %c0_10 = arith.constant 0 : index
    %12 = vector.load %arg5[%c0_9, %c0_10] : memref<1x64xf32, #tpu.memory_space<vmem>>, vector<1x64xf32>
    %13 = vector.broadcast %12 : vector<1x64xf32> to vector<16x64xf32>
    %14 = arith.addf %11, %13 : vector<16x64xf32>
    %15 = arith.truncf %14 : vector<16x64xf32> to vector<16x64xbf16>
    %c0_11 = arith.constant 0 : index
    %c0_12 = arith.constant 0 : index
    %16 = vector.load %arg6[%c0_11, %c0_12] : memref<64x1024xbf16, #tpu.memory_space<vmem>>, vector<64x1024xbf16>
    %cst_13 = arith.constant dense<0.000000e+00> : vector<16x1024xf32>
    %17 = tpu.matmul %15, %16, %cst_13 {dimension_numbers = #tpu.dot_dimension_numbers<[1], [0], [0], [1], [0, 0, 1, 1], [], []>} : vector<16x64xbf16>, vector<64x1024xbf16>, vector<16x1024xf32> -> vector<16x1024xf32>
    %c0_14 = arith.constant 0 : index
    %c0_15 = arith.constant 0 : index
    %18 = vector.load %arg7[%c0_14, %c0_15] : memref<1x1024xf32, #tpu.memory_space<vmem>>, vector<1x1024xf32>
    %19 = vector.broadcast %18 : vector<1x1024xf32> to vector<16x1024xf32>
    %20 = arith.addf %17, %19 : vector<16x1024xf32>
    %c0_16 = arith.constant 0 : index
    %c0_17 = arith.constant 0 : index
    %21 = vector.load %arg8[%c0_16, %c0_17] : memref<16x1024xf32, #tpu.memory_space<vmem>>, vector<16x1024xf32>
    tpu.vector_store %arg8[%c0_16, %c0_17], %20 {strides = array<i32>} : memref<16x1024xf32, #tpu.memory_space<vmem>>, vector<16x1024xf32>,
    return
  }
  func.func @transform_0(%arg0: i32) -> (i32, i32) {
    %c0_i32 = arith.constant 0 : i32
    %c0_i32_0 = arith.constant 0 : i32
    %c0_i32_1 = arith.constant 0 : i32
    return %c0_i32, %c0_i32_0 : i32, i32
  }
  func.func @transform_1(%arg0: i32) -> (i32, i32) {
    %c0_i32 = arith.constant 0 : i32
    %c0_i32_0 = arith.constant 0 : i32
    %c0_i32_1 = arith.constant 0 : i32
    return %c0_i32, %c0_i32_0 : i32, i32
  }
  func.func @transform_2(%arg0: i32) -> (i32, i32) {
    %c0_i32 = arith.constant 0 : i32
    %c0_i32_0 = arith.constant 0 : i32
    %c0_i32_1 = arith.constant 0 : i32
    return %c0_i32, %c0_i32_0 : i32, i32
  }
  func.func @transform_3(%arg0: i32) -> (i32, i32) {
    %c0_i32 = arith.constant 0 : i32
    %c0_i32_0 = arith.constant 0 : i32
    %c0_i32_1 = arith.constant 0 : i32
    return %c0_i32, %c0_i32_0 : i32, i32
  }
  func.func @transform_4(%arg0: i32) -> (i32, i32) {
    %c0_i32 = arith.constant 0 : i32
    %c0_i32_0 = arith.constant 0 : i32
    %c0_i32_1 = arith.constant 0 : i32
    return %c0_i32, %c0_i32_0 : i32, i32
  }
  func.func @transform_5(%arg0: i32) -> (i32, i32) {
    %c0_i32 = arith.constant 0 : i32
    %c0_i32_0 = arith.constant 0 : i32
    %c0_i32_1 = arith.constant 0 : i32
    return %c0_i32, %c0_i32_0 : i32, i32
  }
  func.func @transform_6(%arg0: i32) -> (i32, i32) {
    %c0_i32 = arith.constant 0 : i32
    %c0_i32_0 = arith.constant 0 : i32
    %c0_i32_1 = arith.constant 0 : i32
    return %c0_i32, %c0_i32_0 : i32, i32
  }
  func.func @transform_7(%arg0: i32) -> (i32, i32) {
    %c0_i32 = arith.constant 0 : i32
    %c0_i32_0 = arith.constant 0 : i32
    %c0_i32_1 = arith.constant 0 : i32
    return %c0_i32, %c0_i32_0 : i32, i32
  }
}

module attributes {stable_mosaic.version = 11 : i64} {
  func.func @_bilstm_layer_kernel(%arg0: i32, %arg1: memref<1x2x1024xf32, #tpu.memory_space<vmem>>, %arg2: memref<1x2x1024xf32, #tpu.memory_space<vmem>>, %arg3: memref<128x512xbf16, #tpu.memory_space<vmem>>, %arg4: memref<128x512xbf16, #tpu.memory_space<vmem>>, %arg5: memref<8x2x256xf32, #tpu.memory_space<vmem>>, %arg6: memref<2x128xf32, #tpu.memory_space<vmem>>, %arg7: memref<2x128xf32, #tpu.memory_space<vmem>>, %arg8: memref<2x128xf32, #tpu.memory_space<vmem>>, %arg9: memref<2x128xf32, #tpu.memory_space<vmem>>) attributes {dimension_semantics = [#tpu.dimension_semantics<arbitrary>], iteration_bounds = array<i64: 8>, scalar_prefetch = 0 : i64, scratch_operands = 4 : i64, tpu.core_type = #tpu.core_type<tc>, window_params = [{transform_indices = @transform_0, window_bounds = array<i64: 1, 2, 1024>}, {transform_indices = @transform_1, window_bounds = array<i64: 1, 2, 1024>}, {pipeline_mode = #tpu.pipeline_mode<synchronous>, transform_indices = @transform_2, window_bounds = array<i64: 128, 512>}, {pipeline_mode = #tpu.pipeline_mode<synchronous>, transform_indices = @transform_3, window_bounds = array<i64: 128, 512>}, {pipeline_mode = #tpu.pipeline_mode<synchronous>, transform_indices = @transform_4, window_bounds = array<i64: 8, 2, 256>}]} {
    %c0_i32 = arith.constant 0 : i32
    %0 = arith.cmpi eq, %arg0, %c0_i32 : i32
    %1 = arith.extui %0 : i1 to i32
    %c0_i32_0 = arith.constant 0 : i32
    %2 = arith.cmpi ne, %1, %c0_i32_0 : i32
    scf.if %2 {
      %cst_35 = arith.constant 0.000000e+00 : f32
      %82 = vector.broadcast %cst_35 : f32 to vector<2x128xf32>
      %c0_36 = arith.constant 0 : index
      %c0_37 = arith.constant 0 : index
      %83 = vector.load %arg6[%c0_36, %c0_37] : memref<2x128xf32, #tpu.memory_space<vmem>>, vector<2x128xf32>
      tpu.vector_store %arg6[%c0_36, %c0_37], %82 {strides = array<i32>} : memref<2x128xf32, #tpu.memory_space<vmem>>, vector<2x128xf32>,
      %cst_38 = arith.constant 0.000000e+00 : f32
      %84 = vector.broadcast %cst_38 : f32 to vector<2x128xf32>
      %c0_39 = arith.constant 0 : index
      %c0_40 = arith.constant 0 : index
      %85 = vector.load %arg7[%c0_39, %c0_40] : memref<2x128xf32, #tpu.memory_space<vmem>>, vector<2x128xf32>
      tpu.vector_store %arg7[%c0_39, %c0_40], %84 {strides = array<i32>} : memref<2x128xf32, #tpu.memory_space<vmem>>, vector<2x128xf32>,
      %cst_41 = arith.constant 0.000000e+00 : f32
      %86 = vector.broadcast %cst_41 : f32 to vector<2x128xf32>
      %c0_42 = arith.constant 0 : index
      %c0_43 = arith.constant 0 : index
      %87 = vector.load %arg8[%c0_42, %c0_43] : memref<2x128xf32, #tpu.memory_space<vmem>>, vector<2x128xf32>
      tpu.vector_store %arg8[%c0_42, %c0_43], %86 {strides = array<i32>} : memref<2x128xf32, #tpu.memory_space<vmem>>, vector<2x128xf32>,
      %cst_44 = arith.constant 0.000000e+00 : f32
      %88 = vector.broadcast %cst_44 : f32 to vector<2x128xf32>
      %c0_45 = arith.constant 0 : index
      %c0_46 = arith.constant 0 : index
      %89 = vector.load %arg9[%c0_45, %c0_46] : memref<2x128xf32, #tpu.memory_space<vmem>>, vector<2x128xf32>
      tpu.vector_store %arg9[%c0_45, %c0_46], %88 {strides = array<i32>} : memref<2x128xf32, #tpu.memory_space<vmem>>, vector<2x128xf32>,
    } else {
    }
    %c0 = arith.constant 0 : index
    %c0_1 = arith.constant 0 : index
    %c0_2 = arith.constant 0 : index
    %3 = vector.load %arg1[%c0, %c0_1, %c0_2] : memref<1x2x1024xf32, #tpu.memory_space<vmem>>, vector<1x2x512xf32>
    %4 = vector.shape_cast %3 : vector<1x2x512xf32> to vector<2x512xf32>
    %c0_3 = arith.constant 0 : index
    %c0_4 = arith.constant 0 : index
    %c512 = arith.constant 512 : index
    %5 = vector.load %arg2[%c0_3, %c0_4, %c512] : memref<1x2x1024xf32, #tpu.memory_space<vmem>>, vector<1x2x512xf32>
    %6 = vector.shape_cast %5 : vector<1x2x512xf32> to vector<2x512xf32>
    %c0_5 = arith.constant 0 : index
    %c0_6 = arith.constant 0 : index
    %7 = vector.load %arg6[%c0_5, %c0_6] : memref<2x128xf32, #tpu.memory_space<vmem>>, vector<2x128xf32>
    %8 = arith.truncf %7 : vector<2x128xf32> to vector<2x128xbf16>
    %c0_7 = arith.constant 0 : index
    %c0_8 = arith.constant 0 : index
    %9 = vector.load %arg3[%c0_7, %c0_8] : memref<128x512xbf16, #tpu.memory_space<vmem>>, vector<128x512xbf16>
    %cst = arith.constant dense<0.000000e+00> : vector<2x512xf32>
    %10 = tpu.matmul %8, %9, %cst {dimension_numbers = #tpu.dot_dimension_numbers<[1], [0], [0], [1], [0, 0, 1, 1], [], []>} : vector<2x128xbf16>, vector<128x512xbf16>, vector<2x512xf32> -> vector<2x512xf32>
    %11 = arith.addf %4, %10 : vector<2x512xf32>
    %c0_9 = arith.constant 0 : index
    %c0_10 = arith.constant 0 : index
    %12 = vector.load %arg8[%c0_9, %c0_10] : memref<2x128xf32, #tpu.memory_space<vmem>>, vector<2x128xf32>
    %13 = arith.truncf %12 : vector<2x128xf32> to vector<2x128xbf16>
    %c0_11 = arith.constant 0 : index
    %c0_12 = arith.constant 0 : index
    %14 = vector.load %arg4[%c0_11, %c0_12] : memref<128x512xbf16, #tpu.memory_space<vmem>>, vector<128x512xbf16>
    %cst_13 = arith.constant dense<0.000000e+00> : vector<2x512xf32>
    %15 = tpu.matmul %13, %14, %cst_13 {dimension_numbers = #tpu.dot_dimension_numbers<[1], [0], [0], [1], [0, 0, 1, 1], [], []>} : vector<2x128xbf16>, vector<128x512xbf16>, vector<2x512xf32> -> vector<2x512xf32>
    %16 = arith.addf %6, %15 : vector<2x512xf32>
    %c0_14 = arith.constant 0 : index
    %c0_15 = arith.constant 0 : index
    %17 = vector.load %arg7[%c0_14, %c0_15] : memref<2x128xf32, #tpu.memory_space<vmem>>, vector<2x128xf32>
    %18 = vector.extract_strided_slice %11 {offsets = [0, 0], sizes = [2, 128], strides = [1, 1]} : vector<2x512xf32> to vector<2x128xf32>
    %19 = arith.negf %18 : vector<2x128xf32>
    %20 = math.exp %19 : vector<2x128xf32>
    %cst_16 = arith.constant 1.000000e+00 : f32
    %21 = vector.broadcast %cst_16 : f32 to vector<2x128xf32>
    %22 = arith.addf %21, %20 : vector<2x128xf32>
    %23 = arith.divf %21, %22 : vector<2x128xf32>
    %24 = vector.extract_strided_slice %11 {offsets = [0, 128], sizes = [2, 128], strides = [1, 1]} : vector<2x512xf32> to vector<2x128xf32>
    %25 = arith.negf %24 : vector<2x128xf32>
    %26 = math.exp %25 : vector<2x128xf32>
    %cst_17 = arith.constant 1.000000e+00 : f32
    %27 = vector.broadcast %cst_17 : f32 to vector<2x128xf32>
    %28 = arith.addf %27, %26 : vector<2x128xf32>
    %29 = arith.divf %27, %28 : vector<2x128xf32>
    %30 = vector.extract_strided_slice %11 {offsets = [0, 256], sizes = [2, 128], strides = [1, 1]} : vector<2x512xf32> to vector<2x128xf32>
    %31 = math.tanh %30 : vector<2x128xf32>
    %32 = vector.extract_strided_slice %11 {offsets = [0, 384], sizes = [2, 128], strides = [1, 1]} : vector<2x512xf32> to vector<2x128xf32>
    %33 = arith.negf %32 : vector<2x128xf32>
    %34 = math.exp %33 : vector<2x128xf32>
    %cst_18 = arith.constant 1.000000e+00 : f32
    %35 = vector.broadcast %cst_18 : f32 to vector<2x128xf32>
    %36 = arith.addf %35, %34 : vector<2x128xf32>
    %37 = arith.divf %35, %36 : vector<2x128xf32>
    %38 = arith.mulf %29, %17 : vector<2x128xf32>
    %39 = arith.mulf %23, %31 : vector<2x128xf32>
    %40 = arith.addf %38, %39 : vector<2x128xf32>
    %41 = math.tanh %40 : vector<2x128xf32>
    %42 = arith.mulf %37, %41 : vector<2x128xf32>
    %c0_19 = arith.constant 0 : index
    %c0_20 = arith.constant 0 : index
    %43 = vector.load %arg9[%c0_19, %c0_20] : memref<2x128xf32, #tpu.memory_space<vmem>>, vector<2x128xf32>
    %44 = vector.extract_strided_slice %16 {offsets = [0, 0], sizes = [2, 128], strides = [1, 1]} : vector<2x512xf32> to vector<2x128xf32>
    %45 = arith.negf %44 : vector<2x128xf32>
    %46 = math.exp %45 : vector<2x128xf32>
    %cst_21 = arith.constant 1.000000e+00 : f32
    %47 = vector.broadcast %cst_21 : f32 to vector<2x128xf32>
    %48 = arith.addf %47, %46 : vector<2x128xf32>
    %49 = arith.divf %47, %48 : vector<2x128xf32>
    %50 = vector.extract_strided_slice %16 {offsets = [0, 128], sizes = [2, 128], strides = [1, 1]} : vector<2x512xf32> to vector<2x128xf32>
    %51 = arith.negf %50 : vector<2x128xf32>
    %52 = math.exp %51 : vector<2x128xf32>
    %cst_22 = arith.constant 1.000000e+00 : f32
    %53 = vector.broadcast %cst_22 : f32 to vector<2x128xf32>
    %54 = arith.addf %53, %52 : vector<2x128xf32>
    %55 = arith.divf %53, %54 : vector<2x128xf32>
    %56 = vector.extract_strided_slice %16 {offsets = [0, 256], sizes = [2, 128], strides = [1, 1]} : vector<2x512xf32> to vector<2x128xf32>
    %57 = math.tanh %56 : vector<2x128xf32>
    %58 = vector.extract_strided_slice %16 {offsets = [0, 384], sizes = [2, 128], strides = [1, 1]} : vector<2x512xf32> to vector<2x128xf32>
    %59 = arith.negf %58 : vector<2x128xf32>
    %60 = math.exp %59 : vector<2x128xf32>
    %cst_23 = arith.constant 1.000000e+00 : f32
    %61 = vector.broadcast %cst_23 : f32 to vector<2x128xf32>
    %62 = arith.addf %61, %60 : vector<2x128xf32>
    %63 = arith.divf %61, %62 : vector<2x128xf32>
    %64 = arith.mulf %55, %43 : vector<2x128xf32>
    %65 = arith.mulf %49, %57 : vector<2x128xf32>
    %66 = arith.addf %64, %65 : vector<2x128xf32>
    %67 = math.tanh %66 : vector<2x128xf32>
    %68 = arith.mulf %63, %67 : vector<2x128xf32>
    %c0_24 = arith.constant 0 : index
    %c0_25 = arith.constant 0 : index
    %69 = vector.load %arg6[%c0_24, %c0_25] : memref<2x128xf32, #tpu.memory_space<vmem>>, vector<2x128xf32>
    tpu.vector_store %arg6[%c0_24, %c0_25], %42 {strides = array<i32>} : memref<2x128xf32, #tpu.memory_space<vmem>>, vector<2x128xf32>,
    %c0_26 = arith.constant 0 : index
    %c0_27 = arith.constant 0 : index
    %70 = vector.load %arg7[%c0_26, %c0_27] : memref<2x128xf32, #tpu.memory_space<vmem>>, vector<2x128xf32>
    tpu.vector_store %arg7[%c0_26, %c0_27], %40 {strides = array<i32>} : memref<2x128xf32, #tpu.memory_space<vmem>>, vector<2x128xf32>,
    %c0_28 = arith.constant 0 : index
    %c0_29 = arith.constant 0 : index
    %71 = vector.load %arg8[%c0_28, %c0_29] : memref<2x128xf32, #tpu.memory_space<vmem>>, vector<2x128xf32>
    tpu.vector_store %arg8[%c0_28, %c0_29], %68 {strides = array<i32>} : memref<2x128xf32, #tpu.memory_space<vmem>>, vector<2x128xf32>,
    %c0_30 = arith.constant 0 : index
    %c0_31 = arith.constant 0 : index
    %72 = vector.load %arg9[%c0_30, %c0_31] : memref<2x128xf32, #tpu.memory_space<vmem>>, vector<2x128xf32>
    tpu.vector_store %arg9[%c0_30, %c0_31], %66 {strides = array<i32>} : memref<2x128xf32, #tpu.memory_space<vmem>>, vector<2x128xf32>,
    %73 = arith.index_cast %arg0 : i32 to index
    %c0_32 = arith.constant 0 : index
    %c0_33 = arith.constant 0 : index
    %74 = vector.load %arg5[%73, %c0_32, %c0_33] : memref<8x2x256xf32, #tpu.memory_space<vmem>>, vector<1x2x128xf32>
    %75 = vector.shape_cast %74 : vector<1x2x128xf32> to vector<2x128xf32>
    %76 = vector.shape_cast %42 : vector<2x128xf32> to vector<1x2x128xf32>
    tpu.vector_store %arg5[%73, %c0_32, %c0_33], %76 {strides = array<i32>} : memref<8x2x256xf32, #tpu.memory_space<vmem>>, vector<1x2x128xf32>,
    %c7_i32 = arith.constant 7 : i32
    %77 = arith.subi %c7_i32, %arg0 : i32
    %78 = arith.index_cast %77 : i32 to index
    %c0_34 = arith.constant 0 : index
    %c128 = arith.constant 128 : index
    %79 = vector.load %arg5[%78, %c0_34, %c128] : memref<8x2x256xf32, #tpu.memory_space<vmem>>, vector<1x2x128xf32>
    %80 = vector.shape_cast %79 : vector<1x2x128xf32> to vector<2x128xf32>
    %81 = vector.shape_cast %68 : vector<2x128xf32> to vector<1x2x128xf32>
    tpu.vector_store %arg5[%78, %c0_34, %c128], %81 {strides = array<i32>} : memref<8x2x256xf32, #tpu.memory_space<vmem>>, vector<1x2x128xf32>,
    return
  }
  func.func @transform_0(%arg0: i32) -> (i32, i32, i32) {
    %c0_i32 = arith.constant 0 : i32
    %c0_i32_0 = arith.constant 0 : i32
    %c0_i32_1 = arith.constant 0 : i32
    return %arg0, %c0_i32, %c0_i32_0 : i32, i32, i32
  }
  func.func @transform_1(%arg0: i32) -> (i32, i32, i32) {
    %c7_i32 = arith.constant 7 : i32
    %0 = arith.subi %c7_i32, %arg0 : i32
    %c0_i32 = arith.constant 0 : i32
    %c0_i32_0 = arith.constant 0 : i32
    %c0_i32_1 = arith.constant 0 : i32
    return %0, %c0_i32, %c0_i32_0 : i32, i32, i32
  }
  func.func @transform_2(%arg0: i32) -> (i32, i32) {
    %c0_i32 = arith.constant 0 : i32
    %c0_i32_0 = arith.constant 0 : i32
    %c0_i32_1 = arith.constant 0 : i32
    return %c0_i32, %c0_i32_0 : i32, i32
  }
  func.func @transform_3(%arg0: i32) -> (i32, i32) {
    %c0_i32 = arith.constant 0 : i32
    %c0_i32_0 = arith.constant 0 : i32
    %c0_i32_1 = arith.constant 0 : i32
    return %c0_i32, %c0_i32_0 : i32, i32
  }
  func.func @transform_4(%arg0: i32) -> (i32, i32, i32) {
    %c0_i32 = arith.constant 0 : i32
    %c0_i32_0 = arith.constant 0 : i32
    %c0_i32_1 = arith.constant 0 : i32
    %c0_i32_2 = arith.constant 0 : i32
    return %c0_i32, %c0_i32_0, %c0_i32_1 : i32, i32, i32
  }
}

module attributes {stable_mosaic.version = 11 : i64} {
  func.func @_gate_precompute_kernel(%arg0: i32, %arg1: memref<16x256xf32, #tpu.memory_space<vmem>>, %arg2: memref<256x1024xbf16, #tpu.memory_space<vmem>>, %arg3: memref<1x1024xf32, #tpu.memory_space<vmem>>, %arg4: memref<16x1024xf32, #tpu.memory_space<vmem>>) attributes {dimension_semantics = [#tpu.dimension_semantics<arbitrary>], iteration_bounds = array<i64: 1>, scalar_prefetch = 0 : i64, scratch_operands = 0 : i64, tpu.core_type = #tpu.core_type<tc>, window_params = [{pipeline_mode = #tpu.pipeline_mode<synchronous>, transform_indices = @transform_0, window_bounds = array<i64: 16, 256>}, {pipeline_mode = #tpu.pipeline_mode<synchronous>, transform_indices = @transform_1, window_bounds = array<i64: 256, 1024>}, {pipeline_mode = #tpu.pipeline_mode<synchronous>, transform_indices = @transform_2, window_bounds = array<i64: 1, 1024>}, {pipeline_mode = #tpu.pipeline_mode<synchronous>, transform_indices = @transform_3, window_bounds = array<i64: 16, 1024>}]} {
    %c0 = arith.constant 0 : index
    %c0_0 = arith.constant 0 : index
    %0 = vector.load %arg1[%c0, %c0_0] : memref<16x256xf32, #tpu.memory_space<vmem>>, vector<16x256xf32>
    %1 = arith.truncf %0 : vector<16x256xf32> to vector<16x256xbf16>
    %c0_1 = arith.constant 0 : index
    %c0_2 = arith.constant 0 : index
    %2 = vector.load %arg2[%c0_1, %c0_2] : memref<256x1024xbf16, #tpu.memory_space<vmem>>, vector<256x1024xbf16>
    %cst = arith.constant dense<0.000000e+00> : vector<16x1024xf32>
    %3 = tpu.matmul %1, %2, %cst {dimension_numbers = #tpu.dot_dimension_numbers<[1], [0], [0], [1], [0, 0, 1, 1], [], []>} : vector<16x256xbf16>, vector<256x1024xbf16>, vector<16x1024xf32> -> vector<16x1024xf32>
    %c0_3 = arith.constant 0 : index
    %c0_4 = arith.constant 0 : index
    %4 = vector.load %arg3[%c0_3, %c0_4] : memref<1x1024xf32, #tpu.memory_space<vmem>>, vector<1x1024xf32>
    %5 = vector.broadcast %4 : vector<1x1024xf32> to vector<16x1024xf32>
    %6 = arith.addf %3, %5 : vector<16x1024xf32>
    %c0_5 = arith.constant 0 : index
    %c0_6 = arith.constant 0 : index
    %7 = vector.load %arg4[%c0_5, %c0_6] : memref<16x1024xf32, #tpu.memory_space<vmem>>, vector<16x1024xf32>
    tpu.vector_store %arg4[%c0_5, %c0_6], %6 {strides = array<i32>} : memref<16x1024xf32, #tpu.memory_space<vmem>>, vector<16x1024xf32>,
    return
  }
  func.func @transform_0(%arg0: i32) -> (i32, i32) {
    %c0_i32 = arith.constant 0 : i32
    %c0_i32_0 = arith.constant 0 : i32
    %c0_i32_1 = arith.constant 0 : i32
    return %c0_i32, %c0_i32_0 : i32, i32
  }
  func.func @transform_1(%arg0: i32) -> (i32, i32) {
    %c0_i32 = arith.constant 0 : i32
    %c0_i32_0 = arith.constant 0 : i32
    %c0_i32_1 = arith.constant 0 : i32
    return %c0_i32, %c0_i32_0 : i32, i32
  }
  func.func @transform_2(%arg0: i32) -> (i32, i32) {
    %c0_i32 = arith.constant 0 : i32
    %c0_i32_0 = arith.constant 0 : i32
    %c0_i32_1 = arith.constant 0 : i32
    return %c0_i32, %c0_i32_0 : i32, i32
  }
  func.func @transform_3(%arg0: i32) -> (i32, i32) {
    %c0_i32 = arith.constant 0 : i32
    %c0_i32_0 = arith.constant 0 : i32
    %c0_i32_1 = arith.constant 0 : i32
    return %c0_i32, %c0_i32_0 : i32, i32
  }
}

module attributes {stable_mosaic.version = 11 : i64} {
  func.func @_bilstm_layer_kernel(%arg0: i32, %arg1: memref<1x2x1024xf32, #tpu.memory_space<vmem>>, %arg2: memref<1x2x1024xf32, #tpu.memory_space<vmem>>, %arg3: memref<128x512xbf16, #tpu.memory_space<vmem>>, %arg4: memref<128x512xbf16, #tpu.memory_space<vmem>>, %arg5: memref<8x2x256xf32, #tpu.memory_space<vmem>>, %arg6: memref<2x128xf32, #tpu.memory_space<vmem>>, %arg7: memref<2x128xf32, #tpu.memory_space<vmem>>, %arg8: memref<2x128xf32, #tpu.memory_space<vmem>>, %arg9: memref<2x128xf32, #tpu.memory_space<vmem>>) attributes {dimension_semantics = [#tpu.dimension_semantics<arbitrary>], iteration_bounds = array<i64: 8>, scalar_prefetch = 0 : i64, scratch_operands = 4 : i64, tpu.core_type = #tpu.core_type<tc>, window_params = [{transform_indices = @transform_0, window_bounds = array<i64: 1, 2, 1024>}, {transform_indices = @transform_1, window_bounds = array<i64: 1, 2, 1024>}, {pipeline_mode = #tpu.pipeline_mode<synchronous>, transform_indices = @transform_2, window_bounds = array<i64: 128, 512>}, {pipeline_mode = #tpu.pipeline_mode<synchronous>, transform_indices = @transform_3, window_bounds = array<i64: 128, 512>}, {pipeline_mode = #tpu.pipeline_mode<synchronous>, transform_indices = @transform_4, window_bounds = array<i64: 8, 2, 256>}]} {
    %c0_i32 = arith.constant 0 : i32
    %0 = arith.cmpi eq, %arg0, %c0_i32 : i32
    %1 = arith.extui %0 : i1 to i32
    %c0_i32_0 = arith.constant 0 : i32
    %2 = arith.cmpi ne, %1, %c0_i32_0 : i32
    scf.if %2 {
      %cst_35 = arith.constant 0.000000e+00 : f32
      %82 = vector.broadcast %cst_35 : f32 to vector<2x128xf32>
      %c0_36 = arith.constant 0 : index
      %c0_37 = arith.constant 0 : index
      %83 = vector.load %arg6[%c0_36, %c0_37] : memref<2x128xf32, #tpu.memory_space<vmem>>, vector<2x128xf32>
      tpu.vector_store %arg6[%c0_36, %c0_37], %82 {strides = array<i32>} : memref<2x128xf32, #tpu.memory_space<vmem>>, vector<2x128xf32>,
      %cst_38 = arith.constant 0.000000e+00 : f32
      %84 = vector.broadcast %cst_38 : f32 to vector<2x128xf32>
      %c0_39 = arith.constant 0 : index
      %c0_40 = arith.constant 0 : index
      %85 = vector.load %arg7[%c0_39, %c0_40] : memref<2x128xf32, #tpu.memory_space<vmem>>, vector<2x128xf32>
      tpu.vector_store %arg7[%c0_39, %c0_40], %84 {strides = array<i32>} : memref<2x128xf32, #tpu.memory_space<vmem>>, vector<2x128xf32>,
      %cst_41 = arith.constant 0.000000e+00 : f32
      %86 = vector.broadcast %cst_41 : f32 to vector<2x128xf32>
      %c0_42 = arith.constant 0 : index
      %c0_43 = arith.constant 0 : index
      %87 = vector.load %arg8[%c0_42, %c0_43] : memref<2x128xf32, #tpu.memory_space<vmem>>, vector<2x128xf32>
      tpu.vector_store %arg8[%c0_42, %c0_43], %86 {strides = array<i32>} : memref<2x128xf32, #tpu.memory_space<vmem>>, vector<2x128xf32>,
      %cst_44 = arith.constant 0.000000e+00 : f32
      %88 = vector.broadcast %cst_44 : f32 to vector<2x128xf32>
      %c0_45 = arith.constant 0 : index
      %c0_46 = arith.constant 0 : index
      %89 = vector.load %arg9[%c0_45, %c0_46] : memref<2x128xf32, #tpu.memory_space<vmem>>, vector<2x128xf32>
      tpu.vector_store %arg9[%c0_45, %c0_46], %88 {strides = array<i32>} : memref<2x128xf32, #tpu.memory_space<vmem>>, vector<2x128xf32>,
    } else {
    }
    %c0 = arith.constant 0 : index
    %c0_1 = arith.constant 0 : index
    %c0_2 = arith.constant 0 : index
    %3 = vector.load %arg1[%c0, %c0_1, %c0_2] : memref<1x2x1024xf32, #tpu.memory_space<vmem>>, vector<1x2x512xf32>
    %4 = vector.shape_cast %3 : vector<1x2x512xf32> to vector<2x512xf32>
    %c0_3 = arith.constant 0 : index
    %c0_4 = arith.constant 0 : index
    %c512 = arith.constant 512 : index
    %5 = vector.load %arg2[%c0_3, %c0_4, %c512] : memref<1x2x1024xf32, #tpu.memory_space<vmem>>, vector<1x2x512xf32>
    %6 = vector.shape_cast %5 : vector<1x2x512xf32> to vector<2x512xf32>
    %c0_5 = arith.constant 0 : index
    %c0_6 = arith.constant 0 : index
    %7 = vector.load %arg6[%c0_5, %c0_6] : memref<2x128xf32, #tpu.memory_space<vmem>>, vector<2x128xf32>
    %8 = arith.truncf %7 : vector<2x128xf32> to vector<2x128xbf16>
    %c0_7 = arith.constant 0 : index
    %c0_8 = arith.constant 0 : index
    %9 = vector.load %arg3[%c0_7, %c0_8] : memref<128x512xbf16, #tpu.memory_space<vmem>>, vector<128x512xbf16>
    %cst = arith.constant dense<0.000000e+00> : vector<2x512xf32>
    %10 = tpu.matmul %8, %9, %cst {dimension_numbers = #tpu.dot_dimension_numbers<[1], [0], [0], [1], [0, 0, 1, 1], [], []>} : vector<2x128xbf16>, vector<128x512xbf16>, vector<2x512xf32> -> vector<2x512xf32>
    %11 = arith.addf %4, %10 : vector<2x512xf32>
    %c0_9 = arith.constant 0 : index
    %c0_10 = arith.constant 0 : index
    %12 = vector.load %arg8[%c0_9, %c0_10] : memref<2x128xf32, #tpu.memory_space<vmem>>, vector<2x128xf32>
    %13 = arith.truncf %12 : vector<2x128xf32> to vector<2x128xbf16>
    %c0_11 = arith.constant 0 : index
    %c0_12 = arith.constant 0 : index
    %14 = vector.load %arg4[%c0_11, %c0_12] : memref<128x512xbf16, #tpu.memory_space<vmem>>, vector<128x512xbf16>
    %cst_13 = arith.constant dense<0.000000e+00> : vector<2x512xf32>
    %15 = tpu.matmul %13, %14, %cst_13 {dimension_numbers = #tpu.dot_dimension_numbers<[1], [0], [0], [1], [0, 0, 1, 1], [], []>} : vector<2x128xbf16>, vector<128x512xbf16>, vector<2x512xf32> -> vector<2x512xf32>
    %16 = arith.addf %6, %15 : vector<2x512xf32>
    %c0_14 = arith.constant 0 : index
    %c0_15 = arith.constant 0 : index
    %17 = vector.load %arg7[%c0_14, %c0_15] : memref<2x128xf32, #tpu.memory_space<vmem>>, vector<2x128xf32>
    %18 = vector.extract_strided_slice %11 {offsets = [0, 0], sizes = [2, 128], strides = [1, 1]} : vector<2x512xf32> to vector<2x128xf32>
    %19 = arith.negf %18 : vector<2x128xf32>
    %20 = math.exp %19 : vector<2x128xf32>
    %cst_16 = arith.constant 1.000000e+00 : f32
    %21 = vector.broadcast %cst_16 : f32 to vector<2x128xf32>
    %22 = arith.addf %21, %20 : vector<2x128xf32>
    %23 = arith.divf %21, %22 : vector<2x128xf32>
    %24 = vector.extract_strided_slice %11 {offsets = [0, 128], sizes = [2, 128], strides = [1, 1]} : vector<2x512xf32> to vector<2x128xf32>
    %25 = arith.negf %24 : vector<2x128xf32>
    %26 = math.exp %25 : vector<2x128xf32>
    %cst_17 = arith.constant 1.000000e+00 : f32
    %27 = vector.broadcast %cst_17 : f32 to vector<2x128xf32>
    %28 = arith.addf %27, %26 : vector<2x128xf32>
    %29 = arith.divf %27, %28 : vector<2x128xf32>
    %30 = vector.extract_strided_slice %11 {offsets = [0, 256], sizes = [2, 128], strides = [1, 1]} : vector<2x512xf32> to vector<2x128xf32>
    %31 = math.tanh %30 : vector<2x128xf32>
    %32 = vector.extract_strided_slice %11 {offsets = [0, 384], sizes = [2, 128], strides = [1, 1]} : vector<2x512xf32> to vector<2x128xf32>
    %33 = arith.negf %32 : vector<2x128xf32>
    %34 = math.exp %33 : vector<2x128xf32>
    %cst_18 = arith.constant 1.000000e+00 : f32
    %35 = vector.broadcast %cst_18 : f32 to vector<2x128xf32>
    %36 = arith.addf %35, %34 : vector<2x128xf32>
    %37 = arith.divf %35, %36 : vector<2x128xf32>
    %38 = arith.mulf %29, %17 : vector<2x128xf32>
    %39 = arith.mulf %23, %31 : vector<2x128xf32>
    %40 = arith.addf %38, %39 : vector<2x128xf32>
    %41 = math.tanh %40 : vector<2x128xf32>
    %42 = arith.mulf %37, %41 : vector<2x128xf32>
    %c0_19 = arith.constant 0 : index
    %c0_20 = arith.constant 0 : index
    %43 = vector.load %arg9[%c0_19, %c0_20] : memref<2x128xf32, #tpu.memory_space<vmem>>, vector<2x128xf32>
    %44 = vector.extract_strided_slice %16 {offsets = [0, 0], sizes = [2, 128], strides = [1, 1]} : vector<2x512xf32> to vector<2x128xf32>
    %45 = arith.negf %44 : vector<2x128xf32>
    %46 = math.exp %45 : vector<2x128xf32>
    %cst_21 = arith.constant 1.000000e+00 : f32
    %47 = vector.broadcast %cst_21 : f32 to vector<2x128xf32>
    %48 = arith.addf %47, %46 : vector<2x128xf32>
    %49 = arith.divf %47, %48 : vector<2x128xf32>
    %50 = vector.extract_strided_slice %16 {offsets = [0, 128], sizes = [2, 128], strides = [1, 1]} : vector<2x512xf32> to vector<2x128xf32>
    %51 = arith.negf %50 : vector<2x128xf32>
    %52 = math.exp %51 : vector<2x128xf32>
    %cst_22 = arith.constant 1.000000e+00 : f32
    %53 = vector.broadcast %cst_22 : f32 to vector<2x128xf32>
    %54 = arith.addf %53, %52 : vector<2x128xf32>
    %55 = arith.divf %53, %54 : vector<2x128xf32>
    %56 = vector.extract_strided_slice %16 {offsets = [0, 256], sizes = [2, 128], strides = [1, 1]} : vector<2x512xf32> to vector<2x128xf32>
    %57 = math.tanh %56 : vector<2x128xf32>
    %58 = vector.extract_strided_slice %16 {offsets = [0, 384], sizes = [2, 128], strides = [1, 1]} : vector<2x512xf32> to vector<2x128xf32>
    %59 = arith.negf %58 : vector<2x128xf32>
    %60 = math.exp %59 : vector<2x128xf32>
    %cst_23 = arith.constant 1.000000e+00 : f32
    %61 = vector.broadcast %cst_23 : f32 to vector<2x128xf32>
    %62 = arith.addf %61, %60 : vector<2x128xf32>
    %63 = arith.divf %61, %62 : vector<2x128xf32>
    %64 = arith.mulf %55, %43 : vector<2x128xf32>
    %65 = arith.mulf %49, %57 : vector<2x128xf32>
    %66 = arith.addf %64, %65 : vector<2x128xf32>
    %67 = math.tanh %66 : vector<2x128xf32>
    %68 = arith.mulf %63, %67 : vector<2x128xf32>
    %c0_24 = arith.constant 0 : index
    %c0_25 = arith.constant 0 : index
    %69 = vector.load %arg6[%c0_24, %c0_25] : memref<2x128xf32, #tpu.memory_space<vmem>>, vector<2x128xf32>
    tpu.vector_store %arg6[%c0_24, %c0_25], %42 {strides = array<i32>} : memref<2x128xf32, #tpu.memory_space<vmem>>, vector<2x128xf32>,
    %c0_26 = arith.constant 0 : index
    %c0_27 = arith.constant 0 : index
    %70 = vector.load %arg7[%c0_26, %c0_27] : memref<2x128xf32, #tpu.memory_space<vmem>>, vector<2x128xf32>
    tpu.vector_store %arg7[%c0_26, %c0_27], %40 {strides = array<i32>} : memref<2x128xf32, #tpu.memory_space<vmem>>, vector<2x128xf32>,
    %c0_28 = arith.constant 0 : index
    %c0_29 = arith.constant 0 : index
    %71 = vector.load %arg8[%c0_28, %c0_29] : memref<2x128xf32, #tpu.memory_space<vmem>>, vector<2x128xf32>
    tpu.vector_store %arg8[%c0_28, %c0_29], %68 {strides = array<i32>} : memref<2x128xf32, #tpu.memory_space<vmem>>, vector<2x128xf32>,
    %c0_30 = arith.constant 0 : index
    %c0_31 = arith.constant 0 : index
    %72 = vector.load %arg9[%c0_30, %c0_31] : memref<2x128xf32, #tpu.memory_space<vmem>>, vector<2x128xf32>
    tpu.vector_store %arg9[%c0_30, %c0_31], %66 {strides = array<i32>} : memref<2x128xf32, #tpu.memory_space<vmem>>, vector<2x128xf32>,
    %73 = arith.index_cast %arg0 : i32 to index
    %c0_32 = arith.constant 0 : index
    %c0_33 = arith.constant 0 : index
    %74 = vector.load %arg5[%73, %c0_32, %c0_33] : memref<8x2x256xf32, #tpu.memory_space<vmem>>, vector<1x2x128xf32>
    %75 = vector.shape_cast %74 : vector<1x2x128xf32> to vector<2x128xf32>
    %76 = vector.shape_cast %42 : vector<2x128xf32> to vector<1x2x128xf32>
    tpu.vector_store %arg5[%73, %c0_32, %c0_33], %76 {strides = array<i32>} : memref<8x2x256xf32, #tpu.memory_space<vmem>>, vector<1x2x128xf32>,
    %c7_i32 = arith.constant 7 : i32
    %77 = arith.subi %c7_i32, %arg0 : i32
    %78 = arith.index_cast %77 : i32 to index
    %c0_34 = arith.constant 0 : index
    %c128 = arith.constant 128 : index
    %79 = vector.load %arg5[%78, %c0_34, %c128] : memref<8x2x256xf32, #tpu.memory_space<vmem>>, vector<1x2x128xf32>
    %80 = vector.shape_cast %79 : vector<1x2x128xf32> to vector<2x128xf32>
    %81 = vector.shape_cast %68 : vector<2x128xf32> to vector<1x2x128xf32>
    tpu.vector_store %arg5[%78, %c0_34, %c128], %81 {strides = array<i32>} : memref<8x2x256xf32, #tpu.memory_space<vmem>>, vector<1x2x128xf32>,
    return
  }
  func.func @transform_0(%arg0: i32) -> (i32, i32, i32) {
    %c0_i32 = arith.constant 0 : i32
    %c0_i32_0 = arith.constant 0 : i32
    %c0_i32_1 = arith.constant 0 : i32
    return %arg0, %c0_i32, %c0_i32_0 : i32, i32, i32
  }
  func.func @transform_1(%arg0: i32) -> (i32, i32, i32) {
    %c7_i32 = arith.constant 7 : i32
    %0 = arith.subi %c7_i32, %arg0 : i32
    %c0_i32 = arith.constant 0 : i32
    %c0_i32_0 = arith.constant 0 : i32
    %c0_i32_1 = arith.constant 0 : i32
    return %0, %c0_i32, %c0_i32_0 : i32, i32, i32
  }
  func.func @transform_2(%arg0: i32) -> (i32, i32) {
    %c0_i32 = arith.constant 0 : i32
    %c0_i32_0 = arith.constant 0 : i32
    %c0_i32_1 = arith.constant 0 : i32
    return %c0_i32, %c0_i32_0 : i32, i32
  }
  func.func @transform_3(%arg0: i32) -> (i32, i32) {
    %c0_i32 = arith.constant 0 : i32
    %c0_i32_0 = arith.constant 0 : i32
    %c0_i32_1 = arith.constant 0 : i32
    return %c0_i32, %c0_i32_0 : i32, i32
  }
  func.func @transform_4(%arg0: i32) -> (i32, i32, i32) {
    %c0_i32 = arith.constant 0 : i32
    %c0_i32_0 = arith.constant 0 : i32
    %c0_i32_1 = arith.constant 0 : i32
    %c0_i32_2 = arith.constant 0 : i32
    return %c0_i32, %c0_i32_0, %c0_i32_1 : i32, i32, i32
  }
}

module attributes {stable_mosaic.version = 11 : i64} {
  func.func @_attn_head_kernel(%arg0: i32, %arg1: memref<16x256xf32, #tpu.memory_space<vmem>>, %arg2: memref<256x768xbf16, #tpu.memory_space<vmem>>, %arg3: memref<1x768xf32, #tpu.memory_space<vmem>>, %arg4: memref<256x256xbf16, #tpu.memory_space<vmem>>, %arg5: memref<1x256xf32, #tpu.memory_space<vmem>>, %arg6: memref<256x128xbf16, #tpu.memory_space<vmem>>, %arg7: memref<1x128xf32, #tpu.memory_space<vmem>>, %arg8: memref<128x64xbf16, #tpu.memory_space<vmem>>, %arg9: memref<1x64xf32, #tpu.memory_space<vmem>>, %arg10: memref<64x32xbf16, #tpu.memory_space<vmem>>, %arg11: memref<1x32xf32, #tpu.memory_space<vmem>>, %arg12: memref<32x128xbf16, #tpu.memory_space<vmem>>, %arg13: memref<1x128xf32, #tpu.memory_space<vmem>>, %arg14: memref<2x128xf32, #tpu.memory_space<vmem>>) attributes {dimension_semantics = [#tpu.dimension_semantics<arbitrary>], iteration_bounds = array<i64: 1>, scalar_prefetch = 0 : i64, scratch_operands = 0 : i64, tpu.core_type = #tpu.core_type<tc>, window_params = [{pipeline_mode = #tpu.pipeline_mode<synchronous>, transform_indices = @transform_0, window_bounds = array<i64: 16, 256>}, {pipeline_mode = #tpu.pipeline_mode<synchronous>, transform_indices = @transform_1, window_bounds = array<i64: 256, 768>}, {pipeline_mode = #tpu.pipeline_mode<synchronous>, transform_indices = @transform_2, window_bounds = array<i64: 1, 768>}, {pipeline_mode = #tpu.pipeline_mode<synchronous>, transform_indices = @transform_3, window_bounds = array<i64: 256, 256>}, {pipeline_mode = #tpu.pipeline_mode<synchronous>, transform_indices = @transform_4, window_bounds = array<i64: 1, 256>}, {pipeline_mode = #tpu.pipeline_mode<synchronous>, transform_indices = @transform_5, window_bounds = array<i64: 256, 128>}, {pipeline_mode = #tpu.pipeline_mode<synchronous>, transform_indices = @transform_6, window_bounds = array<i64: 1, 128>}, {pipeline_mode = #tpu.pipeline_mode<synchronous>, transform_indices = @transform_7, window_bounds = array<i64: 128, 64>}, {pipeline_mode = #tpu.pipeline_mode<synchronous>, transform_indices = @transform_8, window_bounds = array<i64: 1, 64>}, {pipeline_mode = #tpu.pipeline_mode<synchronous>, transform_indices = @transform_9, window_bounds = array<i64: 64, 32>}, {pipeline_mode = #tpu.pipeline_mode<synchronous>, transform_indices = @transform_10, window_bounds = array<i64: 1, 32>}, {pipeline_mode = #tpu.pipeline_mode<synchronous>, transform_indices = @transform_11, window_bounds = array<i64: 32, 128>}, {pipeline_mode = #tpu.pipeline_mode<synchronous>, transform_indices = @transform_12, window_bounds = array<i64: 1, 128>}, {pipeline_mode = #tpu.pipeline_mode<synchronous>, transform_indices = @transform_13, window_bounds = array<i64: 2, 128>}]} {
    %c0 = arith.constant 0 : index
    %c0_0 = arith.constant 0 : index
    %0 = vector.load %arg1[%c0, %c0_0] : memref<16x256xf32, #tpu.memory_space<vmem>>, vector<16x256xf32>
    %1 = arith.truncf %0 : vector<16x256xf32> to vector<16x256xbf16>
    %c0_1 = arith.constant 0 : index
    %c0_2 = arith.constant 0 : index
    %2 = vector.load %arg2[%c0_1, %c0_2] : memref<256x768xbf16, #tpu.memory_space<vmem>>, vector<256x768xbf16>
    %cst = arith.constant dense<0.000000e+00> : vector<16x768xf32>
    %3 = tpu.matmul %1, %2, %cst {dimension_numbers = #tpu.dot_dimension_numbers<[1], [0], [0], [1], [0, 0, 1, 1], [], []>} : vector<16x256xbf16>, vector<256x768xbf16>, vector<16x768xf32> -> vector<16x768xf32>
    %c0_3 = arith.constant 0 : index
    %c0_4 = arith.constant 0 : index
    %4 = vector.load %arg3[%c0_3, %c0_4] : memref<1x768xf32, #tpu.memory_space<vmem>>, vector<1x768xf32>
    %5 = vector.broadcast %4 : vector<1x768xf32> to vector<16x768xf32>
    %6 = arith.addf %3, %5 : vector<16x768xf32>
    %7 = vector.extract_strided_slice %6 {offsets = [0, 0], sizes = [8, 256], strides = [1, 1]} : vector<16x768xf32> to vector<8x256xf32>
    %8 = vector.extract_strided_slice %6 {offsets = [0, 256], sizes = [8, 256], strides = [1, 1]} : vector<16x768xf32> to vector<8x256xf32>
    %9 = vector.extract_strided_slice %6 {offsets = [0, 512], sizes = [8, 256], strides = [1, 1]} : vector<16x768xf32> to vector<8x256xf32>
    %10 = vector.extract_strided_slice %7 {offsets = [0, 0], sizes = [8, 64], strides = [1, 1]} : vector<8x256xf32> to vector<8x64xf32>
    %11 = vector.extract_strided_slice %8 {offsets = [0, 0], sizes = [8, 64], strides = [1, 1]} : vector<8x256xf32> to vector<8x64xf32>
    %12 = vector.extract_strided_slice %9 {offsets = [0, 0], sizes = [8, 64], strides = [1, 1]} : vector<8x256xf32> to vector<8x64xf32>
    %cst_5 = arith.constant dense<0.000000e+00> : vector<8x8xf32>
    %13 = tpu.matmul %10, %11, %cst_5 {dimension_numbers = #tpu.dot_dimension_numbers<[1], [1], [0], [0], [0, 0, 1, 0], [], []>} : vector<8x64xf32>, vector<8x64xf32>, vector<8x8xf32> -> vector<8x8xf32>
    %cst_6 = arith.constant 1.250000e-01 : f32
    %14 = vector.broadcast %cst_6 : f32 to vector<8x8xf32>
    %15 = arith.mulf %13, %14 : vector<8x8xf32>
    %cst_7 = arith.constant dense<0xFF800000> : vector<8xf32>
    %16 = vector.multi_reduction <maximumf>, %15, %cst_7 [1] : vector<8x8xf32> to vector<8xf32>
    %17 = vector.shape_cast %16 : vector<8xf32> to vector<8x1xf32>
    %18 = vector.broadcast %17 : vector<8x1xf32> to vector<8x8xf32>
    %19 = arith.subf %15, %18 : vector<8x8xf32>
    %20 = math.exp %19 : vector<8x8xf32>
    %cst_8 = arith.constant dense<0.000000e+00> : vector<8xf32>
    %21 = vector.multi_reduction <add>, %20, %cst_8 [1] : vector<8x8xf32> to vector<8xf32>
    %22 = vector.shape_cast %21 : vector<8xf32> to vector<8x1xf32>
    %23 = vector.broadcast %22 : vector<8x1xf32> to vector<8x8xf32>
    %24 = arith.divf %20, %23 : vector<8x8xf32>
    %cst_9 = arith.constant dense<0.000000e+00> : vector<8x64xf32>
    %25 = tpu.matmul %24, %12, %cst_9 {dimension_numbers = #tpu.dot_dimension_numbers<[1], [0], [0], [1], [0, 0, 1, 1], [], []>} : vector<8x8xf32>, vector<8x64xf32>, vector<8x64xf32> -> vector<8x64xf32>
    %26 = vector.extract_strided_slice %7 {offsets = [0, 64], sizes = [8, 64], strides = [1, 1]} : vector<8x256xf32> to vector<8x64xf32>
    %27 = vector.extract_strided_slice %8 {offsets = [0, 64], sizes = [8, 64], strides = [1, 1]} : vector<8x256xf32> to vector<8x64xf32>
    %28 = vector.extract_strided_slice %9 {offsets = [0, 64], sizes = [8, 64], strides = [1, 1]} : vector<8x256xf32> to vector<8x64xf32>
    %cst_10 = arith.constant dense<0.000000e+00> : vector<8x8xf32>
    %29 = tpu.matmul %26, %27, %cst_10 {dimension_numbers = #tpu.dot_dimension_numbers<[1], [1], [0], [0], [0, 0, 1, 0], [], []>} : vector<8x64xf32>, vector<8x64xf32>, vector<8x8xf32> -> vector<8x8xf32>
    %cst_11 = arith.constant 1.250000e-01 : f32
    %30 = vector.broadcast %cst_11 : f32 to vector<8x8xf32>
    %31 = arith.mulf %29, %30 : vector<8x8xf32>
    %cst_12 = arith.constant dense<0xFF800000> : vector<8xf32>
    %32 = vector.multi_reduction <maximumf>, %31, %cst_12 [1] : vector<8x8xf32> to vector<8xf32>
    %33 = vector.shape_cast %32 : vector<8xf32> to vector<8x1xf32>
    %34 = vector.broadcast %33 : vector<8x1xf32> to vector<8x8xf32>
    %35 = arith.subf %31, %34 : vector<8x8xf32>
    %36 = math.exp %35 : vector<8x8xf32>
    %cst_13 = arith.constant dense<0.000000e+00> : vector<8xf32>
    %37 = vector.multi_reduction <add>, %36, %cst_13 [1] : vector<8x8xf32> to vector<8xf32>
    %38 = vector.shape_cast %37 : vector<8xf32> to vector<8x1xf32>
    %39 = vector.broadcast %38 : vector<8x1xf32> to vector<8x8xf32>
    %40 = arith.divf %36, %39 : vector<8x8xf32>
    %cst_14 = arith.constant dense<0.000000e+00> : vector<8x64xf32>
    %41 = tpu.matmul %40, %28, %cst_14 {dimension_numbers = #tpu.dot_dimension_numbers<[1], [0], [0], [1], [0, 0, 1, 1], [], []>} : vector<8x8xf32>, vector<8x64xf32>, vector<8x64xf32> -> vector<8x64xf32>
    %42 = vector.extract_strided_slice %7 {offsets = [0, 128], sizes = [8, 64], strides = [1, 1]} : vector<8x256xf32> to vector<8x64xf32>
    %43 = vector.extract_strided_slice %8 {offsets = [0, 128], sizes = [8, 64], strides = [1, 1]} : vector<8x256xf32> to vector<8x64xf32>
    %44 = vector.extract_strided_slice %9 {offsets = [0, 128], sizes = [8, 64], strides = [1, 1]} : vector<8x256xf32> to vector<8x64xf32>
    %cst_15 = arith.constant dense<0.000000e+00> : vector<8x8xf32>
    %45 = tpu.matmul %42, %43, %cst_15 {dimension_numbers = #tpu.dot_dimension_numbers<[1], [1], [0], [0], [0, 0, 1, 0], [], []>} : vector<8x64xf32>, vector<8x64xf32>, vector<8x8xf32> -> vector<8x8xf32>
    %cst_16 = arith.constant 1.250000e-01 : f32
    %46 = vector.broadcast %cst_16 : f32 to vector<8x8xf32>
    %47 = arith.mulf %45, %46 : vector<8x8xf32>
    %cst_17 = arith.constant dense<0xFF800000> : vector<8xf32>
    %48 = vector.multi_reduction <maximumf>, %47, %cst_17 [1] : vector<8x8xf32> to vector<8xf32>
    %49 = vector.shape_cast %48 : vector<8xf32> to vector<8x1xf32>
    %50 = vector.broadcast %49 : vector<8x1xf32> to vector<8x8xf32>
    %51 = arith.subf %47, %50 : vector<8x8xf32>
    %52 = math.exp %51 : vector<8x8xf32>
    %cst_18 = arith.constant dense<0.000000e+00> : vector<8xf32>
    %53 = vector.multi_reduction <add>, %52, %cst_18 [1] : vector<8x8xf32> to vector<8xf32>
    %54 = vector.shape_cast %53 : vector<8xf32> to vector<8x1xf32>
    %55 = vector.broadcast %54 : vector<8x1xf32> to vector<8x8xf32>
    %56 = arith.divf %52, %55 : vector<8x8xf32>
    %cst_19 = arith.constant dense<0.000000e+00> : vector<8x64xf32>
    %57 = tpu.matmul %56, %44, %cst_19 {dimension_numbers = #tpu.dot_dimension_numbers<[1], [0], [0], [1], [0, 0, 1, 1], [], []>} : vector<8x8xf32>, vector<8x64xf32>, vector<8x64xf32> -> vector<8x64xf32>
    %58 = vector.extract_strided_slice %7 {offsets = [0, 192], sizes = [8, 64], strides = [1, 1]} : vector<8x256xf32> to vector<8x64xf32>
    %59 = vector.extract_strided_slice %8 {offsets = [0, 192], sizes = [8, 64], strides = [1, 1]} : vector<8x256xf32> to vector<8x64xf32>
    %60 = vector.extract_strided_slice %9 {offsets = [0, 192], sizes = [8, 64], strides = [1, 1]} : vector<8x256xf32> to vector<8x64xf32>
    %cst_20 = arith.constant dense<0.000000e+00> : vector<8x8xf32>
    %61 = tpu.matmul %58, %59, %cst_20 {dimension_numbers = #tpu.dot_dimension_numbers<[1], [1], [0], [0], [0, 0, 1, 0], [], []>} : vector<8x64xf32>, vector<8x64xf32>, vector<8x8xf32> -> vector<8x8xf32>
    %cst_21 = arith.constant 1.250000e-01 : f32
    %62 = vector.broadcast %cst_21 : f32 to vector<8x8xf32>
    %63 = arith.mulf %61, %62 : vector<8x8xf32>
    %cst_22 = arith.constant dense<0xFF800000> : vector<8xf32>
    %64 = vector.multi_reduction <maximumf>, %63, %cst_22 [1] : vector<8x8xf32> to vector<8xf32>
    %65 = vector.shape_cast %64 : vector<8xf32> to vector<8x1xf32>
    %66 = vector.broadcast %65 : vector<8x1xf32> to vector<8x8xf32>
    %67 = arith.subf %63, %66 : vector<8x8xf32>
    %68 = math.exp %67 : vector<8x8xf32>
    %cst_23 = arith.constant dense<0.000000e+00> : vector<8xf32>
    %69 = vector.multi_reduction <add>, %68, %cst_23 [1] : vector<8x8xf32> to vector<8xf32>
    %70 = vector.shape_cast %69 : vector<8xf32> to vector<8x1xf32>
    %71 = vector.broadcast %70 : vector<8x1xf32> to vector<8x8xf32>
    %72 = arith.divf %68, %71 : vector<8x8xf32>
    %cst_24 = arith.constant dense<0.000000e+00> : vector<8x64xf32>
    %73 = tpu.matmul %72, %60, %cst_24 {dimension_numbers = #tpu.dot_dimension_numbers<[1], [0], [0], [1], [0, 0, 1, 1], [], []>} : vector<8x8xf32>, vector<8x64xf32>, vector<8x64xf32> -> vector<8x64xf32>
    %74 = tpu.concatenate %25, %41, %57, %73 in 1 : vector<8x64xf32>, vector<8x64xf32>, vector<8x64xf32>, vector<8x64xf32> -> vector<8x256xf32>
    %75 = vector.extract_strided_slice %6 {offsets = [8, 0], sizes = [8, 256], strides = [1, 1]} : vector<16x768xf32> to vector<8x256xf32>
    %76 = vector.extract_strided_slice %6 {offsets = [8, 256], sizes = [8, 256], strides = [1, 1]} : vector<16x768xf32> to vector<8x256xf32>
    %77 = vector.extract_strided_slice %6 {offsets = [8, 512], sizes = [8, 256], strides = [1, 1]} : vector<16x768xf32> to vector<8x256xf32>
    %78 = vector.extract_strided_slice %75 {offsets = [0, 0], sizes = [8, 64], strides = [1, 1]} : vector<8x256xf32> to vector<8x64xf32>
    %79 = vector.extract_strided_slice %76 {offsets = [0, 0], sizes = [8, 64], strides = [1, 1]} : vector<8x256xf32> to vector<8x64xf32>
    %80 = vector.extract_strided_slice %77 {offsets = [0, 0], sizes = [8, 64], strides = [1, 1]} : vector<8x256xf32> to vector<8x64xf32>
    %cst_25 = arith.constant dense<0.000000e+00> : vector<8x8xf32>
    %81 = tpu.matmul %78, %79, %cst_25 {dimension_numbers = #tpu.dot_dimension_numbers<[1], [1], [0], [0], [0, 0, 1, 0], [], []>} : vector<8x64xf32>, vector<8x64xf32>, vector<8x8xf32> -> vector<8x8xf32>
    %cst_26 = arith.constant 1.250000e-01 : f32
    %82 = vector.broadcast %cst_26 : f32 to vector<8x8xf32>
    %83 = arith.mulf %81, %82 : vector<8x8xf32>
    %cst_27 = arith.constant dense<0xFF800000> : vector<8xf32>
    %84 = vector.multi_reduction <maximumf>, %83, %cst_27 [1] : vector<8x8xf32> to vector<8xf32>
    %85 = vector.shape_cast %84 : vector<8xf32> to vector<8x1xf32>
    %86 = vector.broadcast %85 : vector<8x1xf32> to vector<8x8xf32>
    %87 = arith.subf %83, %86 : vector<8x8xf32>
    %88 = math.exp %87 : vector<8x8xf32>
    %cst_28 = arith.constant dense<0.000000e+00> : vector<8xf32>
    %89 = vector.multi_reduction <add>, %88, %cst_28 [1] : vector<8x8xf32> to vector<8xf32>
    %90 = vector.shape_cast %89 : vector<8xf32> to vector<8x1xf32>
    %91 = vector.broadcast %90 : vector<8x1xf32> to vector<8x8xf32>
    %92 = arith.divf %88, %91 : vector<8x8xf32>
    %cst_29 = arith.constant dense<0.000000e+00> : vector<8x64xf32>
    %93 = tpu.matmul %92, %80, %cst_29 {dimension_numbers = #tpu.dot_dimension_numbers<[1], [0], [0], [1], [0, 0, 1, 1], [], []>} : vector<8x8xf32>, vector<8x64xf32>, vector<8x64xf32> -> vector<8x64xf32>
    %94 = vector.extract_strided_slice %75 {offsets = [0, 64], sizes = [8, 64], strides = [1, 1]} : vector<8x256xf32> to vector<8x64xf32>
    %95 = vector.extract_strided_slice %76 {offsets = [0, 64], sizes = [8, 64], strides = [1, 1]} : vector<8x256xf32> to vector<8x64xf32>
    %96 = vector.extract_strided_slice %77 {offsets = [0, 64], sizes = [8, 64], strides = [1, 1]} : vector<8x256xf32> to vector<8x64xf32>
    %cst_30 = arith.constant dense<0.000000e+00> : vector<8x8xf32>
    %97 = tpu.matmul %94, %95, %cst_30 {dimension_numbers = #tpu.dot_dimension_numbers<[1], [1], [0], [0], [0, 0, 1, 0], [], []>} : vector<8x64xf32>, vector<8x64xf32>, vector<8x8xf32> -> vector<8x8xf32>
    %cst_31 = arith.constant 1.250000e-01 : f32
    %98 = vector.broadcast %cst_31 : f32 to vector<8x8xf32>
    %99 = arith.mulf %97, %98 : vector<8x8xf32>
    %cst_32 = arith.constant dense<0xFF800000> : vector<8xf32>
    %100 = vector.multi_reduction <maximumf>, %99, %cst_32 [1] : vector<8x8xf32> to vector<8xf32>
    %101 = vector.shape_cast %100 : vector<8xf32> to vector<8x1xf32>
    %102 = vector.broadcast %101 : vector<8x1xf32> to vector<8x8xf32>
    %103 = arith.subf %99, %102 : vector<8x8xf32>
    %104 = math.exp %103 : vector<8x8xf32>
    %cst_33 = arith.constant dense<0.000000e+00> : vector<8xf32>
    %105 = vector.multi_reduction <add>, %104, %cst_33 [1] : vector<8x8xf32> to vector<8xf32>
    %106 = vector.shape_cast %105 : vector<8xf32> to vector<8x1xf32>
    %107 = vector.broadcast %106 : vector<8x1xf32> to vector<8x8xf32>
    %108 = arith.divf %104, %107 : vector<8x8xf32>
    %cst_34 = arith.constant dense<0.000000e+00> : vector<8x64xf32>
    %109 = tpu.matmul %108, %96, %cst_34 {dimension_numbers = #tpu.dot_dimension_numbers<[1], [0], [0], [1], [0, 0, 1, 1], [], []>} : vector<8x8xf32>, vector<8x64xf32>, vector<8x64xf32> -> vector<8x64xf32>
    %110 = vector.extract_strided_slice %75 {offsets = [0, 128], sizes = [8, 64], strides = [1, 1]} : vector<8x256xf32> to vector<8x64xf32>
    %111 = vector.extract_strided_slice %76 {offsets = [0, 128], sizes = [8, 64], strides = [1, 1]} : vector<8x256xf32> to vector<8x64xf32>
    %112 = vector.extract_strided_slice %77 {offsets = [0, 128], sizes = [8, 64], strides = [1, 1]} : vector<8x256xf32> to vector<8x64xf32>
    %cst_35 = arith.constant dense<0.000000e+00> : vector<8x8xf32>
    %113 = tpu.matmul %110, %111, %cst_35 {dimension_numbers = #tpu.dot_dimension_numbers<[1], [1], [0], [0], [0, 0, 1, 0], [], []>} : vector<8x64xf32>, vector<8x64xf32>, vector<8x8xf32> -> vector<8x8xf32>
    %cst_36 = arith.constant 1.250000e-01 : f32
    %114 = vector.broadcast %cst_36 : f32 to vector<8x8xf32>
    %115 = arith.mulf %113, %114 : vector<8x8xf32>
    %cst_37 = arith.constant dense<0xFF800000> : vector<8xf32>
    %116 = vector.multi_reduction <maximumf>, %115, %cst_37 [1] : vector<8x8xf32> to vector<8xf32>
    %117 = vector.shape_cast %116 : vector<8xf32> to vector<8x1xf32>
    %118 = vector.broadcast %117 : vector<8x1xf32> to vector<8x8xf32>
    %119 = arith.subf %115, %118 : vector<8x8xf32>
    %120 = math.exp %119 : vector<8x8xf32>
    %cst_38 = arith.constant dense<0.000000e+00> : vector<8xf32>
    %121 = vector.multi_reduction <add>, %120, %cst_38 [1] : vector<8x8xf32> to vector<8xf32>
    %122 = vector.shape_cast %121 : vector<8xf32> to vector<8x1xf32>
    %123 = vector.broadcast %122 : vector<8x1xf32> to vector<8x8xf32>
    %124 = arith.divf %120, %123 : vector<8x8xf32>
    %cst_39 = arith.constant dense<0.000000e+00> : vector<8x64xf32>
    %125 = tpu.matmul %124, %112, %cst_39 {dimension_numbers = #tpu.dot_dimension_numbers<[1], [0], [0], [1], [0, 0, 1, 1], [], []>} : vector<8x8xf32>, vector<8x64xf32>, vector<8x64xf32> -> vector<8x64xf32>
    %126 = vector.extract_strided_slice %75 {offsets = [0, 192], sizes = [8, 64], strides = [1, 1]} : vector<8x256xf32> to vector<8x64xf32>
    %127 = vector.extract_strided_slice %76 {offsets = [0, 192], sizes = [8, 64], strides = [1, 1]} : vector<8x256xf32> to vector<8x64xf32>
    %128 = vector.extract_strided_slice %77 {offsets = [0, 192], sizes = [8, 64], strides = [1, 1]} : vector<8x256xf32> to vector<8x64xf32>
    %cst_40 = arith.constant dense<0.000000e+00> : vector<8x8xf32>
    %129 = tpu.matmul %126, %127, %cst_40 {dimension_numbers = #tpu.dot_dimension_numbers<[1], [1], [0], [0], [0, 0, 1, 0], [], []>} : vector<8x64xf32>, vector<8x64xf32>, vector<8x8xf32> -> vector<8x8xf32>
    %cst_41 = arith.constant 1.250000e-01 : f32
    %130 = vector.broadcast %cst_41 : f32 to vector<8x8xf32>
    %131 = arith.mulf %129, %130 : vector<8x8xf32>
    %cst_42 = arith.constant dense<0xFF800000> : vector<8xf32>
    %132 = vector.multi_reduction <maximumf>, %131, %cst_42 [1] : vector<8x8xf32> to vector<8xf32>
    %133 = vector.shape_cast %132 : vector<8xf32> to vector<8x1xf32>
    %134 = vector.broadcast %133 : vector<8x1xf32> to vector<8x8xf32>
    %135 = arith.subf %131, %134 : vector<8x8xf32>
    %136 = math.exp %135 : vector<8x8xf32>
    %cst_43 = arith.constant dense<0.000000e+00> : vector<8xf32>
    %137 = vector.multi_reduction <add>, %136, %cst_43 [1] : vector<8x8xf32> to vector<8xf32>
    %138 = vector.shape_cast %137 : vector<8xf32> to vector<8x1xf32>
    %139 = vector.broadcast %138 : vector<8x1xf32> to vector<8x8xf32>
    %140 = arith.divf %136, %139 : vector<8x8xf32>
    %cst_44 = arith.constant dense<0.000000e+00> : vector<8x64xf32>
    %141 = tpu.matmul %140, %128, %cst_44 {dimension_numbers = #tpu.dot_dimension_numbers<[1], [0], [0], [1], [0, 0, 1, 1], [], []>} : vector<8x8xf32>, vector<8x64xf32>, vector<8x64xf32> -> vector<8x64xf32>
    %142 = tpu.concatenate %93, %109, %125, %141 in 1 : vector<8x64xf32>, vector<8x64xf32>, vector<8x64xf32>, vector<8x64xf32> -> vector<8x256xf32>
    %143 = tpu.concatenate %74, %142 in 0 : vector<8x256xf32>, vector<8x256xf32> -> vector<16x256xf32>
    %144 = arith.truncf %143 : vector<16x256xf32> to vector<16x256xbf16>
    %c0_45 = arith.constant 0 : index
    %c0_46 = arith.constant 0 : index
    %145 = vector.load %arg4[%c0_45, %c0_46] : memref<256x256xbf16, #tpu.memory_space<vmem>>, vector<256x256xbf16>
    %cst_47 = arith.constant dense<0.000000e+00> : vector<16x256xf32>
    %146 = tpu.matmul %144, %145, %cst_47 {dimension_numbers = #tpu.dot_dimension_numbers<[1], [0], [0], [1], [0, 0, 1, 1], [], []>} : vector<16x256xbf16>, vector<256x256xbf16>, vector<16x256xf32> -> vector<16x256xf32>
    %c0_48 = arith.constant 0 : index
    %c0_49 = arith.constant 0 : index
    %147 = vector.load %arg5[%c0_48, %c0_49] : memref<1x256xf32, #tpu.memory_space<vmem>>, vector<1x256xf32>
    %148 = vector.broadcast %147 : vector<1x256xf32> to vector<16x256xf32>
    %149 = arith.addf %146, %148 : vector<16x256xf32>
    %150 = vector.extract_strided_slice %0 {offsets = [0, 0], sizes = [8, 256], strides = [1, 1]} : vector<16x256xf32> to vector<8x256xf32>
    %cst_50 = arith.constant dense<0.000000e+00> : vector<256xf32>
    %151 = vector.multi_reduction <add>, %150, %cst_50 [0] : vector<8x256xf32> to vector<256xf32>
    %152 = vector.shape_cast %151 : vector<256xf32> to vector<1x256xf32>
    %153 = vector.extract_strided_slice %149 {offsets = [0, 0], sizes = [8, 256], strides = [1, 1]} : vector<16x256xf32> to vector<8x256xf32>
    %cst_51 = arith.constant dense<0.000000e+00> : vector<256xf32>
    %154 = vector.multi_reduction <add>, %153, %cst_51 [0] : vector<8x256xf32> to vector<256xf32>
    %155 = vector.shape_cast %154 : vector<256xf32> to vector<1x256xf32>
    %156 = arith.addf %152, %155 : vector<1x256xf32>
    %cst_52 = arith.constant 1.250000e-01 : f32
    %157 = vector.broadcast %cst_52 : f32 to vector<1x256xf32>
    %158 = arith.mulf %156, %157 : vector<1x256xf32>
    %159 = vector.extract_strided_slice %0 {offsets = [8, 0], sizes = [8, 256], strides = [1, 1]} : vector<16x256xf32> to vector<8x256xf32>
    %cst_53 = arith.constant dense<0.000000e+00> : vector<256xf32>
    %160 = vector.multi_reduction <add>, %159, %cst_53 [0] : vector<8x256xf32> to vector<256xf32>
    %161 = vector.shape_cast %160 : vector<256xf32> to vector<1x256xf32>
    %162 = vector.extract_strided_slice %149 {offsets = [8, 0], sizes = [8, 256], strides = [1, 1]} : vector<16x256xf32> to vector<8x256xf32>
    %cst_54 = arith.constant dense<0.000000e+00> : vector<256xf32>
    %163 = vector.multi_reduction <add>, %162, %cst_54 [0] : vector<8x256xf32> to vector<256xf32>
    %164 = vector.shape_cast %163 : vector<256xf32> to vector<1x256xf32>
    %165 = arith.addf %161, %164 : vector<1x256xf32>
    %cst_55 = arith.constant 1.250000e-01 : f32
    %166 = vector.broadcast %cst_55 : f32 to vector<1x256xf32>
    %167 = arith.mulf %165, %166 : vector<1x256xf32>
    %168 = tpu.concatenate %158, %167 in 0 : vector<1x256xf32>, vector<1x256xf32> -> vector<2x256xf32>
    %169 = arith.truncf %168 : vector<2x256xf32> to vector<2x256xbf16>
    %c0_56 = arith.constant 0 : index
    %c0_57 = arith.constant 0 : index
    %170 = vector.load %arg6[%c0_56, %c0_57] : memref<256x128xbf16, #tpu.memory_space<vmem>>, vector<256x128xbf16>
    %cst_58 = arith.constant dense<0.000000e+00> : vector<2x128xf32>
    %171 = tpu.matmul %169, %170, %cst_58 {dimension_numbers = #tpu.dot_dimension_numbers<[1], [0], [0], [1], [0, 0, 1, 1], [], []>} : vector<2x256xbf16>, vector<256x128xbf16>, vector<2x128xf32> -> vector<2x128xf32>
    %c0_59 = arith.constant 0 : index
    %c0_60 = arith.constant 0 : index
    %172 = vector.load %arg7[%c0_59, %c0_60] : memref<1x128xf32, #tpu.memory_space<vmem>>, vector<1x128xf32>
    %173 = vector.broadcast %172 : vector<1x128xf32> to vector<2x128xf32>
    %174 = arith.addf %171, %173 : vector<2x128xf32>
    %cst_61 = arith.constant 0.000000e+00 : f32
    %175 = vector.broadcast %cst_61 : f32 to vector<2x128xf32>
    %176 = arith.maximumf %174, %175 : vector<2x128xf32>
    %177 = arith.truncf %176 : vector<2x128xf32> to vector<2x128xbf16>
    %c0_62 = arith.constant 0 : index
    %c0_63 = arith.constant 0 : index
    %178 = vector.load %arg8[%c0_62, %c0_63] : memref<128x64xbf16, #tpu.memory_space<vmem>>, vector<128x64xbf16>
    %cst_64 = arith.constant dense<0.000000e+00> : vector<2x64xf32>
    %179 = tpu.matmul %177, %178, %cst_64 {dimension_numbers = #tpu.dot_dimension_numbers<[1], [0], [0], [1], [0, 0, 1, 1], [], []>} : vector<2x128xbf16>, vector<128x64xbf16>, vector<2x64xf32> -> vector<2x64xf32>
    %c0_65 = arith.constant 0 : index
    %c0_66 = arith.constant 0 : index
    %180 = vector.load %arg9[%c0_65, %c0_66] : memref<1x64xf32, #tpu.memory_space<vmem>>, vector<1x64xf32>
    %181 = vector.broadcast %180 : vector<1x64xf32> to vector<2x64xf32>
    %182 = arith.addf %179, %181 : vector<2x64xf32>
    %cst_67 = arith.constant 0.000000e+00 : f32
    %183 = vector.broadcast %cst_67 : f32 to vector<2x64xf32>
    %184 = arith.maximumf %182, %183 : vector<2x64xf32>
    %185 = arith.truncf %184 : vector<2x64xf32> to vector<2x64xbf16>
    %c0_68 = arith.constant 0 : index
    %c0_69 = arith.constant 0 : index
    %186 = vector.load %arg10[%c0_68, %c0_69] : memref<64x32xbf16, #tpu.memory_space<vmem>>, vector<64x32xbf16>
    %cst_70 = arith.constant dense<0.000000e+00> : vector<2x32xf32>
    %187 = tpu.matmul %185, %186, %cst_70 {dimension_numbers = #tpu.dot_dimension_numbers<[1], [0], [0], [1], [0, 0, 1, 1], [], []>} : vector<2x64xbf16>, vector<64x32xbf16>, vector<2x32xf32> -> vector<2x32xf32>
    %c0_71 = arith.constant 0 : index
    %c0_72 = arith.constant 0 : index
    %188 = vector.load %arg11[%c0_71, %c0_72] : memref<1x32xf32, #tpu.memory_space<vmem>>, vector<1x32xf32>
    %189 = vector.broadcast %188 : vector<1x32xf32> to vector<2x32xf32>
    %190 = arith.addf %187, %189 : vector<2x32xf32>
    %cst_73 = arith.constant 0.999994993 : f32
    %191 = vector.broadcast %cst_73 : f32 to vector<2x32xf32>
    %192 = arith.mulf %190, %191 : vector<2x32xf32>
    %cst_74 = arith.constant 0.000000e+00 : f32
    %193 = vector.broadcast %cst_74 : f32 to vector<2x32xf32>
    %194 = arith.maximumf %192, %193 : vector<2x32xf32>
    %195 = arith.truncf %194 : vector<2x32xf32> to vector<2x32xbf16>
    %c0_75 = arith.constant 0 : index
    %c0_76 = arith.constant 0 : index
    %196 = vector.load %arg12[%c0_75, %c0_76] : memref<32x128xbf16, #tpu.memory_space<vmem>>, vector<32x128xbf16>
    %cst_77 = arith.constant dense<0.000000e+00> : vector<2x128xf32>
    %197 = tpu.matmul %195, %196, %cst_77 {dimension_numbers = #tpu.dot_dimension_numbers<[1], [0], [0], [1], [0, 0, 1, 1], [], []>} : vector<2x32xbf16>, vector<32x128xbf16>, vector<2x128xf32> -> vector<2x128xf32>
    %c0_78 = arith.constant 0 : index
    %c0_79 = arith.constant 0 : index
    %198 = vector.load %arg13[%c0_78, %c0_79] : memref<1x128xf32, #tpu.memory_space<vmem>>, vector<1x128xf32>
    %199 = vector.broadcast %198 : vector<1x128xf32> to vector<2x128xf32>
    %200 = arith.addf %197, %199 : vector<2x128xf32>
    %c0_80 = arith.constant 0 : index
    %c0_81 = arith.constant 0 : index
    %201 = vector.load %arg14[%c0_80, %c0_81] : memref<2x128xf32, #tpu.memory_space<vmem>>, vector<2x128xf32>
    tpu.vector_store %arg14[%c0_80, %c0_81], %200 {strides = array<i32>} : memref<2x128xf32, #tpu.memory_space<vmem>>, vector<2x128xf32>,
    return
  }
  func.func @transform_0(%arg0: i32) -> (i32, i32) {
    %c0_i32 = arith.constant 0 : i32
    %c0_i32_0 = arith.constant 0 : i32
    %c0_i32_1 = arith.constant 0 : i32
    return %c0_i32, %c0_i32_0 : i32, i32
  }
  func.func @transform_1(%arg0: i32) -> (i32, i32) {
    %c0_i32 = arith.constant 0 : i32
    %c0_i32_0 = arith.constant 0 : i32
    %c0_i32_1 = arith.constant 0 : i32
    return %c0_i32, %c0_i32_0 : i32, i32
  }
  func.func @transform_2(%arg0: i32) -> (i32, i32) {
    %c0_i32 = arith.constant 0 : i32
    %c0_i32_0 = arith.constant 0 : i32
    %c0_i32_1 = arith.constant 0 : i32
    return %c0_i32, %c0_i32_0 : i32, i32
  }
  func.func @transform_3(%arg0: i32) -> (i32, i32) {
    %c0_i32 = arith.constant 0 : i32
    %c0_i32_0 = arith.constant 0 : i32
    %c0_i32_1 = arith.constant 0 : i32
    return %c0_i32, %c0_i32_0 : i32, i32
  }
  func.func @transform_4(%arg0: i32) -> (i32, i32) {
    %c0_i32 = arith.constant 0 : i32
    %c0_i32_0 = arith.constant 0 : i32
    %c0_i32_1 = arith.constant 0 : i32
    return %c0_i32, %c0_i32_0 : i32, i32
  }
  func.func @transform_5(%arg0: i32) -> (i32, i32) {
    %c0_i32 = arith.constant 0 : i32
    %c0_i32_0 = arith.constant 0 : i32
    %c0_i32_1 = arith.constant 0 : i32
    return %c0_i32, %c0_i32_0 : i32, i32
  }
  func.func @transform_6(%arg0: i32) -> (i32, i32) {
    %c0_i32 = arith.constant 0 : i32
    %c0_i32_0 = arith.constant 0 : i32
    %c0_i32_1 = arith.constant 0 : i32
    return %c0_i32, %c0_i32_0 : i32, i32
  }
  func.func @transform_7(%arg0: i32) -> (i32, i32) {
    %c0_i32 = arith.constant 0 : i32
    %c0_i32_0 = arith.constant 0 : i32
    %c0_i32_1 = arith.constant 0 : i32
    return %c0_i32, %c0_i32_0 : i32, i32
  }
  func.func @transform_8(%arg0: i32) -> (i32, i32) {
    %c0_i32 = arith.constant 0 : i32
    %c0_i32_0 = arith.constant 0 : i32
    %c0_i32_1 = arith.constant 0 : i32
    return %c0_i32, %c0_i32_0 : i32, i32
  }
  func.func @transform_9(%arg0: i32) -> (i32, i32) {
    %c0_i32 = arith.constant 0 : i32
    %c0_i32_0 = arith.constant 0 : i32
    %c0_i32_1 = arith.constant 0 : i32
    return %c0_i32, %c0_i32_0 : i32, i32
  }
  func.func @transform_10(%arg0: i32) -> (i32, i32) {
    %c0_i32 = arith.constant 0 : i32
    %c0_i32_0 = arith.constant 0 : i32
    %c0_i32_1 = arith.constant 0 : i32
    return %c0_i32, %c0_i32_0 : i32, i32
  }
  func.func @transform_11(%arg0: i32) -> (i32, i32) {
    %c0_i32 = arith.constant 0 : i32
    %c0_i32_0 = arith.constant 0 : i32
    %c0_i32_1 = arith.constant 0 : i32
    return %c0_i32, %c0_i32_0 : i32, i32
  }
  func.func @transform_12(%arg0: i32) -> (i32, i32) {
    %c0_i32 = arith.constant 0 : i32
    %c0_i32_0 = arith.constant 0 : i32
    %c0_i32_1 = arith.constant 0 : i32
    return %c0_i32, %c0_i32_0 : i32, i32
  }
  func.func @transform_13(%arg0: i32) -> (i32, i32) {
    %c0_i32 = arith.constant 0 : i32
    %c0_i32_0 = arith.constant 0 : i32
    %c0_i32_1 = arith.constant 0 : i32
    return %c0_i32, %c0_i32_0 : i32, i32
  }
}

</mosaic_0001>

<llo_original>
// kernel: forward.10
$region0: #{forward.10}
  #allocation0 [shape = 'u32[]', space=smem, size = 0x4, offset = 0x4, fixed_abs, tag = 'smem constant byte address 0x4 - core index']
  #allocation1 [shape = 'u32[144,128]{1,0:T(1,128)}', space=vmem, size = 0x12000, scoped, tag = 'internal scratch']
  #allocation2 [shape = 'f32[2,128]{1,0:T(2,128)}', space=vmem, size = 0x400, scoped, tag = 'scratch operand']
  #allocation3 [shape = 'f32[2,128]{1,0:T(2,128)}', space=vmem, size = 0x400, scoped, tag = 'scratch operand']
  #allocation4 [shape = 'f32[2,128]{1,0:T(2,128)}', space=vmem, size = 0x400, scoped, tag = 'scratch operand']
  #allocation5 [shape = 'f32[2,128]{1,0:T(2,128)}', space=vmem, size = 0x400, scoped, tag = 'scratch operand']
  %s0 = inlined_call_operand.vmem [shape: f32[8,2,1024], index: 0, kind: input, shape index: {}, may-alias: {0,1}]
  %s1 = inlined_call_operand.vmem [shape: f32[8,2,1024], index: 1, kind: input, shape index: {}, may-alias: {0,1}]
  %s2 = inlined_call_operand.vmem [shape: bf16[128,512], index: 2, kind: input, shape index: {}]
  %s3 = inlined_call_operand.vmem [shape: bf16[128,512], index: 3, kind: input, shape index: {}]
  %s4 = inlined_call_operand.vmem [shape: f32[8,2,256], index: 4, kind: output, shape index: {}]
  %s5 = sld [smem:[#allocation0]]
  $region53: #{forward.10} parent=0
    _
  %s7 = ssub.s32 1, %s5
  %s8 = scalar_select 0, %s7, %s5
  loop: start=0, step=1, limit=10
  $region2: #{forward.10} parent=0 // loop_pre_header
    _
  $region3: #{forward.10} parent=0 // loop_header
    %s10 = sphi 0, %s14
    %p11 = scmp.ge.s32.totalorder %s10, 10
    %s20 = sphi 0, %s22
    %s23 = sphi 0, %s20
    %s24 = sphi 0, %s23
    %s40 = sphi 0, %s24
    %s48 = sphi 0, %s50
    %s51 = sphi 0, %s48
    %s52 = sphi 0, %s51
    %s68 = sphi 0, %s52
    %s72 = sphi 0, %s72
    %s74 = sphi 0, %s72
    %s75 = sphi 0, %s74
    %s89 = sphi 0, %s75
    %s93 = sphi 0, %s93
    %s95 = sphi 0, %s93
    %s96 = sphi 0, %s95
    %s110 = sphi 0, %s96
    %s114 = sphi 0, %s114
    %s116 = sphi 0, %s114
    %s117 = sphi 0, %s116
    %s131 = sphi 0, %s117
  $region4: #{forward.10} parent=0 // loop_header_branch
    %13 = sbr.rel (%p11) target = $region8
  $region5: #{forward.10} parent=0 // loop_body
    %s15 = ssub.s32 %s10, 1
    %s16 = ssub.s32 %s10, 2
    %s17 = sadd.s32 %s10, 1
    %s18 = ssub.s32 %s10, %s17
    %p19 = scmp.eq.s32.totalorder %s18, 0
    %s21 = sadd.s32 %s20, 1
    %s22 = scalar_select %p19, %s20, %s21
    %p25 = pneg %p19
    %p26 = scmp.eq.s32.totalorder %s10, 7
    %p27 = por %p25, %p26
    %p28 = scmp.ne.s32.totalorder %s20, %s23
    %p29 = scmp.eq.s32.totalorder %s10, 0
    %p30 = por %p28, %p29
    %p31 = scmp.ne.s32.totalorder %s20, %s23
    %p32 = scmp.eq.s32.totalorder %s15, 7
    %p33 = por %p31, %p32
    %p34 = scmp.ne.s32.totalorder %s23, %s24
    %p35 = scmp.eq.s32.totalorder %s15, 0
    %p36 = por %p34, %p35
    %p37 = scmp.ne.s32.totalorder %s23, %s24
    %p38 = scmp.eq.s32.totalorder %s16, 7
    %p39 = por %p37, %p38
    %p41 = scmp.ne.s32.totalorder %s24, %s40
    %p42 = scmp.eq.s32.totalorder %s16, 0
    %p43 = por %p41, %p42
    %s44 = ssub.s32 7, %s10
    %s45 = ssub.s32 7, %s17
    %s46 = ssub.s32 %s44, %s45
    %p47 = scmp.eq.s32.totalorder %s46, 0
    %s49 = sadd.s32 %s48, 1
    %s50 = scalar_select %p47, %s48, %s49
    %p53 = pneg %p47
    %p54 = scmp.eq.s32.totalorder %s10, 7
    %p55 = por %p53, %p54
    %p56 = scmp.ne.s32.totalorder %s48, %s51
    %p57 = scmp.eq.s32.totalorder %s10, 0
    %p58 = por %p56, %p57
    %p59 = scmp.ne.s32.totalorder %s48, %s51
    %p60 = scmp.eq.s32.totalorder %s15, 7
    %p61 = por %p59, %p60
    %p62 = scmp.ne.s32.totalorder %s51, %s52
    %p63 = scmp.eq.s32.totalorder %s15, 0
    %p64 = por %p62, %p63
    %p65 = scmp.ne.s32.totalorder %s51, %s52
    %p66 = scmp.eq.s32.totalorder %s16, 7
    %p67 = por %p65, %p66
    %p69 = scmp.ne.s32.totalorder %s52, %s68
    %p70 = scmp.eq.s32.totalorder %s16, 0
    %p71 = por %p69, %p70
    %s73 = sadd.s32 %s72, 1
    %p76 = scmp.eq.s32.totalorder %s10, 7
    %p77 = scmp.ne.s32.totalorder %s72, %s74
    %p78 = scmp.eq.s32.totalorder %s10, 0
    %p79 = por %p77, %p78
    %p80 = scmp.ne.s32.totalorder %s72, %s74
    %p81 = scmp.eq.s32.totalorder %s15, 7
    %p82 = por %p80, %p81
    %p83 = scmp.ne.s32.totalorder %s74, %s75
    %p84 = scmp.eq.s32.totalorder %s15, 0
    %p85 = por %p83, %p84
    %p86 = scmp.ne.s32.totalorder %s74, %s75
    %p87 = scmp.eq.s32.totalorder %s16, 7
    %p88 = por %p86, %p87
    %p90 = scmp.ne.s32.totalorder %s75, %s89
    %p91 = scmp.eq.s32.totalorder %s16, 0
    %p92 = por %p90, %p91
    %s94 = sadd.s32 %s93, 1
    %p97 = scmp.eq.s32.totalorder %s10, 7
    %p98 = scmp.ne.s32.totalorder %s93, %s95
    %p99 = scmp.eq.s32.totalorder %s10, 0
    %p100 = por %p98, %p99
    %p101 = scmp.ne.s32.totalorder %s93, %s95
    %p102 = scmp.eq.s32.totalorder %s15, 7
    %p103 = por %p101, %p102
    %p104 = scmp.ne.s32.totalorder %s95, %s96
    %p105 = scmp.eq.s32.totalorder %s15, 0
    %p106 = por %p104, %p105
    %p107 = scmp.ne.s32.totalorder %s95, %s96
    %p108 = scmp.eq.s32.totalorder %s16, 7
    %p109 = por %p107, %p108
    %p111 = scmp.ne.s32.totalorder %s96, %s110
    %p112 = scmp.eq.s32.totalorder %s16, 0
    %p113 = por %p111, %p112
    %s115 = sadd.s32 %s114, 1
    %p118 = scmp.eq.s32.totalorder %s10, 7
    %p119 = scmp.ne.s32.totalorder %s114, %s116
    %p120 = scmp.eq.s32.totalorder %s10, 0
    %p121 = por %p119, %p120
    %p122 = scmp.ne.s32.totalorder %s114, %s116
    %p123 = scmp.eq.s32.totalorder %s15, 7
    %p124 = por %p122, %p123
    %p125 = scmp.ne.s32.totalorder %s116, %s117
    %p126 = scmp.eq.s32.totalorder %s15, 0
    %p127 = por %p125, %p126
    %p128 = scmp.ne.s32.totalorder %s116, %s117
    %p129 = scmp.eq.s32.totalorder %s16, 7
    %p130 = por %p128, %p129
    %p132 = scmp.ne.s32.totalorder %s117, %s131
    %p133 = scmp.eq.s32.totalorder %s16, 0
    %p134 = por %p132, %p133
    %p135 = scmp.le.s32.totalorder 1, %s10
    %p136 = scmp.lt.s32.totalorder %s10, 9
    %p137 = pnand %p135, %p136
    %p138 = pneg %p137
    // Predicated region
    $region9: #{forward.10} parent=5 // pred_check
      _
    $region10: #{forward.10} parent=5 // pred_check_branch
      %140 = sbr.rel (%p137) target = $region12
    $region11: #{forward.10} parent=5 // pred_region
      %s141 = ssub.s32 %s10, 1
      // Predicated region
      $region13: #{forward.10} parent=11 // pred_check
        %p142 = pneg %p85
      $region14: #{forward.10} parent=11 // pred_check_branch
        %144 = sbr.rel (%p142) target = $region16
      $region15: #{forward.10} parent=11 // pred_region
        _
      $region16: #{forward.10} parent=11 // pred_fallthru
        _
      // Predicated region
      $region17: #{forward.10} parent=11 // pred_check
        %p145 = pneg %p106
      $region18: #{forward.10} parent=11 // pred_check_branch
        %147 = sbr.rel (%p145) target = $region20
      $region19: #{forward.10} parent=11 // pred_region
        _
      $region20: #{forward.10} parent=11 // pred_fallthru
        _
    $region12: #{forward.10} parent=5 // pred_fallthru
      _
    %p148 = scmp.lt.s32.totalorder %s10, 8
    // Predicated region
    $region21: #{forward.10} parent=5 // pred_check
      %p149 = pneg %p148
    $region22: #{forward.10} parent=5 // pred_check_branch
      %151 = sbr.rel (%p149) target = $region24
    $region23: #{forward.10} parent=5 // pred_region
      // Predicated region
      $region25: #{forward.10} parent=23 // pred_check
        %p152 = pneg %p30
      $region26: #{forward.10} parent=23 // pred_check_branch
        %154 = sbr.rel (%p152) target = $region28
      $region27: #{forward.10} parent=23 // pred_region
        %p155 = scmp.lt.s32.totalorder %s10, 7
        %s156 = scalar_select %p155, %s10, 7
        %s157 = smul.addr %s156, 8
        %s158 = smul.addr %s157, 2
        %s159 = scalar_lea.vmem %s0, %s158
      $region28: #{forward.10} parent=23 // pred_fallthru
        _
      // Predicated region
      $region29: #{forward.10} parent=23 // pred_check
        %p160 = pneg %p58
      $region30: #{forward.10} parent=23 // pred_check_branch
        %162 = sbr.rel (%p160) target = $region32
      $region31: #{forward.10} parent=23 // pred_region
        %s163 = ssub.s32 7, %s10
        %p164 = scmp.lt.s32.totalorder %s163, 7
        %s165 = scalar_select %p164, %s163, 7
        %s166 = smul.addr %s165, 8
        %s167 = smul.addr %s166, 2
        %s168 = scalar_lea.vmem %s1, %s167
        %s169 = ssub.s32 7, %s10
      $region32: #{forward.10} parent=23 // pred_fallthru
        _
    $region24: #{forward.10} parent=5 // pred_fallthru
      _
    %p170 = scmp.le.s32.totalorder 1, %s10
    %p171 = scmp.lt.s32.totalorder %s10, 9
    %p172 = pnand %p170, %p171
    %p173 = pneg %p172
    // Predicated region
    $region33: #{forward.10} parent=5 // pred_check
      _
    $region34: #{forward.10} parent=5 // pred_check_branch
      %175 = sbr.rel (%p172) target = $region36
    $region35: #{forward.10} parent=5 // pred_region
      %s176 = ssub.s32 %s10, 1
      %p177 = scmp.lt.s32.totalorder %s15, 7
      %s178 = scalar_select %p177, %s15, 7
      %s179 = smul.addr %s178, 8
      %s180 = smul.addr %s179, 2
      %s181 = scalar_lea.vmem %s0, %s180
      %p182 = pneg %p36
      %p183 = pneg %p33
      %s184 = ssub.s32 7, %s15
      %p185 = scmp.lt.s32.totalorder %s184, 7
      %s186 = scalar_select %p185, %s184, 7
      %s187 = smul.addr %s186, 8
      %s188 = smul.addr %s187, 2
      %s189 = scalar_lea.vmem %s1, %s188
      %p190 = pneg %p64
      %p191 = pneg %p61
      %p192 = pneg %p85
      %p193 = pneg %p82
      %p194 = pneg %p106
      %p195 = pneg %p103
      %p196 = pneg %p127
      %p197 = pneg %p124
      %p198 = scmp.lt.s32.totalorder %s15, 7
      %s199 = scalar_select %p198, %s15, 7
      %s200 = smul.addr %s199, 8
      %s201 = smul.addr %s200, 2
      %s202 = scalar_lea.vmem %s0, %s201
      %s203 = ssub.s32 7, %s15
      %p204 = scmp.lt.s32.totalorder %s203, 7
      %s205 = scalar_select %p204, %s203, 7
      %s206 = smul.addr %s205, 8
      %s207 = smul.addr %s206, 2
      %s208 = scalar_lea.vmem %s1, %s207
      %s209 = ssub.s32 7, %s15
      %p211 = scmp.eq.s32.totalorder %s15, 0
      // Predicated region
      $region37: #{forward.10} parent=35 // pred_check
        %p212 = pneg %p211
      $region38: #{forward.10} parent=35 // pred_check_branch
        %214 = sbr.rel (%p212) target = $region40
      $region39: #{forward.10} parent=35 // pred_region
        %215 = vst [vmem:[#allocation2] sm:$0x3] 0.0
        %216 = vst [vmem:[#allocation3] sm:$0x3] 0.0
        %217 = vst [vmem:[#allocation4] sm:$0x3] 0.0
        %218 = vst [vmem:[#allocation5] sm:$0x3] 0.0
      $region40: #{forward.10} parent=35 // pred_fallthru
        _
      %v219 = vld [vmem:[%s202] sm:$0xff]
      %v220 = vld [vmem:[%s208 + $0x8] sm:$0xff]
      %v221 = vld [vmem:[#allocation2] sm:$0x3]
      %v222 = vpack.c.bf16 %v221, %v221
      %v223 = vld [vmem:[%s2] sm:$0xff]
      %v224 = vld [vmem:[%s2 + $0x8] sm:$0xff]
      %v225 = vld [vmem:[%s2 + $0x10] sm:$0xff]
      %v226 = vld [vmem:[%s2 + $0x18] sm:$0xff]
      %v227 = vld [vmem:[%s2 + $0x20] sm:$0xff]
      %v228 = vld [vmem:[%s2 + $0x28] sm:$0xff]
      %v229 = vld [vmem:[%s2 + $0x30] sm:$0xff]
      %v230 = vld [vmem:[%s2 + $0x38] sm:$0xff]
      %v231 = vld [vmem:[%s2 + $0x40] sm:$0xff]
      %v232 = vld [vmem:[%s2 + $0x48] sm:$0xff]
      %v233 = vld [vmem:[%s2 + $0x50] sm:$0xff]
      %v234 = vld [vmem:[%s2 + $0x58] sm:$0xff]
      %v235 = vld [vmem:[%s2 + $0x60] sm:$0xff]
      %v236 = vld [vmem:[%s2 + $0x68] sm:$0xff]
      %v237 = vld [vmem:[%s2 + $0x70] sm:$0xff]
      %v238 = vld [vmem:[%s2 + $0x78] sm:$0xff]
      %v239 = vld [vmem:[%s2 + $0x80] sm:$0xff]
      %v240 = vld [vmem:[%s2 + $0x88] sm:$0xff]
      %v241 = vld [vmem:[%s2 + $0x90] sm:$0xff]
      %v242 = vld [vmem:[%s2 + $0x98] sm:$0xff]
      %v243 = vld [vmem:[%s2 + $0xa0] sm:$0xff]
      %v244 = vld [vmem:[%s2 + $0xa8] sm:$0xff]
      %v245 = vld [vmem:[%s2 + $0xb0] sm:$0xff]
      %v246 = vld [vmem:[%s2 + $0xb8] sm:$0xff]
      %v247 = vld [vmem:[%s2 + $0xc0] sm:$0xff]
      %v248 = vld [vmem:[%s2 + $0xc8] sm:$0xff]
      %v249 = vld [vmem:[%s2 + $0xd0] sm:$0xff]
      %v250 = vld [vmem:[%s2 + $0xd8] sm:$0xff]
      %v251 = vld [vmem:[%s2 + $0xe0] sm:$0xff]
      %v252 = vld [vmem:[%s2 + $0xe8] sm:$0xff]
      %v253 = vld [vmem:[%s2 + $0xf0] sm:$0xff]
      %v254 = vld [vmem:[%s2 + $0xf8] sm:$0xff]
      %v287 = vunpack.c.l.b16 %v223
      %v288 = vunpack.c.h.b16 %v223
      %v289 = vunpack.c.l.b16 %v224
      %v290 = vunpack.c.h.b16 %v224
      %v291 = vunpack.c.l.b16 %v225
      %v292 = vunpack.c.h.b16 %v225
      %v293 = vunpack.c.l.b16 %v226
      %v294 = vunpack.c.h.b16 %v226
      %v295 = vunpack.c.l.b16 %v227
      %v296 = vunpack.c.h.b16 %v227
      %v297 = vunpack.c.l.b16 %v228
      %v298 = vunpack.c.h.b16 %v228
      %v299 = vunpack.c.l.b16 %v229
      %v300 = vunpack.c.h.b16 %v229
      %v301 = vunpack.c.l.b16 %v230
      %v302 = vunpack.c.h.b16 %v230
      %v303 = vunpack.c.l.b16 %v231
      %v304 = vunpack.c.h.b16 %v231
      %v305 = vunpack.c.l.b16 %v232
      %v306 = vunpack.c.h.b16 %v232
      %v307 = vunpack.c.l.b16 %v233
      %v308 = vunpack.c.h.b16 %v233
      %v309 = vunpack.c.l.b16 %v234
      %v310 = vunpack.c.h.b16 %v234
      %v311 = vunpack.c.l.b16 %v235
      %v312 = vunpack.c.h.b16 %v235
      %v313 = vunpack.c.l.b16 %v236
      %v314 = vunpack.c.h.b16 %v236
      %v315 = vunpack.c.l.b16 %v237
      %v316 = vunpack.c.h.b16 %v237
      %v317 = vunpack.c.l.b16 %v238
      %v318 = vunpack.c.h.b16 %v238
      %v319 = vunpack.c.l.b16 %v239
      %v320 = vunpack.c.h.b16 %v239
      %v321 = vunpack.c.l.b16 %v240
      %v322 = vunpack.c.h.b16 %v240
      %v323 = vunpack.c.l.b16 %v241
      %v324 = vunpack.c.h.b16 %v241
      %v325 = vunpack.c.l.b16 %v242
      %v326 = vunpack.c.h.b16 %v242
      %v327 = vunpack.c.l.b16 %v243
      %v328 = vunpack.c.h.b16 %v243
      %v329 = vunpack.c.l.b16 %v244
      %v330 = vunpack.c.h.b16 %v244
      %v331 = vunpack.c.l.b16 %v245
      %v332 = vunpack.c.h.b16 %v245
      %v333 = vunpack.c.l.b16 %v246
      %v334 = vunpack.c.h.b16 %v246
      %v335 = vunpack.c.l.b16 %v247
      %v336 = vunpack.c.h.b16 %v247
      %v337 = vunpack.c.l.b16 %v248
      %v338 = vunpack.c.h.b16 %v248
      %v339 = vunpack.c.l.b16 %v249
      %v340 = vunpack.c.h.b16 %v249
      %v341 = vunpack.c.l.b16 %v250
      %v342 = vunpack.c.h.b16 %v250
      %v343 = vunpack.c.l.b16 %v251
      %v344 = vunpack.c.h.b16 %v251
      %v345 = vunpack.c.l.b16 %v252
      %v346 = vunpack.c.h.b16 %v252
      %v347 = vunpack.c.l.b16 %v253
      %v348 = vunpack.c.h.b16 %v253
      %v349 = vunpack.c.l.b16 %v254
      %v350 = vunpack.c.h.b16 %v254
      %v351 = vpack.c.b16 %v291, %v287
      %v352 = vpack.c.b16 %v292, %v288
      %v353 = vpack.c.b16 %v293, %v289
      %v354 = vpack.c.b16 %v294, %v290
      %v355 = vpack.c.b16 %v299, %v295
      %v356 = vpack.c.b16 %v300, %v296
      %v357 = vpack.c.b16 %v301, %v297
      %v358 = vpack.c.b16 %v302, %v298
      %v359 = vpack.c.b16 %v307, %v303
      %v360 = vpack.c.b16 %v308, %v304
      %v361 = vpack.c.b16 %v309, %v305
      %v362 = vpack.c.b16 %v310, %v306
      %v363 = vpack.c.b16 %v315, %v311
      %v364 = vpack.c.b16 %v316, %v312
      %v365 = vpack.c.b16 %v317, %v313
      %v366 = vpack.c.b16 %v318, %v314
      %v367 = vpack.c.b16 %v323, %v319
      %v368 = vpack.c.b16 %v324, %v320
      %v369 = vpack.c.b16 %v325, %v321
      %v370 = vpack.c.b16 %v326, %v322
      %v371 = vpack.c.b16 %v331, %v327
      %v372 = vpack.c.b16 %v332, %v328
      %v373 = vpack.c.b16 %v333, %v329
      %v374 = vpack.c.b16 %v334, %v330
      %v375 = vpack.c.b16 %v339, %v335
      %v376 = vpack.c.b16 %v340, %v336
      %v377 = vpack.c.b16 %v341, %v337
      %v378 = vpack.c.b16 %v342, %v338
      %v379 = vpack.c.b16 %v347, %v343
      %v380 = vpack.c.b16 %v348, %v344
      %v381 = vpack.c.b16 %v349, %v345
      %v382 = vpack.c.b16 %v350, %v346
      %415 = vmatprep.subr.bf16.mxu0 %v352
      %416 = vmatpush1.bf16.msra.mxu0 %v351
      %417 = vmatprep.subr.bf16.mxu0 %v356
      %418 = vmatpush1.bf16.msra.mxu0 %v355
      %419 = vmatprep.subr.bf16.mxu0 %v360
      %420 = vmatpush1.bf16.msra.mxu0 %v359
      %421 = vmatprep.subr.bf16.mxu0 %v364
      %422 = vmatpush1.bf16.msra.mxu0 %v363
      %423 = vmatprep.subr.bf16.mxu0 %v368
      %424 = vmatpush1.bf16.msra.mxu0 %v367
      %425 = vmatprep.subr.bf16.mxu0 %v372
      %426 = vmatpush1.bf16.msra.mxu0 %v371
      %427 = vmatprep.subr.bf16.mxu0 %v376
      %428 = vmatpush1.bf16.msra.mxu0 %v375
      %429 = vmatprep.subr.bf16.mxu0 %v380
      %430 = vmatpush1.bf16.msra.mxu0 %v379
      %431 = vmatprep.subr.bf16.mxu0 0
      %432 = vmatpush1.bf16.msra.mxu0 0
      %433 = vmatprep.subr.bf16.mxu0 0
      %434 = vmatpush1.bf16.msra.mxu0 0
      %435 = vmatprep.subr.bf16.mxu0 0
      %436 = vmatpush1.bf16.msra.mxu0 0
      %437 = vmatprep.subr.bf16.mxu0 0
      %438 = vmatpush1.bf16.msra.mxu0 0
      %439 = vmatprep.subr.bf16.mxu0 0
      %440 = vmatpush1.bf16.msra.mxu0 0
      %441 = vmatprep.subr.bf16.mxu0 0
      %442 = vmatpush1.bf16.msra.mxu0 0
      %443 = vmatprep.subr.bf16.mxu0 0
      %444 = vmatpush1.bf16.msra.mxu0 0
      %445 = vmatprep.subr.bf16.mxu0 0
      %446 = vmatpush1.bf16.msra.mxu0 0
      %447 = vmatprep.mubr.bf16.mxu0 0
      %448 = vmatmul.mubr.bf16.gmra.mrb[0].mxu0 %v222
      %v449 = vpop.f32.mrb[0].mxu0
      %v450 = vadd.f32 0.0, %v449
      %v451 = vpop.f32.mrb[0].mxu0
      %v452 = vadd.f32 0.0, %v451
      %v453 = vpop.f32.mrb[0].mxu0
      %v454 = vpop.f32.mrb[0].mxu0
      %455 = vdwg.mxu0
      %456 = vmatprep.subr.bf16.mxu0 %v354
      %457 = vmatpush1.bf16.msra.mxu0 %v353
      %458 = vmatprep.subr.bf16.mxu0 %v358
      %459 = vmatpush1.bf16.msra.mxu0 %v357
      %460 = vmatprep.subr.bf16.mxu0 %v362
      %461 = vmatpush1.bf16.msra.mxu0 %v361
      %462 = vmatprep.subr.bf16.mxu0 %v366
      %463 = vmatpush1.bf16.msra.mxu0 %v365
      %464 = vmatprep.subr.bf16.mxu0 %v370
      %465 = vmatpush1.bf16.msra.mxu0 %v369
      %466 = vmatprep.subr.bf16.mxu0 %v374
      %467 = vmatpush1.bf16.msra.mxu0 %v373
      %468 = vmatprep.subr.bf16.mxu0 %v378
      %469 = vmatpush1.bf16.msra.mxu0 %v377
      %470 = vmatprep.subr.bf16.mxu0 %v382
      %471 = vmatpush1.bf16.msra.mxu0 %v381
      %472 = vmatprep.subr.bf16.mxu0 0
      %473 = vmatpush1.bf16.msra.mxu0 0
      %474 = vmatprep.subr.bf16.mxu0 0
      %475 = vmatpush1.bf16.msra.mxu0 0
      %476 = vmatprep.subr.bf16.mxu0 0
      %477 = vmatpush1.bf16.msra.mxu0 0
      %478 = vmatprep.subr.bf16.mxu0 0
      %479 = vmatpush1.bf16.msra.mxu0 0
      %480 = vmatprep.subr.bf16.mxu0 0
      %481 = vmatpush1.bf16.msra.mxu0 0
      %482 = vmatprep.subr.bf16.mxu0 0
      %483 = vmatpush1.bf16.msra.mxu0 0
      %484 = vmatprep.subr.bf16.mxu0 0
      %485 = vmatpush1.bf16.msra.mxu0 0
      %486 = vmatprep.subr.bf16.mxu0 0
      %487 = vmatpush1.bf16.msra.mxu0 0
      %488 = vmatprep.mubr.bf16.mxu0 0
      %489 = vmatmul.mubr.bf16.gmra.mrb[0].mxu0 %v222
      %v490 = vpop.f32.mrb[0].mxu0
      %v491 = vadd.f32 0.0, %v490
      %v492 = vpop.f32.mrb[0].mxu0
      %v493 = vadd.f32 0.0, %v492
      %v494 = vpop.f32.mrb[0].mxu0
      %v495 = vpop.f32.mrb[0].mxu0
      %496 = vdwg.mxu0
      %v501 = vcombine.low %v450, %v452
      %v502 = vcombine.low %v491, %v493
      %v504 = vunpack.c.l.s4 1983009808
      %v505 = vunpack.c.0.s8 %v504
      %v506 = vlaneseq
      %v507 = vshrl.u32 %v506, 7
      %v508 = vsub.s32 %v505, %v507
      %v509 = vrot.slane %v501, %v508
      %v511 = vunpack.c.l.s4 1983009808
      %v512 = vunpack.c.0.s8 %v511
      %v513 = vlaneseq
      %v514 = vshrl.u32 %v513, 7
      %v515 = vsub.s32 %v512, %v514
      %v516 = vrot.slane %v502, %v515
      %v517 = vcombine.low %v509, %v516
      %v519 = vadd.f32 %v219, %v517
      %v520 = vld [vmem:[#allocation4] sm:$0x3]
      %v521 = vpack.c.bf16 %v520, %v520
      %v522 = vld [vmem:[%s3] sm:$0xff]
      %v523 = vld [vmem:[%s3 + $0x8] sm:$0xff]
      %v524 = vld [vmem:[%s3 + $0x10] sm:$0xff]
      %v525 = vld [vmem:[%s3 + $0x18] sm:$0xff]
      %v526 = vld [vmem:[%s3 + $0x20] sm:$0xff]
      %v527 = vld [vmem:[%s3 + $0x28] sm:$0xff]
      %v528 = vld [vmem:[%s3 + $0x30] sm:$0xff]
      %v529 = vld [vmem:[%s3 + $0x38] sm:$0xff]
      %v530 = vld [vmem:[%s3 + $0x40] sm:$0xff]
      %v531 = vld [vmem:[%s3 + $0x48] sm:$0xff]
      %v532 = vld [vmem:[%s3 + $0x50] sm:$0xff]
      %v533 = vld [vmem:[%s3 + $0x58] sm:$0xff]
      %v534 = vld [vmem:[%s3 + $0x60] sm:$0xff]
      %v535 = vld [vmem:[%s3 + $0x68] sm:$0xff]
      %v536 = vld [vmem:[%s3 + $0x70] sm:$0xff]
      %v537 = vld [vmem:[%s3 + $0x78] sm:$0xff]
      %v538 = vld [vmem:[%s3 + $0x80] sm:$0xff]
      %v539 = vld [vmem:[%s3 + $0x88] sm:$0xff]
      %v540 = vld [vmem:[%s3 + $0x90] sm:$0xff]
      %v541 = vld [vmem:[%s3 + $0x98] sm:$0xff]
      %v542 = vld [vmem:[%s3 + $0xa0] sm:$0xff]
      %v543 = vld [vmem:[%s3 + $0xa8] sm:$0xff]
      %v544 = vld [vmem:[%s3 + $0xb0] sm:$0xff]
      %v545 = vld [vmem:[%s3 + $0xb8] sm:$0xff]
      %v546 = vld [vmem:[%s3 + $0xc0] sm:$0xff]
      %v547 = vld [vmem:[%s3 + $0xc8] sm:$0xff]
      %v548 = vld [vmem:[%s3 + $0xd0] sm:$0xff]
      %v549 = vld [vmem:[%s3 + $0xd8] sm:$0xff]
      %v550 = vld [vmem:[%s3 + $0xe0] sm:$0xff]
      %v551 = vld [vmem:[%s3 + $0xe8] sm:$0xff]
      %v552 = vld [vmem:[%s3 + $0xf0] sm:$0xff]
      %v553 = vld [vmem:[%s3 + $0xf8] sm:$0xff]
      %v586 = vunpack.c.l.b16 %v522
      %v587 = vunpack.c.h.b16 %v522
      %v588 = vunpack.c.l.b16 %v523
      %v589 = vunpack.c.h.b16 %v523
      %v590 = vunpack.c.l.b16 %v524
      %v591 = vunpack.c.h.b16 %v524
      %v592 = vunpack.c.l.b16 %v525
      %v593 = vunpack.c.h.b16 %v525
      %v594 = vunpack.c.l.b16 %v526
      %v595 = vunpack.c.h.b16 %v526
      %v596 = vunpack.c.l.b16 %v527
      %v597 = vunpack.c.h.b16 %v527
      %v598 = vunpack.c.l.b16 %v528
      %v599 = vunpack.c.h.b16 %v528
      %v600 = vunpack.c.l.b16 %v529
      %v601 = vunpack.c.h.b16 %v529
      %v602 = vunpack.c.l.b16 %v530
      %v603 = vunpack.c.h.b16 %v530
      %v604 = vunpack.c.l.b16 %v531
      %v605 = vunpack.c.h.b16 %v531
      %v606 = vunpack.c.l.b16 %v532
      %v607 = vunpack.c.h.b16 %v532
      %v608 = vunpack.c.l.b16 %v533
      %v609 = vunpack.c.h.b16 %v533
      %v610 = vunpack.c.l.b16 %v534
      %v611 = vunpack.c.h.b16 %v534
      %v612 = vunpack.c.l.b16 %v535
      %v613 = vunpack.c.h.b16 %v535
      %v614 = vunpack.c.l.b16 %v536
      %v615 = vunpack.c.h.b16 %v536
      %v616 = vunpack.c.l.b16 %v537
      %v617 = vunpack.c.h.b16 %v537
      %v618 = vunpack.c.l.b16 %v538
      %v619 = vunpack.c.h.b16 %v538
      %v620 = vunpack.c.l.b16 %v539
      %v621 = vunpack.c.h.b16 %v539
      %v622 = vunpack.c.l.b16 %v540
      %v623 = vunpack.c.h.b16 %v540
      %v624 = vunpack.c.l.b16 %v541
      %v625 = vunpack.c.h.b16 %v541
      %v626 = vunpack.c.l.b16 %v542
      %v627 = vunpack.c.h.b16 %v542
      %v628 = vunpack.c.l.b16 %v543
      %v629 = vunpack.c.h.b16 %v543
      %v630 = vunpack.c.l.b16 %v544
      %v631 = vunpack.c.h.b16 %v544
      %v632 = vunpack.c.l.b16 %v545
      %v633 = vunpack.c.h.b16 %v545
      %v634 = vunpack.c.l.b16 %v546
      %v635 = vunpack.c.h.b16 %v546
      %v636 = vunpack.c.l.b16 %v547
      %v637 = vunpack.c.h.b16 %v547
      %v638 = vunpack.c.l.b16 %v548
      %v639 = vunpack.c.h.b16 %v548
      %v640 = vunpack.c.l.b16 %v549
      %v641 = vunpack.c.h.b16 %v549
      %v642 = vunpack.c.l.b16 %v550
      %v643 = vunpack.c.h.b16 %v550
      %v644 = vunpack.c.l.b16 %v551
      %v645 = vunpack.c.h.b16 %v551
      %v646 = vunpack.c.l.b16 %v552
      %v647 = vunpack.c.h.b16 %v552
      %v648 = vunpack.c.l.b16 %v553
      %v649 = vunpack.c.h.b16 %v553
      %v650 = vpack.c.b16 %v590, %v586
      %v651 = vpack.c.b16 %v591, %v587
      %v652 = vpack.c.b16 %v592, %v588
      %v653 = vpack.c.b16 %v593, %v589
      %v654 = vpack.c.b16 %v598, %v594
      %v655 = vpack.c.b16 %v599, %v595
      %v656 = vpack.c.b16 %v600, %v596
      %v657 = vpack.c.b16 %v601, %v597
      %v658 = vpack.c.b16 %v606, %v602
      %v659 = vpack.c.b16 %v607, %v603
      %v660 = vpack.c.b16 %v608, %v604
      %v661 = vpack.c.b16 %v609, %v605
      %v662 = vpack.c.b16 %v614, %v610
      %v663 = vpack.c.b16 %v615, %v611
      %v664 = vpack.c.b16 %v616, %v612
      %v665 = vpack.c.b16 %v617, %v613
      %v666 = vpack.c.b16 %v622, %v618
      %v667 = vpack.c.b16 %v623, %v619
      %v668 = vpack.c.b16 %v624, %v620
      %v669 = vpack.c.b16 %v625, %v621
      %v670 = vpack.c.b16 %v630, %v626
      %v671 = vpack.c.b16 %v631, %v627
      %v672 = vpack.c.b16 %v632, %v628
      %v673 = vpack.c.b16 %v633, %v629
      %v674 = vpack.c.b16 %v638, %v634
      %v675 = vpack.c.b16 %v639, %v635
      %v676 = vpack.c.b16 %v640, %v636
      %v677 = vpack.c.b16 %v641, %v637
      %v678 = vpack.c.b16 %v646, %v642
      %v679 = vpack.c.b16 %v647, %v643
      %v680 = vpack.c.b16 %v648, %v644
      %v681 = vpack.c.b16 %v649, %v645
      %714 = vmatprep.subr.bf16.mxu0 %v651
      %715 = vmatpush1.bf16.msra.mxu0 %v650
      %716 = vmatprep.subr.bf16.mxu0 %v655
      %717 = vmatpush1.bf16.msra.mxu0 %v654
      %718 = vmatprep.subr.bf16.mxu0 %v659
      %719 = vmatpush1.bf16.msra.mxu0 %v658
      %720 = vmatprep.subr.bf16.mxu0 %v663
      %721 = vmatpush1.bf16.msra.mxu0 %v662
      %722 = vmatprep.subr.bf16.mxu0 %v667
      %723 = vmatpush1.bf16.msra.mxu0 %v666
      %724 = vmatprep.subr.bf16.mxu0 %v671
      %725 = vmatpush1.bf16.msra.mxu0 %v670
      %726 = vmatprep.subr.bf16.mxu0 %v675
      %727 = vmatpush1.bf16.msra.mxu0 %v674
      %728 = vmatprep.subr.bf16.mxu0 %v679
      %729 = vmatpush1.bf16.msra.mxu0 %v678
      %730 = vmatprep.subr.bf16.mxu0 0
      %731 = vmatpush1.bf16.msra.mxu0 0
      %732 = vmatprep.subr.bf16.mxu0 0
      %733 = vmatpush1.bf16.msra.mxu0 0
      %734 = vmatprep.subr.bf16.mxu0 0
      %735 = vmatpush1.bf16.msra.mxu0 0
      %736 = vmatprep.subr.bf16.mxu0 0
      %737 = vmatpush1.bf16.msra.mxu0 0
      %738 = vmatprep.subr.bf16.mxu0 0
      %739 = vmatpush1.bf16.msra.mxu0 0
      %740 = vmatprep.subr.bf16.mxu0 0
      %741 = vmatpush1.bf16.msra.mxu0 0
      %742 = vmatprep.subr.bf16.mxu0 0
      %743 = vmatpush1.bf16.msra.mxu0 0
      %744 = vmatprep.subr.bf16.mxu0 0
      %745 = vmatpush1.bf16.msra.mxu0 0
      %746 = vmatprep.mubr.bf16.mxu0 0
      %747 = vmatmul.mubr.bf16.gmra.mrb[0].mxu0 %v521
      %v748 = vpop.f32.mrb[0].mxu0
      %v749 = vadd.f32 0.0, %v748
      %v750 = vpop.f32.mrb[0].mxu0
      %v751 = vadd.f32 0.0, %v750
      %v752 = vpop.f32.mrb[0].mxu0
      %v753 = vpop.f32.mrb[0].mxu0
      %754 = vdwg.mxu0
      %755 = vmatprep.subr.bf16.mxu0 %v653
      %756 = vmatpush1.bf16.msra.mxu0 %v652
      %757 = vmatprep.subr.bf16.mxu0 %v657
      %758 = vmatpush1.bf16.msra.mxu0 %v656
      %759 = vmatprep.subr.bf16.mxu0 %v661
      %760 = vmatpush1.bf16.msra.mxu0 %v660
      %761 = vmatprep.subr.bf16.mxu0 %v665
      %762 = vmatpush1.bf16.msra.mxu0 %v664
      %763 = vmatprep.subr.bf16.mxu0 %v669
      %764 = vmatpush1.bf16.msra.mxu0 %v668
      %765 = vmatprep.subr.bf16.mxu0 %v673
      %766 = vmatpush1.bf16.msra.mxu0 %v672
      %767 = vmatprep.subr.bf16.mxu0 %v677
      %768 = vmatpush1.bf16.msra.mxu0 %v676
      %769 = vmatprep.subr.bf16.mxu0 %v681
      %770 = vmatpush1.bf16.msra.mxu0 %v680
      %771 = vmatprep.subr.bf16.mxu0 0
      %772 = vmatpush1.bf16.msra.mxu0 0
      %773 = vmatprep.subr.bf16.mxu0 0
      %774 = vmatpush1.bf16.msra.mxu0 0
      %775 = vmatprep.subr.bf16.mxu0 0
      %776 = vmatpush1.bf16.msra.mxu0 0
      %777 = vmatprep.subr.bf16.mxu0 0
      %778 = vmatpush1.bf16.msra.mxu0 0
      %779 = vmatprep.subr.bf16.mxu0 0
      %780 = vmatpush1.bf16.msra.mxu0 0
      %781 = vmatprep.subr.bf16.mxu0 0
      %782 = vmatpush1.bf16.msra.mxu0 0
      %783 = vmatprep.subr.bf16.mxu0 0
      %784 = vmatpush1.bf16.msra.mxu0 0
      %785 = vmatprep.subr.bf16.mxu0 0
      %786 = vmatpush1.bf16.msra.mxu0 0
      %787 = vmatprep.mubr.bf16.mxu0 0
      %788 = vmatmul.mubr.bf16.gmra.mrb[0].mxu0 %v521
      %v789 = vpop.f32.mrb[0].mxu0
      %v790 = vadd.f32 0.0, %v789
      %v791 = vpop.f32.mrb[0].mxu0
      %v792 = vadd.f32 0.0, %v791
      %v793 = vpop.f32.mrb[0].mxu0
      %v794 = vpop.f32.mrb[0].mxu0
      %795 = vdwg.mxu0
      %v800 = vcombine.low %v749, %v751
      %v801 = vcombine.low %v790, %v792
      %v803 = vunpack.c.l.s4 1983009808
      %v804 = vunpack.c.0.s8 %v803
      %v805 = vlaneseq
      %v806 = vshrl.u32 %v805, 7
      %v807 = vsub.s32 %v804, %v806
      %v808 = vrot.slane %v800, %v807
      %v810 = vunpack.c.l.s4 1983009808
      %v811 = vunpack.c.0.s8 %v810
      %v812 = vlaneseq
      %v813 = vshrl.u32 %v812, 7
      %v814 = vsub.s32 %v811, %v813
      %v815 = vrot.slane %v801, %v814
      %v816 = vcombine.low %v808, %v815
      %v818 = vadd.f32 %v220, %v816
      %v819 = vld [vmem:[#allocation3] sm:$0x3]
      %v820 = vxor.u32 %v519, 2147483648
      %v821 = vmul.f32 %v820, 1.442695
      %v822 = vpow.pop %v821
      %v823 = vadd.f32 %v822, 1.0
      %v824 = vrcp.pop %v823
      %v825 = vmul.f32 1.0, %v824
      %v827 = vrot.slane %v519, 2
      %v829 = vxor.u32 %v827, 2147483648
      %v830 = vmul.f32 %v829, 1.442695
      %v831 = vpow.pop %v830
      %v832 = vadd.f32 %v831, 1.0
      %v833 = vrcp.pop %v832
      %v834 = vmul.f32 1.0, %v833
      %v835 = vrot.slane %v519, 4
      %v837 = vtanh.pop %v835
      %v838 = vrot.slane %v519, 6
      %v840 = vxor.u32 %v838, 2147483648
      %v841 = vmul.f32 %v840, 1.442695
      %v842 = vpow.pop %v841
      %v843 = vadd.f32 %v842, 1.0
      %v844 = vrcp.pop %v843
      %v845 = vmul.f32 1.0, %v844
      %v846 = vmul.f32 %v834, %v819
      %v847 = vmul.f32 %v825, %v837
      %v848 = vadd.f32 %v846, %v847
      %v849 = vtanh.pop %v848
      %v850 = vmul.f32 %v845, %v849
      %v851 = vld [vmem:[#allocation5] sm:$0x3]
      %v852 = vxor.u32 %v818, 2147483648
      %v853 = vmul.f32 %v852, 1.442695
      %v854 = vpow.pop %v853
      %v855 = vadd.f32 %v854, 1.0
      %v856 = vrcp.pop %v855
      %v857 = vmul.f32 1.0, %v856
      %v859 = vrot.slane %v818, 2
      %v861 = vxor.u32 %v859, 2147483648
      %v862 = vmul.f32 %v861, 1.442695
      %v863 = vpow.pop %v862
      %v864 = vadd.f32 %v863, 1.0
      %v865 = vrcp.pop %v864
      %v866 = vmul.f32 1.0, %v865
      %v867 = vrot.slane %v818, 4
      %v869 = vtanh.pop %v867
      %v870 = vrot.slane %v818, 6
      %v872 = vxor.u32 %v870, 2147483648
      %v873 = vmul.f32 %v872, 1.442695
      %v874 = vpow.pop %v873
      %v875 = vadd.f32 %v874, 1.0
      %v876 = vrcp.pop %v875
      %v877 = vmul.f32 1.0, %v876
      %v878 = vmul.f32 %v866, %v851
      %v879 = vmul.f32 %v857, %v869
      %v880 = vadd.f32 %v878, %v879
      %v881 = vtanh.pop %v880
      %v882 = vmul.f32 %v877, %v881
      %883 = vst [vmem:[#allocation2] sm:$0x3] %v850
      %884 = vst [vmem:[#allocation3] sm:$0x3] %v848
      %885 = vst [vmem:[#allocation4] sm:$0x3] %v882
      %886 = vst [vmem:[#allocation5] sm:$0x3] %v880
      %s887 = smul.u32 %s15, 2
      %s888 = smul.addr %s887, 2
      %s889 = scalar_lea.vmem %s4, %s888
      %890 = vst [vmem:[%s889] sm:$0x3] %v850
      %s891 = ssub.s32 7, %s15
      %s892 = smul.u32 %s891, 2
      %s893 = smul.addr %s892, 2
      %s894 = scalar_lea.vmem %s4, %s893
      %895 = vst [vmem:[%s894 + $0x2] sm:$0x3] %v882
      // Predicated region
      $region41: #{forward.10} parent=35 // pred_check
        %p896 = pneg %p124
      $region42: #{forward.10} parent=35 // pred_check_branch
        %898 = sbr.rel (%p896) target = $region44
      $region43: #{forward.10} parent=35 // pred_region
        _
      $region44: #{forward.10} parent=35 // pred_fallthru
        _
      // Predicated region
      $region45: #{forward.10} parent=35 // pred_check
        %p899 = pneg %p124
      $region46: #{forward.10} parent=35 // pred_check_branch
        %901 = sbr.rel (%p899) target = $region48
      $region47: #{forward.10} parent=35 // pred_region
        _
      $region48: #{forward.10} parent=35 // pred_fallthru
        _
    $region36: #{forward.10} parent=5 // pred_fallthru
      _
    %p902 = scmp.le.s32.totalorder 2, %s10
    // Predicated region
    $region49: #{forward.10} parent=5 // pred_check
      %p903 = pneg %p902
    $region50: #{forward.10} parent=5 // pred_check_branch
      %905 = sbr.rel (%p903) target = $region52
    $region51: #{forward.10} parent=5 // pred_region
      %s906 = ssub.s32 %s10, 2
    $region52: #{forward.10} parent=5 // pred_fallthru
      _
  $region6: #{forward.10} parent=0 // loop_footer
    %s14 = sadd.s32 1, %s10
  $region7: #{forward.10} parent=0 // loop_footer_branch
    %9 = sbr.rel target = $region3
  $region8: #{forward.10} parent=0 // loop_exit
    _

// kernel: forward.8
$region0: #{forward.8}
  #allocation0 [shape = 'u32[]', space=smem, size = 0x4, offset = 0x4, fixed_abs, tag = 'smem constant byte address 0x4 - core index']
  #allocation1 [shape = 'u32[144,128]{1,0:T(1,128)}', space=vmem, size = 0x12000, scoped, tag = 'internal scratch']
  #allocation2 [shape = 'f32[2,128]{1,0:T(2,128)}', space=vmem, size = 0x400, scoped, tag = 'scratch operand']
  #allocation3 [shape = 'f32[2,128]{1,0:T(2,128)}', space=vmem, size = 0x400, scoped, tag = 'scratch operand']
  #allocation4 [shape = 'f32[2,128]{1,0:T(2,128)}', space=vmem, size = 0x400, scoped, tag = 'scratch operand']
  #allocation5 [shape = 'f32[2,128]{1,0:T(2,128)}', space=vmem, size = 0x400, scoped, tag = 'scratch operand']
  %s0 = inlined_call_operand.vmem [shape: f32[8,2,1024], index: 0, kind: input, shape index: {}, may-alias: {0,1}]
  %s1 = inlined_call_operand.vmem [shape: f32[8,2,1024], index: 1, kind: input, shape index: {}, may-alias: {0,1}]
  %s2 = inlined_call_operand.hbm [shape: bf16[128,512], index: 2, kind: input, shape index: {}]
  %s3 = inlined_call_operand.vmem [shape: bf16[128,512], index: 3, kind: input, shape index: {}]
  %s4 = inlined_call_operand.vmem [shape: f32[8,2,256], index: 4, kind: output, shape index: {}]
  %s5 = sld [smem:[#allocation0]]
  $region57: #{forward.8} parent=0
    _
  %s7 = ssub.s32 1, %s5
  %s8 = scalar_select 0, %s7, %s5
  $region1: #{forward.8} parent=0
    #allocation6 [shape = 'u8[131072]{0}', space=vmem, size = 0x20000, scoped, tag = 'input window, operand 2, single buffered']
    #allocation7 [shape = 's32[2]{0}', space=sflag, size = 0x8, scoped, tag = 'scoped memory for forward.8']
    %9 = vsyncpa [#allocation7], 0
    loop: start=0, step=1, limit=10
    $region2: #{forward.8} parent=1 // loop_pre_header
      _
    $region3: #{forward.8} parent=1 // loop_header
      %s11 = sphi 0, %s15
      %p12 = scmp.ge.s32.totalorder %s11, 10
      %s21 = sphi 0, %s23
      %s24 = sphi 0, %s21
      %s25 = sphi 0, %s24
      %s41 = sphi 0, %s25
      %s49 = sphi 0, %s51
      %s52 = sphi 0, %s49
      %s53 = sphi 0, %s52
      %s69 = sphi 0, %s53
      %s73 = sphi 0, %s73
      %s75 = sphi 0, %s73
      %s76 = sphi 0, %s75
      %s90 = sphi 0, %s76
      %s94 = sphi 0, %s94
      %s96 = sphi 0, %s94
      %s97 = sphi 0, %s96
      %s111 = sphi 0, %s97
      %s115 = sphi 0, %s115
      %s117 = sphi 0, %s115
      %s118 = sphi 0, %s117
      %s132 = sphi 0, %s118
    $region4: #{forward.8} parent=1 // loop_header_branch
      %14 = sbr.rel (%p12) target = $region8
    $region5: #{forward.8} parent=1 // loop_body
      %s16 = ssub.s32 %s11, 1
      %s17 = ssub.s32 %s11, 2
      %s18 = sadd.s32 %s11, 1
      %s19 = ssub.s32 %s11, %s18
      %p20 = scmp.eq.s32.totalorder %s19, 0
      %s22 = sadd.s32 %s21, 1
      %s23 = scalar_select %p20, %s21, %s22
      %p26 = pneg %p20
      %p27 = scmp.eq.s32.totalorder %s11, 7
      %p28 = por %p26, %p27
      %p29 = scmp.ne.s32.totalorder %s21, %s24
      %p30 = scmp.eq.s32.totalorder %s11, 0
      %p31 = por %p29, %p30
      %p32 = scmp.ne.s32.totalorder %s21, %s24
      %p33 = scmp.eq.s32.totalorder %s16, 7
      %p34 = por %p32, %p33
      %p35 = scmp.ne.s32.totalorder %s24, %s25
      %p36 = scmp.eq.s32.totalorder %s16, 0
      %p37 = por %p35, %p36
      %p38 = scmp.ne.s32.totalorder %s24, %s25
      %p39 = scmp.eq.s32.totalorder %s17, 7
      %p40 = por %p38, %p39
      %p42 = scmp.ne.s32.totalorder %s25, %s41
      %p43 = scmp.eq.s32.totalorder %s17, 0
      %p44 = por %p42, %p43
      %s45 = ssub.s32 7, %s11
      %s46 = ssub.s32 7, %s18
      %s47 = ssub.s32 %s45, %s46
      %p48 = scmp.eq.s32.totalorder %s47, 0
      %s50 = sadd.s32 %s49, 1
      %s51 = scalar_select %p48, %s49, %s50
      %p54 = pneg %p48
      %p55 = scmp.eq.s32.totalorder %s11, 7
      %p56 = por %p54, %p55
      %p57 = scmp.ne.s32.totalorder %s49, %s52
      %p58 = scmp.eq.s32.totalorder %s11, 0
      %p59 = por %p57, %p58
      %p60 = scmp.ne.s32.totalorder %s49, %s52
      %p61 = scmp.eq.s32.totalorder %s16, 7
      %p62 = por %p60, %p61
      %p63 = scmp.ne.s32.totalorder %s52, %s53
      %p64 = scmp.eq.s32.totalorder %s16, 0
      %p65 = por %p63, %p64
      %p66 = scmp.ne.s32.totalorder %s52, %s53
      %p67 = scmp.eq.s32.totalorder %s17, 7
      %p68 = por %p66, %p67
      %p70 = scmp.ne.s32.totalorder %s53, %s69
      %p71 = scmp.eq.s32.totalorder %s17, 0
      %p72 = por %p70, %p71
      %s74 = sadd.s32 %s73, 1
      %p77 = scmp.eq.s32.totalorder %s11, 7
      %p78 = scmp.ne.s32.totalorder %s73, %s75
      %p79 = scmp.eq.s32.totalorder %s11, 0
      %p80 = por %p78, %p79
      %p81 = scmp.ne.s32.totalorder %s73, %s75
      %p82 = scmp.eq.s32.totalorder %s16, 7
      %p83 = por %p81, %p82
      %p84 = scmp.ne.s32.totalorder %s75, %s76
      %p85 = scmp.eq.s32.totalorder %s16, 0
      %p86 = por %p84, %p85
      %p87 = scmp.ne.s32.totalorder %s75, %s76
      %p88 = scmp.eq.s32.totalorder %s17, 7
      %p89 = por %p87, %p88
      %p91 = scmp.ne.s32.totalorder %s76, %s90
      %p92 = scmp.eq.s32.totalorder %s17, 0
      %p93 = por %p91, %p92
      %s95 = sadd.s32 %s94, 1
      %p98 = scmp.eq.s32.totalorder %s11, 7
      %p99 = scmp.ne.s32.totalorder %s94, %s96
      %p100 = scmp.eq.s32.totalorder %s11, 0
      %p101 = por %p99, %p100
      %p102 = scmp.ne.s32.totalorder %s94, %s96
      %p103 = scmp.eq.s32.totalorder %s16, 7
      %p104 = por %p102, %p103
      %p105 = scmp.ne.s32.totalorder %s96, %s97
      %p106 = scmp.eq.s32.totalorder %s16, 0
      %p107 = por %p105, %p106
      %p108 = scmp.ne.s32.totalorder %s96, %s97
      %p109 = scmp.eq.s32.totalorder %s17, 7
      %p110 = por %p108, %p109
      %p112 = scmp.ne.s32.totalorder %s97, %s111
      %p113 = scmp.eq.s32.totalorder %s17, 0
      %p114 = por %p112, %p113
      %s116 = sadd.s32 %s115, 1
      %p119 = scmp.eq.s32.totalorder %s11, 7
      %p120 = scmp.ne.s32.totalorder %s115, %s117
      %p121 = scmp.eq.s32.totalorder %s11, 0
      %p122 = por %p120, %p121
      %p123 = scmp.ne.s32.totalorder %s115, %s117
      %p124 = scmp.eq.s32.totalorder %s16, 7
      %p125 = por %p123, %p124
      %p126 = scmp.ne.s32.totalorder %s117, %s118
      %p127 = scmp.eq.s32.totalorder %s16, 0
      %p128 = por %p126, %p127
      %p129 = scmp.ne.s32.totalorder %s117, %s118
      %p130 = scmp.eq.s32.totalorder %s17, 7
      %p131 = por %p129, %p130
      %p133 = scmp.ne.s32.totalorder %s118, %s132
      %p134 = scmp.eq.s32.totalorder %s17, 0
      %p135 = por %p133, %p134
      %p136 = scmp.le.s32.totalorder 1, %s11
      %p137 = scmp.lt.s32.totalorder %s11, 9
      %p138 = pnand %p136, %p137
      %p139 = pneg %p138
      // Predicated region
      $region9: #{forward.8} parent=5 // pred_check
        _
      $region10: #{forward.8} parent=5 // pred_check_branch
        %141 = sbr.rel (%p138) target = $region12
      $region11: #{forward.8} parent=5 // pred_region
        %s142 = ssub.s32 %s11, 1
        // Predicated region
        $region13: #{forward.8} parent=11 // pred_check
          %p143 = pneg %p86
        $region14: #{forward.8} parent=11 // pred_check_branch
          %145 = sbr.rel (%p143) target = $region16
        $region15: #{forward.8} parent=11 // pred_region
          %s147 = ssub.s32 4096, 4096
          %148 = vsyncadd [#allocation7], %s147
          %s149 = sshll.u32 [#allocation6], 4
          %s150 = int_to_ptr.vmem [resolvable:$true] %s149
          %155 = dma.hbm_to_vmem [thread:$0]  %s2, 4096, %s150, [#allocation7], 256, 256, 16
        $region16: #{forward.8} parent=11 // pred_fallthru
          _
        // Predicated region
        $region17: #{forward.8} parent=11 // pred_check
          %p156 = pneg %p107
        $region18: #{forward.8} parent=11 // pred_check_branch
          %158 = sbr.rel (%p156) target = $region20
        $region19: #{forward.8} parent=11 // pred_region
          _
        $region20: #{forward.8} parent=11 // pred_fallthru
          _
      $region12: #{forward.8} parent=5 // pred_fallthru
        _
      %p159 = scmp.lt.s32.totalorder %s11, 8
      // Predicated region
      $region21: #{forward.8} parent=5 // pred_check
        %p160 = pneg %p159
      $region22: #{forward.8} parent=5 // pred_check_branch
        %162 = sbr.rel (%p160) target = $region24
      $region23: #{forward.8} parent=5 // pred_region
        // Predicated region
        $region25: #{forward.8} parent=23 // pred_check
          %p163 = pneg %p31
        $region26: #{forward.8} parent=23 // pred_check_branch
          %165 = sbr.rel (%p163) target = $region28
        $region27: #{forward.8} parent=23 // pred_region
          %p166 = scmp.lt.s32.totalorder %s11, 7
          %s167 = scalar_select %p166, %s11, 7
          %s168 = smul.addr %s167, 8
          %s169 = smul.addr %s168, 2
          %s170 = scalar_lea.vmem %s0, %s169
        $region28: #{forward.8} parent=23 // pred_fallthru
          _
        // Predicated region
        $region29: #{forward.8} parent=23 // pred_check
          %p171 = pneg %p59
        $region30: #{forward.8} parent=23 // pred_check_branch
          %173 = sbr.rel (%p171) target = $region32
        $region31: #{forward.8} parent=23 // pred_region
          %s174 = ssub.s32 7, %s11
          %p175 = scmp.lt.s32.totalorder %s174, 7
          %s176 = scalar_select %p175, %s174, 7
          %s177 = smul.addr %s176, 8
          %s178 = smul.addr %s177, 2
          %s179 = scalar_lea.vmem %s1, %s178
          %s180 = ssub.s32 7, %s11
        $region32: #{forward.8} parent=23 // pred_fallthru
          _
      $region24: #{forward.8} parent=5 // pred_fallthru
        _
      %p181 = scmp.le.s32.totalorder 1, %s11
      %p182 = scmp.lt.s32.totalorder %s11, 9
      %p183 = pnand %p181, %p182
      %p184 = pneg %p183
      // Predicated region
      $region33: #{forward.8} parent=5 // pred_check
        _
      $region34: #{forward.8} parent=5 // pred_check_branch
        %186 = sbr.rel (%p183) target = $region36
      $region35: #{forward.8} parent=5 // pred_region
        %s187 = ssub.s32 %s11, 1
        // Predicated region
        $region37: #{forward.8} parent=35 // pred_check
          %p188 = pneg %p86
        $region38: #{forward.8} parent=35 // pred_check_branch
          %190 = sbr.rel (%p188) target = $region40
        $region39: #{forward.8} parent=35 // pred_region
          %191 = dma.done [#allocation7], 4096
        $region40: #{forward.8} parent=35 // pred_fallthru
          _
        %p192 = scmp.lt.s32.totalorder %s16, 7
        %s193 = scalar_select %p192, %s16, 7
        %s194 = smul.addr %s193, 8
        %s195 = smul.addr %s194, 2
        %s196 = scalar_lea.vmem %s0, %s195
        %p197 = pneg %p37
        %p198 = pneg %p34
        %s199 = ssub.s32 7, %s16
        %p200 = scmp.lt.s32.totalorder %s199, 7
        %s201 = scalar_select %p200, %s199, 7
        %s202 = smul.addr %s201, 8
        %s203 = smul.addr %s202, 2
        %s204 = scalar_lea.vmem %s1, %s203
        %p205 = pneg %p65
        %p206 = pneg %p62
        %p207 = pneg %p86
        %p208 = pneg %p83
        %p209 = pneg %p107
        %p210 = pneg %p104
        %p211 = pneg %p128
        %p212 = pneg %p125
        %p213 = scmp.lt.s32.totalorder %s16, 7
        %s214 = scalar_select %p213, %s16, 7
        %s215 = smul.addr %s214, 8
        %s216 = smul.addr %s215, 2
        %s217 = scalar_lea.vmem %s0, %s216
        %s218 = ssub.s32 7, %s16
        %p219 = scmp.lt.s32.totalorder %s218, 7
        %s220 = scalar_select %p219, %s218, 7
        %s221 = smul.addr %s220, 8
        %s222 = smul.addr %s221, 2
        %s223 = scalar_lea.vmem %s1, %s222
        %s224 = ssub.s32 7, %s16
        %p226 = scmp.eq.s32.totalorder %s16, 0
        // Predicated region
        $region41: #{forward.8} parent=35 // pred_check
          %p227 = pneg %p226
        $region42: #{forward.8} parent=35 // pred_check_branch
          %229 = sbr.rel (%p227) target = $region44
        $region43: #{forward.8} parent=35 // pred_region
          %230 = vst [vmem:[#allocation2] sm:$0x3] 0.0
          %231 = vst [vmem:[#allocation3] sm:$0x3] 0.0
          %232 = vst [vmem:[#allocation4] sm:$0x3] 0.0
          %233 = vst [vmem:[#allocation5] sm:$0x3] 0.0
        $region44: #{forward.8} parent=35 // pred_fallthru
          _
        %v234 = vld [vmem:[%s217] sm:$0xff]
        %v235 = vld [vmem:[%s223 + $0x8] sm:$0xff]
        %v236 = vld [vmem:[#allocation2] sm:$0x3]
        %v237 = vpack.c.bf16 %v236, %v236
        %v238 = vld [vmem:[#allocation6] sm:$0xff]
        %v239 = vld [vmem:[#allocation6 + $0x8] sm:$0xff]
        %v240 = vld [vmem:[#allocation6 + $0x10] sm:$0xff]
        %v241 = vld [vmem:[#allocation6 + $0x18] sm:$0xff]
        %v242 = vld [vmem:[#allocation6 + $0x20] sm:$0xff]
        %v243 = vld [vmem:[#allocation6 + $0x28] sm:$0xff]
        %v244 = vld [vmem:[#allocation6 + $0x30] sm:$0xff]
        %v245 = vld [vmem:[#allocation6 + $0x38] sm:$0xff]
        %v246 = vld [vmem:[#allocation6 + $0x40] sm:$0xff]
        %v247 = vld [vmem:[#allocation6 + $0x48] sm:$0xff]
        %v248 = vld [vmem:[#allocation6 + $0x50] sm:$0xff]
        %v249 = vld [vmem:[#allocation6 + $0x58] sm:$0xff]
        %v250 = vld [vmem:[#allocation6 + $0x60] sm:$0xff]
        %v251 = vld [vmem:[#allocation6 + $0x68] sm:$0xff]
        %v252 = vld [vmem:[#allocation6 + $0x70] sm:$0xff]
        %v253 = vld [vmem:[#allocation6 + $0x78] sm:$0xff]
        %v254 = vld [vmem:[#allocation6 + $0x80] sm:$0xff]
        %v255 = vld [vmem:[#allocation6 + $0x88] sm:$0xff]
        %v256 = vld [vmem:[#allocation6 + $0x90] sm:$0xff]
        %v257 = vld [vmem:[#allocation6 + $0x98] sm:$0xff]
        %v258 = vld [vmem:[#allocation6 + $0xa0] sm:$0xff]
        %v259 = vld [vmem:[#allocation6 + $0xa8] sm:$0xff]
        %v260 = vld [vmem:[#allocation6 + $0xb0] sm:$0xff]
        %v261 = vld [vmem:[#allocation6 + $0xb8] sm:$0xff]
        %v262 = vld [vmem:[#allocation6 + $0xc0] sm:$0xff]
        %v263 = vld [vmem:[#allocation6 + $0xc8] sm:$0xff]
        %v264 = vld [vmem:[#allocation6 + $0xd0] sm:$0xff]
        %v265 = vld [vmem:[#allocation6 + $0xd8] sm:$0xff]
        %v266 = vld [vmem:[#allocation6 + $0xe0] sm:$0xff]
        %v267 = vld [vmem:[#allocation6 + $0xe8] sm:$0xff]
        %v268 = vld [vmem:[#allocation6 + $0xf0] sm:$0xff]
        %v269 = vld [vmem:[#allocation6 + $0xf8] sm:$0xff]
        %v302 = vunpack.c.l.b16 %v238
        %v303 = vunpack.c.h.b16 %v238
        %v304 = vunpack.c.l.b16 %v239
        %v305 = vunpack.c.h.b16 %v239
        %v306 = vunpack.c.l.b16 %v240
        %v307 = vunpack.c.h.b16 %v240
        %v308 = vunpack.c.l.b16 %v241
        %v309 = vunpack.c.h.b16 %v241
        %v310 = vunpack.c.l.b16 %v242
        %v311 = vunpack.c.h.b16 %v242
        %v312 = vunpack.c.l.b16 %v243
        %v313 = vunpack.c.h.b16 %v243
        %v314 = vunpack.c.l.b16 %v244
        %v315 = vunpack.c.h.b16 %v244
        %v316 = vunpack.c.l.b16 %v245
        %v317 = vunpack.c.h.b16 %v245
        %v318 = vunpack.c.l.b16 %v246
        %v319 = vunpack.c.h.b16 %v246
        %v320 = vunpack.c.l.b16 %v247
        %v321 = vunpack.c.h.b16 %v247
        %v322 = vunpack.c.l.b16 %v248
        %v323 = vunpack.c.h.b16 %v248
        %v324 = vunpack.c.l.b16 %v249
        %v325 = vunpack.c.h.b16 %v249
        %v326 = vunpack.c.l.b16 %v250
        %v327 = vunpack.c.h.b16 %v250
        %v328 = vunpack.c.l.b16 %v251
        %v329 = vunpack.c.h.b16 %v251
        %v330 = vunpack.c.l.b16 %v252
        %v331 = vunpack.c.h.b16 %v252
        %v332 = vunpack.c.l.b16 %v253
        %v333 = vunpack.c.h.b16 %v253
        %v334 = vunpack.c.l.b16 %v254
        %v335 = vunpack.c.h.b16 %v254
        %v336 = vunpack.c.l.b16 %v255
        %v337 = vunpack.c.h.b16 %v255
        %v338 = vunpack.c.l.b16 %v256
        %v339 = vunpack.c.h.b16 %v256
        %v340 = vunpack.c.l.b16 %v257
        %v341 = vunpack.c.h.b16 %v257
        %v342 = vunpack.c.l.b16 %v258
        %v343 = vunpack.c.h.b16 %v258
        %v344 = vunpack.c.l.b16 %v259
        %v345 = vunpack.c.h.b16 %v259
        %v346 = vunpack.c.l.b16 %v260
        %v347 = vunpack.c.h.b16 %v260
        %v348 = vunpack.c.l.b16 %v261
        %v349 = vunpack.c.h.b16 %v261
        %v350 = vunpack.c.l.b16 %v262
        %v351 = vunpack.c.h.b16 %v262
        %v352 = vunpack.c.l.b16 %v263
        %v353 = vunpack.c.h.b16 %v263
        %v354 = vunpack.c.l.b16 %v264
        %v355 = vunpack.c.h.b16 %v264
        %v356 = vunpack.c.l.b16 %v265
        %v357 = vunpack.c.h.b16 %v265
        %v358 = vunpack.c.l.b16 %v266
        %v359 = vunpack.c.h.b16 %v266
        %v360 = vunpack.c.l.b16 %v267
        %v361 = vunpack.c.h.b16 %v267
        %v362 = vunpack.c.l.b16 %v268
        %v363 = vunpack.c.h.b16 %v268
        %v364 = vunpack.c.l.b16 %v269
        %v365 = vunpack.c.h.b16 %v269
        %v366 = vpack.c.b16 %v306, %v302
        %v367 = vpack.c.b16 %v307, %v303
        %v368 = vpack.c.b16 %v308, %v304
        %v369 = vpack.c.b16 %v309, %v305
        %v370 = vpack.c.b16 %v314, %v310
        %v371 = vpack.c.b16 %v315, %v311
        %v372 = vpack.c.b16 %v316, %v312
        %v373 = vpack.c.b16 %v317, %v313
        %v374 = vpack.c.b16 %v322, %v318
        %v375 = vpack.c.b16 %v323, %v319
        %v376 = vpack.c.b16 %v324, %v320
        %v377 = vpack.c.b16 %v325, %v321
        %v378 = vpack.c.b16 %v330, %v326
        %v379 = vpack.c.b16 %v331, %v327
        %v380 = vpack.c.b16 %v332, %v328
        %v381 = vpack.c.b16 %v333, %v329
        %v382 = vpack.c.b16 %v338, %v334
        %v383 = vpack.c.b16 %v339, %v335
        %v384 = vpack.c.b16 %v340, %v336
        %v385 = vpack.c.b16 %v341, %v337
        %v386 = vpack.c.b16 %v346, %v342
        %v387 = vpack.c.b16 %v347, %v343
        %v388 = vpack.c.b16 %v348, %v344
        %v389 = vpack.c.b16 %v349, %v345
        %v390 = vpack.c.b16 %v354, %v350
        %v391 = vpack.c.b16 %v355, %v351
        %v392 = vpack.c.b16 %v356, %v352
        %v393 = vpack.c.b16 %v357, %v353
        %v394 = vpack.c.b16 %v362, %v358
        %v395 = vpack.c.b16 %v363, %v359
        %v396 = vpack.c.b16 %v364, %v360
        %v397 = vpack.c.b16 %v365, %v361
        %430 = vmatprep.subr.bf16.mxu0 %v367
        %431 = vmatpush1.bf16.msra.mxu0 %v366
        %432 = vmatprep.subr.bf16.mxu0 %v371
        %433 = vmatpush1.bf16.msra.mxu0 %v370
        %434 = vmatprep.subr.bf16.mxu0 %v375
        %435 = vmatpush1.bf16.msra.mxu0 %v374
        %436 = vmatprep.subr.bf16.mxu0 %v379
        %437 = vmatpush1.bf16.msra.mxu0 %v378
        %438 = vmatprep.subr.bf16.mxu0 %v383
        %439 = vmatpush1.bf16.msra.mxu0 %v382
        %440 = vmatprep.subr.bf16.mxu0 %v387
        %441 = vmatpush1.bf16.msra.mxu0 %v386
        %442 = vmatprep.subr.bf16.mxu0 %v391
        %443 = vmatpush1.bf16.msra.mxu0 %v390
        %444 = vmatprep.subr.bf16.mxu0 %v395
        %445 = vmatpush1.bf16.msra.mxu0 %v394
        %446 = vmatprep.subr.bf16.mxu0 0
        %447 = vmatpush1.bf16.msra.mxu0 0
        %448 = vmatprep.subr.bf16.mxu0 0
        %449 = vmatpush1.bf16.msra.mxu0 0
        %450 = vmatprep.subr.bf16.mxu0 0
        %451 = vmatpush1.bf16.msra.mxu0 0
        %452 = vmatprep.subr.bf16.mxu0 0
        %453 = vmatpush1.bf16.msra.mxu0 0
        %454 = vmatprep.subr.bf16.mxu0 0
        %455 = vmatpush1.bf16.msra.mxu0 0
        %456 = vmatprep.subr.bf16.mxu0 0
        %457 = vmatpush1.bf16.msra.mxu0 0
        %458 = vmatprep.subr.bf16.mxu0 0
        %459 = vmatpush1.bf16.msra.mxu0 0
        %460 = vmatprep.subr.bf16.mxu0 0
        %461 = vmatpush1.bf16.msra.mxu0 0
        %462 = vmatprep.mubr.bf16.mxu0 0
        %463 = vmatmul.mubr.bf16.gmra.mrb[0].mxu0 %v237
        %v464 = vpop.f32.mrb[0].mxu0
        %v465 = vadd.f32 0.0, %v464
        %v466 = vpop.f32.mrb[0].mxu0
        %v467 = vadd.f32 0.0, %v466
        %v468 = vpop.f32.mrb[0].mxu0
        %v469 = vpop.f32.mrb[0].mxu0
        %470 = vdwg.mxu0
        %471 = vmatprep.subr.bf16.mxu0 %v369
        %472 = vmatpush1.bf16.msra.mxu0 %v368
        %473 = vmatprep.subr.bf16.mxu0 %v373
        %474 = vmatpush1.bf16.msra.mxu0 %v372
        %475 = vmatprep.subr.bf16.mxu0 %v377
        %476 = vmatpush1.bf16.msra.mxu0 %v376
        %477 = vmatprep.subr.bf16.mxu0 %v381
        %478 = vmatpush1.bf16.msra.mxu0 %v380
        %479 = vmatprep.subr.bf16.mxu0 %v385
        %480 = vmatpush1.bf16.msra.mxu0 %v384
        %481 = vmatprep.subr.bf16.mxu0 %v389
        %482 = vmatpush1.bf16.msra.mxu0 %v388
        %483 = vmatprep.subr.bf16.mxu0 %v393
        %484 = vmatpush1.bf16.msra.mxu0 %v392
        %485 = vmatprep.subr.bf16.mxu0 %v397
        %486 = vmatpush1.bf16.msra.mxu0 %v396
        %487 = vmatprep.subr.bf16.mxu0 0
        %488 = vmatpush1.bf16.msra.mxu0 0
        %489 = vmatprep.subr.bf16.mxu0 0
        %490 = vmatpush1.bf16.msra.mxu0 0
        %491 = vmatprep.subr.bf16.mxu0 0
        %492 = vmatpush1.bf16.msra.mxu0 0
        %493 = vmatprep.subr.bf16.mxu0 0
        %494 = vmatpush1.bf16.msra.mxu0 0
        %495 = vmatprep.subr.bf16.mxu0 0
        %496 = vmatpush1.bf16.msra.mxu0 0
        %497 = vmatprep.subr.bf16.mxu0 0
        %498 = vmatpush1.bf16.msra.mxu0 0
        %499 = vmatprep.subr.bf16.mxu0 0
        %500 = vmatpush1.bf16.msra.mxu0 0
        %501 = vmatprep.subr.bf16.mxu0 0
        %502 = vmatpush1.bf16.msra.mxu0 0
        %503 = vmatprep.mubr.bf16.mxu0 0
        %504 = vmatmul.mubr.bf16.gmra.mrb[0].mxu0 %v237
        %v505 = vpop.f32.mrb[0].mxu0
        %v506 = vadd.f32 0.0, %v505
        %v507 = vpop.f32.mrb[0].mxu0
        %v508 = vadd.f32 0.0, %v507
        %v509 = vpop.f32.mrb[0].mxu0
        %v510 = vpop.f32.mrb[0].mxu0
        %511 = vdwg.mxu0
        %v516 = vcombine.low %v465, %v467
        %v517 = vcombine.low %v506, %v508
        %v519 = vunpack.c.l.s4 1983009808
        %v520 = vunpack.c.0.s8 %v519
        %v521 = vlaneseq
        %v522 = vshrl.u32 %v521, 7
        %v523 = vsub.s32 %v520, %v522
        %v524 = vrot.slane %v516, %v523
        %v526 = vunpack.c.l.s4 1983009808
        %v527 = vunpack.c.0.s8 %v526
        %v528 = vlaneseq
        %v529 = vshrl.u32 %v528, 7
        %v530 = vsub.s32 %v527, %v529
        %v531 = vrot.slane %v517, %v530
        %v532 = vcombine.low %v524, %v531
        %v534 = vadd.f32 %v234, %v532
        %v535 = vld [vmem:[#allocation4] sm:$0x3]
        %v536 = vpack.c.bf16 %v535, %v535
        %v537 = vld [vmem:[%s3] sm:$0xff]
        %v538 = vld [vmem:[%s3 + $0x8] sm:$0xff]
        %v539 = vld [vmem:[%s3 + $0x10] sm:$0xff]
        %v540 = vld [vmem:[%s3 + $0x18] sm:$0xff]
        %v541 = vld [vmem:[%s3 + $0x20] sm:$0xff]
        %v542 = vld [vmem:[%s3 + $0x28] sm:$0xff]
        %v543 = vld [vmem:[%s3 + $0x30] sm:$0xff]
        %v544 = vld [vmem:[%s3 + $0x38] sm:$0xff]
        %v545 = vld [vmem:[%s3 + $0x40] sm:$0xff]
        %v546 = vld [vmem:[%s3 + $0x48] sm:$0xff]
        %v547 = vld [vmem:[%s3 + $0x50] sm:$0xff]
        %v548 = vld [vmem:[%s3 + $0x58] sm:$0xff]
        %v549 = vld [vmem:[%s3 + $0x60] sm:$0xff]
        %v550 = vld [vmem:[%s3 + $0x68] sm:$0xff]
        %v551 = vld [vmem:[%s3 + $0x70] sm:$0xff]
        %v552 = vld [vmem:[%s3 + $0x78] sm:$0xff]
        %v553 = vld [vmem:[%s3 + $0x80] sm:$0xff]
        %v554 = vld [vmem:[%s3 + $0x88] sm:$0xff]
        %v555 = vld [vmem:[%s3 + $0x90] sm:$0xff]
        %v556 = vld [vmem:[%s3 + $0x98] sm:$0xff]
        %v557 = vld [vmem:[%s3 + $0xa0] sm:$0xff]
        %v558 = vld [vmem:[%s3 + $0xa8] sm:$0xff]
        %v559 = vld [vmem:[%s3 + $0xb0] sm:$0xff]
        %v560 = vld [vmem:[%s3 + $0xb8] sm:$0xff]
        %v561 = vld [vmem:[%s3 + $0xc0] sm:$0xff]
        %v562 = vld [vmem:[%s3 + $0xc8] sm:$0xff]
        %v563 = vld [vmem:[%s3 + $0xd0] sm:$0xff]
        %v564 = vld [vmem:[%s3 + $0xd8] sm:$0xff]
        %v565 = vld [vmem:[%s3 + $0xe0] sm:$0xff]
        %v566 = vld [vmem:[%s3 + $0xe8] sm:$0xff]
        %v567 = vld [vmem:[%s3 + $0xf0] sm:$0xff]
        %v568 = vld [vmem:[%s3 + $0xf8] sm:$0xff]
        %v601 = vunpack.c.l.b16 %v537
        %v602 = vunpack.c.h.b16 %v537
        %v603 = vunpack.c.l.b16 %v538
        %v604 = vunpack.c.h.b16 %v538
        %v605 = vunpack.c.l.b16 %v539
        %v606 = vunpack.c.h.b16 %v539
        %v607 = vunpack.c.l.b16 %v540
        %v608 = vunpack.c.h.b16 %v540
        %v609 = vunpack.c.l.b16 %v541
        %v610 = vunpack.c.h.b16 %v541
        %v611 = vunpack.c.l.b16 %v542
        %v612 = vunpack.c.h.b16 %v542
        %v613 = vunpack.c.l.b16 %v543
        %v614 = vunpack.c.h.b16 %v543
        %v615 = vunpack.c.l.b16 %v544
        %v616 = vunpack.c.h.b16 %v544
        %v617 = vunpack.c.l.b16 %v545
        %v618 = vunpack.c.h.b16 %v545
        %v619 = vunpack.c.l.b16 %v546
        %v620 = vunpack.c.h.b16 %v546
        %v621 = vunpack.c.l.b16 %v547
        %v622 = vunpack.c.h.b16 %v547
        %v623 = vunpack.c.l.b16 %v548
        %v624 = vunpack.c.h.b16 %v548
        %v625 = vunpack.c.l.b16 %v549
        %v626 = vunpack.c.h.b16 %v549
        %v627 = vunpack.c.l.b16 %v550
        %v628 = vunpack.c.h.b16 %v550
        %v629 = vunpack.c.l.b16 %v551
        %v630 = vunpack.c.h.b16 %v551
        %v631 = vunpack.c.l.b16 %v552
        %v632 = vunpack.c.h.b16 %v552
        %v633 = vunpack.c.l.b16 %v553
        %v634 = vunpack.c.h.b16 %v553
        %v635 = vunpack.c.l.b16 %v554
        %v636 = vunpack.c.h.b16 %v554
        %v637 = vunpack.c.l.b16 %v555
        %v638 = vunpack.c.h.b16 %v555
        %v639 = vunpack.c.l.b16 %v556
        %v640 = vunpack.c.h.b16 %v556
        %v641 = vunpack.c.l.b16 %v557
        %v642 = vunpack.c.h.b16 %v557
        %v643 = vunpack.c.l.b16 %v558
        %v644 = vunpack.c.h.b16 %v558
        %v645 = vunpack.c.l.b16 %v559
        %v646 = vunpack.c.h.b16 %v559
        %v647 = vunpack.c.l.b16 %v560
        %v648 = vunpack.c.h.b16 %v560
        %v649 = vunpack.c.l.b16 %v561
        %v650 = vunpack.c.h.b16 %v561
        %v651 = vunpack.c.l.b16 %v562
        %v652 = vunpack.c.h.b16 %v562
        %v653 = vunpack.c.l.b16 %v563
        %v654 = vunpack.c.h.b16 %v563
        %v655 = vunpack.c.l.b16 %v564
        %v656 = vunpack.c.h.b16 %v564
        %v657 = vunpack.c.l.b16 %v565
        %v658 = vunpack.c.h.b16 %v565
        %v659 = vunpack.c.l.b16 %v566
        %v660 = vunpack.c.h.b16 %v566
        %v661 = vunpack.c.l.b16 %v567
        %v662 = vunpack.c.h.b16 %v567
        %v663 = vunpack.c.l.b16 %v568
        %v664 = vunpack.c.h.b16 %v568
        %v665 = vpack.c.b16 %v605, %v601
        %v666 = vpack.c.b16 %v606, %v602
        %v667 = vpack.c.b16 %v607, %v603
        %v668 = vpack.c.b16 %v608, %v604
        %v669 = vpack.c.b16 %v613, %v609
        %v670 = vpack.c.b16 %v614, %v610
        %v671 = vpack.c.b16 %v615, %v611
        %v672 = vpack.c.b16 %v616, %v612
        %v673 = vpack.c.b16 %v621, %v617
        %v674 = vpack.c.b16 %v622, %v618
        %v675 = vpack.c.b16 %v623, %v619
        %v676 = vpack.c.b16 %v624, %v620
        %v677 = vpack.c.b16 %v629, %v625
        %v678 = vpack.c.b16 %v630, %v626
        %v679 = vpack.c.b16 %v631, %v627
        %v680 = vpack.c.b16 %v632, %v628
        %v681 = vpack.c.b16 %v637, %v633
        %v682 = vpack.c.b16 %v638, %v634
        %v683 = vpack.c.b16 %v639, %v635
        %v684 = vpack.c.b16 %v640, %v636
        %v685 = vpack.c.b16 %v645, %v641
        %v686 = vpack.c.b16 %v646, %v642
        %v687 = vpack.c.b16 %v647, %v643
        %v688 = vpack.c.b16 %v648, %v644
        %v689 = vpack.c.b16 %v653, %v649
        %v690 = vpack.c.b16 %v654, %v650
        %v691 = vpack.c.b16 %v655, %v651
        %v692 = vpack.c.b16 %v656, %v652
        %v693 = vpack.c.b16 %v661, %v657
        %v694 = vpack.c.b16 %v662, %v658
        %v695 = vpack.c.b16 %v663, %v659
        %v696 = vpack.c.b16 %v664, %v660
        %729 = vmatprep.subr.bf16.mxu0 %v666
        %730 = vmatpush1.bf16.msra.mxu0 %v665
        %731 = vmatprep.subr.bf16.mxu0 %v670
        %732 = vmatpush1.bf16.msra.mxu0 %v669
        %733 = vmatprep.subr.bf16.mxu0 %v674
        %734 = vmatpush1.bf16.msra.mxu0 %v673
        %735 = vmatprep.subr.bf16.mxu0 %v678
        %736 = vmatpush1.bf16.msra.mxu0 %v677
        %737 = vmatprep.subr.bf16.mxu0 %v682
        %738 = vmatpush1.bf16.msra.mxu0 %v681
        %739 = vmatprep.subr.bf16.mxu0 %v686
        %740 = vmatpush1.bf16.msra.mxu0 %v685
        %741 = vmatprep.subr.bf16.mxu0 %v690
        %742 = vmatpush1.bf16.msra.mxu0 %v689
        %743 = vmatprep.subr.bf16.mxu0 %v694
        %744 = vmatpush1.bf16.msra.mxu0 %v693
        %745 = vmatprep.subr.bf16.mxu0 0
        %746 = vmatpush1.bf16.msra.mxu0 0
        %747 = vmatprep.subr.bf16.mxu0 0
        %748 = vmatpush1.bf16.msra.mxu0 0
        %749 = vmatprep.subr.bf16.mxu0 0
        %750 = vmatpush1.bf16.msra.mxu0 0
        %751 = vmatprep.subr.bf16.mxu0 0
        %752 = vmatpush1.bf16.msra.mxu0 0
        %753 = vmatprep.subr.bf16.mxu0 0
        %754 = vmatpush1.bf16.msra.mxu0 0
        %755 = vmatprep.subr.bf16.mxu0 0
        %756 = vmatpush1.bf16.msra.mxu0 0
        %757 = vmatprep.subr.bf16.mxu0 0
        %758 = vmatpush1.bf16.msra.mxu0 0
        %759 = vmatprep.subr.bf16.mxu0 0
        %760 = vmatpush1.bf16.msra.mxu0 0
        %761 = vmatprep.mubr.bf16.mxu0 0
        %762 = vmatmul.mubr.bf16.gmra.mrb[0].mxu0 %v536
        %v763 = vpop.f32.mrb[0].mxu0
        %v764 = vadd.f32 0.0, %v763
        %v765 = vpop.f32.mrb[0].mxu0
        %v766 = vadd.f32 0.0, %v765
        %v767 = vpop.f32.mrb[0].mxu0
        %v768 = vpop.f32.mrb[0].mxu0
        %769 = vdwg.mxu0
        %770 = vmatprep.subr.bf16.mxu0 %v668
        %771 = vmatpush1.bf16.msra.mxu0 %v667
        %772 = vmatprep.subr.bf16.mxu0 %v672
        %773 = vmatpush1.bf16.msra.mxu0 %v671
        %774 = vmatprep.subr.bf16.mxu0 %v676
        %775 = vmatpush1.bf16.msra.mxu0 %v675
        %776 = vmatprep.subr.bf16.mxu0 %v680
        %777 = vmatpush1.bf16.msra.mxu0 %v679
        %778 = vmatprep.subr.bf16.mxu0 %v684
        %779 = vmatpush1.bf16.msra.mxu0 %v683
        %780 = vmatprep.subr.bf16.mxu0 %v688
        %781 = vmatpush1.bf16.msra.mxu0 %v687
        %782 = vmatprep.subr.bf16.mxu0 %v692
        %783 = vmatpush1.bf16.msra.mxu0 %v691
        %784 = vmatprep.subr.bf16.mxu0 %v696
        %785 = vmatpush1.bf16.msra.mxu0 %v695
        %786 = vmatprep.subr.bf16.mxu0 0
        %787 = vmatpush1.bf16.msra.mxu0 0
        %788 = vmatprep.subr.bf16.mxu0 0
        %789 = vmatpush1.bf16.msra.mxu0 0
        %790 = vmatprep.subr.bf16.mxu0 0
        %791 = vmatpush1.bf16.msra.mxu0 0
        %792 = vmatprep.subr.bf16.mxu0 0
        %793 = vmatpush1.bf16.msra.mxu0 0
        %794 = vmatprep.subr.bf16.mxu0 0
        %795 = vmatpush1.bf16.msra.mxu0 0
        %796 = vmatprep.subr.bf16.mxu0 0
        %797 = vmatpush1.bf16.msra.mxu0 0
        %798 = vmatprep.subr.bf16.mxu0 0
        %799 = vmatpush1.bf16.msra.mxu0 0
        %800 = vmatprep.subr.bf16.mxu0 0
        %801 = vmatpush1.bf16.msra.mxu0 0
        %802 = vmatprep.mubr.bf16.mxu0 0
        %803 = vmatmul.mubr.bf16.gmra.mrb[0].mxu0 %v536
        %v804 = vpop.f32.mrb[0].mxu0
        %v805 = vadd.f32 0.0, %v804
        %v806 = vpop.f32.mrb[0].mxu0
        %v807 = vadd.f32 0.0, %v806
        %v808 = vpop.f32.mrb[0].mxu0
        %v809 = vpop.f32.mrb[0].mxu0
        %810 = vdwg.mxu0
        %v815 = vcombine.low %v764, %v766
        %v816 = vcombine.low %v805, %v807
        %v818 = vunpack.c.l.s4 1983009808
        %v819 = vunpack.c.0.s8 %v818
        %v820 = vlaneseq
        %v821 = vshrl.u32 %v820, 7
        %v822 = vsub.s32 %v819, %v821
        %v823 = vrot.slane %v815, %v822
        %v825 = vunpack.c.l.s4 1983009808
        %v826 = vunpack.c.0.s8 %v825
        %v827 = vlaneseq
        %v828 = vshrl.u32 %v827, 7
        %v829 = vsub.s32 %v826, %v828
        %v830 = vrot.slane %v816, %v829
        %v831 = vcombine.low %v823, %v830
        %v833 = vadd.f32 %v235, %v831
        %v834 = vld [vmem:[#allocation3] sm:$0x3]
        %v835 = vxor.u32 %v534, 2147483648
        %v836 = vmul.f32 %v835, 1.442695
        %v837 = vpow.pop %v836
        %v838 = vadd.f32 %v837, 1.0
        %v839 = vrcp.pop %v838
        %v840 = vmul.f32 1.0, %v839
        %v842 = vrot.slane %v534, 2
        %v844 = vxor.u32 %v842, 2147483648
        %v845 = vmul.f32 %v844, 1.442695
        %v846 = vpow.pop %v845
        %v847 = vadd.f32 %v846, 1.0
        %v848 = vrcp.pop %v847
        %v849 = vmul.f32 1.0, %v848
        %v850 = vrot.slane %v534, 4
        %v852 = vtanh.pop %v850
        %v853 = vrot.slane %v534, 6
        %v855 = vxor.u32 %v853, 2147483648
        %v856 = vmul.f32 %v855, 1.442695
        %v857 = vpow.pop %v856
        %v858 = vadd.f32 %v857, 1.0
        %v859 = vrcp.pop %v858
        %v860 = vmul.f32 1.0, %v859
        %v861 = vmul.f32 %v849, %v834
        %v862 = vmul.f32 %v840, %v852
        %v863 = vadd.f32 %v861, %v862
        %v864 = vtanh.pop %v863
        %v865 = vmul.f32 %v860, %v864
        %v866 = vld [vmem:[#allocation5] sm:$0x3]
        %v867 = vxor.u32 %v833, 2147483648
        %v868 = vmul.f32 %v867, 1.442695
        %v869 = vpow.pop %v868
        %v870 = vadd.f32 %v869, 1.0
        %v871 = vrcp.pop %v870
        %v872 = vmul.f32 1.0, %v871
        %v874 = vrot.slane %v833, 2
        %v876 = vxor.u32 %v874, 2147483648
        %v877 = vmul.f32 %v876, 1.442695
        %v878 = vpow.pop %v877
        %v879 = vadd.f32 %v878, 1.0
        %v880 = vrcp.pop %v879
        %v881 = vmul.f32 1.0, %v880
        %v882 = vrot.slane %v833, 4
        %v884 = vtanh.pop %v882
        %v885 = vrot.slane %v833, 6
        %v887 = vxor.u32 %v885, 2147483648
        %v888 = vmul.f32 %v887, 1.442695
        %v889 = vpow.pop %v888
        %v890 = vadd.f32 %v889, 1.0
        %v891 = vrcp.pop %v890
        %v892 = vmul.f32 1.0, %v891
        %v893 = vmul.f32 %v881, %v866
        %v894 = vmul.f32 %v872, %v884
        %v895 = vadd.f32 %v893, %v894
        %v896 = vtanh.pop %v895
        %v897 = vmul.f32 %v892, %v896
        %898 = vst [vmem:[#allocation2] sm:$0x3] %v865
        %899 = vst [vmem:[#allocation3] sm:$0x3] %v863
        %900 = vst [vmem:[#allocation4] sm:$0x3] %v897
        %901 = vst [vmem:[#allocation5] sm:$0x3] %v895
        %s902 = smul.u32 %s16, 2
        %s903 = smul.addr %s902, 2
        %s904 = scalar_lea.vmem %s4, %s903
        %905 = vst [vmem:[%s904] sm:$0x3] %v865
        %s906 = ssub.s32 7, %s16
        %s907 = smul.u32 %s906, 2
        %s908 = smul.addr %s907, 2
        %s909 = scalar_lea.vmem %s4, %s908
        %910 = vst [vmem:[%s909 + $0x2] sm:$0x3] %v897
        // Predicated region
        $region45: #{forward.8} parent=35 // pred_check
          %p911 = pneg %p125
        $region46: #{forward.8} parent=35 // pred_check_branch
          %913 = sbr.rel (%p911) target = $region48
        $region47: #{forward.8} parent=35 // pred_region
          _
        $region48: #{forward.8} parent=35 // pred_fallthru
          _
        // Predicated region
        $region49: #{forward.8} parent=35 // pred_check
          %p914 = pneg %p125
        $region50: #{forward.8} parent=35 // pred_check_branch
          %916 = sbr.rel (%p914) target = $region52
        $region51: #{forward.8} parent=35 // pred_region
          _
        $region52: #{forward.8} parent=35 // pred_fallthru
          _
      $region36: #{forward.8} parent=5 // pred_fallthru
        _
      %p917 = scmp.le.s32.totalorder 2, %s11
      // Predicated region
      $region53: #{forward.8} parent=5 // pred_check
        %p918 = pneg %p917
      $region54: #{forward.8} parent=5 // pred_check_branch
        %920 = sbr.rel (%p918) target = $region56
      $region55: #{forward.8} parent=5 // pred_region
        %s921 = ssub.s32 %s11, 2
      $region56: #{forward.8} parent=5 // pred_fallthru
        _
    $region6: #{forward.8} parent=1 // loop_footer
      %s15 = sadd.s32 1, %s11
    $region7: #{forward.8} parent=1 // loop_footer_branch
      %10 = sbr.rel target = $region3
    $region8: #{forward.8} parent=1 // loop_exit
      _
    %922 = vsyncpa [#allocation7], 1
    %s923 = scalar_lea.sflag [#allocation7], 1
    %924 = vsyncpa %s923, 1

// kernel: forward.7
$region0: #{forward.7}
  #allocation0 [shape = 'u32[]', space=smem, size = 0x4, offset = 0x4, fixed_abs, tag = 'smem constant byte address 0x4 - core index']
  #allocation1 [shape = 'u32[144,128]{1,0:T(1,128)}', space=vmem, size = 0x12000, scoped, tag = 'internal scratch']
  %s0 = inlined_call_operand.vmem [shape: f32[16,66], index: 0, kind: input, shape index: {}]
  %s1 = inlined_call_operand.vmem [shape: bf16[66,64], index: 1, kind: input, shape index: {}]
  %s2 = inlined_call_operand.vmem [shape: f32[1,64], index: 2, kind: input, shape index: {}]
  %s3 = inlined_call_operand.vmem [shape: bf16[64,64], index: 3, kind: input, shape index: {}]
  %s4 = inlined_call_operand.vmem [shape: f32[1,64], index: 4, kind: input, shape index: {}]
  %s5 = inlined_call_operand.hbm [shape: bf16[64,1024], index: 5, kind: input, shape index: {}]
  %s6 = inlined_call_operand.vmem [shape: f32[1,1024], index: 6, kind: input, shape index: {}]
  %s7 = inlined_call_operand.vmem [shape: f32[16,1024], index: 7, kind: output, shape index: {}]
  %s8 = sld [smem:[#allocation0]]
  $region42: #{forward.7} parent=0
    _
  %s10 = ssub.s32 1, %s8
  %s11 = scalar_select 0, %s10, %s8
  $region1: #{forward.7} parent=0
    #allocation2 [shape = 'u8[131072]{0}', space=vmem, size = 0x20000, scoped, tag = 'input window, operand 5, single buffered']
    #allocation3 [shape = 's32[1]{0}', space=sflag, size = 0x4, scoped, tag = 'scoped memory for forward.7']
    %12 = vsyncpa [#allocation3], 0
    // Predicated region
    $region2: #{forward.7} parent=1 // pred_check
      _
    $region3: #{forward.7} parent=1 // pred_check_branch
      %14 = sbr.rel (0) target = $region5
    $region4: #{forward.7} parent=1 // pred_region
      _
    $region5: #{forward.7} parent=1 // pred_fallthru
      _
    // Predicated region
    $region6: #{forward.7} parent=1 // pred_check
      _
    $region7: #{forward.7} parent=1 // pred_check_branch
      %16 = sbr.rel (0) target = $region9
    $region8: #{forward.7} parent=1 // pred_region
      _
    $region9: #{forward.7} parent=1 // pred_fallthru
      _
    // Predicated region
    $region10: #{forward.7} parent=1 // pred_check
      _
    $region11: #{forward.7} parent=1 // pred_check_branch
      %18 = sbr.rel (0) target = $region13
    $region12: #{forward.7} parent=1 // pred_region
      _
    $region13: #{forward.7} parent=1 // pred_fallthru
      _
    // Predicated region
    $region14: #{forward.7} parent=1 // pred_check
      _
    $region15: #{forward.7} parent=1 // pred_check_branch
      %20 = sbr.rel (0) target = $region17
    $region16: #{forward.7} parent=1 // pred_region
      _
    $region17: #{forward.7} parent=1 // pred_fallthru
      _
    // Predicated region
    $region18: #{forward.7} parent=1 // pred_check
      _
    $region19: #{forward.7} parent=1 // pred_check_branch
      %22 = sbr.rel (0) target = $region21
    $region20: #{forward.7} parent=1 // pred_region
      _
    $region21: #{forward.7} parent=1 // pred_fallthru
      _
    // Predicated region
    $region22: #{forward.7} parent=1 // pred_check
      _
    $region23: #{forward.7} parent=1 // pred_check_branch
      %24 = sbr.rel (0) target = $region25
    $region24: #{forward.7} parent=1 // pred_region
      %s26 = ssub.s32 4096, 4096
      %27 = vsyncadd [#allocation3], %s26
      %s28 = sshll.u32 [#allocation2], 4
      %s29 = int_to_ptr.vmem [resolvable:$true] %s28
      %34 = dma.hbm_to_vmem [thread:$0]  %s5, 4096, %s29, [#allocation3], 512, 512, 32
    $region25: #{forward.7} parent=1 // pred_fallthru
      _
    // Predicated region
    $region26: #{forward.7} parent=1 // pred_check
      _
    $region27: #{forward.7} parent=1 // pred_check_branch
      %36 = sbr.rel (0) target = $region29
    $region28: #{forward.7} parent=1 // pred_region
      _
    $region29: #{forward.7} parent=1 // pred_fallthru
      _
    // Predicated region
    $region30: #{forward.7} parent=1 // pred_check
      _
    $region31: #{forward.7} parent=1 // pred_check_branch
      %38 = sbr.rel (0) target = $region33
    $region32: #{forward.7} parent=1 // pred_region
      %39 = dma.done [#allocation3], 4096
    $region33: #{forward.7} parent=1 // pred_fallthru
      _
    %v41 = vld [vmem:[%s0] sm:$0xff]
    %v42 = vld [vmem:[%s0 + $0x8] sm:$0xff]
    %v43 = vpack.c.bf16 %v42, %v41
    %v44 = vld [vmem:[%s1] sm:$0xf]
    %v45 = vld [vmem:[%s1 + $0x4] sm:$0xf]
    %v46 = vld [vmem:[%s1 + $0x8] sm:$0xf]
    %v47 = vld [vmem:[%s1 + $0xc] sm:$0xf]
    %v48 = vld [vmem:[%s1 + $0x10] sm:$0xf]
    %v49 = vld [vmem:[%s1 + $0x14] sm:$0xf]
    %v50 = vld [vmem:[%s1 + $0x18] sm:$0xf]
    %v51 = vld [vmem:[%s1 + $0x1c] sm:$0xf]
    %v52 = vld [vmem:[%s1 + $0x20] sm:$0x1]
    %v53 = vld [vmem:[%s2] sm:$0x1]
    %v55 = vlaneseq
    %v56 = vshrl.u32 %v55, 7
    %v57 = vsub.s32 0, %v56
    %v58 = vrot.slane %v53, %v57
    %v69 = vunpack.c.l.b16 %v44
    %v70 = vunpack.c.l.b16 %v45
    %v71 = vunpack.c.l.b16 %v46
    %v72 = vunpack.c.l.b16 %v47
    %v73 = vunpack.c.l.b16 %v48
    %v74 = vunpack.c.l.b16 %v49
    %v75 = vunpack.c.l.b16 %v50
    %v76 = vunpack.c.l.b16 %v51
    %v77 = vunpack.c.l.b16 %v52
    %v78 = vpack.c.b16 %v70, %v69
    %v79 = vpack.c.b16 %v72, %v71
    %v80 = vpack.c.b16 %v74, %v73
    %v81 = vpack.c.b16 %v76, %v75
    %v82 = vpack.c.b16 %v77, %v77
    %vm87 = vcmask 539648
    %v89 = vsel %vm87, %v43, 0
    %vm91 = vcmask 1040384
    %v93 = vsel %vm91, %v82, 0
    %95 = vmatprep.subr.bf16.mxu0 0
    %96 = vmatpush1.bf16.msra.mxu0 %v78
    %97 = vmatprep.subr.bf16.mxu0 0
    %98 = vmatpush1.bf16.msra.mxu0 %v79
    %99 = vmatprep.subr.bf16.mxu0 0
    %100 = vmatpush1.bf16.msra.mxu0 %v80
    %101 = vmatprep.subr.bf16.mxu0 0
    %102 = vmatpush1.bf16.msra.mxu0 %v81
    %103 = vmatprep.subr.bf16.mxu0 0
    %104 = vmatpush1.bf16.msra.mxu0 %v93
    %105 = vmatprep.subr.bf16.mxu0 0
    %106 = vmatpush1.bf16.msra.mxu0 0
    %107 = vmatprep.subr.bf16.mxu0 0
    %108 = vmatpush1.bf16.msra.mxu0 0
    %109 = vmatprep.subr.bf16.mxu0 0
    %110 = vmatpush1.bf16.msra.mxu0 0
    %111 = vmatprep.subr.bf16.mxu0 0
    %112 = vmatpush1.bf16.msra.mxu0 0
    %113 = vmatprep.subr.bf16.mxu0 0
    %114 = vmatpush1.bf16.msra.mxu0 0
    %115 = vmatprep.subr.bf16.mxu0 0
    %116 = vmatpush1.bf16.msra.mxu0 0
    %117 = vmatprep.subr.bf16.mxu0 0
    %118 = vmatpush1.bf16.msra.mxu0 0
    %119 = vmatprep.subr.bf16.mxu0 0
    %120 = vmatpush1.bf16.msra.mxu0 0
    %121 = vmatprep.subr.bf16.mxu0 0
    %122 = vmatpush1.bf16.msra.mxu0 0
    %123 = vmatprep.subr.bf16.mxu0 0
    %124 = vmatpush1.bf16.msra.mxu0 0
    %125 = vmatprep.subr.bf16.mxu0 0
    %126 = vmatpush1.bf16.msra.mxu0 0
    %127 = vmatprep.mubr.bf16.mxu0 0
    %128 = vmatmul.mubr.bf16.gmra.mrb[0].mxu0 %v89
    %v129 = vpop.f32.mrb[0].mxu0
    %v130 = vadd.f32 %v58, %v129
    %v131 = vpop.f32.mrb[0].mxu0
    %v132 = vpop.f32.mrb[0].mxu0
    %v133 = vadd.f32 %v58, %v132
    %v134 = vpop.f32.mrb[0].mxu0
    %135 = vdwg.mxu0
    %v136 = vmax.f32 %v130, 0.0
    %v137 = vmax.f32 %v133, 0.0
    %v138 = vpack.c.bf16 %v137, %v136
    %v139 = vld [vmem:[%s3] sm:$0xf]
    %v140 = vld [vmem:[%s3 + $0x4] sm:$0xf]
    %v141 = vld [vmem:[%s3 + $0x8] sm:$0xf]
    %v142 = vld [vmem:[%s3 + $0xc] sm:$0xf]
    %v143 = vld [vmem:[%s3 + $0x10] sm:$0xf]
    %v144 = vld [vmem:[%s3 + $0x14] sm:$0xf]
    %v145 = vld [vmem:[%s3 + $0x18] sm:$0xf]
    %v146 = vld [vmem:[%s3 + $0x1c] sm:$0xf]
    %v147 = vld [vmem:[%s4] sm:$0x1]
    %v149 = vlaneseq
    %v150 = vshrl.u32 %v149, 7
    %v151 = vsub.s32 0, %v150
    %v152 = vrot.slane %v147, %v151
    %v162 = vunpack.c.l.b16 %v139
    %v163 = vunpack.c.l.b16 %v140
    %v164 = vunpack.c.l.b16 %v141
    %v165 = vunpack.c.l.b16 %v142
    %v166 = vunpack.c.l.b16 %v143
    %v167 = vunpack.c.l.b16 %v144
    %v168 = vunpack.c.l.b16 %v145
    %v169 = vunpack.c.l.b16 %v146
    %v170 = vpack.c.b16 %v163, %v162
    %v171 = vpack.c.b16 %v165, %v164
    %v172 = vpack.c.b16 %v167, %v166
    %v173 = vpack.c.b16 %v169, %v168
    %vm178 = vcmask 523264
    %v180 = vsel %vm178, %v138, 0
    %182 = vmatprep.subr.bf16.mxu0 0
    %183 = vmatpush1.bf16.msra.mxu0 %v170
    %184 = vmatprep.subr.bf16.mxu0 0
    %185 = vmatpush1.bf16.msra.mxu0 %v171
    %186 = vmatprep.subr.bf16.mxu0 0
    %187 = vmatpush1.bf16.msra.mxu0 %v172
    %188 = vmatprep.subr.bf16.mxu0 0
    %189 = vmatpush1.bf16.msra.mxu0 %v173
    %190 = vmatprep.subr.bf16.mxu0 0
    %191 = vmatpush1.bf16.msra.mxu0 0
    %192 = vmatprep.subr.bf16.mxu0 0
    %193 = vmatpush1.bf16.msra.mxu0 0
    %194 = vmatprep.subr.bf16.mxu0 0
    %195 = vmatpush1.bf16.msra.mxu0 0
    %196 = vmatprep.subr.bf16.mxu0 0
    %197 = vmatpush1.bf16.msra.mxu0 0
    %198 = vmatprep.subr.bf16.mxu0 0
    %199 = vmatpush1.bf16.msra.mxu0 0
    %200 = vmatprep.subr.bf16.mxu0 0
    %201 = vmatpush1.bf16.msra.mxu0 0
    %202 = vmatprep.subr.bf16.mxu0 0
    %203 = vmatpush1.bf16.msra.mxu0 0
    %204 = vmatprep.subr.bf16.mxu0 0
    %205 = vmatpush1.bf16.msra.mxu0 0
    %206 = vmatprep.subr.bf16.mxu0 0
    %207 = vmatpush1.bf16.msra.mxu0 0
    %208 = vmatprep.subr.bf16.mxu0 0
    %209 = vmatpush1.bf16.msra.mxu0 0
    %210 = vmatprep.subr.bf16.mxu0 0
    %211 = vmatpush1.bf16.msra.mxu0 0
    %212 = vmatprep.subr.bf16.mxu0 0
    %213 = vmatpush1.bf16.msra.mxu0 0
    %214 = vmatprep.mubr.bf16.mxu0 0
    %215 = vmatmul.mubr.bf16.gmra.mrb[0].mxu0 %v180
    %v216 = vpop.f32.mrb[0].mxu0
    %v217 = vadd.f32 %v152, %v216
    %v218 = vpop.f32.mrb[0].mxu0
    %v219 = vpop.f32.mrb[0].mxu0
    %v220 = vadd.f32 %v152, %v219
    %v221 = vpop.f32.mrb[0].mxu0
    %222 = vdwg.mxu0
    %v223 = vpack.c.bf16 %v220, %v217
    %v224 = vld [vmem:[#allocation2] sm:$0xff]
    %v225 = vld [vmem:[#allocation2 + $0x8] sm:$0xff]
    %v226 = vld [vmem:[#allocation2 + $0x10] sm:$0xff]
    %v227 = vld [vmem:[#allocation2 + $0x18] sm:$0xff]
    %v228 = vld [vmem:[#allocation2 + $0x20] sm:$0xff]
    %v229 = vld [vmem:[#allocation2 + $0x28] sm:$0xff]
    %v230 = vld [vmem:[#allocation2 + $0x30] sm:$0xff]
    %v231 = vld [vmem:[#allocation2 + $0x38] sm:$0xff]
    %v232 = vld [vmem:[#allocation2 + $0x40] sm:$0xff]
    %v233 = vld [vmem:[#allocation2 + $0x48] sm:$0xff]
    %v234 = vld [vmem:[#allocation2 + $0x50] sm:$0xff]
    %v235 = vld [vmem:[#allocation2 + $0x58] sm:$0xff]
    %v236 = vld [vmem:[#allocation2 + $0x60] sm:$0xff]
    %v237 = vld [vmem:[#allocation2 + $0x68] sm:$0xff]
    %v238 = vld [vmem:[#allocation2 + $0x70] sm:$0xff]
    %v239 = vld [vmem:[#allocation2 + $0x78] sm:$0xff]
    %v240 = vld [vmem:[#allocation2 + $0x80] sm:$0xff]
    %v241 = vld [vmem:[#allocation2 + $0x88] sm:$0xff]
    %v242 = vld [vmem:[#allocation2 + $0x90] sm:$0xff]
    %v243 = vld [vmem:[#allocation2 + $0x98] sm:$0xff]
    %v244 = vld [vmem:[#allocation2 + $0xa0] sm:$0xff]
    %v245 = vld [vmem:[#allocation2 + $0xa8] sm:$0xff]
    %v246 = vld [vmem:[#allocation2 + $0xb0] sm:$0xff]
    %v247 = vld [vmem:[#allocation2 + $0xb8] sm:$0xff]
    %v248 = vld [vmem:[#allocation2 + $0xc0] sm:$0xff]
    %v249 = vld [vmem:[#allocation2 + $0xc8] sm:$0xff]
    %v250 = vld [vmem:[#allocation2 + $0xd0] sm:$0xff]
    %v251 = vld [vmem:[#allocation2 + $0xd8] sm:$0xff]
    %v252 = vld [vmem:[#allocation2 + $0xe0] sm:$0xff]
    %v253 = vld [vmem:[#allocation2 + $0xe8] sm:$0xff]
    %v254 = vld [vmem:[#allocation2 + $0xf0] sm:$0xff]
    %v255 = vld [vmem:[#allocation2 + $0xf8] sm:$0xff]
    %v256 = vld [vmem:[%s6] sm:$0xff]
    %v258 = vlaneseq
    %v259 = vshrl.u32 %v258, 7
    %v260 = vsub.s32 0, %v259
    %v261 = vrot.slane %v256, %v260
    %v262 = vlaneseq
    %v263 = vshrl.u32 %v262, 7
    %v264 = vsub.s32 1, %v263
    %v265 = vrot.slane %v256, %v264
    %v266 = vlaneseq
    %v267 = vshrl.u32 %v266, 7
    %v268 = vsub.s32 2, %v267
    %v269 = vrot.slane %v256, %v268
    %v270 = vlaneseq
    %v271 = vshrl.u32 %v270, 7
    %v272 = vsub.s32 3, %v271
    %v273 = vrot.slane %v256, %v272
    %v274 = vlaneseq
    %v275 = vshrl.u32 %v274, 7
    %v276 = vsub.s32 4, %v275
    %v277 = vrot.slane %v256, %v276
    %v278 = vlaneseq
    %v279 = vshrl.u32 %v278, 7
    %v280 = vsub.s32 5, %v279
    %v281 = vrot.slane %v256, %v280
    %v282 = vlaneseq
    %v283 = vshrl.u32 %v282, 7
    %v284 = vsub.s32 6, %v283
    %v285 = vrot.slane %v256, %v284
    %v286 = vlaneseq
    %v287 = vshrl.u32 %v286, 7
    %v288 = vsub.s32 7, %v287
    %v289 = vrot.slane %v256, %v288
    %v330 = vunpack.c.l.b16 %v224
    %v331 = vunpack.c.h.b16 %v224
    %v332 = vunpack.c.l.b16 %v225
    %v333 = vunpack.c.h.b16 %v225
    %v334 = vunpack.c.l.b16 %v226
    %v335 = vunpack.c.h.b16 %v226
    %v336 = vunpack.c.l.b16 %v227
    %v337 = vunpack.c.h.b16 %v227
    %v338 = vunpack.c.l.b16 %v228
    %v339 = vunpack.c.h.b16 %v228
    %v340 = vunpack.c.l.b16 %v229
    %v341 = vunpack.c.h.b16 %v229
    %v342 = vunpack.c.l.b16 %v230
    %v343 = vunpack.c.h.b16 %v230
    %v344 = vunpack.c.l.b16 %v231
    %v345 = vunpack.c.h.b16 %v231
    %v346 = vunpack.c.l.b16 %v232
    %v347 = vunpack.c.h.b16 %v232
    %v348 = vunpack.c.l.b16 %v233
    %v349 = vunpack.c.h.b16 %v233
    %v350 = vunpack.c.l.b16 %v234
    %v351 = vunpack.c.h.b16 %v234
    %v352 = vunpack.c.l.b16 %v235
    %v353 = vunpack.c.h.b16 %v235
    %v354 = vunpack.c.l.b16 %v236
    %v355 = vunpack.c.h.b16 %v236
    %v356 = vunpack.c.l.b16 %v237
    %v357 = vunpack.c.h.b16 %v237
    %v358 = vunpack.c.l.b16 %v238
    %v359 = vunpack.c.h.b16 %v238
    %v360 = vunpack.c.l.b16 %v239
    %v361 = vunpack.c.h.b16 %v239
    %v362 = vunpack.c.l.b16 %v240
    %v363 = vunpack.c.h.b16 %v240
    %v364 = vunpack.c.l.b16 %v241
    %v365 = vunpack.c.h.b16 %v241
    %v366 = vunpack.c.l.b16 %v242
    %v367 = vunpack.c.h.b16 %v242
    %v368 = vunpack.c.l.b16 %v243
    %v369 = vunpack.c.h.b16 %v243
    %v370 = vunpack.c.l.b16 %v244
    %v371 = vunpack.c.h.b16 %v244
    %v372 = vunpack.c.l.b16 %v245
    %v373 = vunpack.c.h.b16 %v245
    %v374 = vunpack.c.l.b16 %v246
    %v375 = vunpack.c.h.b16 %v246
    %v376 = vunpack.c.l.b16 %v247
    %v377 = vunpack.c.h.b16 %v247
    %v378 = vunpack.c.l.b16 %v248
    %v379 = vunpack.c.h.b16 %v248
    %v380 = vunpack.c.l.b16 %v249
    %v381 = vunpack.c.h.b16 %v249
    %v382 = vunpack.c.l.b16 %v250
    %v383 = vunpack.c.h.b16 %v250
    %v384 = vunpack.c.l.b16 %v251
    %v385 = vunpack.c.h.b16 %v251
    %v386 = vunpack.c.l.b16 %v252
    %v387 = vunpack.c.h.b16 %v252
    %v388 = vunpack.c.l.b16 %v253
    %v389 = vunpack.c.h.b16 %v253
    %v390 = vunpack.c.l.b16 %v254
    %v391 = vunpack.c.h.b16 %v254
    %v392 = vunpack.c.l.b16 %v255
    %v393 = vunpack.c.h.b16 %v255
    %v394 = vpack.c.b16 %v338, %v330
    %v395 = vpack.c.b16 %v339, %v331
    %v396 = vpack.c.b16 %v340, %v332
    %v397 = vpack.c.b16 %v341, %v333
    %v398 = vpack.c.b16 %v342, %v334
    %v399 = vpack.c.b16 %v343, %v335
    %v400 = vpack.c.b16 %v344, %v336
    %v401 = vpack.c.b16 %v345, %v337
    %v402 = vpack.c.b16 %v354, %v346
    %v403 = vpack.c.b16 %v355, %v347
    %v404 = vpack.c.b16 %v356, %v348
    %v405 = vpack.c.b16 %v357, %v349
    %v406 = vpack.c.b16 %v358, %v350
    %v407 = vpack.c.b16 %v359, %v351
    %v408 = vpack.c.b16 %v360, %v352
    %v409 = vpack.c.b16 %v361, %v353
    %v410 = vpack.c.b16 %v370, %v362
    %v411 = vpack.c.b16 %v371, %v363
    %v412 = vpack.c.b16 %v372, %v364
    %v413 = vpack.c.b16 %v373, %v365
    %v414 = vpack.c.b16 %v374, %v366
    %v415 = vpack.c.b16 %v375, %v367
    %v416 = vpack.c.b16 %v376, %v368
    %v417 = vpack.c.b16 %v377, %v369
    %v418 = vpack.c.b16 %v386, %v378
    %v419 = vpack.c.b16 %v387, %v379
    %v420 = vpack.c.b16 %v388, %v380
    %v421 = vpack.c.b16 %v389, %v381
    %v422 = vpack.c.b16 %v390, %v382
    %v423 = vpack.c.b16 %v391, %v383
    %v424 = vpack.c.b16 %v392, %v384
    %v425 = vpack.c.b16 %v393, %v385
    %v459 = vsel %vm178, %v223, 0
    %461 = vmatprep.subr.bf16.mxu0 %v395
    %462 = vmatpush1.bf16.msra.mxu0 %v394
    %463 = vmatprep.subr.bf16.mxu0 %v403
    %464 = vmatpush1.bf16.msra.mxu0 %v402
    %465 = vmatprep.subr.bf16.mxu0 %v411
    %466 = vmatpush1.bf16.msra.mxu0 %v410
    %467 = vmatprep.subr.bf16.mxu0 %v419
    %468 = vmatpush1.bf16.msra.mxu0 %v418
    %469 = vmatprep.subr.bf16.mxu0 0
    %470 = vmatpush1.bf16.msra.mxu0 0
    %471 = vmatprep.subr.bf16.mxu0 0
    %472 = vmatpush1.bf16.msra.mxu0 0
    %473 = vmatprep.subr.bf16.mxu0 0
    %474 = vmatpush1.bf16.msra.mxu0 0
    %475 = vmatprep.subr.bf16.mxu0 0
    %476 = vmatpush1.bf16.msra.mxu0 0
    %477 = vmatprep.subr.bf16.mxu0 0
    %478 = vmatpush1.bf16.msra.mxu0 0
    %479 = vmatprep.subr.bf16.mxu0 0
    %480 = vmatpush1.bf16.msra.mxu0 0
    %481 = vmatprep.subr.bf16.mxu0 0
    %482 = vmatpush1.bf16.msra.mxu0 0
    %483 = vmatprep.subr.bf16.mxu0 0
    %484 = vmatpush1.bf16.msra.mxu0 0
    %485 = vmatprep.subr.bf16.mxu0 0
    %486 = vmatpush1.bf16.msra.mxu0 0
    %487 = vmatprep.subr.bf16.mxu0 0
    %488 = vmatpush1.bf16.msra.mxu0 0
    %489 = vmatprep.subr.bf16.mxu0 0
    %490 = vmatpush1.bf16.msra.mxu0 0
    %491 = vmatprep.subr.bf16.mxu0 0
    %492 = vmatpush1.bf16.msra.mxu0 0
    %493 = vmatprep.mubr.bf16.mxu0 0
    %494 = vmatmul.mubr.bf16.gmra.mrb[0].mxu0 %v459
    %v495 = vpop.f32.mrb[0].mxu0
    %v496 = vadd.f32 %v261, %v495
    %v497 = vpop.f32.mrb[0].mxu0
    %v498 = vadd.f32 %v265, %v497
    %v499 = vpop.f32.mrb[0].mxu0
    %v500 = vadd.f32 %v261, %v499
    %v501 = vpop.f32.mrb[0].mxu0
    %v502 = vadd.f32 %v265, %v501
    %503 = vdwg.mxu0
    %504 = vmatprep.subr.bf16.mxu0 %v397
    %505 = vmatpush1.bf16.msra.mxu0 %v396
    %506 = vmatprep.subr.bf16.mxu0 %v405
    %507 = vmatpush1.bf16.msra.mxu0 %v404
    %508 = vmatprep.subr.bf16.mxu0 %v413
    %509 = vmatpush1.bf16.msra.mxu0 %v412
    %510 = vmatprep.subr.bf16.mxu0 %v421
    %511 = vmatpush1.bf16.msra.mxu0 %v420
    %512 = vmatprep.subr.bf16.mxu0 0
    %513 = vmatpush1.bf16.msra.mxu0 0
    %514 = vmatprep.subr.bf16.mxu0 0
    %515 = vmatpush1.bf16.msra.mxu0 0
    %516 = vmatprep.subr.bf16.mxu0 0
    %517 = vmatpush1.bf16.msra.mxu0 0
    %518 = vmatprep.subr.bf16.mxu0 0
    %519 = vmatpush1.bf16.msra.mxu0 0
    %520 = vmatprep.subr.bf16.mxu0 0
    %521 = vmatpush1.bf16.msra.mxu0 0
    %522 = vmatprep.subr.bf16.mxu0 0
    %523 = vmatpush1.bf16.msra.mxu0 0
    %524 = vmatprep.subr.bf16.mxu0 0
    %525 = vmatpush1.bf16.msra.mxu0 0
    %526 = vmatprep.subr.bf16.mxu0 0
    %527 = vmatpush1.bf16.msra.mxu0 0
    %528 = vmatprep.subr.bf16.mxu0 0
    %529 = vmatpush1.bf16.msra.mxu0 0
    %530 = vmatprep.subr.bf16.mxu0 0
    %531 = vmatpush1.bf16.msra.mxu0 0
    %532 = vmatprep.subr.bf16.mxu0 0
    %533 = vmatpush1.bf16.msra.mxu0 0
    %534 = vmatprep.subr.bf16.mxu0 0
    %535 = vmatpush1.bf16.msra.mxu0 0
    %536 = vmatprep.mubr.bf16.mxu0 0
    %537 = vmatmul.mubr.bf16.gmra.mrb[0].mxu0 %v459
    %v538 = vpop.f32.mrb[0].mxu0
    %v539 = vadd.f32 %v269, %v538
    %v540 = vpop.f32.mrb[0].mxu0
    %v541 = vadd.f32 %v273, %v540
    %v542 = vpop.f32.mrb[0].mxu0
    %v543 = vadd.f32 %v269, %v542
    %v544 = vpop.f32.mrb[0].mxu0
    %v545 = vadd.f32 %v273, %v544
    %546 = vdwg.mxu0
    %547 = vmatprep.subr.bf16.mxu0 %v399
    %548 = vmatpush1.bf16.msra.mxu0 %v398
    %549 = vmatprep.subr.bf16.mxu0 %v407
    %550 = vmatpush1.bf16.msra.mxu0 %v406
    %551 = vmatprep.subr.bf16.mxu0 %v415
    %552 = vmatpush1.bf16.msra.mxu0 %v414
    %553 = vmatprep.subr.bf16.mxu0 %v423
    %554 = vmatpush1.bf16.msra.mxu0 %v422
    %555 = vmatprep.subr.bf16.mxu0 0
    %556 = vmatpush1.bf16.msra.mxu0 0
    %557 = vmatprep.subr.bf16.mxu0 0
    %558 = vmatpush1.bf16.msra.mxu0 0
    %559 = vmatprep.subr.bf16.mxu0 0
    %560 = vmatpush1.bf16.msra.mxu0 0
    %561 = vmatprep.subr.bf16.mxu0 0
    %562 = vmatpush1.bf16.msra.mxu0 0
    %563 = vmatprep.subr.bf16.mxu0 0
    %564 = vmatpush1.bf16.msra.mxu0 0
    %565 = vmatprep.subr.bf16.mxu0 0
    %566 = vmatpush1.bf16.msra.mxu0 0
    %567 = vmatprep.subr.bf16.mxu0 0
    %568 = vmatpush1.bf16.msra.mxu0 0
    %569 = vmatprep.subr.bf16.mxu0 0
    %570 = vmatpush1.bf16.msra.mxu0 0
    %571 = vmatprep.subr.bf16.mxu0 0
    %572 = vmatpush1.bf16.msra.mxu0 0
    %573 = vmatprep.subr.bf16.mxu0 0
    %574 = vmatpush1.bf16.msra.mxu0 0
    %575 = vmatprep.subr.bf16.mxu0 0
    %576 = vmatpush1.bf16.msra.mxu0 0
    %577 = vmatprep.subr.bf16.mxu0 0
    %578 = vmatpush1.bf16.msra.mxu0 0
    %579 = vmatprep.mubr.bf16.mxu0 0
    %580 = vmatmul.mubr.bf16.gmra.mrb[0].mxu0 %v459
    %v581 = vpop.f32.mrb[0].mxu0
    %v582 = vadd.f32 %v277, %v581
    %v583 = vpop.f32.mrb[0].mxu0
    %v584 = vadd.f32 %v281, %v583
    %v585 = vpop.f32.mrb[0].mxu0
    %v586 = vadd.f32 %v277, %v585
    %v587 = vpop.f32.mrb[0].mxu0
    %v588 = vadd.f32 %v281, %v587
    %589 = vdwg.mxu0
    %590 = vmatprep.subr.bf16.mxu0 %v401
    %591 = vmatpush1.bf16.msra.mxu0 %v400
    %592 = vmatprep.subr.bf16.mxu0 %v409
    %593 = vmatpush1.bf16.msra.mxu0 %v408
    %594 = vmatprep.subr.bf16.mxu0 %v417
    %595 = vmatpush1.bf16.msra.mxu0 %v416
    %596 = vmatprep.subr.bf16.mxu0 %v425
    %597 = vmatpush1.bf16.msra.mxu0 %v424
    %598 = vmatprep.subr.bf16.mxu0 0
    %599 = vmatpush1.bf16.msra.mxu0 0
    %600 = vmatprep.subr.bf16.mxu0 0
    %601 = vmatpush1.bf16.msra.mxu0 0
    %602 = vmatprep.subr.bf16.mxu0 0
    %603 = vmatpush1.bf16.msra.mxu0 0
    %604 = vmatprep.subr.bf16.mxu0 0
    %605 = vmatpush1.bf16.msra.mxu0 0
    %606 = vmatprep.subr.bf16.mxu0 0
    %607 = vmatpush1.bf16.msra.mxu0 0
    %608 = vmatprep.subr.bf16.mxu0 0
    %609 = vmatpush1.bf16.msra.mxu0 0
    %610 = vmatprep.subr.bf16.mxu0 0
    %611 = vmatpush1.bf16.msra.mxu0 0
    %612 = vmatprep.subr.bf16.mxu0 0
    %613 = vmatpush1.bf16.msra.mxu0 0
    %614 = vmatprep.subr.bf16.mxu0 0
    %615 = vmatpush1.bf16.msra.mxu0 0
    %616 = vmatprep.subr.bf16.mxu0 0
    %617 = vmatpush1.bf16.msra.mxu0 0
    %618 = vmatprep.subr.bf16.mxu0 0
    %619 = vmatpush1.bf16.msra.mxu0 0
    %620 = vmatprep.subr.bf16.mxu0 0
    %621 = vmatpush1.bf16.msra.mxu0 0
    %622 = vmatprep.mubr.bf16.mxu0 0
    %623 = vmatmul.mubr.bf16.gmra.mrb[0].mxu0 %v459
    %v624 = vpop.f32.mrb[0].mxu0
    %v625 = vadd.f32 %v285, %v624
    %v626 = vpop.f32.mrb[0].mxu0
    %v627 = vadd.f32 %v289, %v626
    %v628 = vpop.f32.mrb[0].mxu0
    %v629 = vadd.f32 %v285, %v628
    %v630 = vpop.f32.mrb[0].mxu0
    %v631 = vadd.f32 %v289, %v630
    %632 = vdwg.mxu0
    %633 = vst [vmem:[%s7] sm:$0xff] %v496
    %634 = vst [vmem:[%s7 + $0x8] sm:$0xff] %v498
    %635 = vst [vmem:[%s7 + $0x10] sm:$0xff] %v539
    %636 = vst [vmem:[%s7 + $0x18] sm:$0xff] %v541
    %637 = vst [vmem:[%s7 + $0x20] sm:$0xff] %v582
    %638 = vst [vmem:[%s7 + $0x28] sm:$0xff] %v584
    %639 = vst [vmem:[%s7 + $0x30] sm:$0xff] %v625
    %640 = vst [vmem:[%s7 + $0x38] sm:$0xff] %v627
    %641 = vst [vmem:[%s7 + $0x40] sm:$0xff] %v500
    %642 = vst [vmem:[%s7 + $0x48] sm:$0xff] %v502
    %643 = vst [vmem:[%s7 + $0x50] sm:$0xff] %v543
    %644 = vst [vmem:[%s7 + $0x58] sm:$0xff] %v545
    %645 = vst [vmem:[%s7 + $0x60] sm:$0xff] %v586
    %646 = vst [vmem:[%s7 + $0x68] sm:$0xff] %v588
    %647 = vst [vmem:[%s7 + $0x70] sm:$0xff] %v629
    %648 = vst [vmem:[%s7 + $0x78] sm:$0xff] %v631
    // Predicated region
    $region34: #{forward.7} parent=1 // pred_check
      _
    $region35: #{forward.7} parent=1 // pred_check_branch
      %650 = sbr.rel (0) target = $region37
    $region36: #{forward.7} parent=1 // pred_region
      _
    $region37: #{forward.7} parent=1 // pred_fallthru
      _
    // Predicated region
    $region38: #{forward.7} parent=1 // pred_check
      _
    $region39: #{forward.7} parent=1 // pred_check_branch
      %652 = sbr.rel (0) target = $region41
    $region40: #{forward.7} parent=1 // pred_region
      _
    $region41: #{forward.7} parent=1 // pred_fallthru
      _
    %653 = vsyncpa [#allocation3], 1

// kernel: forward.9
$region0: #{forward.9}
  #allocation0 [shape = 'u32[]', space=smem, size = 0x4, offset = 0x4, fixed_abs, tag = 'smem constant byte address 0x4 - core index']
  #allocation1 [shape = 'u32[144,128]{1,0:T(1,128)}', space=vmem, size = 0x12000, scoped, tag = 'internal scratch']
  %s0 = inlined_call_operand.vmem [shape: f32[16,256], index: 0, kind: input, shape index: {}]
  %s1 = inlined_call_operand.vmem [shape: bf16[256,1024], index: 1, kind: input, shape index: {}]
  %s2 = inlined_call_operand.vmem [shape: f32[1,1024], index: 2, kind: input, shape index: {}]
  %s3 = inlined_call_operand.vmem [shape: f32[16,1024], index: 3, kind: output, shape index: {}]
  %s4 = sld [smem:[#allocation0]]
  $region22: #{forward.9} parent=0
    _
  %s6 = ssub.s32 1, %s4
  %s7 = scalar_select 0, %s6, %s4
  // Predicated region
  $region2: #{forward.9} parent=0 // pred_check
    _
  $region3: #{forward.9} parent=0 // pred_check_branch
    %9 = sbr.rel (0) target = $region5
  $region4: #{forward.9} parent=0 // pred_region
    _
  $region5: #{forward.9} parent=0 // pred_fallthru
    _
  // Predicated region
  $region6: #{forward.9} parent=0 // pred_check
    _
  $region7: #{forward.9} parent=0 // pred_check_branch
    %11 = sbr.rel (0) target = $region9
  $region8: #{forward.9} parent=0 // pred_region
    _
  $region9: #{forward.9} parent=0 // pred_fallthru
    _
  // Predicated region
  $region10: #{forward.9} parent=0 // pred_check
    _
  $region11: #{forward.9} parent=0 // pred_check_branch
    %13 = sbr.rel (0) target = $region13
  $region12: #{forward.9} parent=0 // pred_region
    _
  $region13: #{forward.9} parent=0 // pred_fallthru
    _
  %v14 = vld [vmem:[%s0] sm:$0xff]
  %v15 = vld [vmem:[%s0 + $0x8] sm:$0xff]
  %v16 = vld [vmem:[%s0 + $0x10] sm:$0xff]
  %v17 = vld [vmem:[%s0 + $0x18] sm:$0xff]
  %v18 = vpack.c.bf16 %v16, %v14
  %v19 = vpack.c.bf16 %v17, %v15
  %v20 = vld [vmem:[%s1] sm:$0xff]
  %v21 = vld [vmem:[%s1 + $0x8] sm:$0xff]
  %v22 = vld [vmem:[%s1 + $0x10] sm:$0xff]
  %v23 = vld [vmem:[%s1 + $0x18] sm:$0xff]
  %v24 = vld [vmem:[%s1 + $0x20] sm:$0xff]
  %v25 = vld [vmem:[%s1 + $0x28] sm:$0xff]
  %v26 = vld [vmem:[%s1 + $0x30] sm:$0xff]
  %v27 = vld [vmem:[%s1 + $0x38] sm:$0xff]
  %v28 = vld [vmem:[%s1 + $0x40] sm:$0xff]
  %v29 = vld [vmem:[%s1 + $0x48] sm:$0xff]
  %v30 = vld [vmem:[%s1 + $0x50] sm:$0xff]
  %v31 = vld [vmem:[%s1 + $0x58] sm:$0xff]
  %v32 = vld [vmem:[%s1 + $0x60] sm:$0xff]
  %v33 = vld [vmem:[%s1 + $0x68] sm:$0xff]
  %v34 = vld [vmem:[%s1 + $0x70] sm:$0xff]
  %v35 = vld [vmem:[%s1 + $0x78] sm:$0xff]
  %v36 = vld [vmem:[%s1 + $0x80] sm:$0xff]
  %v37 = vld [vmem:[%s1 + $0x88] sm:$0xff]
  %v38 = vld [vmem:[%s1 + $0x90] sm:$0xff]
  %v39 = vld [vmem:[%s1 + $0x98] sm:$0xff]
  %v40 = vld [vmem:[%s1 + $0xa0] sm:$0xff]
  %v41 = vld [vmem:[%s1 + $0xa8] sm:$0xff]
  %v42 = vld [vmem:[%s1 + $0xb0] sm:$0xff]
  %v43 = vld [vmem:[%s1 + $0xb8] sm:$0xff]
  %v44 = vld [vmem:[%s1 + $0xc0] sm:$0xff]
  %v45 = vld [vmem:[%s1 + $0xc8] sm:$0xff]
  %v46 = vld [vmem:[%s1 + $0xd0] sm:$0xff]
  %v47 = vld [vmem:[%s1 + $0xd8] sm:$0xff]
  %v48 = vld [vmem:[%s1 + $0xe0] sm:$0xff]
  %v49 = vld [vmem:[%s1 + $0xe8] sm:$0xff]
  %v50 = vld [vmem:[%s1 + $0xf0] sm:$0xff]
  %v51 = vld [vmem:[%s1 + $0xf8] sm:$0xff]
  %v52 = vld [vmem:[%s1 + $0x100] sm:$0xff]
  %v53 = vld [vmem:[%s1 + $0x108] sm:$0xff]
  %v54 = vld [vmem:[%s1 + $0x110] sm:$0xff]
  %v55 = vld [vmem:[%s1 + $0x118] sm:$0xff]
  %v56 = vld [vmem:[%s1 + $0x120] sm:$0xff]
  %v57 = vld [vmem:[%s1 + $0x128] sm:$0xff]
  %v58 = vld [vmem:[%s1 + $0x130] sm:$0xff]
  %v59 = vld [vmem:[%s1 + $0x138] sm:$0xff]
  %v60 = vld [vmem:[%s1 + $0x140] sm:$0xff]
  %v61 = vld [vmem:[%s1 + $0x148] sm:$0xff]
  %v62 = vld [vmem:[%s1 + $0x150] sm:$0xff]
  %v63 = vld [vmem:[%s1 + $0x158] sm:$0xff]
  %v64 = vld [vmem:[%s1 + $0x160] sm:$0xff]
  %v65 = vld [vmem:[%s1 + $0x168] sm:$0xff]
  %v66 = vld [vmem:[%s1 + $0x170] sm:$0xff]
  %v67 = vld [vmem:[%s1 + $0x178] sm:$0xff]
  %v68 = vld [vmem:[%s1 + $0x180] sm:$0xff]
  %v69 = vld [vmem:[%s1 + $0x188] sm:$0xff]
  %v70 = vld [vmem:[%s1 + $0x190] sm:$0xff]
  %v71 = vld [vmem:[%s1 + $0x198] sm:$0xff]
  %v72 = vld [vmem:[%s1 + $0x1a0] sm:$0xff]
  %v73 = vld [vmem:[%s1 + $0x1a8] sm:$0xff]
  %v74 = vld [vmem:[%s1 + $0x1b0] sm:$0xff]
  %v75 = vld [vmem:[%s1 + $0x1b8] sm:$0xff]
  %v76 = vld [vmem:[%s1 + $0x1c0] sm:$0xff]
  %v77 = vld [vmem:[%s1 + $0x1c8] sm:$0xff]
  %v78 = vld [vmem:[%s1 + $0x1d0] sm:$0xff]
  %v79 = vld [vmem:[%s1 + $0x1d8] sm:$0xff]
  %v80 = vld [vmem:[%s1 + $0x1e0] sm:$0xff]
  %v81 = vld [vmem:[%s1 + $0x1e8] sm:$0xff]
  %v82 = vld [vmem:[%s1 + $0x1f0] sm:$0xff]
  %v83 = vld [vmem:[%s1 + $0x1f8] sm:$0xff]
  %v84 = vld [vmem:[%s1 + $0x200] sm:$0xff]
  %v85 = vld [vmem:[%s1 + $0x208] sm:$0xff]
  %v86 = vld [vmem:[%s1 + $0x210] sm:$0xff]
  %v87 = vld [vmem:[%s1 + $0x218] sm:$0xff]
  %v88 = vld [vmem:[%s1 + $0x220] sm:$0xff]
  %v89 = vld [vmem:[%s1 + $0x228] sm:$0xff]
  %v90 = vld [vmem:[%s1 + $0x230] sm:$0xff]
  %v91 = vld [vmem:[%s1 + $0x238] sm:$0xff]
  %v92 = vld [vmem:[%s1 + $0x240] sm:$0xff]
  %v93 = vld [vmem:[%s1 + $0x248] sm:$0xff]
  %v94 = vld [vmem:[%s1 + $0x250] sm:$0xff]
  %v95 = vld [vmem:[%s1 + $0x258] sm:$0xff]
  %v96 = vld [vmem:[%s1 + $0x260] sm:$0xff]
  %v97 = vld [vmem:[%s1 + $0x268] sm:$0xff]
  %v98 = vld [vmem:[%s1 + $0x270] sm:$0xff]
  %v99 = vld [vmem:[%s1 + $0x278] sm:$0xff]
  %v100 = vld [vmem:[%s1 + $0x280] sm:$0xff]
  %v101 = vld [vmem:[%s1 + $0x288] sm:$0xff]
  %v102 = vld [vmem:[%s1 + $0x290] sm:$0xff]
  %v103 = vld [vmem:[%s1 + $0x298] sm:$0xff]
  %v104 = vld [vmem:[%s1 + $0x2a0] sm:$0xff]
  %v105 = vld [vmem:[%s1 + $0x2a8] sm:$0xff]
  %v106 = vld [vmem:[%s1 + $0x2b0] sm:$0xff]
  %v107 = vld [vmem:[%s1 + $0x2b8] sm:$0xff]
  %v108 = vld [vmem:[%s1 + $0x2c0] sm:$0xff]
  %v109 = vld [vmem:[%s1 + $0x2c8] sm:$0xff]
  %v110 = vld [vmem:[%s1 + $0x2d0] sm:$0xff]
  %v111 = vld [vmem:[%s1 + $0x2d8] sm:$0xff]
  %v112 = vld [vmem:[%s1 + $0x2e0] sm:$0xff]
  %v113 = vld [vmem:[%s1 + $0x2e8] sm:$0xff]
  %v114 = vld [vmem:[%s1 + $0x2f0] sm:$0xff]
  %v115 = vld [vmem:[%s1 + $0x2f8] sm:$0xff]
  %v116 = vld [vmem:[%s1 + $0x300] sm:$0xff]
  %v117 = vld [vmem:[%s1 + $0x308] sm:$0xff]
  %v118 = vld [vmem:[%s1 + $0x310] sm:$0xff]
  %v119 = vld [vmem:[%s1 + $0x318] sm:$0xff]
  %v120 = vld [vmem:[%s1 + $0x320] sm:$0xff]
  %v121 = vld [vmem:[%s1 + $0x328] sm:$0xff]
  %v122 = vld [vmem:[%s1 + $0x330] sm:$0xff]
  %v123 = vld [vmem:[%s1 + $0x338] sm:$0xff]
  %v124 = vld [vmem:[%s1 + $0x340] sm:$0xff]
  %v125 = vld [vmem:[%s1 + $0x348] sm:$0xff]
  %v126 = vld [vmem:[%s1 + $0x350] sm:$0xff]
  %v127 = vld [vmem:[%s1 + $0x358] sm:$0xff]
  %v128 = vld [vmem:[%s1 + $0x360] sm:$0xff]
  %v129 = vld [vmem:[%s1 + $0x368] sm:$0xff]
  %v130 = vld [vmem:[%s1 + $0x370] sm:$0xff]
  %v131 = vld [vmem:[%s1 + $0x378] sm:$0xff]
  %v132 = vld [vmem:[%s1 + $0x380] sm:$0xff]
  %v133 = vld [vmem:[%s1 + $0x388] sm:$0xff]
  %v134 = vld [vmem:[%s1 + $0x390] sm:$0xff]
  %v135 = vld [vmem:[%s1 + $0x398] sm:$0xff]
  %v136 = vld [vmem:[%s1 + $0x3a0] sm:$0xff]
  %v137 = vld [vmem:[%s1 + $0x3a8] sm:$0xff]
  %v138 = vld [vmem:[%s1 + $0x3b0] sm:$0xff]
  %v139 = vld [vmem:[%s1 + $0x3b8] sm:$0xff]
  %v140 = vld [vmem:[%s1 + $0x3c0] sm:$0xff]
  %v141 = vld [vmem:[%s1 + $0x3c8] sm:$0xff]
  %v142 = vld [vmem:[%s1 + $0x3d0] sm:$0xff]
  %v143 = vld [vmem:[%s1 + $0x3d8] sm:$0xff]
  %v144 = vld [vmem:[%s1 + $0x3e0] sm:$0xff]
  %v145 = vld [vmem:[%s1 + $0x3e8] sm:$0xff]
  %v146 = vld [vmem:[%s1 + $0x3f0] sm:$0xff]
  %v147 = vld [vmem:[%s1 + $0x3f8] sm:$0xff]
  %v148 = vld [vmem:[%s2] sm:$0xff]
  %v150 = vlaneseq
  %v151 = vshrl.u32 %v150, 7
  %v152 = vsub.s32 0, %v151
  %v153 = vrot.slane %v148, %v152
  %v154 = vlaneseq
  %v155 = vshrl.u32 %v154, 7
  %v156 = vsub.s32 1, %v155
  %v157 = vrot.slane %v148, %v156
  %v158 = vlaneseq
  %v159 = vshrl.u32 %v158, 7
  %v160 = vsub.s32 2, %v159
  %v161 = vrot.slane %v148, %v160
  %v162 = vlaneseq
  %v163 = vshrl.u32 %v162, 7
  %v164 = vsub.s32 3, %v163
  %v165 = vrot.slane %v148, %v164
  %v166 = vlaneseq
  %v167 = vshrl.u32 %v166, 7
  %v168 = vsub.s32 4, %v167
  %v169 = vrot.slane %v148, %v168
  %v170 = vlaneseq
  %v171 = vshrl.u32 %v170, 7
  %v172 = vsub.s32 5, %v171
  %v173 = vrot.slane %v148, %v172
  %v174 = vlaneseq
  %v175 = vshrl.u32 %v174, 7
  %v176 = vsub.s32 6, %v175
  %v177 = vrot.slane %v148, %v176
  %v178 = vlaneseq
  %v179 = vshrl.u32 %v178, 7
  %v180 = vsub.s32 7, %v179
  %v181 = vrot.slane %v148, %v180
  %v318 = vunpack.c.l.b16 %v20
  %v319 = vunpack.c.h.b16 %v20
  %v320 = vunpack.c.l.b16 %v21
  %v321 = vunpack.c.h.b16 %v21
  %v322 = vunpack.c.l.b16 %v22
  %v323 = vunpack.c.h.b16 %v22
  %v324 = vunpack.c.l.b16 %v23
  %v325 = vunpack.c.h.b16 %v23
  %v326 = vunpack.c.l.b16 %v24
  %v327 = vunpack.c.h.b16 %v24
  %v328 = vunpack.c.l.b16 %v25
  %v329 = vunpack.c.h.b16 %v25
  %v330 = vunpack.c.l.b16 %v26
  %v331 = vunpack.c.h.b16 %v26
  %v332 = vunpack.c.l.b16 %v27
  %v333 = vunpack.c.h.b16 %v27
  %v334 = vunpack.c.l.b16 %v28
  %v335 = vunpack.c.h.b16 %v28
  %v336 = vunpack.c.l.b16 %v29
  %v337 = vunpack.c.h.b16 %v29
  %v338 = vunpack.c.l.b16 %v30
  %v339 = vunpack.c.h.b16 %v30
  %v340 = vunpack.c.l.b16 %v31
  %v341 = vunpack.c.h.b16 %v31
  %v342 = vunpack.c.l.b16 %v32
  %v343 = vunpack.c.h.b16 %v32
  %v344 = vunpack.c.l.b16 %v33
  %v345 = vunpack.c.h.b16 %v33
  %v346 = vunpack.c.l.b16 %v34
  %v347 = vunpack.c.h.b16 %v34
  %v348 = vunpack.c.l.b16 %v35
  %v349 = vunpack.c.h.b16 %v35
  %v350 = vunpack.c.l.b16 %v36
  %v351 = vunpack.c.h.b16 %v36
  %v352 = vunpack.c.l.b16 %v37
  %v353 = vunpack.c.h.b16 %v37
  %v354 = vunpack.c.l.b16 %v38
  %v355 = vunpack.c.h.b16 %v38
  %v356 = vunpack.c.l.b16 %v39
  %v357 = vunpack.c.h.b16 %v39
  %v358 = vunpack.c.l.b16 %v40
  %v359 = vunpack.c.h.b16 %v40
  %v360 = vunpack.c.l.b16 %v41
  %v361 = vunpack.c.h.b16 %v41
  %v362 = vunpack.c.l.b16 %v42
  %v363 = vunpack.c.h.b16 %v42
  %v364 = vunpack.c.l.b16 %v43
  %v365 = vunpack.c.h.b16 %v43
  %v366 = vunpack.c.l.b16 %v44
  %v367 = vunpack.c.h.b16 %v44
  %v368 = vunpack.c.l.b16 %v45
  %v369 = vunpack.c.h.b16 %v45
  %v370 = vunpack.c.l.b16 %v46
  %v371 = vunpack.c.h.b16 %v46
  %v372 = vunpack.c.l.b16 %v47
  %v373 = vunpack.c.h.b16 %v47
  %v374 = vunpack.c.l.b16 %v48
  %v375 = vunpack.c.h.b16 %v48
  %v376 = vunpack.c.l.b16 %v49
  %v377 = vunpack.c.h.b16 %v49
  %v378 = vunpack.c.l.b16 %v50
  %v379 = vunpack.c.h.b16 %v50
  %v380 = vunpack.c.l.b16 %v51
  %v381 = vunpack.c.h.b16 %v51
  %v382 = vunpack.c.l.b16 %v52
  %v383 = vunpack.c.h.b16 %v52
  %v384 = vunpack.c.l.b16 %v53
  %v385 = vunpack.c.h.b16 %v53
  %v386 = vunpack.c.l.b16 %v54
  %v387 = vunpack.c.h.b16 %v54
  %v388 = vunpack.c.l.b16 %v55
  %v389 = vunpack.c.h.b16 %v55
  %v390 = vunpack.c.l.b16 %v56
  %v391 = vunpack.c.h.b16 %v56
  %v392 = vunpack.c.l.b16 %v57
  %v393 = vunpack.c.h.b16 %v57
  %v394 = vunpack.c.l.b16 %v58
  %v395 = vunpack.c.h.b16 %v58
  %v396 = vunpack.c.l.b16 %v59
  %v397 = vunpack.c.h.b16 %v59
  %v398 = vunpack.c.l.b16 %v60
  %v399 = vunpack.c.h.b16 %v60
  %v400 = vunpack.c.l.b16 %v61
  %v401 = vunpack.c.h.b16 %v61
  %v402 = vunpack.c.l.b16 %v62
  %v403 = vunpack.c.h.b16 %v62
  %v404 = vunpack.c.l.b16 %v63
  %v405 = vunpack.c.h.b16 %v63
  %v406 = vunpack.c.l.b16 %v64
  %v407 = vunpack.c.h.b16 %v64
  %v408 = vunpack.c.l.b16 %v65
  %v409 = vunpack.c.h.b16 %v65
  %v410 = vunpack.c.l.b16 %v66
  %v411 = vunpack.c.h.b16 %v66
  %v412 = vunpack.c.l.b16 %v67
  %v413 = vunpack.c.h.b16 %v67
  %v414 = vunpack.c.l.b16 %v68
  %v415 = vunpack.c.h.b16 %v68
  %v416 = vunpack.c.l.b16 %v69
  %v417 = vunpack.c.h.b16 %v69
  %v418 = vunpack.c.l.b16 %v70
  %v419 = vunpack.c.h.b16 %v70
  %v420 = vunpack.c.l.b16 %v71
  %v421 = vunpack.c.h.b16 %v71
  %v422 = vunpack.c.l.b16 %v72
  %v423 = vunpack.c.h.b16 %v72
  %v424 = vunpack.c.l.b16 %v73
  %v425 = vunpack.c.h.b16 %v73
  %v426 = vunpack.c.l.b16 %v74
  %v427 = vunpack.c.h.b16 %v74
  %v428 = vunpack.c.l.b16 %v75
  %v429 = vunpack.c.h.b16 %v75
  %v430 = vunpack.c.l.b16 %v76
  %v431 = vunpack.c.h.b16 %v76
  %v432 = vunpack.c.l.b16 %v77
  %v433 = vunpack.c.h.b16 %v77
  %v434 = vunpack.c.l.b16 %v78
  %v435 = vunpack.c.h.b16 %v78
  %v436 = vunpack.c.l.b16 %v79
  %v437 = vunpack.c.h.b16 %v79
  %v438 = vunpack.c.l.b16 %v80
  %v439 = vunpack.c.h.b16 %v80
  %v440 = vunpack.c.l.b16 %v81
  %v441 = vunpack.c.h.b16 %v81
  %v442 = vunpack.c.l.b16 %v82
  %v443 = vunpack.c.h.b16 %v82
  %v444 = vunpack.c.l.b16 %v83
  %v445 = vunpack.c.h.b16 %v83
  %v446 = vunpack.c.l.b16 %v84
  %v447 = vunpack.c.h.b16 %v84
  %v448 = vunpack.c.l.b16 %v85
  %v449 = vunpack.c.h.b16 %v85
  %v450 = vunpack.c.l.b16 %v86
  %v451 = vunpack.c.h.b16 %v86
  %v452 = vunpack.c.l.b16 %v87
  %v453 = vunpack.c.h.b16 %v87
  %v454 = vunpack.c.l.b16 %v88
  %v455 = vunpack.c.h.b16 %v88
  %v456 = vunpack.c.l.b16 %v89
  %v457 = vunpack.c.h.b16 %v89
  %v458 = vunpack.c.l.b16 %v90
  %v459 = vunpack.c.h.b16 %v90
  %v460 = vunpack.c.l.b16 %v91
  %v461 = vunpack.c.h.b16 %v91
  %v462 = vunpack.c.l.b16 %v92
  %v463 = vunpack.c.h.b16 %v92
  %v464 = vunpack.c.l.b16 %v93
  %v465 = vunpack.c.h.b16 %v93
  %v466 = vunpack.c.l.b16 %v94
  %v467 = vunpack.c.h.b16 %v94
  %v468 = vunpack.c.l.b16 %v95
  %v469 = vunpack.c.h.b16 %v95
  %v470 = vunpack.c.l.b16 %v96
  %v471 = vunpack.c.h.b16 %v96
  %v472 = vunpack.c.l.b16 %v97
  %v473 = vunpack.c.h.b16 %v97
  %v474 = vunpack.c.l.b16 %v98
  %v475 = vunpack.c.h.b16 %v98
  %v476 = vunpack.c.l.b16 %v99
  %v477 = vunpack.c.h.b16 %v99
  %v478 = vunpack.c.l.b16 %v100
  %v479 = vunpack.c.h.b16 %v100
  %v480 = vunpack.c.l.b16 %v101
  %v481 = vunpack.c.h.b16 %v101
  %v482 = vunpack.c.l.b16 %v102
  %v483 = vunpack.c.h.b16 %v102
  %v484 = vunpack.c.l.b16 %v103
  %v485 = vunpack.c.h.b16 %v103
  %v486 = vunpack.c.l.b16 %v104
  %v487 = vunpack.c.h.b16 %v104
  %v488 = vunpack.c.l.b16 %v105
  %v489 = vunpack.c.h.b16 %v105
  %v490 = vunpack.c.l.b16 %v106
  %v491 = vunpack.c.h.b16 %v106
  %v492 = vunpack.c.l.b16 %v107
  %v493 = vunpack.c.h.b16 %v107
  %v494 = vunpack.c.l.b16 %v108
  %v495 = vunpack.c.h.b16 %v108
  %v496 = vunpack.c.l.b16 %v109
  %v497 = vunpack.c.h.b16 %v109
  %v498 = vunpack.c.l.b16 %v110
  %v499 = vunpack.c.h.b16 %v110
  %v500 = vunpack.c.l.b16 %v111
  %v501 = vunpack.c.h.b16 %v111
  %v502 = vunpack.c.l.b16 %v112
  %v503 = vunpack.c.h.b16 %v112
  %v504 = vunpack.c.l.b16 %v113
  %v505 = vunpack.c.h.b16 %v113
  %v506 = vunpack.c.l.b16 %v114
  %v507 = vunpack.c.h.b16 %v114
  %v508 = vunpack.c.l.b16 %v115
  %v509 = vunpack.c.h.b16 %v115
  %v510 = vunpack.c.l.b16 %v116
  %v511 = vunpack.c.h.b16 %v116
  %v512 = vunpack.c.l.b16 %v117
  %v513 = vunpack.c.h.b16 %v117
  %v514 = vunpack.c.l.b16 %v118
  %v515 = vunpack.c.h.b16 %v118
  %v516 = vunpack.c.l.b16 %v119
  %v517 = vunpack.c.h.b16 %v119
  %v518 = vunpack.c.l.b16 %v120
  %v519 = vunpack.c.h.b16 %v120
  %v520 = vunpack.c.l.b16 %v121
  %v521 = vunpack.c.h.b16 %v121
  %v522 = vunpack.c.l.b16 %v122
  %v523 = vunpack.c.h.b16 %v122
  %v524 = vunpack.c.l.b16 %v123
  %v525 = vunpack.c.h.b16 %v123
  %v526 = vunpack.c.l.b16 %v124
  %v527 = vunpack.c.h.b16 %v124
  %v528 = vunpack.c.l.b16 %v125
  %v529 = vunpack.c.h.b16 %v125
  %v530 = vunpack.c.l.b16 %v126
  %v531 = vunpack.c.h.b16 %v126
  %v532 = vunpack.c.l.b16 %v127
  %v533 = vunpack.c.h.b16 %v127
  %v534 = vunpack.c.l.b16 %v128
  %v535 = vunpack.c.h.b16 %v128
  %v536 = vunpack.c.l.b16 %v129
  %v537 = vunpack.c.h.b16 %v129
  %v538 = vunpack.c.l.b16 %v130
  %v539 = vunpack.c.h.b16 %v130
  %v540 = vunpack.c.l.b16 %v131
  %v541 = vunpack.c.h.b16 %v131
  %v542 = vunpack.c.l.b16 %v132
  %v543 = vunpack.c.h.b16 %v132
  %v544 = vunpack.c.l.b16 %v133
  %v545 = vunpack.c.h.b16 %v133
  %v546 = vunpack.c.l.b16 %v134
  %v547 = vunpack.c.h.b16 %v134
  %v548 = vunpack.c.l.b16 %v135
  %v549 = vunpack.c.h.b16 %v135
  %v550 = vunpack.c.l.b16 %v136
  %v551 = vunpack.c.h.b16 %v136
  %v552 = vunpack.c.l.b16 %v137
  %v553 = vunpack.c.h.b16 %v137
  %v554 = vunpack.c.l.b16 %v138
  %v555 = vunpack.c.h.b16 %v138
  %v556 = vunpack.c.l.b16 %v139
  %v557 = vunpack.c.h.b16 %v139
  %v558 = vunpack.c.l.b16 %v140
  %v559 = vunpack.c.h.b16 %v140
  %v560 = vunpack.c.l.b16 %v141
  %v561 = vunpack.c.h.b16 %v141
  %v562 = vunpack.c.l.b16 %v142
  %v563 = vunpack.c.h.b16 %v142
  %v564 = vunpack.c.l.b16 %v143
  %v565 = vunpack.c.h.b16 %v143
  %v566 = vunpack.c.l.b16 %v144
  %v567 = vunpack.c.h.b16 %v144
  %v568 = vunpack.c.l.b16 %v145
  %v569 = vunpack.c.h.b16 %v145
  %v570 = vunpack.c.l.b16 %v146
  %v571 = vunpack.c.h.b16 %v146
  %v572 = vunpack.c.l.b16 %v147
  %v573 = vunpack.c.h.b16 %v147
  %v574 = vpack.c.b16 %v326, %v318
  %v575 = vpack.c.b16 %v327, %v319
  %v576 = vpack.c.b16 %v328, %v320
  %v577 = vpack.c.b16 %v329, %v321
  %v578 = vpack.c.b16 %v330, %v322
  %v579 = vpack.c.b16 %v331, %v323
  %v580 = vpack.c.b16 %v332, %v324
  %v581 = vpack.c.b16 %v333, %v325
  %v582 = vpack.c.b16 %v342, %v334
  %v583 = vpack.c.b16 %v343, %v335
  %v584 = vpack.c.b16 %v344, %v336
  %v585 = vpack.c.b16 %v345, %v337
  %v586 = vpack.c.b16 %v346, %v338
  %v587 = vpack.c.b16 %v347, %v339
  %v588 = vpack.c.b16 %v348, %v340
  %v589 = vpack.c.b16 %v349, %v341
  %v590 = vpack.c.b16 %v358, %v350
  %v591 = vpack.c.b16 %v359, %v351
  %v592 = vpack.c.b16 %v360, %v352
  %v593 = vpack.c.b16 %v361, %v353
  %v594 = vpack.c.b16 %v362, %v354
  %v595 = vpack.c.b16 %v363, %v355
  %v596 = vpack.c.b16 %v364, %v356
  %v597 = vpack.c.b16 %v365, %v357
  %v598 = vpack.c.b16 %v374, %v366
  %v599 = vpack.c.b16 %v375, %v367
  %v600 = vpack.c.b16 %v376, %v368
  %v601 = vpack.c.b16 %v377, %v369
  %v602 = vpack.c.b16 %v378, %v370
  %v603 = vpack.c.b16 %v379, %v371
  %v604 = vpack.c.b16 %v380, %v372
  %v605 = vpack.c.b16 %v381, %v373
  %v606 = vpack.c.b16 %v390, %v382
  %v607 = vpack.c.b16 %v391, %v383
  %v608 = vpack.c.b16 %v392, %v384
  %v609 = vpack.c.b16 %v393, %v385
  %v610 = vpack.c.b16 %v394, %v386
  %v611 = vpack.c.b16 %v395, %v387
  %v612 = vpack.c.b16 %v396, %v388
  %v613 = vpack.c.b16 %v397, %v389
  %v614 = vpack.c.b16 %v406, %v398
  %v615 = vpack.c.b16 %v407, %v399
  %v616 = vpack.c.b16 %v408, %v400
  %v617 = vpack.c.b16 %v409, %v401
  %v618 = vpack.c.b16 %v410, %v402
  %v619 = vpack.c.b16 %v411, %v403
  %v620 = vpack.c.b16 %v412, %v404
  %v621 = vpack.c.b16 %v413, %v405
  %v622 = vpack.c.b16 %v422, %v414
  %v623 = vpack.c.b16 %v423, %v415
  %v624 = vpack.c.b16 %v424, %v416
  %v625 = vpack.c.b16 %v425, %v417
  %v626 = vpack.c.b16 %v426, %v418
  %v627 = vpack.c.b16 %v427, %v419
  %v628 = vpack.c.b16 %v428, %v420
  %v629 = vpack.c.b16 %v429, %v421
  %v630 = vpack.c.b16 %v438, %v430
  %v631 = vpack.c.b16 %v439, %v431
  %v632 = vpack.c.b16 %v440, %v432
  %v633 = vpack.c.b16 %v441, %v433
  %v634 = vpack.c.b16 %v442, %v434
  %v635 = vpack.c.b16 %v443, %v435
  %v636 = vpack.c.b16 %v444, %v436
  %v637 = vpack.c.b16 %v445, %v437
  %v638 = vpack.c.b16 %v454, %v446
  %v639 = vpack.c.b16 %v455, %v447
  %v640 = vpack.c.b16 %v456, %v448
  %v641 = vpack.c.b16 %v457, %v449
  %v642 = vpack.c.b16 %v458, %v450
  %v643 = vpack.c.b16 %v459, %v451
  %v644 = vpack.c.b16 %v460, %v452
  %v645 = vpack.c.b16 %v461, %v453
  %v646 = vpack.c.b16 %v470, %v462
  %v647 = vpack.c.b16 %v471, %v463
  %v648 = vpack.c.b16 %v472, %v464
  %v649 = vpack.c.b16 %v473, %v465
  %v650 = vpack.c.b16 %v474, %v466
  %v651 = vpack.c.b16 %v475, %v467
  %v652 = vpack.c.b16 %v476, %v468
  %v653 = vpack.c.b16 %v477, %v469
  %v654 = vpack.c.b16 %v486, %v478
  %v655 = vpack.c.b16 %v487, %v479
  %v656 = vpack.c.b16 %v488, %v480
  %v657 = vpack.c.b16 %v489, %v481
  %v658 = vpack.c.b16 %v490, %v482
  %v659 = vpack.c.b16 %v491, %v483
  %v660 = vpack.c.b16 %v492, %v484
  %v661 = vpack.c.b16 %v493, %v485
  %v662 = vpack.c.b16 %v502, %v494
  %v663 = vpack.c.b16 %v503, %v495
  %v664 = vpack.c.b16 %v504, %v496
  %v665 = vpack.c.b16 %v505, %v497
  %v666 = vpack.c.b16 %v506, %v498
  %v667 = vpack.c.b16 %v507, %v499
  %v668 = vpack.c.b16 %v508, %v500
  %v669 = vpack.c.b16 %v509, %v501
  %v670 = vpack.c.b16 %v518, %v510
  %v671 = vpack.c.b16 %v519, %v511
  %v672 = vpack.c.b16 %v520, %v512
  %v673 = vpack.c.b16 %v521, %v513
  %v674 = vpack.c.b16 %v522, %v514
  %v675 = vpack.c.b16 %v523, %v515
  %v676 = vpack.c.b16 %v524, %v516
  %v677 = vpack.c.b16 %v525, %v517
  %v678 = vpack.c.b16 %v534, %v526
  %v679 = vpack.c.b16 %v535, %v527
  %v680 = vpack.c.b16 %v536, %v528
  %v681 = vpack.c.b16 %v537, %v529
  %v682 = vpack.c.b16 %v538, %v530
  %v683 = vpack.c.b16 %v539, %v531
  %v684 = vpack.c.b16 %v540, %v532
  %v685 = vpack.c.b16 %v541, %v533
  %v686 = vpack.c.b16 %v550, %v542
  %v687 = vpack.c.b16 %v551, %v543
  %v688 = vpack.c.b16 %v552, %v544
  %v689 = vpack.c.b16 %v553, %v545
  %v690 = vpack.c.b16 %v554, %v546
  %v691 = vpack.c.b16 %v555, %v547
  %v692 = vpack.c.b16 %v556, %v548
  %v693 = vpack.c.b16 %v557, %v549
  %v694 = vpack.c.b16 %v566, %v558
  %v695 = vpack.c.b16 %v567, %v559
  %v696 = vpack.c.b16 %v568, %v560
  %v697 = vpack.c.b16 %v569, %v561
  %v698 = vpack.c.b16 %v570, %v562
  %v699 = vpack.c.b16 %v571, %v563
  %v700 = vpack.c.b16 %v572, %v564
  %v701 = vpack.c.b16 %v573, %v565
  %830 = vmatprep.subr.bf16.mxu0 %v575
  %831 = vmatpush1.bf16.msra.mxu0 %v574
  %832 = vmatprep.subr.bf16.mxu0 %v583
  %833 = vmatpush1.bf16.msra.mxu0 %v582
  %834 = vmatprep.subr.bf16.mxu0 %v591
  %835 = vmatpush1.bf16.msra.mxu0 %v590
  %836 = vmatprep.subr.bf16.mxu0 %v599
  %837 = vmatpush1.bf16.msra.mxu0 %v598
  %838 = vmatprep.subr.bf16.mxu0 %v607
  %839 = vmatpush1.bf16.msra.mxu0 %v606
  %840 = vmatprep.subr.bf16.mxu0 %v615
  %841 = vmatpush1.bf16.msra.mxu0 %v614
  %842 = vmatprep.subr.bf16.mxu0 %v623
  %843 = vmatpush1.bf16.msra.mxu0 %v622
  %844 = vmatprep.subr.bf16.mxu0 %v631
  %845 = vmatpush1.bf16.msra.mxu0 %v630
  %846 = vmatprep.subr.bf16.mxu0 %v639
  %847 = vmatpush1.bf16.msra.mxu0 %v638
  %848 = vmatprep.subr.bf16.mxu0 %v647
  %849 = vmatpush1.bf16.msra.mxu0 %v646
  %850 = vmatprep.subr.bf16.mxu0 %v655
  %851 = vmatpush1.bf16.msra.mxu0 %v654
  %852 = vmatprep.subr.bf16.mxu0 %v663
  %853 = vmatpush1.bf16.msra.mxu0 %v662
  %854 = vmatprep.subr.bf16.mxu0 %v671
  %855 = vmatpush1.bf16.msra.mxu0 %v670
  %856 = vmatprep.subr.bf16.mxu0 %v679
  %857 = vmatpush1.bf16.msra.mxu0 %v678
  %858 = vmatprep.subr.bf16.mxu0 %v687
  %859 = vmatpush1.bf16.msra.mxu0 %v686
  %860 = vmatprep.subr.bf16.mxu0 %v695
  %861 = vmatpush1.bf16.msra.mxu0 %v694
  %862 = vmatprep.mubr.bf16.mxu0 %v19
  %863 = vmatmul.mubr.bf16.gmra.mrb[0].mxu0 %v18
  %v864 = vpop.f32.mrb[0].mxu0
  %v865 = vadd.f32 %v153, %v864
  %v866 = vpop.f32.mrb[0].mxu0
  %v867 = vadd.f32 %v157, %v866
  %v868 = vpop.f32.mrb[0].mxu0
  %v869 = vadd.f32 %v153, %v868
  %v870 = vpop.f32.mrb[0].mxu0
  %v871 = vadd.f32 %v157, %v870
  %872 = vdwg.mxu0
  %873 = vmatprep.subr.bf16.mxu0 %v577
  %874 = vmatpush1.bf16.msra.mxu0 %v576
  %875 = vmatprep.subr.bf16.mxu0 %v585
  %876 = vmatpush1.bf16.msra.mxu0 %v584
  %877 = vmatprep.subr.bf16.mxu0 %v593
  %878 = vmatpush1.bf16.msra.mxu0 %v592
  %879 = vmatprep.subr.bf16.mxu0 %v601
  %880 = vmatpush1.bf16.msra.mxu0 %v600
  %881 = vmatprep.subr.bf16.mxu0 %v609
  %882 = vmatpush1.bf16.msra.mxu0 %v608
  %883 = vmatprep.subr.bf16.mxu0 %v617
  %884 = vmatpush1.bf16.msra.mxu0 %v616
  %885 = vmatprep.subr.bf16.mxu0 %v625
  %886 = vmatpush1.bf16.msra.mxu0 %v624
  %887 = vmatprep.subr.bf16.mxu0 %v633
  %888 = vmatpush1.bf16.msra.mxu0 %v632
  %889 = vmatprep.subr.bf16.mxu0 %v641
  %890 = vmatpush1.bf16.msra.mxu0 %v640
  %891 = vmatprep.subr.bf16.mxu0 %v649
  %892 = vmatpush1.bf16.msra.mxu0 %v648
  %893 = vmatprep.subr.bf16.mxu0 %v657
  %894 = vmatpush1.bf16.msra.mxu0 %v656
  %895 = vmatprep.subr.bf16.mxu0 %v665
  %896 = vmatpush1.bf16.msra.mxu0 %v664
  %897 = vmatprep.subr.bf16.mxu0 %v673
  %898 = vmatpush1.bf16.msra.mxu0 %v672
  %899 = vmatprep.subr.bf16.mxu0 %v681
  %900 = vmatpush1.bf16.msra.mxu0 %v680
  %901 = vmatprep.subr.bf16.mxu0 %v689
  %902 = vmatpush1.bf16.msra.mxu0 %v688
  %903 = vmatprep.subr.bf16.mxu0 %v697
  %904 = vmatpush1.bf16.msra.mxu0 %v696
  %905 = vmatprep.mubr.bf16.mxu0 %v19
  %906 = vmatmul.mubr.bf16.gmra.mrb[0].mxu0 %v18
  %v907 = vpop.f32.mrb[0].mxu0
  %v908 = vadd.f32 %v161, %v907
  %v909 = vpop.f32.mrb[0].mxu0
  %v910 = vadd.f32 %v165, %v909
  %v911 = vpop.f32.mrb[0].mxu0
  %v912 = vadd.f32 %v161, %v911
  %v913 = vpop.f32.mrb[0].mxu0
  %v914 = vadd.f32 %v165, %v913
  %915 = vdwg.mxu0
  %916 = vmatprep.subr.bf16.mxu0 %v579
  %917 = vmatpush1.bf16.msra.mxu0 %v578
  %918 = vmatprep.subr.bf16.mxu0 %v587
  %919 = vmatpush1.bf16.msra.mxu0 %v586
  %920 = vmatprep.subr.bf16.mxu0 %v595
  %921 = vmatpush1.bf16.msra.mxu0 %v594
  %922 = vmatprep.subr.bf16.mxu0 %v603
  %923 = vmatpush1.bf16.msra.mxu0 %v602
  %924 = vmatprep.subr.bf16.mxu0 %v611
  %925 = vmatpush1.bf16.msra.mxu0 %v610
  %926 = vmatprep.subr.bf16.mxu0 %v619
  %927 = vmatpush1.bf16.msra.mxu0 %v618
  %928 = vmatprep.subr.bf16.mxu0 %v627
  %929 = vmatpush1.bf16.msra.mxu0 %v626
  %930 = vmatprep.subr.bf16.mxu0 %v635
  %931 = vmatpush1.bf16.msra.mxu0 %v634
  %932 = vmatprep.subr.bf16.mxu0 %v643
  %933 = vmatpush1.bf16.msra.mxu0 %v642
  %934 = vmatprep.subr.bf16.mxu0 %v651
  %935 = vmatpush1.bf16.msra.mxu0 %v650
  %936 = vmatprep.subr.bf16.mxu0 %v659
  %937 = vmatpush1.bf16.msra.mxu0 %v658
  %938 = vmatprep.subr.bf16.mxu0 %v667
  %939 = vmatpush1.bf16.msra.mxu0 %v666
  %940 = vmatprep.subr.bf16.mxu0 %v675
  %941 = vmatpush1.bf16.msra.mxu0 %v674
  %942 = vmatprep.subr.bf16.mxu0 %v683
  %943 = vmatpush1.bf16.msra.mxu0 %v682
  %944 = vmatprep.subr.bf16.mxu0 %v691
  %945 = vmatpush1.bf16.msra.mxu0 %v690
  %946 = vmatprep.subr.bf16.mxu0 %v699
  %947 = vmatpush1.bf16.msra.mxu0 %v698
  %948 = vmatprep.mubr.bf16.mxu0 %v19
  %949 = vmatmul.mubr.bf16.gmra.mrb[0].mxu0 %v18
  %v950 = vpop.f32.mrb[0].mxu0
  %v951 = vadd.f32 %v169, %v950
  %v952 = vpop.f32.mrb[0].mxu0
  %v953 = vadd.f32 %v173, %v952
  %v954 = vpop.f32.mrb[0].mxu0
  %v955 = vadd.f32 %v169, %v954
  %v956 = vpop.f32.mrb[0].mxu0
  %v957 = vadd.f32 %v173, %v956
  %958 = vdwg.mxu0
  %959 = vmatprep.subr.bf16.mxu0 %v581
  %960 = vmatpush1.bf16.msra.mxu0 %v580
  %961 = vmatprep.subr.bf16.mxu0 %v589
  %962 = vmatpush1.bf16.msra.mxu0 %v588
  %963 = vmatprep.subr.bf16.mxu0 %v597
  %964 = vmatpush1.bf16.msra.mxu0 %v596
  %965 = vmatprep.subr.bf16.mxu0 %v605
  %966 = vmatpush1.bf16.msra.mxu0 %v604
  %967 = vmatprep.subr.bf16.mxu0 %v613
  %968 = vmatpush1.bf16.msra.mxu0 %v612
  %969 = vmatprep.subr.bf16.mxu0 %v621
  %970 = vmatpush1.bf16.msra.mxu0 %v620
  %971 = vmatprep.subr.bf16.mxu0 %v629
  %972 = vmatpush1.bf16.msra.mxu0 %v628
  %973 = vmatprep.subr.bf16.mxu0 %v637
  %974 = vmatpush1.bf16.msra.mxu0 %v636
  %975 = vmatprep.subr.bf16.mxu0 %v645
  %976 = vmatpush1.bf16.msra.mxu0 %v644
  %977 = vmatprep.subr.bf16.mxu0 %v653
  %978 = vmatpush1.bf16.msra.mxu0 %v652
  %979 = vmatprep.subr.bf16.mxu0 %v661
  %980 = vmatpush1.bf16.msra.mxu0 %v660
  %981 = vmatprep.subr.bf16.mxu0 %v669
  %982 = vmatpush1.bf16.msra.mxu0 %v668
  %983 = vmatprep.subr.bf16.mxu0 %v677
  %984 = vmatpush1.bf16.msra.mxu0 %v676
  %985 = vmatprep.subr.bf16.mxu0 %v685
  %986 = vmatpush1.bf16.msra.mxu0 %v684
  %987 = vmatprep.subr.bf16.mxu0 %v693
  %988 = vmatpush1.bf16.msra.mxu0 %v692
  %989 = vmatprep.subr.bf16.mxu0 %v701
  %990 = vmatpush1.bf16.msra.mxu0 %v700
  %991 = vmatprep.mubr.bf16.mxu0 %v19
  %992 = vmatmul.mubr.bf16.gmra.mrb[0].mxu0 %v18
  %v993 = vpop.f32.mrb[0].mxu0
  %v994 = vadd.f32 %v177, %v993
  %v995 = vpop.f32.mrb[0].mxu0
  %v996 = vadd.f32 %v181, %v995
  %v997 = vpop.f32.mrb[0].mxu0
  %v998 = vadd.f32 %v177, %v997
  %v999 = vpop.f32.mrb[0].mxu0
  %v1000 = vadd.f32 %v181, %v999
  %1001 = vdwg.mxu0
  %1002 = vst [vmem:[%s3] sm:$0xff] %v865
  %1003 = vst [vmem:[%s3 + $0x8] sm:$0xff] %v867
  %1004 = vst [vmem:[%s3 + $0x10] sm:$0xff] %v908
  %1005 = vst [vmem:[%s3 + $0x18] sm:$0xff] %v910
  %1006 = vst [vmem:[%s3 + $0x20] sm:$0xff] %v951
  %1007 = vst [vmem:[%s3 + $0x28] sm:$0xff] %v953
  %1008 = vst [vmem:[%s3 + $0x30] sm:$0xff] %v994
  %1009 = vst [vmem:[%s3 + $0x38] sm:$0xff] %v996
  %1010 = vst [vmem:[%s3 + $0x40] sm:$0xff] %v869
  %1011 = vst [vmem:[%s3 + $0x48] sm:$0xff] %v871
  %1012 = vst [vmem:[%s3 + $0x50] sm:$0xff] %v912
  %1013 = vst [vmem:[%s3 + $0x58] sm:$0xff] %v914
  %1014 = vst [vmem:[%s3 + $0x60] sm:$0xff] %v955
  %1015 = vst [vmem:[%s3 + $0x68] sm:$0xff] %v957
  %1016 = vst [vmem:[%s3 + $0x70] sm:$0xff] %v998
  %1017 = vst [vmem:[%s3 + $0x78] sm:$0xff] %v1000
  // Predicated region
  $region14: #{forward.9} parent=0 // pred_check
    _
  $region15: #{forward.9} parent=0 // pred_check_branch
    %1019 = sbr.rel (0) target = $region17
  $region16: #{forward.9} parent=0 // pred_region
    _
  $region17: #{forward.9} parent=0 // pred_fallthru
    _
  // Predicated region
  $region18: #{forward.9} parent=0 // pred_check
    _
  $region19: #{forward.9} parent=0 // pred_check_branch
    %1021 = sbr.rel (0) target = $region21
  $region20: #{forward.9} parent=0 // pred_region
    _
  $region21: #{forward.9} parent=0 // pred_fallthru
    _

// kernel: forward.13
$region0: #{forward.13}
  #allocation0 [shape = 'u32[]', space=smem, size = 0x4, offset = 0x4, fixed_abs, tag = 'smem constant byte address 0x4 - core index']
  #allocation1 [shape = 'u32[144,128]{1,0:T(1,128)}', space=vmem, size = 0x12000, scoped, tag = 'internal scratch']
  %s0 = inlined_call_operand.vmem [shape: f32[16,256], index: 0, kind: input, shape index: {}]
  %s1 = inlined_call_operand.vmem [shape: bf16[256,768], index: 1, kind: input, shape index: {}]
  %s2 = inlined_call_operand.vmem [shape: f32[1,768], index: 2, kind: input, shape index: {}]
  %s3 = inlined_call_operand.vmem [shape: bf16[256,256], index: 3, kind: input, shape index: {}]
  %s4 = inlined_call_operand.vmem [shape: f32[1,256], index: 4, kind: input, shape index: {}]
  %s5 = inlined_call_operand.vmem [shape: bf16[256,128], index: 5, kind: input, shape index: {}]
  %s6 = inlined_call_operand.vmem [shape: f32[1,128], index: 6, kind: input, shape index: {}]
  %s7 = inlined_call_operand.vmem [shape: bf16[128,64], index: 7, kind: input, shape index: {}]
  %s8 = inlined_call_operand.vmem [shape: f32[1,64], index: 8, kind: input, shape index: {}]
  %s9 = inlined_call_operand.vmem [shape: bf16[64,32], index: 9, kind: input, shape index: {}]
  %s10 = inlined_call_operand.vmem [shape: f32[1,32], index: 10, kind: input, shape index: {}]
  %s11 = inlined_call_operand.vmem [shape: bf16[32,128], index: 11, kind: input, shape index: {}]
  %s12 = inlined_call_operand.vmem [shape: f32[1,128], index: 12, kind: input, shape index: {}]
  %s13 = inlined_call_operand.hbm [shape: f32[2,128], index: 13, kind: output, shape index: {}]
  %s14 = sld [smem:[#allocation0]]
  $region62: #{forward.13} parent=0
    _
  %s16 = ssub.s32 1, %s14
  %s17 = scalar_select 0, %s16, %s14
  $region1: #{forward.13} parent=0
    #allocation2 [shape = 'u8[1024]{0}', space=vmem, size = 0x400, scoped, tag = 'output window, operand 0, single buffered']
    #allocation3 [shape = 's32[1]{0}', space=sflag, size = 0x4, scoped, tag = 'scoped memory for forward.13']
    %18 = vsyncpa [#allocation3], 0
    // Predicated region
    $region2: #{forward.13} parent=1 // pred_check
      _
    $region3: #{forward.13} parent=1 // pred_check_branch
      %20 = sbr.rel (0) target = $region5
    $region4: #{forward.13} parent=1 // pred_region
      _
    $region5: #{forward.13} parent=1 // pred_fallthru
      _
    // Predicated region
    $region6: #{forward.13} parent=1 // pred_check
      _
    $region7: #{forward.13} parent=1 // pred_check_branch
      %22 = sbr.rel (0) target = $region9
    $region8: #{forward.13} parent=1 // pred_region
      _
    $region9: #{forward.13} parent=1 // pred_fallthru
      _
    // Predicated region
    $region10: #{forward.13} parent=1 // pred_check
      _
    $region11: #{forward.13} parent=1 // pred_check_branch
      %24 = sbr.rel (0) target = $region13
    $region12: #{forward.13} parent=1 // pred_region
      _
    $region13: #{forward.13} parent=1 // pred_fallthru
      _
    // Predicated region
    $region14: #{forward.13} parent=1 // pred_check
      _
    $region15: #{forward.13} parent=1 // pred_check_branch
      %26 = sbr.rel (0) target = $region17
    $region16: #{forward.13} parent=1 // pred_region
      _
    $region17: #{forward.13} parent=1 // pred_fallthru
      _
    // Predicated region
    $region18: #{forward.13} parent=1 // pred_check
      _
    $region19: #{forward.13} parent=1 // pred_check_branch
      %28 = sbr.rel (0) target = $region21
    $region20: #{forward.13} parent=1 // pred_region
      _
    $region21: #{forward.13} parent=1 // pred_fallthru
      _
    // Predicated region
    $region22: #{forward.13} parent=1 // pred_check
      _
    $region23: #{forward.13} parent=1 // pred_check_branch
      %30 = sbr.rel (0) target = $region25
    $region24: #{forward.13} parent=1 // pred_region
      _
    $region25: #{forward.13} parent=1 // pred_fallthru
      _
    // Predicated region
    $region26: #{forward.13} parent=1 // pred_check
      _
    $region27: #{forward.13} parent=1 // pred_check_branch
      %32 = sbr.rel (0) target = $region29
    $region28: #{forward.13} parent=1 // pred_region
      _
    $region29: #{forward.13} parent=1 // pred_fallthru
      _
    // Predicated region
    $region30: #{forward.13} parent=1 // pred_check
      _
    $region31: #{forward.13} parent=1 // pred_check_branch
      %34 = sbr.rel (0) target = $region33
    $region32: #{forward.13} parent=1 // pred_region
      _
    $region33: #{forward.13} parent=1 // pred_fallthru
      _
    // Predicated region
    $region34: #{forward.13} parent=1 // pred_check
      _
    $region35: #{forward.13} parent=1 // pred_check_branch
      %36 = sbr.rel (0) target = $region37
    $region36: #{forward.13} parent=1 // pred_region
      _
    $region37: #{forward.13} parent=1 // pred_fallthru
      _
    // Predicated region
    $region38: #{forward.13} parent=1 // pred_check
      _
    $region39: #{forward.13} parent=1 // pred_check_branch
      %38 = sbr.rel (0) target = $region41
    $region40: #{forward.13} parent=1 // pred_region
      _
    $region41: #{forward.13} parent=1 // pred_fallthru
      _
    // Predicated region
    $region42: #{forward.13} parent=1 // pred_check
      _
    $region43: #{forward.13} parent=1 // pred_check_branch
      %40 = sbr.rel (0) target = $region45
    $region44: #{forward.13} parent=1 // pred_region
      _
    $region45: #{forward.13} parent=1 // pred_fallthru
      _
    // Predicated region
    $region46: #{forward.13} parent=1 // pred_check
      _
    $region47: #{forward.13} parent=1 // pred_check_branch
      %42 = sbr.rel (0) target = $region49
    $region48: #{forward.13} parent=1 // pred_region
      _
    $region49: #{forward.13} parent=1 // pred_fallthru
      _
    // Predicated region
    $region50: #{forward.13} parent=1 // pred_check
      _
    $region51: #{forward.13} parent=1 // pred_check_branch
      %44 = sbr.rel (0) target = $region53
    $region52: #{forward.13} parent=1 // pred_region
      _
    $region53: #{forward.13} parent=1 // pred_fallthru
      _
    %v46 = vld [vmem:[%s0] sm:$0xff]
    %v47 = vld [vmem:[%s0 + $0x8] sm:$0xff]
    %v48 = vld [vmem:[%s0 + $0x10] sm:$0xff]
    %v49 = vld [vmem:[%s0 + $0x18] sm:$0xff]
    %v50 = vpack.c.bf16 %v48, %v46
    %v51 = vpack.c.bf16 %v49, %v47
    %v52 = vld [vmem:[%s1] sm:$0xff]
    %v53 = vld [vmem:[%s1 + $0x8] sm:$0xff]
    %v54 = vld [vmem:[%s1 + $0x10] sm:$0xff]
    %v55 = vld [vmem:[%s1 + $0x18] sm:$0xff]
    %v56 = vld [vmem:[%s1 + $0x20] sm:$0xff]
    %v57 = vld [vmem:[%s1 + $0x28] sm:$0xff]
    %v58 = vld [vmem:[%s1 + $0x30] sm:$0xff]
    %v59 = vld [vmem:[%s1 + $0x38] sm:$0xff]
    %v60 = vld [vmem:[%s1 + $0x40] sm:$0xff]
    %v61 = vld [vmem:[%s1 + $0x48] sm:$0xff]
    %v62 = vld [vmem:[%s1 + $0x50] sm:$0xff]
    %v63 = vld [vmem:[%s1 + $0x58] sm:$0xff]
    %v64 = vld [vmem:[%s1 + $0x60] sm:$0xff]
    %v65 = vld [vmem:[%s1 + $0x68] sm:$0xff]
    %v66 = vld [vmem:[%s1 + $0x70] sm:$0xff]
    %v67 = vld [vmem:[%s1 + $0x78] sm:$0xff]
    %v68 = vld [vmem:[%s1 + $0x80] sm:$0xff]
    %v69 = vld [vmem:[%s1 + $0x88] sm:$0xff]
    %v70 = vld [vmem:[%s1 + $0x90] sm:$0xff]
    %v71 = vld [vmem:[%s1 + $0x98] sm:$0xff]
    %v72 = vld [vmem:[%s1 + $0xa0] sm:$0xff]
    %v73 = vld [vmem:[%s1 + $0xa8] sm:$0xff]
    %v74 = vld [vmem:[%s1 + $0xb0] sm:$0xff]
    %v75 = vld [vmem:[%s1 + $0xb8] sm:$0xff]
    %v76 = vld [vmem:[%s1 + $0xc0] sm:$0xff]
    %v77 = vld [vmem:[%s1 + $0xc8] sm:$0xff]
    %v78 = vld [vmem:[%s1 + $0xd0] sm:$0xff]
    %v79 = vld [vmem:[%s1 + $0xd8] sm:$0xff]
    %v80 = vld [vmem:[%s1 + $0xe0] sm:$0xff]
    %v81 = vld [vmem:[%s1 + $0xe8] sm:$0xff]
    %v82 = vld [vmem:[%s1 + $0xf0] sm:$0xff]
    %v83 = vld [vmem:[%s1 + $0xf8] sm:$0xff]
    %v84 = vld [vmem:[%s1 + $0x100] sm:$0xff]
    %v85 = vld [vmem:[%s1 + $0x108] sm:$0xff]
    %v86 = vld [vmem:[%s1 + $0x110] sm:$0xff]
    %v87 = vld [vmem:[%s1 + $0x118] sm:$0xff]
    %v88 = vld [vmem:[%s1 + $0x120] sm:$0xff]
    %v89 = vld [vmem:[%s1 + $0x128] sm:$0xff]
    %v90 = vld [vmem:[%s1 + $0x130] sm:$0xff]
    %v91 = vld [vmem:[%s1 + $0x138] sm:$0xff]
    %v92 = vld [vmem:[%s1 + $0x140] sm:$0xff]
    %v93 = vld [vmem:[%s1 + $0x148] sm:$0xff]
    %v94 = vld [vmem:[%s1 + $0x150] sm:$0xff]
    %v95 = vld [vmem:[%s1 + $0x158] sm:$0xff]
    %v96 = vld [vmem:[%s1 + $0x160] sm:$0xff]
    %v97 = vld [vmem:[%s1 + $0x168] sm:$0xff]
    %v98 = vld [vmem:[%s1 + $0x170] sm:$0xff]
    %v99 = vld [vmem:[%s1 + $0x178] sm:$0xff]
    %v100 = vld [vmem:[%s1 + $0x180] sm:$0xff]
    %v101 = vld [vmem:[%s1 + $0x188] sm:$0xff]
    %v102 = vld [vmem:[%s1 + $0x190] sm:$0xff]
    %v103 = vld [vmem:[%s1 + $0x198] sm:$0xff]
    %v104 = vld [vmem:[%s1 + $0x1a0] sm:$0xff]
    %v105 = vld [vmem:[%s1 + $0x1a8] sm:$0xff]
    %v106 = vld [vmem:[%s1 + $0x1b0] sm:$0xff]
    %v107 = vld [vmem:[%s1 + $0x1b8] sm:$0xff]
    %v108 = vld [vmem:[%s1 + $0x1c0] sm:$0xff]
    %v109 = vld [vmem:[%s1 + $0x1c8] sm:$0xff]
    %v110 = vld [vmem:[%s1 + $0x1d0] sm:$0xff]
    %v111 = vld [vmem:[%s1 + $0x1d8] sm:$0xff]
    %v112 = vld [vmem:[%s1 + $0x1e0] sm:$0xff]
    %v113 = vld [vmem:[%s1 + $0x1e8] sm:$0xff]
    %v114 = vld [vmem:[%s1 + $0x1f0] sm:$0xff]
    %v115 = vld [vmem:[%s1 + $0x1f8] sm:$0xff]
    %v116 = vld [vmem:[%s1 + $0x200] sm:$0xff]
    %v117 = vld [vmem:[%s1 + $0x208] sm:$0xff]
    %v118 = vld [vmem:[%s1 + $0x210] sm:$0xff]
    %v119 = vld [vmem:[%s1 + $0x218] sm:$0xff]
    %v120 = vld [vmem:[%s1 + $0x220] sm:$0xff]
    %v121 = vld [vmem:[%s1 + $0x228] sm:$0xff]
    %v122 = vld [vmem:[%s1 + $0x230] sm:$0xff]
    %v123 = vld [vmem:[%s1 + $0x238] sm:$0xff]
    %v124 = vld [vmem:[%s1 + $0x240] sm:$0xff]
    %v125 = vld [vmem:[%s1 + $0x248] sm:$0xff]
    %v126 = vld [vmem:[%s1 + $0x250] sm:$0xff]
    %v127 = vld [vmem:[%s1 + $0x258] sm:$0xff]
    %v128 = vld [vmem:[%s1 + $0x260] sm:$0xff]
    %v129 = vld [vmem:[%s1 + $0x268] sm:$0xff]
    %v130 = vld [vmem:[%s1 + $0x270] sm:$0xff]
    %v131 = vld [vmem:[%s1 + $0x278] sm:$0xff]
    %v132 = vld [vmem:[%s1 + $0x280] sm:$0xff]
    %v133 = vld [vmem:[%s1 + $0x288] sm:$0xff]
    %v134 = vld [vmem:[%s1 + $0x290] sm:$0xff]
    %v135 = vld [vmem:[%s1 + $0x298] sm:$0xff]
    %v136 = vld [vmem:[%s1 + $0x2a0] sm:$0xff]
    %v137 = vld [vmem:[%s1 + $0x2a8] sm:$0xff]
    %v138 = vld [vmem:[%s1 + $0x2b0] sm:$0xff]
    %v139 = vld [vmem:[%s1 + $0x2b8] sm:$0xff]
    %v140 = vld [vmem:[%s1 + $0x2c0] sm:$0xff]
    %v141 = vld [vmem:[%s1 + $0x2c8] sm:$0xff]
    %v142 = vld [vmem:[%s1 + $0x2d0] sm:$0xff]
    %v143 = vld [vmem:[%s1 + $0x2d8] sm:$0xff]
    %v144 = vld [vmem:[%s1 + $0x2e0] sm:$0xff]
    %v145 = vld [vmem:[%s1 + $0x2e8] sm:$0xff]
    %v146 = vld [vmem:[%s1 + $0x2f0] sm:$0xff]
    %v147 = vld [vmem:[%s1 + $0x2f8] sm:$0xff]
    %v148 = vld [vmem:[%s2] sm:$0x3f]
    %v150 = vlaneseq
    %v151 = vshrl.u32 %v150, 7
    %v152 = vsub.s32 0, %v151
    %v153 = vrot.slane %v148, %v152
    %v154 = vlaneseq
    %v155 = vshrl.u32 %v154, 7
    %v156 = vsub.s32 1, %v155
    %v157 = vrot.slane %v148, %v156
    %v158 = vlaneseq
    %v159 = vshrl.u32 %v158, 7
    %v160 = vsub.s32 2, %v159
    %v161 = vrot.slane %v148, %v160
    %v162 = vlaneseq
    %v163 = vshrl.u32 %v162, 7
    %v164 = vsub.s32 3, %v163
    %v165 = vrot.slane %v148, %v164
    %v166 = vlaneseq
    %v167 = vshrl.u32 %v166, 7
    %v168 = vsub.s32 4, %v167
    %v169 = vrot.slane %v148, %v168
    %v170 = vlaneseq
    %v171 = vshrl.u32 %v170, 7
    %v172 = vsub.s32 5, %v171
    %v173 = vrot.slane %v148, %v172
    %v276 = vunpack.c.l.b16 %v52
    %v277 = vunpack.c.h.b16 %v52
    %v278 = vunpack.c.l.b16 %v53
    %v279 = vunpack.c.h.b16 %v53
    %v280 = vunpack.c.l.b16 %v54
    %v281 = vunpack.c.h.b16 %v54
    %v282 = vunpack.c.l.b16 %v55
    %v283 = vunpack.c.h.b16 %v55
    %v284 = vunpack.c.l.b16 %v56
    %v285 = vunpack.c.h.b16 %v56
    %v286 = vunpack.c.l.b16 %v57
    %v287 = vunpack.c.h.b16 %v57
    %v288 = vunpack.c.l.b16 %v58
    %v289 = vunpack.c.h.b16 %v58
    %v290 = vunpack.c.l.b16 %v59
    %v291 = vunpack.c.h.b16 %v59
    %v292 = vunpack.c.l.b16 %v60
    %v293 = vunpack.c.h.b16 %v60
    %v294 = vunpack.c.l.b16 %v61
    %v295 = vunpack.c.h.b16 %v61
    %v296 = vunpack.c.l.b16 %v62
    %v297 = vunpack.c.h.b16 %v62
    %v298 = vunpack.c.l.b16 %v63
    %v299 = vunpack.c.h.b16 %v63
    %v300 = vunpack.c.l.b16 %v64
    %v301 = vunpack.c.h.b16 %v64
    %v302 = vunpack.c.l.b16 %v65
    %v303 = vunpack.c.h.b16 %v65
    %v304 = vunpack.c.l.b16 %v66
    %v305 = vunpack.c.h.b16 %v66
    %v306 = vunpack.c.l.b16 %v67
    %v307 = vunpack.c.h.b16 %v67
    %v308 = vunpack.c.l.b16 %v68
    %v309 = vunpack.c.h.b16 %v68
    %v310 = vunpack.c.l.b16 %v69
    %v311 = vunpack.c.h.b16 %v69
    %v312 = vunpack.c.l.b16 %v70
    %v313 = vunpack.c.h.b16 %v70
    %v314 = vunpack.c.l.b16 %v71
    %v315 = vunpack.c.h.b16 %v71
    %v316 = vunpack.c.l.b16 %v72
    %v317 = vunpack.c.h.b16 %v72
    %v318 = vunpack.c.l.b16 %v73
    %v319 = vunpack.c.h.b16 %v73
    %v320 = vunpack.c.l.b16 %v74
    %v321 = vunpack.c.h.b16 %v74
    %v322 = vunpack.c.l.b16 %v75
    %v323 = vunpack.c.h.b16 %v75
    %v324 = vunpack.c.l.b16 %v76
    %v325 = vunpack.c.h.b16 %v76
    %v326 = vunpack.c.l.b16 %v77
    %v327 = vunpack.c.h.b16 %v77
    %v328 = vunpack.c.l.b16 %v78
    %v329 = vunpack.c.h.b16 %v78
    %v330 = vunpack.c.l.b16 %v79
    %v331 = vunpack.c.h.b16 %v79
    %v332 = vunpack.c.l.b16 %v80
    %v333 = vunpack.c.h.b16 %v80
    %v334 = vunpack.c.l.b16 %v81
    %v335 = vunpack.c.h.b16 %v81
    %v336 = vunpack.c.l.b16 %v82
    %v337 = vunpack.c.h.b16 %v82
    %v338 = vunpack.c.l.b16 %v83
    %v339 = vunpack.c.h.b16 %v83
    %v340 = vunpack.c.l.b16 %v84
    %v341 = vunpack.c.h.b16 %v84
    %v342 = vunpack.c.l.b16 %v85
    %v343 = vunpack.c.h.b16 %v85
    %v344 = vunpack.c.l.b16 %v86
    %v345 = vunpack.c.h.b16 %v86
    %v346 = vunpack.c.l.b16 %v87
    %v347 = vunpack.c.h.b16 %v87
    %v348 = vunpack.c.l.b16 %v88
    %v349 = vunpack.c.h.b16 %v88
    %v350 = vunpack.c.l.b16 %v89
    %v351 = vunpack.c.h.b16 %v89
    %v352 = vunpack.c.l.b16 %v90
    %v353 = vunpack.c.h.b16 %v90
    %v354 = vunpack.c.l.b16 %v91
    %v355 = vunpack.c.h.b16 %v91
    %v356 = vunpack.c.l.b16 %v92
    %v357 = vunpack.c.h.b16 %v92
    %v358 = vunpack.c.l.b16 %v93
    %v359 = vunpack.c.h.b16 %v93
    %v360 = vunpack.c.l.b16 %v94
    %v361 = vunpack.c.h.b16 %v94
    %v362 = vunpack.c.l.b16 %v95
    %v363 = vunpack.c.h.b16 %v95
    %v364 = vunpack.c.l.b16 %v96
    %v365 = vunpack.c.h.b16 %v96
    %v366 = vunpack.c.l.b16 %v97
    %v367 = vunpack.c.h.b16 %v97
    %v368 = vunpack.c.l.b16 %v98
    %v369 = vunpack.c.h.b16 %v98
    %v370 = vunpack.c.l.b16 %v99
    %v371 = vunpack.c.h.b16 %v99
    %v372 = vunpack.c.l.b16 %v100
    %v373 = vunpack.c.h.b16 %v100
    %v374 = vunpack.c.l.b16 %v101
    %v375 = vunpack.c.h.b16 %v101
    %v376 = vunpack.c.l.b16 %v102
    %v377 = vunpack.c.h.b16 %v102
    %v378 = vunpack.c.l.b16 %v103
    %v379 = vunpack.c.h.b16 %v103
    %v380 = vunpack.c.l.b16 %v104
    %v381 = vunpack.c.h.b16 %v104
    %v382 = vunpack.c.l.b16 %v105
    %v383 = vunpack.c.h.b16 %v105
    %v384 = vunpack.c.l.b16 %v106
    %v385 = vunpack.c.h.b16 %v106
    %v386 = vunpack.c.l.b16 %v107
    %v387 = vunpack.c.h.b16 %v107
    %v388 = vunpack.c.l.b16 %v108
    %v389 = vunpack.c.h.b16 %v108
    %v390 = vunpack.c.l.b16 %v109
    %v391 = vunpack.c.h.b16 %v109
    %v392 = vunpack.c.l.b16 %v110
    %v393 = vunpack.c.h.b16 %v110
    %v394 = vunpack.c.l.b16 %v111
    %v395 = vunpack.c.h.b16 %v111
    %v396 = vunpack.c.l.b16 %v112
    %v397 = vunpack.c.h.b16 %v112
    %v398 = vunpack.c.l.b16 %v113
    %v399 = vunpack.c.h.b16 %v113
    %v400 = vunpack.c.l.b16 %v114
    %v401 = vunpack.c.h.b16 %v114
    %v402 = vunpack.c.l.b16 %v115
    %v403 = vunpack.c.h.b16 %v115
    %v404 = vunpack.c.l.b16 %v116
    %v405 = vunpack.c.h.b16 %v116
    %v406 = vunpack.c.l.b16 %v117
    %v407 = vunpack.c.h.b16 %v117
    %v408 = vunpack.c.l.b16 %v118
    %v409 = vunpack.c.h.b16 %v118
    %v410 = vunpack.c.l.b16 %v119
    %v411 = vunpack.c.h.b16 %v119
    %v412 = vunpack.c.l.b16 %v120
    %v413 = vunpack.c.h.b16 %v120
    %v414 = vunpack.c.l.b16 %v121
    %v415 = vunpack.c.h.b16 %v121
    %v416 = vunpack.c.l.b16 %v122
    %v417 = vunpack.c.h.b16 %v122
    %v418 = vunpack.c.l.b16 %v123
    %v419 = vunpack.c.h.b16 %v123
    %v420 = vunpack.c.l.b16 %v124
    %v421 = vunpack.c.h.b16 %v124
    %v422 = vunpack.c.l.b16 %v125
    %v423 = vunpack.c.h.b16 %v125
    %v424 = vunpack.c.l.b16 %v126
    %v425 = vunpack.c.h.b16 %v126
    %v426 = vunpack.c.l.b16 %v127
    %v427 = vunpack.c.h.b16 %v127
    %v428 = vunpack.c.l.b16 %v128
    %v429 = vunpack.c.h.b16 %v128
    %v430 = vunpack.c.l.b16 %v129
    %v431 = vunpack.c.h.b16 %v129
    %v432 = vunpack.c.l.b16 %v130
    %v433 = vunpack.c.h.b16 %v130
    %v434 = vunpack.c.l.b16 %v131
    %v435 = vunpack.c.h.b16 %v131
    %v436 = vunpack.c.l.b16 %v132
    %v437 = vunpack.c.h.b16 %v132
    %v438 = vunpack.c.l.b16 %v133
    %v439 = vunpack.c.h.b16 %v133
    %v440 = vunpack.c.l.b16 %v134
    %v441 = vunpack.c.h.b16 %v134
    %v442 = vunpack.c.l.b16 %v135
    %v443 = vunpack.c.h.b16 %v135
    %v444 = vunpack.c.l.b16 %v136
    %v445 = vunpack.c.h.b16 %v136
    %v446 = vunpack.c.l.b16 %v137
    %v447 = vunpack.c.h.b16 %v137
    %v448 = vunpack.c.l.b16 %v138
    %v449 = vunpack.c.h.b16 %v138
    %v450 = vunpack.c.l.b16 %v139
    %v451 = vunpack.c.h.b16 %v139
    %v452 = vunpack.c.l.b16 %v140
    %v453 = vunpack.c.h.b16 %v140
    %v454 = vunpack.c.l.b16 %v141
    %v455 = vunpack.c.h.b16 %v141
    %v456 = vunpack.c.l.b16 %v142
    %v457 = vunpack.c.h.b16 %v142
    %v458 = vunpack.c.l.b16 %v143
    %v459 = vunpack.c.h.b16 %v143
    %v460 = vunpack.c.l.b16 %v144
    %v461 = vunpack.c.h.b16 %v144
    %v462 = vunpack.c.l.b16 %v145
    %v463 = vunpack.c.h.b16 %v145
    %v464 = vunpack.c.l.b16 %v146
    %v465 = vunpack.c.h.b16 %v146
    %v466 = vunpack.c.l.b16 %v147
    %v467 = vunpack.c.h.b16 %v147
    %v468 = vpack.c.b16 %v282, %v276
    %v469 = vpack.c.b16 %v283, %v277
    %v470 = vpack.c.b16 %v284, %v278
    %v471 = vpack.c.b16 %v285, %v279
    %v472 = vpack.c.b16 %v286, %v280
    %v473 = vpack.c.b16 %v287, %v281
    %v474 = vpack.c.b16 %v294, %v288
    %v475 = vpack.c.b16 %v295, %v289
    %v476 = vpack.c.b16 %v296, %v290
    %v477 = vpack.c.b16 %v297, %v291
    %v478 = vpack.c.b16 %v298, %v292
    %v479 = vpack.c.b16 %v299, %v293
    %v480 = vpack.c.b16 %v306, %v300
    %v481 = vpack.c.b16 %v307, %v301
    %v482 = vpack.c.b16 %v308, %v302
    %v483 = vpack.c.b16 %v309, %v303
    %v484 = vpack.c.b16 %v310, %v304
    %v485 = vpack.c.b16 %v311, %v305
    %v486 = vpack.c.b16 %v318, %v312
    %v487 = vpack.c.b16 %v319, %v313
    %v488 = vpack.c.b16 %v320, %v314
    %v489 = vpack.c.b16 %v321, %v315
    %v490 = vpack.c.b16 %v322, %v316
    %v491 = vpack.c.b16 %v323, %v317
    %v492 = vpack.c.b16 %v330, %v324
    %v493 = vpack.c.b16 %v331, %v325
    %v494 = vpack.c.b16 %v332, %v326
    %v495 = vpack.c.b16 %v333, %v327
    %v496 = vpack.c.b16 %v334, %v328
    %v497 = vpack.c.b16 %v335, %v329
    %v498 = vpack.c.b16 %v342, %v336
    %v499 = vpack.c.b16 %v343, %v337
    %v500 = vpack.c.b16 %v344, %v338
    %v501 = vpack.c.b16 %v345, %v339
    %v502 = vpack.c.b16 %v346, %v340
    %v503 = vpack.c.b16 %v347, %v341
    %v504 = vpack.c.b16 %v354, %v348
    %v505 = vpack.c.b16 %v355, %v349
    %v506 = vpack.c.b16 %v356, %v350
    %v507 = vpack.c.b16 %v357, %v351
    %v508 = vpack.c.b16 %v358, %v352
    %v509 = vpack.c.b16 %v359, %v353
    %v510 = vpack.c.b16 %v366, %v360
    %v511 = vpack.c.b16 %v367, %v361
    %v512 = vpack.c.b16 %v368, %v362
    %v513 = vpack.c.b16 %v369, %v363
    %v514 = vpack.c.b16 %v370, %v364
    %v515 = vpack.c.b16 %v371, %v365
    %v516 = vpack.c.b16 %v378, %v372
    %v517 = vpack.c.b16 %v379, %v373
    %v518 = vpack.c.b16 %v380, %v374
    %v519 = vpack.c.b16 %v381, %v375
    %v520 = vpack.c.b16 %v382, %v376
    %v521 = vpack.c.b16 %v383, %v377
    %v522 = vpack.c.b16 %v390, %v384
    %v523 = vpack.c.b16 %v391, %v385
    %v524 = vpack.c.b16 %v392, %v386
    %v525 = vpack.c.b16 %v393, %v387
    %v526 = vpack.c.b16 %v394, %v388
    %v527 = vpack.c.b16 %v395, %v389
    %v528 = vpack.c.b16 %v402, %v396
    %v529 = vpack.c.b16 %v403, %v397
    %v530 = vpack.c.b16 %v404, %v398
    %v531 = vpack.c.b16 %v405, %v399
    %v532 = vpack.c.b16 %v406, %v400
    %v533 = vpack.c.b16 %v407, %v401
    %v534 = vpack.c.b16 %v414, %v408
    %v535 = vpack.c.b16 %v415, %v409
    %v536 = vpack.c.b16 %v416, %v410
    %v537 = vpack.c.b16 %v417, %v411
    %v538 = vpack.c.b16 %v418, %v412
    %v539 = vpack.c.b16 %v419, %v413
    %v540 = vpack.c.b16 %v426, %v420
    %v541 = vpack.c.b16 %v427, %v421
    %v542 = vpack.c.b16 %v428, %v422
    %v543 = vpack.c.b16 %v429, %v423
    %v544 = vpack.c.b16 %v430, %v424
    %v545 = vpack.c.b16 %v431, %v425
    %v546 = vpack.c.b16 %v438, %v432
    %v547 = vpack.c.b16 %v439, %v433
    %v548 = vpack.c.b16 %v440, %v434
    %v549 = vpack.c.b16 %v441, %v435
    %v550 = vpack.c.b16 %v442, %v436
    %v551 = vpack.c.b16 %v443, %v437
    %v552 = vpack.c.b16 %v450, %v444
    %v553 = vpack.c.b16 %v451, %v445
    %v554 = vpack.c.b16 %v452, %v446
    %v555 = vpack.c.b16 %v453, %v447
    %v556 = vpack.c.b16 %v454, %v448
    %v557 = vpack.c.b16 %v455, %v449
    %v558 = vpack.c.b16 %v462, %v456
    %v559 = vpack.c.b16 %v463, %v457
    %v560 = vpack.c.b16 %v464, %v458
    %v561 = vpack.c.b16 %v465, %v459
    %v562 = vpack.c.b16 %v466, %v460
    %v563 = vpack.c.b16 %v467, %v461
    %660 = vmatprep.subr.bf16.mxu0 %v469
    %661 = vmatpush1.bf16.msra.mxu0 %v468
    %662 = vmatprep.subr.bf16.mxu0 %v475
    %663 = vmatpush1.bf16.msra.mxu0 %v474
    %664 = vmatprep.subr.bf16.mxu0 %v481
    %665 = vmatpush1.bf16.msra.mxu0 %v480
    %666 = vmatprep.subr.bf16.mxu0 %v487
    %667 = vmatpush1.bf16.msra.mxu0 %v486
    %668 = vmatprep.subr.bf16.mxu0 %v493
    %669 = vmatpush1.bf16.msra.mxu0 %v492
    %670 = vmatprep.subr.bf16.mxu0 %v499
    %671 = vmatpush1.bf16.msra.mxu0 %v498
    %672 = vmatprep.subr.bf16.mxu0 %v505
    %673 = vmatpush1.bf16.msra.mxu0 %v504
    %674 = vmatprep.subr.bf16.mxu0 %v511
    %675 = vmatpush1.bf16.msra.mxu0 %v510
    %676 = vmatprep.subr.bf16.mxu0 %v517
    %677 = vmatpush1.bf16.msra.mxu0 %v516
    %678 = vmatprep.subr.bf16.mxu0 %v523
    %679 = vmatpush1.bf16.msra.mxu0 %v522
    %680 = vmatprep.subr.bf16.mxu0 %v529
    %681 = vmatpush1.bf16.msra.mxu0 %v528
    %682 = vmatprep.subr.bf16.mxu0 %v535
    %683 = vmatpush1.bf16.msra.mxu0 %v534
    %684 = vmatprep.subr.bf16.mxu0 %v541
    %685 = vmatpush1.bf16.msra.mxu0 %v540
    %686 = vmatprep.subr.bf16.mxu0 %v547
    %687 = vmatpush1.bf16.msra.mxu0 %v546
    %688 = vmatprep.subr.bf16.mxu0 %v553
    %689 = vmatpush1.bf16.msra.mxu0 %v552
    %690 = vmatprep.subr.bf16.mxu0 %v559
    %691 = vmatpush1.bf16.msra.mxu0 %v558
    %692 = vmatprep.mubr.bf16.mxu0 %v51
    %693 = vmatmul.mubr.bf16.gmra.mrb[0].mxu0 %v50
    %v694 = vpop.f32.mrb[0].mxu0
    %v695 = vadd.f32 %v153, %v694
    %v696 = vpop.f32.mrb[0].mxu0
    %v697 = vadd.f32 %v157, %v696
    %v698 = vpop.f32.mrb[0].mxu0
    %v699 = vadd.f32 %v153, %v698
    %v700 = vpop.f32.mrb[0].mxu0
    %v701 = vadd.f32 %v157, %v700
    %702 = vdwg.mxu0
    %703 = vmatprep.subr.bf16.mxu0 %v471
    %704 = vmatpush1.bf16.msra.mxu0 %v470
    %705 = vmatprep.subr.bf16.mxu0 %v477
    %706 = vmatpush1.bf16.msra.mxu0 %v476
    %707 = vmatprep.subr.bf16.mxu0 %v483
    %708 = vmatpush1.bf16.msra.mxu0 %v482
    %709 = vmatprep.subr.bf16.mxu0 %v489
    %710 = vmatpush1.bf16.msra.mxu0 %v488
    %711 = vmatprep.subr.bf16.mxu0 %v495
    %712 = vmatpush1.bf16.msra.mxu0 %v494
    %713 = vmatprep.subr.bf16.mxu0 %v501
    %714 = vmatpush1.bf16.msra.mxu0 %v500
    %715 = vmatprep.subr.bf16.mxu0 %v507
    %716 = vmatpush1.bf16.msra.mxu0 %v506
    %717 = vmatprep.subr.bf16.mxu0 %v513
    %718 = vmatpush1.bf16.msra.mxu0 %v512
    %719 = vmatprep.subr.bf16.mxu0 %v519
    %720 = vmatpush1.bf16.msra.mxu0 %v518
    %721 = vmatprep.subr.bf16.mxu0 %v525
    %722 = vmatpush1.bf16.msra.mxu0 %v524
    %723 = vmatprep.subr.bf16.mxu0 %v531
    %724 = vmatpush1.bf16.msra.mxu0 %v530
    %725 = vmatprep.subr.bf16.mxu0 %v537
    %726 = vmatpush1.bf16.msra.mxu0 %v536
    %727 = vmatprep.subr.bf16.mxu0 %v543
    %728 = vmatpush1.bf16.msra.mxu0 %v542
    %729 = vmatprep.subr.bf16.mxu0 %v549
    %730 = vmatpush1.bf16.msra.mxu0 %v548
    %731 = vmatprep.subr.bf16.mxu0 %v555
    %732 = vmatpush1.bf16.msra.mxu0 %v554
    %733 = vmatprep.subr.bf16.mxu0 %v561
    %734 = vmatpush1.bf16.msra.mxu0 %v560
    %735 = vmatprep.mubr.bf16.mxu0 %v51
    %736 = vmatmul.mubr.bf16.gmra.mrb[0].mxu0 %v50
    %v737 = vpop.f32.mrb[0].mxu0
    %v738 = vadd.f32 %v161, %v737
    %v739 = vpop.f32.mrb[0].mxu0
    %v740 = vadd.f32 %v165, %v739
    %v741 = vpop.f32.mrb[0].mxu0
    %v742 = vadd.f32 %v161, %v741
    %v743 = vpop.f32.mrb[0].mxu0
    %v744 = vadd.f32 %v165, %v743
    %745 = vdwg.mxu0
    %746 = vmatprep.subr.bf16.mxu0 %v473
    %747 = vmatpush1.bf16.msra.mxu0 %v472
    %748 = vmatprep.subr.bf16.mxu0 %v479
    %749 = vmatpush1.bf16.msra.mxu0 %v478
    %750 = vmatprep.subr.bf16.mxu0 %v485
    %751 = vmatpush1.bf16.msra.mxu0 %v484
    %752 = vmatprep.subr.bf16.mxu0 %v491
    %753 = vmatpush1.bf16.msra.mxu0 %v490
    %754 = vmatprep.subr.bf16.mxu0 %v497
    %755 = vmatpush1.bf16.msra.mxu0 %v496
    %756 = vmatprep.subr.bf16.mxu0 %v503
    %757 = vmatpush1.bf16.msra.mxu0 %v502
    %758 = vmatprep.subr.bf16.mxu0 %v509
    %759 = vmatpush1.bf16.msra.mxu0 %v508
    %760 = vmatprep.subr.bf16.mxu0 %v515
    %761 = vmatpush1.bf16.msra.mxu0 %v514
    %762 = vmatprep.subr.bf16.mxu0 %v521
    %763 = vmatpush1.bf16.msra.mxu0 %v520
    %764 = vmatprep.subr.bf16.mxu0 %v527
    %765 = vmatpush1.bf16.msra.mxu0 %v526
    %766 = vmatprep.subr.bf16.mxu0 %v533
    %767 = vmatpush1.bf16.msra.mxu0 %v532
    %768 = vmatprep.subr.bf16.mxu0 %v539
    %769 = vmatpush1.bf16.msra.mxu0 %v538
    %770 = vmatprep.subr.bf16.mxu0 %v545
    %771 = vmatpush1.bf16.msra.mxu0 %v544
    %772 = vmatprep.subr.bf16.mxu0 %v551
    %773 = vmatpush1.bf16.msra.mxu0 %v550
    %774 = vmatprep.subr.bf16.mxu0 %v557
    %775 = vmatpush1.bf16.msra.mxu0 %v556
    %776 = vmatprep.subr.bf16.mxu0 %v563
    %777 = vmatpush1.bf16.msra.mxu0 %v562
    %778 = vmatprep.mubr.bf16.mxu0 %v51
    %779 = vmatmul.mubr.bf16.gmra.mrb[0].mxu0 %v50
    %v780 = vpop.f32.mrb[0].mxu0
    %v781 = vadd.f32 %v169, %v780
    %v782 = vpop.f32.mrb[0].mxu0
    %v783 = vadd.f32 %v173, %v782
    %v784 = vpop.f32.mrb[0].mxu0
    %v785 = vadd.f32 %v169, %v784
    %v786 = vpop.f32.mrb[0].mxu0
    %v787 = vadd.f32 %v173, %v786
    %788 = vdwg.mxu0
    %vm789 = vcmask 523264
    %v791 = vsel %vm789, %v695, 0
    %v794 = vsel %vm789, %v738, 0
    %796 = vmatprep.subr.mxu0 0.0
    %797 = vmatpush1.xpose.msra.mxu0 %v794
    %798 = vmatprep.subr.mxu0 0.0
    %799 = vmatpush1.xpose.msra.mxu0 0.0
    %800 = vmatprep.subr.mxu0 0.0
    %801 = vmatpush1.xpose.msra.mxu0 0.0
    %802 = vmatprep.subr.mxu0 0.0
    %803 = vmatpush1.xpose.msra.mxu0 0.0
    %804 = vmatprep.subr.mxu0 0.0
    %805 = vmatpush1.xpose.msra.mxu0 0.0
    %806 = vmatprep.subr.mxu0 0.0
    %807 = vmatpush1.xpose.msra.mxu0 0.0
    %808 = vmatprep.subr.mxu0 0.0
    %809 = vmatpush1.xpose.msra.mxu0 0.0
    %810 = vmatprep.subr.mxu0 0.0
    %811 = vmatpush1.xpose.msra.mxu0 0.0
    %812 = vmatprep.subr.mxu0 0.0
    %813 = vmatpush1.xpose.msra.mxu0 0.0
    %814 = vmatprep.subr.mxu0 0.0
    %815 = vmatpush1.xpose.msra.mxu0 0.0
    %816 = vmatprep.subr.mxu0 0.0
    %817 = vmatpush1.xpose.msra.mxu0 0.0
    %818 = vmatprep.subr.mxu0 0.0
    %819 = vmatpush1.xpose.msra.mxu0 0.0
    %820 = vmatprep.subr.mxu0 0.0
    %821 = vmatpush1.xpose.msra.mxu0 0.0
    %822 = vmatprep.subr.mxu0 0.0
    %823 = vmatpush1.xpose.msra.mxu0 0.0
    %824 = vmatprep.subr.mxu0 0.0
    %825 = vmatpush1.xpose.msra.mxu0 0.0
    %826 = vmatprep.subr.mxu0 0.0
    %827 = vmatpush1.xpose.msra.mxu0 0.0
    %828 = vmatprep.subr.mxu0 0.0
    %829 = vmatpush1.xpose.msra.mxu0 0.0
    %830 = vmatprep.subr.mxu0 0.0
    %831 = vmatpush1.xpose.msra.mxu0 0.0
    %832 = vmatprep.subr.mxu0 0.0
    %833 = vmatpush1.xpose.msra.mxu0 0.0
    %834 = vmatprep.subr.mxu0 0.0
    %835 = vmatpush1.xpose.msra.mxu0 0.0
    %836 = vmatprep.subr.mxu0 0.0
    %837 = vmatpush1.xpose.msra.mxu0 0.0
    %838 = vmatprep.subr.mxu0 0.0
    %839 = vmatpush1.xpose.msra.mxu0 0.0
    %840 = vmatprep.subr.mxu0 0.0
    %841 = vmatpush1.xpose.msra.mxu0 0.0
    %842 = vmatprep.subr.mxu0 0.0
    %843 = vmatpush1.xpose.msra.mxu0 0.0
    %844 = vmatprep.subr.mxu0 0.0
    %845 = vmatpush1.xpose.msra.mxu0 0.0
    %846 = vmatprep.subr.mxu0 0.0
    %847 = vmatpush1.xpose.msra.mxu0 0.0
    %848 = vmatprep.subr.mxu0 0.0
    %849 = vmatpush1.xpose.msra.mxu0 0.0
    %850 = vmatprep.subr.mxu0 0.0
    %851 = vmatpush1.xpose.msra.mxu0 0.0
    %852 = vmatprep.subr.mxu0 0.0
    %853 = vmatpush1.xpose.msra.mxu0 0.0
    %854 = vmatprep.subr.mxu0 0.0
    %855 = vmatpush1.xpose.msra.mxu0 0.0
    %856 = vmatprep.subr.mxu0 0.0
    %857 = vmatpush1.xpose.msra.mxu0 0.0
    %858 = vmatprep.subr.mxu0 0.0
    %859 = vmatpush1.xpose.msra.mxu0 0.0
    %860 = vmatprep.mubr.f32.mxu0 0.0
    %861 = vmatmul.mubr.f32.gmra.mrb[0].mxu0 %v791
    %v862 = vpop.f32.mrb[0].mxu0
    %v863 = vadd.f32 0.0, %v862
    %v864 = vpop.f32.mrb[0].mxu0
    %865 = vdwg.mxu0
    %v866 = vmul.f32 %v863, 0.125
    %vm867 = vcmask 64512
    %v868 = vsel %vm867, %v866, -inf
    %869 = vmax.xlane.f32.xlu0 %v868
    %v870 = vpop.xlane.xlu0 %869
    %v871 = vsub.f32 %v866, %v870
    %v872 = vmul.f32 %v871, 1.442695
    %v873 = vpow.pop %v872
    %v874 = vsel %vm867, %v873, 0.0
    %875 = vadd.xlane.f32.xlu0 %v874
    %v876 = vpop.xlane.xlu0 %875
    %v877 = vrcp.pop %v876
    %v878 = vmul.f32 %v873, %v877
    %v880 = vsel %vm867, %v878, 0
    %882 = vmatprep.subr.mxu0 0.0
    %883 = vmatpush1.msra.mxu0 %v781
    %884 = vmatprep.subr.mxu0 0.0
    %885 = vmatpush1.msra.mxu0 0.0
    %886 = vmatprep.subr.mxu0 0.0
    %887 = vmatpush1.msra.mxu0 0.0
    %888 = vmatprep.subr.mxu0 0.0
    %889 = vmatpush1.msra.mxu0 0.0
    %890 = vmatprep.subr.mxu0 0.0
    %891 = vmatpush1.msra.mxu0 0.0
    %892 = vmatprep.subr.mxu0 0.0
    %893 = vmatpush1.msra.mxu0 0.0
    %894 = vmatprep.subr.mxu0 0.0
    %895 = vmatpush1.msra.mxu0 0.0
    %896 = vmatprep.subr.mxu0 0.0
    %897 = vmatpush1.msra.mxu0 0.0
    %898 = vmatprep.subr.mxu0 0.0
    %899 = vmatpush1.msra.mxu0 0.0
    %900 = vmatprep.subr.mxu0 0.0
    %901 = vmatpush1.msra.mxu0 0.0
    %902 = vmatprep.subr.mxu0 0.0
    %903 = vmatpush1.msra.mxu0 0.0
    %904 = vmatprep.subr.mxu0 0.0
    %905 = vmatpush1.msra.mxu0 0.0
    %906 = vmatprep.subr.mxu0 0.0
    %907 = vmatpush1.msra.mxu0 0.0
    %908 = vmatprep.subr.mxu0 0.0
    %909 = vmatpush1.msra.mxu0 0.0
    %910 = vmatprep.subr.mxu0 0.0
    %911 = vmatpush1.msra.mxu0 0.0
    %912 = vmatprep.subr.mxu0 0.0
    %913 = vmatpush1.msra.mxu0 0.0
    %914 = vmatprep.subr.mxu0 0.0
    %915 = vmatpush1.msra.mxu0 0.0
    %916 = vmatprep.subr.mxu0 0.0
    %917 = vmatpush1.msra.mxu0 0.0
    %918 = vmatprep.subr.mxu0 0.0
    %919 = vmatpush1.msra.mxu0 0.0
    %920 = vmatprep.subr.mxu0 0.0
    %921 = vmatpush1.msra.mxu0 0.0
    %922 = vmatprep.subr.mxu0 0.0
    %923 = vmatpush1.msra.mxu0 0.0
    %924 = vmatprep.subr.mxu0 0.0
    %925 = vmatpush1.msra.mxu0 0.0
    %926 = vmatprep.subr.mxu0 0.0
    %927 = vmatpush1.msra.mxu0 0.0
    %928 = vmatprep.subr.mxu0 0.0
    %929 = vmatpush1.msra.mxu0 0.0
    %930 = vmatprep.subr.mxu0 0.0
    %931 = vmatpush1.msra.mxu0 0.0
    %932 = vmatprep.subr.mxu0 0.0
    %933 = vmatpush1.msra.mxu0 0.0
    %934 = vmatprep.subr.mxu0 0.0
    %935 = vmatpush1.msra.mxu0 0.0
    %936 = vmatprep.subr.mxu0 0.0
    %937 = vmatpush1.msra.mxu0 0.0
    %938 = vmatprep.subr.mxu0 0.0
    %939 = vmatpush1.msra.mxu0 0.0
    %940 = vmatprep.subr.mxu0 0.0
    %941 = vmatpush1.msra.mxu0 0.0
    %942 = vmatprep.subr.mxu0 0.0
    %943 = vmatpush1.msra.mxu0 0.0
    %944 = vmatprep.subr.mxu0 0.0
    %945 = vmatpush1.msra.mxu0 0.0
    %946 = vmatprep.mubr.f32.mxu0 0.0
    %947 = vmatmul.mubr.f32.gmra.mrb[0].mxu0 %v880
    %v948 = vpop.f32.mrb[0].mxu0
    %v949 = vadd.f32 0.0, %v948
    %v950 = vpop.f32.mrb[0].mxu0
    %951 = vdwg.mxu0
    %952 = vrot.lane.b32.xlu0 %v695, 64
    %v953 = vpop.permute.xlu0 %952
    %954 = vrot.lane.b32.xlu0 %v738, 64
    %v955 = vpop.permute.xlu0 %954
    %v956 = vsel %vm789, %v953, 0
    %v958 = vsel %vm789, %v955, 0
    %960 = vmatprep.subr.mxu0 0.0
    %961 = vmatpush1.xpose.msra.mxu0 %v958
    %962 = vmatprep.subr.mxu0 0.0
    %963 = vmatpush1.xpose.msra.mxu0 0.0
    %964 = vmatprep.subr.mxu0 0.0
    %965 = vmatpush1.xpose.msra.mxu0 0.0
    %966 = vmatprep.subr.mxu0 0.0
    %967 = vmatpush1.xpose.msra.mxu0 0.0
    %968 = vmatprep.subr.mxu0 0.0
    %969 = vmatpush1.xpose.msra.mxu0 0.0
    %970 = vmatprep.subr.mxu0 0.0
    %971 = vmatpush1.xpose.msra.mxu0 0.0
    %972 = vmatprep.subr.mxu0 0.0
    %973 = vmatpush1.xpose.msra.mxu0 0.0
    %974 = vmatprep.subr.mxu0 0.0
    %975 = vmatpush1.xpose.msra.mxu0 0.0
    %976 = vmatprep.subr.mxu0 0.0
    %977 = vmatpush1.xpose.msra.mxu0 0.0
    %978 = vmatprep.subr.mxu0 0.0
    %979 = vmatpush1.xpose.msra.mxu0 0.0
    %980 = vmatprep.subr.mxu0 0.0
    %981 = vmatpush1.xpose.msra.mxu0 0.0
    %982 = vmatprep.subr.mxu0 0.0
    %983 = vmatpush1.xpose.msra.mxu0 0.0
    %984 = vmatprep.subr.mxu0 0.0
    %985 = vmatpush1.xpose.msra.mxu0 0.0
    %986 = vmatprep.subr.mxu0 0.0
    %987 = vmatpush1.xpose.msra.mxu0 0.0
    %988 = vmatprep.subr.mxu0 0.0
    %989 = vmatpush1.xpose.msra.mxu0 0.0
    %990 = vmatprep.subr.mxu0 0.0
    %991 = vmatpush1.xpose.msra.mxu0 0.0
    %992 = vmatprep.subr.mxu0 0.0
    %993 = vmatpush1.xpose.msra.mxu0 0.0
    %994 = vmatprep.subr.mxu0 0.0
    %995 = vmatpush1.xpose.msra.mxu0 0.0
    %996 = vmatprep.subr.mxu0 0.0
    %997 = vmatpush1.xpose.msra.mxu0 0.0
    %998 = vmatprep.subr.mxu0 0.0
    %999 = vmatpush1.xpose.msra.mxu0 0.0
    %1000 = vmatprep.subr.mxu0 0.0
    %1001 = vmatpush1.xpose.msra.mxu0 0.0
    %1002 = vmatprep.subr.mxu0 0.0
    %1003 = vmatpush1.xpose.msra.mxu0 0.0
    %1004 = vmatprep.subr.mxu0 0.0
    %1005 = vmatpush1.xpose.msra.mxu0 0.0
    %1006 = vmatprep.subr.mxu0 0.0
    %1007 = vmatpush1.xpose.msra.mxu0 0.0
    %1008 = vmatprep.subr.mxu0 0.0
    %1009 = vmatpush1.xpose.msra.mxu0 0.0
    %1010 = vmatprep.subr.mxu0 0.0
    %1011 = vmatpush1.xpose.msra.mxu0 0.0
    %1012 = vmatprep.subr.mxu0 0.0
    %1013 = vmatpush1.xpose.msra.mxu0 0.0
    %1014 = vmatprep.subr.mxu0 0.0
    %1015 = vmatpush1.xpose.msra.mxu0 0.0
    %1016 = vmatprep.subr.mxu0 0.0
    %1017 = vmatpush1.xpose.msra.mxu0 0.0
    %1018 = vmatprep.subr.mxu0 0.0
    %1019 = vmatpush1.xpose.msra.mxu0 0.0
    %1020 = vmatprep.subr.mxu0 0.0
    %1021 = vmatpush1.xpose.msra.mxu0 0.0
    %1022 = vmatprep.subr.mxu0 0.0
    %1023 = vmatpush1.xpose.msra.mxu0 0.0
    %1024 = vmatprep.mubr.f32.mxu0 0.0
    %1025 = vmatmul.mubr.f32.gmra.mrb[0].mxu0 %v956
    %v1026 = vpop.f32.mrb[0].mxu0
    %v1027 = vadd.f32 0.0, %v1026
    %v1028 = vpop.f32.mrb[0].mxu0
    %1029 = vdwg.mxu0
    %v1030 = vmul.f32 %v1027, 0.125
    %v1031 = vsel %vm867, %v1030, -inf
    %1032 = vmax.xlane.f32.xlu0 %v1031
    %v1033 = vpop.xlane.xlu0 %1032
    %v1034 = vsub.f32 %v1030, %v1033
    %v1035 = vmul.f32 %v1034, 1.442695
    %v1036 = vpow.pop %v1035
    %v1037 = vsel %vm867, %v1036, 0.0
    %1038 = vadd.xlane.f32.xlu0 %v1037
    %v1039 = vpop.xlane.xlu0 %1038
    %v1040 = vrcp.pop %v1039
    %v1041 = vmul.f32 %v1036, %v1040
    %1043 = vrot.lane.b32.xlu0 %v781, 64
    %v1044 = vpop.permute.xlu0 %1043
    %v1047 = vsel %vm867, %v1041, 0
    %1049 = vmatprep.subr.mxu0 0.0
    %1050 = vmatpush1.msra.mxu0 %v1044
    %1051 = vmatprep.subr.mxu0 0.0
    %1052 = vmatpush1.msra.mxu0 0.0
    %1053 = vmatprep.subr.mxu0 0.0
    %1054 = vmatpush1.msra.mxu0 0.0
    %1055 = vmatprep.subr.mxu0 0.0
    %1056 = vmatpush1.msra.mxu0 0.0
    %1057 = vmatprep.subr.mxu0 0.0
    %1058 = vmatpush1.msra.mxu0 0.0
    %1059 = vmatprep.subr.mxu0 0.0
    %1060 = vmatpush1.msra.mxu0 0.0
    %1061 = vmatprep.subr.mxu0 0.0
    %1062 = vmatpush1.msra.mxu0 0.0
    %1063 = vmatprep.subr.mxu0 0.0
    %1064 = vmatpush1.msra.mxu0 0.0
    %1065 = vmatprep.subr.mxu0 0.0
    %1066 = vmatpush1.msra.mxu0 0.0
    %1067 = vmatprep.subr.mxu0 0.0
    %1068 = vmatpush1.msra.mxu0 0.0
    %1069 = vmatprep.subr.mxu0 0.0
    %1070 = vmatpush1.msra.mxu0 0.0
    %1071 = vmatprep.subr.mxu0 0.0
    %1072 = vmatpush1.msra.mxu0 0.0
    %1073 = vmatprep.subr.mxu0 0.0
    %1074 = vmatpush1.msra.mxu0 0.0
    %1075 = vmatprep.subr.mxu0 0.0
    %1076 = vmatpush1.msra.mxu0 0.0
    %1077 = vmatprep.subr.mxu0 0.0
    %1078 = vmatpush1.msra.mxu0 0.0
    %1079 = vmatprep.subr.mxu0 0.0
    %1080 = vmatpush1.msra.mxu0 0.0
    %1081 = vmatprep.subr.mxu0 0.0
    %1082 = vmatpush1.msra.mxu0 0.0
    %1083 = vmatprep.subr.mxu0 0.0
    %1084 = vmatpush1.msra.mxu0 0.0
    %1085 = vmatprep.subr.mxu0 0.0
    %1086 = vmatpush1.msra.mxu0 0.0
    %1087 = vmatprep.subr.mxu0 0.0
    %1088 = vmatpush1.msra.mxu0 0.0
    %1089 = vmatprep.subr.mxu0 0.0
    %1090 = vmatpush1.msra.mxu0 0.0
    %1091 = vmatprep.subr.mxu0 0.0
    %1092 = vmatpush1.msra.mxu0 0.0
    %1093 = vmatprep.subr.mxu0 0.0
    %1094 = vmatpush1.msra.mxu0 0.0
    %1095 = vmatprep.subr.mxu0 0.0
    %1096 = vmatpush1.msra.mxu0 0.0
    %1097 = vmatprep.subr.mxu0 0.0
    %1098 = vmatpush1.msra.mxu0 0.0
    %1099 = vmatprep.subr.mxu0 0.0
    %1100 = vmatpush1.msra.mxu0 0.0
    %1101 = vmatprep.subr.mxu0 0.0
    %1102 = vmatpush1.msra.mxu0 0.0
    %1103 = vmatprep.subr.mxu0 0.0
    %1104 = vmatpush1.msra.mxu0 0.0
    %1105 = vmatprep.subr.mxu0 0.0
    %1106 = vmatpush1.msra.mxu0 0.0
    %1107 = vmatprep.subr.mxu0 0.0
    %1108 = vmatpush1.msra.mxu0 0.0
    %1109 = vmatprep.subr.mxu0 0.0
    %1110 = vmatpush1.msra.mxu0 0.0
    %1111 = vmatprep.subr.mxu0 0.0
    %1112 = vmatpush1.msra.mxu0 0.0
    %1113 = vmatprep.mubr.f32.mxu0 0.0
    %1114 = vmatmul.mubr.f32.gmra.mrb[0].mxu0 %v1047
    %v1115 = vpop.f32.mrb[0].mxu0
    %v1116 = vadd.f32 0.0, %v1115
    %v1117 = vpop.f32.mrb[0].mxu0
    %1118 = vdwg.mxu0
    %v1120 = vsel %vm789, %v697, 0
    %v1123 = vsel %vm789, %v740, 0
    %1125 = vmatprep.subr.mxu0 0.0
    %1126 = vmatpush1.xpose.msra.mxu0 %v1123
    %1127 = vmatprep.subr.mxu0 0.0
    %1128 = vmatpush1.xpose.msra.mxu0 0.0
    %1129 = vmatprep.subr.mxu0 0.0
    %1130 = vmatpush1.xpose.msra.mxu0 0.0
    %1131 = vmatprep.subr.mxu0 0.0
    %1132 = vmatpush1.xpose.msra.mxu0 0.0
    %1133 = vmatprep.subr.mxu0 0.0
    %1134 = vmatpush1.xpose.msra.mxu0 0.0
    %1135 = vmatprep.subr.mxu0 0.0
    %1136 = vmatpush1.xpose.msra.mxu0 0.0
    %1137 = vmatprep.subr.mxu0 0.0
    %1138 = vmatpush1.xpose.msra.mxu0 0.0
    %1139 = vmatprep.subr.mxu0 0.0
    %1140 = vmatpush1.xpose.msra.mxu0 0.0
    %1141 = vmatprep.subr.mxu0 0.0
    %1142 = vmatpush1.xpose.msra.mxu0 0.0
    %1143 = vmatprep.subr.mxu0 0.0
    %1144 = vmatpush1.xpose.msra.mxu0 0.0
    %1145 = vmatprep.subr.mxu0 0.0
    %1146 = vmatpush1.xpose.msra.mxu0 0.0
    %1147 = vmatprep.subr.mxu0 0.0
    %1148 = vmatpush1.xpose.msra.mxu0 0.0
    %1149 = vmatprep.subr.mxu0 0.0
    %1150 = vmatpush1.xpose.msra.mxu0 0.0
    %1151 = vmatprep.subr.mxu0 0.0
    %1152 = vmatpush1.xpose.msra.mxu0 0.0
    %1153 = vmatprep.subr.mxu0 0.0
    %1154 = vmatpush1.xpose.msra.mxu0 0.0
    %1155 = vmatprep.subr.mxu0 0.0
    %1156 = vmatpush1.xpose.msra.mxu0 0.0
    %1157 = vmatprep.subr.mxu0 0.0
    %1158 = vmatpush1.xpose.msra.mxu0 0.0
    %1159 = vmatprep.subr.mxu0 0.0
    %1160 = vmatpush1.xpose.msra.mxu0 0.0
    %1161 = vmatprep.subr.mxu0 0.0
    %1162 = vmatpush1.xpose.msra.mxu0 0.0
    %1163 = vmatprep.subr.mxu0 0.0
    %1164 = vmatpush1.xpose.msra.mxu0 0.0
    %1165 = vmatprep.subr.mxu0 0.0
    %1166 = vmatpush1.xpose.msra.mxu0 0.0
    %1167 = vmatprep.subr.mxu0 0.0
    %1168 = vmatpush1.xpose.msra.mxu0 0.0
    %1169 = vmatprep.subr.mxu0 0.0
    %1170 = vmatpush1.xpose.msra.mxu0 0.0
    %1171 = vmatprep.subr.mxu0 0.0
    %1172 = vmatpush1.xpose.msra.mxu0 0.0
    %1173 = vmatprep.subr.mxu0 0.0
    %1174 = vmatpush1.xpose.msra.mxu0 0.0
    %1175 = vmatprep.subr.mxu0 0.0
    %1176 = vmatpush1.xpose.msra.mxu0 0.0
    %1177 = vmatprep.subr.mxu0 0.0
    %1178 = vmatpush1.xpose.msra.mxu0 0.0
    %1179 = vmatprep.subr.mxu0 0.0
    %1180 = vmatpush1.xpose.msra.mxu0 0.0
    %1181 = vmatprep.subr.mxu0 0.0
    %1182 = vmatpush1.xpose.msra.mxu0 0.0
    %1183 = vmatprep.subr.mxu0 0.0
    %1184 = vmatpush1.xpose.msra.mxu0 0.0
    %1185 = vmatprep.subr.mxu0 0.0
    %1186 = vmatpush1.xpose.msra.mxu0 0.0
    %1187 = vmatprep.subr.mxu0 0.0
    %1188 = vmatpush1.xpose.msra.mxu0 0.0
    %1189 = vmatprep.mubr.f32.mxu0 0.0
    %1190 = vmatmul.mubr.f32.gmra.mrb[0].mxu0 %v1120
    %v1191 = vpop.f32.mrb[0].mxu0
    %v1192 = vadd.f32 0.0, %v1191
    %v1193 = vpop.f32.mrb[0].mxu0
    %1194 = vdwg.mxu0
    %v1195 = vmul.f32 %v1192, 0.125
    %v1196 = vsel %vm867, %v1195, -inf
    %1197 = vmax.xlane.f32.xlu0 %v1196
    %v1198 = vpop.xlane.xlu0 %1197
    %v1199 = vsub.f32 %v1195, %v1198
    %v1200 = vmul.f32 %v1199, 1.442695
    %v1201 = vpow.pop %v1200
    %v1202 = vsel %vm867, %v1201, 0.0
    %1203 = vadd.xlane.f32.xlu0 %v1202
    %v1204 = vpop.xlane.xlu0 %1203
    %v1205 = vrcp.pop %v1204
    %v1206 = vmul.f32 %v1201, %v1205
    %v1208 = vsel %vm867, %v1206, 0
    %1210 = vmatprep.subr.mxu0 0.0
    %1211 = vmatpush1.msra.mxu0 %v783
    %1212 = vmatprep.subr.mxu0 0.0
    %1213 = vmatpush1.msra.mxu0 0.0
    %1214 = vmatprep.subr.mxu0 0.0
    %1215 = vmatpush1.msra.mxu0 0.0
    %1216 = vmatprep.subr.mxu0 0.0
    %1217 = vmatpush1.msra.mxu0 0.0
    %1218 = vmatprep.subr.mxu0 0.0
    %1219 = vmatpush1.msra.mxu0 0.0
    %1220 = vmatprep.subr.mxu0 0.0
    %1221 = vmatpush1.msra.mxu0 0.0
    %1222 = vmatprep.subr.mxu0 0.0
    %1223 = vmatpush1.msra.mxu0 0.0
    %1224 = vmatprep.subr.mxu0 0.0
    %1225 = vmatpush1.msra.mxu0 0.0
    %1226 = vmatprep.subr.mxu0 0.0
    %1227 = vmatpush1.msra.mxu0 0.0
    %1228 = vmatprep.subr.mxu0 0.0
    %1229 = vmatpush1.msra.mxu0 0.0
    %1230 = vmatprep.subr.mxu0 0.0
    %1231 = vmatpush1.msra.mxu0 0.0
    %1232 = vmatprep.subr.mxu0 0.0
    %1233 = vmatpush1.msra.mxu0 0.0
    %1234 = vmatprep.subr.mxu0 0.0
    %1235 = vmatpush1.msra.mxu0 0.0
    %1236 = vmatprep.subr.mxu0 0.0
    %1237 = vmatpush1.msra.mxu0 0.0
    %1238 = vmatprep.subr.mxu0 0.0
    %1239 = vmatpush1.msra.mxu0 0.0
    %1240 = vmatprep.subr.mxu0 0.0
    %1241 = vmatpush1.msra.mxu0 0.0
    %1242 = vmatprep.subr.mxu0 0.0
    %1243 = vmatpush1.msra.mxu0 0.0
    %1244 = vmatprep.subr.mxu0 0.0
    %1245 = vmatpush1.msra.mxu0 0.0
    %1246 = vmatprep.subr.mxu0 0.0
    %1247 = vmatpush1.msra.mxu0 0.0
    %1248 = vmatprep.subr.mxu0 0.0
    %1249 = vmatpush1.msra.mxu0 0.0
    %1250 = vmatprep.subr.mxu0 0.0
    %1251 = vmatpush1.msra.mxu0 0.0
    %1252 = vmatprep.subr.mxu0 0.0
    %1253 = vmatpush1.msra.mxu0 0.0
    %1254 = vmatprep.subr.mxu0 0.0
    %1255 = vmatpush1.msra.mxu0 0.0
    %1256 = vmatprep.subr.mxu0 0.0
    %1257 = vmatpush1.msra.mxu0 0.0
    %1258 = vmatprep.subr.mxu0 0.0
    %1259 = vmatpush1.msra.mxu0 0.0
    %1260 = vmatprep.subr.mxu0 0.0
    %1261 = vmatpush1.msra.mxu0 0.0
    %1262 = vmatprep.subr.mxu0 0.0
    %1263 = vmatpush1.msra.mxu0 0.0
    %1264 = vmatprep.subr.mxu0 0.0
    %1265 = vmatpush1.msra.mxu0 0.0
    %1266 = vmatprep.subr.mxu0 0.0
    %1267 = vmatpush1.msra.mxu0 0.0
    %1268 = vmatprep.subr.mxu0 0.0
    %1269 = vmatpush1.msra.mxu0 0.0
    %1270 = vmatprep.subr.mxu0 0.0
    %1271 = vmatpush1.msra.mxu0 0.0
    %1272 = vmatprep.subr.mxu0 0.0
    %1273 = vmatpush1.msra.mxu0 0.0
    %1274 = vmatprep.mubr.f32.mxu0 0.0
    %1275 = vmatmul.mubr.f32.gmra.mrb[0].mxu0 %v1208
    %v1276 = vpop.f32.mrb[0].mxu0
    %v1277 = vadd.f32 0.0, %v1276
    %v1278 = vpop.f32.mrb[0].mxu0
    %1279 = vdwg.mxu0
    %1280 = vrot.lane.b32.xlu0 %v697, 64
    %v1281 = vpop.permute.xlu0 %1280
    %1282 = vrot.lane.b32.xlu0 %v740, 64
    %v1283 = vpop.permute.xlu0 %1282
    %v1284 = vsel %vm789, %v1281, 0
    %v1286 = vsel %vm789, %v1283, 0
    %1288 = vmatprep.subr.mxu0 0.0
    %1289 = vmatpush1.xpose.msra.mxu0 %v1286
    %1290 = vmatprep.subr.mxu0 0.0
    %1291 = vmatpush1.xpose.msra.mxu0 0.0
    %1292 = vmatprep.subr.mxu0 0.0
    %1293 = vmatpush1.xpose.msra.mxu0 0.0
    %1294 = vmatprep.subr.mxu0 0.0
    %1295 = vmatpush1.xpose.msra.mxu0 0.0
    %1296 = vmatprep.subr.mxu0 0.0
    %1297 = vmatpush1.xpose.msra.mxu0 0.0
    %1298 = vmatprep.subr.mxu0 0.0
    %1299 = vmatpush1.xpose.msra.mxu0 0.0
    %1300 = vmatprep.subr.mxu0 0.0
    %1301 = vmatpush1.xpose.msra.mxu0 0.0
    %1302 = vmatprep.subr.mxu0 0.0
    %1303 = vmatpush1.xpose.msra.mxu0 0.0
    %1304 = vmatprep.subr.mxu0 0.0
    %1305 = vmatpush1.xpose.msra.mxu0 0.0
    %1306 = vmatprep.subr.mxu0 0.0
    %1307 = vmatpush1.xpose.msra.mxu0 0.0
    %1308 = vmatprep.subr.mxu0 0.0
    %1309 = vmatpush1.xpose.msra.mxu0 0.0
    %1310 = vmatprep.subr.mxu0 0.0
    %1311 = vmatpush1.xpose.msra.mxu0 0.0
    %1312 = vmatprep.subr.mxu0 0.0
    %1313 = vmatpush1.xpose.msra.mxu0 0.0
    %1314 = vmatprep.subr.mxu0 0.0
    %1315 = vmatpush1.xpose.msra.mxu0 0.0
    %1316 = vmatprep.subr.mxu0 0.0
    %1317 = vmatpush1.xpose.msra.mxu0 0.0
    %1318 = vmatprep.subr.mxu0 0.0
    %1319 = vmatpush1.xpose.msra.mxu0 0.0
    %1320 = vmatprep.subr.mxu0 0.0
    %1321 = vmatpush1.xpose.msra.mxu0 0.0
    %1322 = vmatprep.subr.mxu0 0.0
    %1323 = vmatpush1.xpose.msra.mxu0 0.0
    %1324 = vmatprep.subr.mxu0 0.0
    %1325 = vmatpush1.xpose.msra.mxu0 0.0
    %1326 = vmatprep.subr.mxu0 0.0
    %1327 = vmatpush1.xpose.msra.mxu0 0.0
    %1328 = vmatprep.subr.mxu0 0.0
    %1329 = vmatpush1.xpose.msra.mxu0 0.0
    %1330 = vmatprep.subr.mxu0 0.0
    %1331 = vmatpush1.xpose.msra.mxu0 0.0
    %1332 = vmatprep.subr.mxu0 0.0
    %1333 = vmatpush1.xpose.msra.mxu0 0.0
    %1334 = vmatprep.subr.mxu0 0.0
    %1335 = vmatpush1.xpose.msra.mxu0 0.0
    %1336 = vmatprep.subr.mxu0 0.0
    %1337 = vmatpush1.xpose.msra.mxu0 0.0
    %1338 = vmatprep.subr.mxu0 0.0
    %1339 = vmatpush1.xpose.msra.mxu0 0.0
    %1340 = vmatprep.subr.mxu0 0.0
    %1341 = vmatpush1.xpose.msra.mxu0 0.0
    %1342 = vmatprep.subr.mxu0 0.0
    %1343 = vmatpush1.xpose.msra.mxu0 0.0
    %1344 = vmatprep.subr.mxu0 0.0
    %1345 = vmatpush1.xpose.msra.mxu0 0.0
    %1346 = vmatprep.subr.mxu0 0.0
    %1347 = vmatpush1.xpose.msra.mxu0 0.0
    %1348 = vmatprep.subr.mxu0 0.0
    %1349 = vmatpush1.xpose.msra.mxu0 0.0
    %1350 = vmatprep.subr.mxu0 0.0
    %1351 = vmatpush1.xpose.msra.mxu0 0.0
    %1352 = vmatprep.mubr.f32.mxu0 0.0
    %1353 = vmatmul.mubr.f32.gmra.mrb[0].mxu0 %v1284
    %v1354 = vpop.f32.mrb[0].mxu0
    %v1355 = vadd.f32 0.0, %v1354
    %v1356 = vpop.f32.mrb[0].mxu0
    %1357 = vdwg.mxu0
    %v1358 = vmul.f32 %v1355, 0.125
    %v1359 = vsel %vm867, %v1358, -inf
    %1360 = vmax.xlane.f32.xlu0 %v1359
    %v1361 = vpop.xlane.xlu0 %1360
    %v1362 = vsub.f32 %v1358, %v1361
    %v1363 = vmul.f32 %v1362, 1.442695
    %v1364 = vpow.pop %v1363
    %v1365 = vsel %vm867, %v1364, 0.0
    %1366 = vadd.xlane.f32.xlu0 %v1365
    %v1367 = vpop.xlane.xlu0 %1366
    %v1368 = vrcp.pop %v1367
    %v1369 = vmul.f32 %v1364, %v1368
    %1371 = vrot.lane.b32.xlu0 %v783, 64
    %v1372 = vpop.permute.xlu0 %1371
    %v1375 = vsel %vm867, %v1369, 0
    %1377 = vmatprep.subr.mxu0 0.0
    %1378 = vmatpush1.msra.mxu0 %v1372
    %1379 = vmatprep.subr.mxu0 0.0
    %1380 = vmatpush1.msra.mxu0 0.0
    %1381 = vmatprep.subr.mxu0 0.0
    %1382 = vmatpush1.msra.mxu0 0.0
    %1383 = vmatprep.subr.mxu0 0.0
    %1384 = vmatpush1.msra.mxu0 0.0
    %1385 = vmatprep.subr.mxu0 0.0
    %1386 = vmatpush1.msra.mxu0 0.0
    %1387 = vmatprep.subr.mxu0 0.0
    %1388 = vmatpush1.msra.mxu0 0.0
    %1389 = vmatprep.subr.mxu0 0.0
    %1390 = vmatpush1.msra.mxu0 0.0
    %1391 = vmatprep.subr.mxu0 0.0
    %1392 = vmatpush1.msra.mxu0 0.0
    %1393 = vmatprep.subr.mxu0 0.0
    %1394 = vmatpush1.msra.mxu0 0.0
    %1395 = vmatprep.subr.mxu0 0.0
    %1396 = vmatpush1.msra.mxu0 0.0
    %1397 = vmatprep.subr.mxu0 0.0
    %1398 = vmatpush1.msra.mxu0 0.0
    %1399 = vmatprep.subr.mxu0 0.0
    %1400 = vmatpush1.msra.mxu0 0.0
    %1401 = vmatprep.subr.mxu0 0.0
    %1402 = vmatpush1.msra.mxu0 0.0
    %1403 = vmatprep.subr.mxu0 0.0
    %1404 = vmatpush1.msra.mxu0 0.0
    %1405 = vmatprep.subr.mxu0 0.0
    %1406 = vmatpush1.msra.mxu0 0.0
    %1407 = vmatprep.subr.mxu0 0.0
    %1408 = vmatpush1.msra.mxu0 0.0
    %1409 = vmatprep.subr.mxu0 0.0
    %1410 = vmatpush1.msra.mxu0 0.0
    %1411 = vmatprep.subr.mxu0 0.0
    %1412 = vmatpush1.msra.mxu0 0.0
    %1413 = vmatprep.subr.mxu0 0.0
    %1414 = vmatpush1.msra.mxu0 0.0
    %1415 = vmatprep.subr.mxu0 0.0
    %1416 = vmatpush1.msra.mxu0 0.0
    %1417 = vmatprep.subr.mxu0 0.0
    %1418 = vmatpush1.msra.mxu0 0.0
    %1419 = vmatprep.subr.mxu0 0.0
    %1420 = vmatpush1.msra.mxu0 0.0
    %1421 = vmatprep.subr.mxu0 0.0
    %1422 = vmatpush1.msra.mxu0 0.0
    %1423 = vmatprep.subr.mxu0 0.0
    %1424 = vmatpush1.msra.mxu0 0.0
    %1425 = vmatprep.subr.mxu0 0.0
    %1426 = vmatpush1.msra.mxu0 0.0
    %1427 = vmatprep.subr.mxu0 0.0
    %1428 = vmatpush1.msra.mxu0 0.0
    %1429 = vmatprep.subr.mxu0 0.0
    %1430 = vmatpush1.msra.mxu0 0.0
    %1431 = vmatprep.subr.mxu0 0.0
    %1432 = vmatpush1.msra.mxu0 0.0
    %1433 = vmatprep.subr.mxu0 0.0
    %1434 = vmatpush1.msra.mxu0 0.0
    %1435 = vmatprep.subr.mxu0 0.0
    %1436 = vmatpush1.msra.mxu0 0.0
    %1437 = vmatprep.subr.mxu0 0.0
    %1438 = vmatpush1.msra.mxu0 0.0
    %1439 = vmatprep.subr.mxu0 0.0
    %1440 = vmatpush1.msra.mxu0 0.0
    %1441 = vmatprep.mubr.f32.mxu0 0.0
    %1442 = vmatmul.mubr.f32.gmra.mrb[0].mxu0 %v1375
    %v1443 = vpop.f32.mrb[0].mxu0
    %v1444 = vadd.f32 0.0, %v1443
    %v1445 = vpop.f32.mrb[0].mxu0
    %1446 = vdwg.mxu0
    %1448 = vrot.lane.b32.xlu0 %v1116, 64
    %v1449 = vpop.permute.xlu0 %1448
    %1452 = vrot.lane.b32.xlu0 %v1444, 64
    %v1453 = vpop.permute.xlu0 %1452
    %v1455 = vsel %vm789, %v949, %v1449
    %v1456 = vsel %vm789, %v1277, %v1453
    %v1458 = vsel %vm789, %v699, 0
    %v1461 = vsel %vm789, %v742, 0
    %1463 = vmatprep.subr.mxu0 0.0
    %1464 = vmatpush1.xpose.msra.mxu0 %v1461
    %1465 = vmatprep.subr.mxu0 0.0
    %1466 = vmatpush1.xpose.msra.mxu0 0.0
    %1467 = vmatprep.subr.mxu0 0.0
    %1468 = vmatpush1.xpose.msra.mxu0 0.0
    %1469 = vmatprep.subr.mxu0 0.0
    %1470 = vmatpush1.xpose.msra.mxu0 0.0
    %1471 = vmatprep.subr.mxu0 0.0
    %1472 = vmatpush1.xpose.msra.mxu0 0.0
    %1473 = vmatprep.subr.mxu0 0.0
    %1474 = vmatpush1.xpose.msra.mxu0 0.0
    %1475 = vmatprep.subr.mxu0 0.0
    %1476 = vmatpush1.xpose.msra.mxu0 0.0
    %1477 = vmatprep.subr.mxu0 0.0
    %1478 = vmatpush1.xpose.msra.mxu0 0.0
    %1479 = vmatprep.subr.mxu0 0.0
    %1480 = vmatpush1.xpose.msra.mxu0 0.0
    %1481 = vmatprep.subr.mxu0 0.0
    %1482 = vmatpush1.xpose.msra.mxu0 0.0
    %1483 = vmatprep.subr.mxu0 0.0
    %1484 = vmatpush1.xpose.msra.mxu0 0.0
    %1485 = vmatprep.subr.mxu0 0.0
    %1486 = vmatpush1.xpose.msra.mxu0 0.0
    %1487 = vmatprep.subr.mxu0 0.0
    %1488 = vmatpush1.xpose.msra.mxu0 0.0
    %1489 = vmatprep.subr.mxu0 0.0
    %1490 = vmatpush1.xpose.msra.mxu0 0.0
    %1491 = vmatprep.subr.mxu0 0.0
    %1492 = vmatpush1.xpose.msra.mxu0 0.0
    %1493 = vmatprep.subr.mxu0 0.0
    %1494 = vmatpush1.xpose.msra.mxu0 0.0
    %1495 = vmatprep.subr.mxu0 0.0
    %1496 = vmatpush1.xpose.msra.mxu0 0.0
    %1497 = vmatprep.subr.mxu0 0.0
    %1498 = vmatpush1.xpose.msra.mxu0 0.0
    %1499 = vmatprep.subr.mxu0 0.0
    %1500 = vmatpush1.xpose.msra.mxu0 0.0
    %1501 = vmatprep.subr.mxu0 0.0
    %1502 = vmatpush1.xpose.msra.mxu0 0.0
    %1503 = vmatprep.subr.mxu0 0.0
    %1504 = vmatpush1.xpose.msra.mxu0 0.0
    %1505 = vmatprep.subr.mxu0 0.0
    %1506 = vmatpush1.xpose.msra.mxu0 0.0
    %1507 = vmatprep.subr.mxu0 0.0
    %1508 = vmatpush1.xpose.msra.mxu0 0.0
    %1509 = vmatprep.subr.mxu0 0.0
    %1510 = vmatpush1.xpose.msra.mxu0 0.0
    %1511 = vmatprep.subr.mxu0 0.0
    %1512 = vmatpush1.xpose.msra.mxu0 0.0
    %1513 = vmatprep.subr.mxu0 0.0
    %1514 = vmatpush1.xpose.msra.mxu0 0.0
    %1515 = vmatprep.subr.mxu0 0.0
    %1516 = vmatpush1.xpose.msra.mxu0 0.0
    %1517 = vmatprep.subr.mxu0 0.0
    %1518 = vmatpush1.xpose.msra.mxu0 0.0
    %1519 = vmatprep.subr.mxu0 0.0
    %1520 = vmatpush1.xpose.msra.mxu0 0.0
    %1521 = vmatprep.subr.mxu0 0.0
    %1522 = vmatpush1.xpose.msra.mxu0 0.0
    %1523 = vmatprep.subr.mxu0 0.0
    %1524 = vmatpush1.xpose.msra.mxu0 0.0
    %1525 = vmatprep.subr.mxu0 0.0
    %1526 = vmatpush1.xpose.msra.mxu0 0.0
    %1527 = vmatprep.mubr.f32.mxu0 0.0
    %1528 = vmatmul.mubr.f32.gmra.mrb[0].mxu0 %v1458
    %v1529 = vpop.f32.mrb[0].mxu0
    %v1530 = vadd.f32 0.0, %v1529
    %v1531 = vpop.f32.mrb[0].mxu0
    %1532 = vdwg.mxu0
    %v1533 = vmul.f32 %v1530, 0.125
    %v1534 = vsel %vm867, %v1533, -inf
    %1535 = vmax.xlane.f32.xlu0 %v1534
    %v1536 = vpop.xlane.xlu0 %1535
    %v1537 = vsub.f32 %v1533, %v1536
    %v1538 = vmul.f32 %v1537, 1.442695
    %v1539 = vpow.pop %v1538
    %v1540 = vsel %vm867, %v1539, 0.0
    %1541 = vadd.xlane.f32.xlu0 %v1540
    %v1542 = vpop.xlane.xlu0 %1541
    %v1543 = vrcp.pop %v1542
    %v1544 = vmul.f32 %v1539, %v1543
    %v1546 = vsel %vm867, %v1544, 0
    %1548 = vmatprep.subr.mxu0 0.0
    %1549 = vmatpush1.msra.mxu0 %v785
    %1550 = vmatprep.subr.mxu0 0.0
    %1551 = vmatpush1.msra.mxu0 0.0
    %1552 = vmatprep.subr.mxu0 0.0
    %1553 = vmatpush1.msra.mxu0 0.0
    %1554 = vmatprep.subr.mxu0 0.0
    %1555 = vmatpush1.msra.mxu0 0.0
    %1556 = vmatprep.subr.mxu0 0.0
    %1557 = vmatpush1.msra.mxu0 0.0
    %1558 = vmatprep.subr.mxu0 0.0
    %1559 = vmatpush1.msra.mxu0 0.0
    %1560 = vmatprep.subr.mxu0 0.0
    %1561 = vmatpush1.msra.mxu0 0.0
    %1562 = vmatprep.subr.mxu0 0.0
    %1563 = vmatpush1.msra.mxu0 0.0
    %1564 = vmatprep.subr.mxu0 0.0
    %1565 = vmatpush1.msra.mxu0 0.0
    %1566 = vmatprep.subr.mxu0 0.0
    %1567 = vmatpush1.msra.mxu0 0.0
    %1568 = vmatprep.subr.mxu0 0.0
    %1569 = vmatpush1.msra.mxu0 0.0
    %1570 = vmatprep.subr.mxu0 0.0
    %1571 = vmatpush1.msra.mxu0 0.0
    %1572 = vmatprep.subr.mxu0 0.0
    %1573 = vmatpush1.msra.mxu0 0.0
    %1574 = vmatprep.subr.mxu0 0.0
    %1575 = vmatpush1.msra.mxu0 0.0
    %1576 = vmatprep.subr.mxu0 0.0
    %1577 = vmatpush1.msra.mxu0 0.0
    %1578 = vmatprep.subr.mxu0 0.0
    %1579 = vmatpush1.msra.mxu0 0.0
    %1580 = vmatprep.subr.mxu0 0.0
    %1581 = vmatpush1.msra.mxu0 0.0
    %1582 = vmatprep.subr.mxu0 0.0
    %1583 = vmatpush1.msra.mxu0 0.0
    %1584 = vmatprep.subr.mxu0 0.0
    %1585 = vmatpush1.msra.mxu0 0.0
    %1586 = vmatprep.subr.mxu0 0.0
    %1587 = vmatpush1.msra.mxu0 0.0
    %1588 = vmatprep.subr.mxu0 0.0
    %1589 = vmatpush1.msra.mxu0 0.0
    %1590 = vmatprep.subr.mxu0 0.0
    %1591 = vmatpush1.msra.mxu0 0.0
    %1592 = vmatprep.subr.mxu0 0.0
    %1593 = vmatpush1.msra.mxu0 0.0
    %1594 = vmatprep.subr.mxu0 0.0
    %1595 = vmatpush1.msra.mxu0 0.0
    %1596 = vmatprep.subr.mxu0 0.0
    %1597 = vmatpush1.msra.mxu0 0.0
    %1598 = vmatprep.subr.mxu0 0.0
    %1599 = vmatpush1.msra.mxu0 0.0
    %1600 = vmatprep.subr.mxu0 0.0
    %1601 = vmatpush1.msra.mxu0 0.0
    %1602 = vmatprep.subr.mxu0 0.0
    %1603 = vmatpush1.msra.mxu0 0.0
    %1604 = vmatprep.subr.mxu0 0.0
    %1605 = vmatpush1.msra.mxu0 0.0
    %1606 = vmatprep.subr.mxu0 0.0
    %1607 = vmatpush1.msra.mxu0 0.0
    %1608 = vmatprep.subr.mxu0 0.0
    %1609 = vmatpush1.msra.mxu0 0.0
    %1610 = vmatprep.subr.mxu0 0.0
    %1611 = vmatpush1.msra.mxu0 0.0
    %1612 = vmatprep.mubr.f32.mxu0 0.0
    %1613 = vmatmul.mubr.f32.gmra.mrb[0].mxu0 %v1546
    %v1614 = vpop.f32.mrb[0].mxu0
    %v1615 = vadd.f32 0.0, %v1614
    %v1616 = vpop.f32.mrb[0].mxu0
    %1617 = vdwg.mxu0
    %1618 = vrot.lane.b32.xlu0 %v699, 64
    %v1619 = vpop.permute.xlu0 %1618
    %1620 = vrot.lane.b32.xlu0 %v742, 64
    %v1621 = vpop.permute.xlu0 %1620
    %v1622 = vsel %vm789, %v1619, 0
    %v1624 = vsel %vm789, %v1621, 0
    %1626 = vmatprep.subr.mxu0 0.0
    %1627 = vmatpush1.xpose.msra.mxu0 %v1624
    %1628 = vmatprep.subr.mxu0 0.0
    %1629 = vmatpush1.xpose.msra.mxu0 0.0
    %1630 = vmatprep.subr.mxu0 0.0
    %1631 = vmatpush1.xpose.msra.mxu0 0.0
    %1632 = vmatprep.subr.mxu0 0.0
    %1633 = vmatpush1.xpose.msra.mxu0 0.0
    %1634 = vmatprep.subr.mxu0 0.0
    %1635 = vmatpush1.xpose.msra.mxu0 0.0
    %1636 = vmatprep.subr.mxu0 0.0
    %1637 = vmatpush1.xpose.msra.mxu0 0.0
    %1638 = vmatprep.subr.mxu0 0.0
    %1639 = vmatpush1.xpose.msra.mxu0 0.0
    %1640 = vmatprep.subr.mxu0 0.0
    %1641 = vmatpush1.xpose.msra.mxu0 0.0
    %1642 = vmatprep.subr.mxu0 0.0
    %1643 = vmatpush1.xpose.msra.mxu0 0.0
    %1644 = vmatprep.subr.mxu0 0.0
    %1645 = vmatpush1.xpose.msra.mxu0 0.0
    %1646 = vmatprep.subr.mxu0 0.0
    %1647 = vmatpush1.xpose.msra.mxu0 0.0
    %1648 = vmatprep.subr.mxu0 0.0
    %1649 = vmatpush1.xpose.msra.mxu0 0.0
    %1650 = vmatprep.subr.mxu0 0.0
    %1651 = vmatpush1.xpose.msra.mxu0 0.0
    %1652 = vmatprep.subr.mxu0 0.0
    %1653 = vmatpush1.xpose.msra.mxu0 0.0
    %1654 = vmatprep.subr.mxu0 0.0
    %1655 = vmatpush1.xpose.msra.mxu0 0.0
    %1656 = vmatprep.subr.mxu0 0.0
    %1657 = vmatpush1.xpose.msra.mxu0 0.0
    %1658 = vmatprep.subr.mxu0 0.0
    %1659 = vmatpush1.xpose.msra.mxu0 0.0
    %1660 = vmatprep.subr.mxu0 0.0
    %1661 = vmatpush1.xpose.msra.mxu0 0.0
    %1662 = vmatprep.subr.mxu0 0.0
    %1663 = vmatpush1.xpose.msra.mxu0 0.0
    %1664 = vmatprep.subr.mxu0 0.0
    %1665 = vmatpush1.xpose.msra.mxu0 0.0
    %1666 = vmatprep.subr.mxu0 0.0
    %1667 = vmatpush1.xpose.msra.mxu0 0.0
    %1668 = vmatprep.subr.mxu0 0.0
    %1669 = vmatpush1.xpose.msra.mxu0 0.0
    %1670 = vmatprep.subr.mxu0 0.0
    %1671 = vmatpush1.xpose.msra.mxu0 0.0
    %1672 = vmatprep.subr.mxu0 0.0
    %1673 = vmatpush1.xpose.msra.mxu0 0.0
    %1674 = vmatprep.subr.mxu0 0.0
    %1675 = vmatpush1.xpose.msra.mxu0 0.0
    %1676 = vmatprep.subr.mxu0 0.0
    %1677 = vmatpush1.xpose.msra.mxu0 0.0
    %1678 = vmatprep.subr.mxu0 0.0
    %1679 = vmatpush1.xpose.msra.mxu0 0.0
    %1680 = vmatprep.subr.mxu0 0.0
    %1681 = vmatpush1.xpose.msra.mxu0 0.0
    %1682 = vmatprep.subr.mxu0 0.0
    %1683 = vmatpush1.xpose.msra.mxu0 0.0
    %1684 = vmatprep.subr.mxu0 0.0
    %1685 = vmatpush1.xpose.msra.mxu0 0.0
    %1686 = vmatprep.subr.mxu0 0.0
    %1687 = vmatpush1.xpose.msra.mxu0 0.0
    %1688 = vmatprep.subr.mxu0 0.0
    %1689 = vmatpush1.xpose.msra.mxu0 0.0
    %1690 = vmatprep.mubr.f32.mxu0 0.0
    %1691 = vmatmul.mubr.f32.gmra.mrb[0].mxu0 %v1622
    %v1692 = vpop.f32.mrb[0].mxu0
    %v1693 = vadd.f32 0.0, %v1692
    %v1694 = vpop.f32.mrb[0].mxu0
    %1695 = vdwg.mxu0
    %v1696 = vmul.f32 %v1693, 0.125
    %v1697 = vsel %vm867, %v1696, -inf
    %1698 = vmax.xlane.f32.xlu0 %v1697
    %v1699 = vpop.xlane.xlu0 %1698
    %v1700 = vsub.f32 %v1696, %v1699
    %v1701 = vmul.f32 %v1700, 1.442695
    %v1702 = vpow.pop %v1701
    %v1703 = vsel %vm867, %v1702, 0.0
    %1704 = vadd.xlane.f32.xlu0 %v1703
    %v1705 = vpop.xlane.xlu0 %1704
    %v1706 = vrcp.pop %v1705
    %v1707 = vmul.f32 %v1702, %v1706
    %1709 = vrot.lane.b32.xlu0 %v785, 64
    %v1710 = vpop.permute.xlu0 %1709
    %v1713 = vsel %vm867, %v1707, 0
    %1715 = vmatprep.subr.mxu0 0.0
    %1716 = vmatpush1.msra.mxu0 %v1710
    %1717 = vmatprep.subr.mxu0 0.0
    %1718 = vmatpush1.msra.mxu0 0.0
    %1719 = vmatprep.subr.mxu0 0.0
    %1720 = vmatpush1.msra.mxu0 0.0
    %1721 = vmatprep.subr.mxu0 0.0
    %1722 = vmatpush1.msra.mxu0 0.0
    %1723 = vmatprep.subr.mxu0 0.0
    %1724 = vmatpush1.msra.mxu0 0.0
    %1725 = vmatprep.subr.mxu0 0.0
    %1726 = vmatpush1.msra.mxu0 0.0
    %1727 = vmatprep.subr.mxu0 0.0
    %1728 = vmatpush1.msra.mxu0 0.0
    %1729 = vmatprep.subr.mxu0 0.0
    %1730 = vmatpush1.msra.mxu0 0.0
    %1731 = vmatprep.subr.mxu0 0.0
    %1732 = vmatpush1.msra.mxu0 0.0
    %1733 = vmatprep.subr.mxu0 0.0
    %1734 = vmatpush1.msra.mxu0 0.0
    %1735 = vmatprep.subr.mxu0 0.0
    %1736 = vmatpush1.msra.mxu0 0.0
    %1737 = vmatprep.subr.mxu0 0.0
    %1738 = vmatpush1.msra.mxu0 0.0
    %1739 = vmatprep.subr.mxu0 0.0
    %1740 = vmatpush1.msra.mxu0 0.0
    %1741 = vmatprep.subr.mxu0 0.0
    %1742 = vmatpush1.msra.mxu0 0.0
    %1743 = vmatprep.subr.mxu0 0.0
    %1744 = vmatpush1.msra.mxu0 0.0
    %1745 = vmatprep.subr.mxu0 0.0
    %1746 = vmatpush1.msra.mxu0 0.0
    %1747 = vmatprep.subr.mxu0 0.0
    %1748 = vmatpush1.msra.mxu0 0.0
    %1749 = vmatprep.subr.mxu0 0.0
    %1750 = vmatpush1.msra.mxu0 0.0
    %1751 = vmatprep.subr.mxu0 0.0
    %1752 = vmatpush1.msra.mxu0 0.0
    %1753 = vmatprep.subr.mxu0 0.0
    %1754 = vmatpush1.msra.mxu0 0.0
    %1755 = vmatprep.subr.mxu0 0.0
    %1756 = vmatpush1.msra.mxu0 0.0
    %1757 = vmatprep.subr.mxu0 0.0
    %1758 = vmatpush1.msra.mxu0 0.0
    %1759 = vmatprep.subr.mxu0 0.0
    %1760 = vmatpush1.msra.mxu0 0.0
    %1761 = vmatprep.subr.mxu0 0.0
    %1762 = vmatpush1.msra.mxu0 0.0
    %1763 = vmatprep.subr.mxu0 0.0
    %1764 = vmatpush1.msra.mxu0 0.0
    %1765 = vmatprep.subr.mxu0 0.0
    %1766 = vmatpush1.msra.mxu0 0.0
    %1767 = vmatprep.subr.mxu0 0.0
    %1768 = vmatpush1.msra.mxu0 0.0
    %1769 = vmatprep.subr.mxu0 0.0
    %1770 = vmatpush1.msra.mxu0 0.0
    %1771 = vmatprep.subr.mxu0 0.0
    %1772 = vmatpush1.msra.mxu0 0.0
    %1773 = vmatprep.subr.mxu0 0.0
    %1774 = vmatpush1.msra.mxu0 0.0
    %1775 = vmatprep.subr.mxu0 0.0
    %1776 = vmatpush1.msra.mxu0 0.0
    %1777 = vmatprep.subr.mxu0 0.0
    %1778 = vmatpush1.msra.mxu0 0.0
    %1779 = vmatprep.mubr.f32.mxu0 0.0
    %1780 = vmatmul.mubr.f32.gmra.mrb[0].mxu0 %v1713
    %v1781 = vpop.f32.mrb[0].mxu0
    %v1782 = vadd.f32 0.0, %v1781
    %v1783 = vpop.f32.mrb[0].mxu0
    %1784 = vdwg.mxu0
    %v1786 = vsel %vm789, %v701, 0
    %v1789 = vsel %vm789, %v744, 0
    %1791 = vmatprep.subr.mxu0 0.0
    %1792 = vmatpush1.xpose.msra.mxu0 %v1789
    %1793 = vmatprep.subr.mxu0 0.0
    %1794 = vmatpush1.xpose.msra.mxu0 0.0
    %1795 = vmatprep.subr.mxu0 0.0
    %1796 = vmatpush1.xpose.msra.mxu0 0.0
    %1797 = vmatprep.subr.mxu0 0.0
    %1798 = vmatpush1.xpose.msra.mxu0 0.0
    %1799 = vmatprep.subr.mxu0 0.0
    %1800 = vmatpush1.xpose.msra.mxu0 0.0
    %1801 = vmatprep.subr.mxu0 0.0
    %1802 = vmatpush1.xpose.msra.mxu0 0.0
    %1803 = vmatprep.subr.mxu0 0.0
    %1804 = vmatpush1.xpose.msra.mxu0 0.0
    %1805 = vmatprep.subr.mxu0 0.0
    %1806 = vmatpush1.xpose.msra.mxu0 0.0
    %1807 = vmatprep.subr.mxu0 0.0
    %1808 = vmatpush1.xpose.msra.mxu0 0.0
    %1809 = vmatprep.subr.mxu0 0.0
    %1810 = vmatpush1.xpose.msra.mxu0 0.0
    %1811 = vmatprep.subr.mxu0 0.0
    %1812 = vmatpush1.xpose.msra.mxu0 0.0
    %1813 = vmatprep.subr.mxu0 0.0
    %1814 = vmatpush1.xpose.msra.mxu0 0.0
    %1815 = vmatprep.subr.mxu0 0.0
    %1816 = vmatpush1.xpose.msra.mxu0 0.0
    %1817 = vmatprep.subr.mxu0 0.0
    %1818 = vmatpush1.xpose.msra.mxu0 0.0
    %1819 = vmatprep.subr.mxu0 0.0
    %1820 = vmatpush1.xpose.msra.mxu0 0.0
    %1821 = vmatprep.subr.mxu0 0.0
    %1822 = vmatpush1.xpose.msra.mxu0 0.0
    %1823 = vmatprep.subr.mxu0 0.0
    %1824 = vmatpush1.xpose.msra.mxu0 0.0
    %1825 = vmatprep.subr.mxu0 0.0
    %1826 = vmatpush1.xpose.msra.mxu0 0.0
    %1827 = vmatprep.subr.mxu0 0.0
    %1828 = vmatpush1.xpose.msra.mxu0 0.0
    %1829 = vmatprep.subr.mxu0 0.0
    %1830 = vmatpush1.xpose.msra.mxu0 0.0
    %1831 = vmatprep.subr.mxu0 0.0
    %1832 = vmatpush1.xpose.msra.mxu0 0.0
    %1833 = vmatprep.subr.mxu0 0.0
    %1834 = vmatpush1.xpose.msra.mxu0 0.0
    %1835 = vmatprep.subr.mxu0 0.0
    %1836 = vmatpush1.xpose.msra.mxu0 0.0
    %1837 = vmatprep.subr.mxu0 0.0
    %1838 = vmatpush1.xpose.msra.mxu0 0.0
    %1839 = vmatprep.subr.mxu0 0.0
    %1840 = vmatpush1.xpose.msra.mxu0 0.0
    %1841 = vmatprep.subr.mxu0 0.0
    %1842 = vmatpush1.xpose.msra.mxu0 0.0
    %1843 = vmatprep.subr.mxu0 0.0
    %1844 = vmatpush1.xpose.msra.mxu0 0.0
    %1845 = vmatprep.subr.mxu0 0.0
    %1846 = vmatpush1.xpose.msra.mxu0 0.0
    %1847 = vmatprep.subr.mxu0 0.0
    %1848 = vmatpush1.xpose.msra.mxu0 0.0
    %1849 = vmatprep.subr.mxu0 0.0
    %1850 = vmatpush1.xpose.msra.mxu0 0.0
    %1851 = vmatprep.subr.mxu0 0.0
    %1852 = vmatpush1.xpose.msra.mxu0 0.0
    %1853 = vmatprep.subr.mxu0 0.0
    %1854 = vmatpush1.xpose.msra.mxu0 0.0
    %1855 = vmatprep.mubr.f32.mxu0 0.0
    %1856 = vmatmul.mubr.f32.gmra.mrb[0].mxu0 %v1786
    %v1857 = vpop.f32.mrb[0].mxu0
    %v1858 = vadd.f32 0.0, %v1857
    %v1859 = vpop.f32.mrb[0].mxu0
    %1860 = vdwg.mxu0
    %v1861 = vmul.f32 %v1858, 0.125
    %v1862 = vsel %vm867, %v1861, -inf
    %1863 = vmax.xlane.f32.xlu0 %v1862
    %v1864 = vpop.xlane.xlu0 %1863
    %v1865 = vsub.f32 %v1861, %v1864
    %v1866 = vmul.f32 %v1865, 1.442695
    %v1867 = vpow.pop %v1866
    %v1868 = vsel %vm867, %v1867, 0.0
    %1869 = vadd.xlane.f32.xlu0 %v1868
    %v1870 = vpop.xlane.xlu0 %1869
    %v1871 = vrcp.pop %v1870
    %v1872 = vmul.f32 %v1867, %v1871
    %v1874 = vsel %vm867, %v1872, 0
    %1876 = vmatprep.subr.mxu0 0.0
    %1877 = vmatpush1.msra.mxu0 %v787
    %1878 = vmatprep.subr.mxu0 0.0
    %1879 = vmatpush1.msra.mxu0 0.0
    %1880 = vmatprep.subr.mxu0 0.0
    %1881 = vmatpush1.msra.mxu0 0.0
    %1882 = vmatprep.subr.mxu0 0.0
    %1883 = vmatpush1.msra.mxu0 0.0
    %1884 = vmatprep.subr.mxu0 0.0
    %1885 = vmatpush1.msra.mxu0 0.0
    %1886 = vmatprep.subr.mxu0 0.0
    %1887 = vmatpush1.msra.mxu0 0.0
    %1888 = vmatprep.subr.mxu0 0.0
    %1889 = vmatpush1.msra.mxu0 0.0
    %1890 = vmatprep.subr.mxu0 0.0
    %1891 = vmatpush1.msra.mxu0 0.0
    %1892 = vmatprep.subr.mxu0 0.0
    %1893 = vmatpush1.msra.mxu0 0.0
    %1894 = vmatprep.subr.mxu0 0.0
    %1895 = vmatpush1.msra.mxu0 0.0
    %1896 = vmatprep.subr.mxu0 0.0
    %1897 = vmatpush1.msra.mxu0 0.0
    %1898 = vmatprep.subr.mxu0 0.0
    %1899 = vmatpush1.msra.mxu0 0.0
    %1900 = vmatprep.subr.mxu0 0.0
    %1901 = vmatpush1.msra.mxu0 0.0
    %1902 = vmatprep.subr.mxu0 0.0
    %1903 = vmatpush1.msra.mxu0 0.0
    %1904 = vmatprep.subr.mxu0 0.0
    %1905 = vmatpush1.msra.mxu0 0.0
    %1906 = vmatprep.subr.mxu0 0.0
    %1907 = vmatpush1.msra.mxu0 0.0
    %1908 = vmatprep.subr.mxu0 0.0
    %1909 = vmatpush1.msra.mxu0 0.0
    %1910 = vmatprep.subr.mxu0 0.0
    %1911 = vmatpush1.msra.mxu0 0.0
    %1912 = vmatprep.subr.mxu0 0.0
    %1913 = vmatpush1.msra.mxu0 0.0
    %1914 = vmatprep.subr.mxu0 0.0
    %1915 = vmatpush1.msra.mxu0 0.0
    %1916 = vmatprep.subr.mxu0 0.0
    %1917 = vmatpush1.msra.mxu0 0.0
    %1918 = vmatprep.subr.mxu0 0.0
    %1919 = vmatpush1.msra.mxu0 0.0
    %1920 = vmatprep.subr.mxu0 0.0
    %1921 = vmatpush1.msra.mxu0 0.0
    %1922 = vmatprep.subr.mxu0 0.0
    %1923 = vmatpush1.msra.mxu0 0.0
    %1924 = vmatprep.subr.mxu0 0.0
    %1925 = vmatpush1.msra.mxu0 0.0
    %1926 = vmatprep.subr.mxu0 0.0
    %1927 = vmatpush1.msra.mxu0 0.0
    %1928 = vmatprep.subr.mxu0 0.0
    %1929 = vmatpush1.msra.mxu0 0.0
    %1930 = vmatprep.subr.mxu0 0.0
    %1931 = vmatpush1.msra.mxu0 0.0
    %1932 = vmatprep.subr.mxu0 0.0
    %1933 = vmatpush1.msra.mxu0 0.0
    %1934 = vmatprep.subr.mxu0 0.0
    %1935 = vmatpush1.msra.mxu0 0.0
    %1936 = vmatprep.subr.mxu0 0.0
    %1937 = vmatpush1.msra.mxu0 0.0
    %1938 = vmatprep.subr.mxu0 0.0
    %1939 = vmatpush1.msra.mxu0 0.0
    %1940 = vmatprep.mubr.f32.mxu0 0.0
    %1941 = vmatmul.mubr.f32.gmra.mrb[0].mxu0 %v1874
    %v1942 = vpop.f32.mrb[0].mxu0
    %v1943 = vadd.f32 0.0, %v1942
    %v1944 = vpop.f32.mrb[0].mxu0
    %1945 = vdwg.mxu0
    %1946 = vrot.lane.b32.xlu0 %v701, 64
    %v1947 = vpop.permute.xlu0 %1946
    %1948 = vrot.lane.b32.xlu0 %v744, 64
    %v1949 = vpop.permute.xlu0 %1948
    %v1950 = vsel %vm789, %v1947, 0
    %v1952 = vsel %vm789, %v1949, 0
    %1954 = vmatprep.subr.mxu0 0.0
    %1955 = vmatpush1.xpose.msra.mxu0 %v1952
    %1956 = vmatprep.subr.mxu0 0.0
    %1957 = vmatpush1.xpose.msra.mxu0 0.0
    %1958 = vmatprep.subr.mxu0 0.0
    %1959 = vmatpush1.xpose.msra.mxu0 0.0
    %1960 = vmatprep.subr.mxu0 0.0
    %1961 = vmatpush1.xpose.msra.mxu0 0.0
    %1962 = vmatprep.subr.mxu0 0.0
    %1963 = vmatpush1.xpose.msra.mxu0 0.0
    %1964 = vmatprep.subr.mxu0 0.0
    %1965 = vmatpush1.xpose.msra.mxu0 0.0
    %1966 = vmatprep.subr.mxu0 0.0
    %1967 = vmatpush1.xpose.msra.mxu0 0.0
    %1968 = vmatprep.subr.mxu0 0.0
    %1969 = vmatpush1.xpose.msra.mxu0 0.0
    %1970 = vmatprep.subr.mxu0 0.0
    %1971 = vmatpush1.xpose.msra.mxu0 0.0
    %1972 = vmatprep.subr.mxu0 0.0
    %1973 = vmatpush1.xpose.msra.mxu0 0.0
    %1974 = vmatprep.subr.mxu0 0.0
    %1975 = vmatpush1.xpose.msra.mxu0 0.0
    %1976 = vmatprep.subr.mxu0 0.0
    %1977 = vmatpush1.xpose.msra.mxu0 0.0
    %1978 = vmatprep.subr.mxu0 0.0
    %1979 = vmatpush1.xpose.msra.mxu0 0.0
    %1980 = vmatprep.subr.mxu0 0.0
    %1981 = vmatpush1.xpose.msra.mxu0 0.0
    %1982 = vmatprep.subr.mxu0 0.0
    %1983 = vmatpush1.xpose.msra.mxu0 0.0
    %1984 = vmatprep.subr.mxu0 0.0
    %1985 = vmatpush1.xpose.msra.mxu0 0.0
    %1986 = vmatprep.subr.mxu0 0.0
    %1987 = vmatpush1.xpose.msra.mxu0 0.0
    %1988 = vmatprep.subr.mxu0 0.0
    %1989 = vmatpush1.xpose.msra.mxu0 0.0
    %1990 = vmatprep.subr.mxu0 0.0
    %1991 = vmatpush1.xpose.msra.mxu0 0.0
    %1992 = vmatprep.subr.mxu0 0.0
    %1993 = vmatpush1.xpose.msra.mxu0 0.0
    %1994 = vmatprep.subr.mxu0 0.0
    %1995 = vmatpush1.xpose.msra.mxu0 0.0
    %1996 = vmatprep.subr.mxu0 0.0
    %1997 = vmatpush1.xpose.msra.mxu0 0.0
    %1998 = vmatprep.subr.mxu0 0.0
    %1999 = vmatpush1.xpose.msra.mxu0 0.0
    %2000 = vmatprep.subr.mxu0 0.0
    %2001 = vmatpush1.xpose.msra.mxu0 0.0
    %2002 = vmatprep.subr.mxu0 0.0
    %2003 = vmatpush1.xpose.msra.mxu0 0.0
    %2004 = vmatprep.subr.mxu0 0.0
    %2005 = vmatpush1.xpose.msra.mxu0 0.0
    %2006 = vmatprep.subr.mxu0 0.0
    %2007 = vmatpush1.xpose.msra.mxu0 0.0
    %2008 = vmatprep.subr.mxu0 0.0
    %2009 = vmatpush1.xpose.msra.mxu0 0.0
    %2010 = vmatprep.subr.mxu0 0.0
    %2011 = vmatpush1.xpose.msra.mxu0 0.0
    %2012 = vmatprep.subr.mxu0 0.0
    %2013 = vmatpush1.xpose.msra.mxu0 0.0
    %2014 = vmatprep.subr.mxu0 0.0
    %2015 = vmatpush1.xpose.msra.mxu0 0.0
    %2016 = vmatprep.subr.mxu0 0.0
    %2017 = vmatpush1.xpose.msra.mxu0 0.0
    %2018 = vmatprep.mubr.f32.mxu0 0.0
    %2019 = vmatmul.mubr.f32.gmra.mrb[0].mxu0 %v1950
    %v2020 = vpop.f32.mrb[0].mxu0
    %v2021 = vadd.f32 0.0, %v2020
    %v2022 = vpop.f32.mrb[0].mxu0
    %2023 = vdwg.mxu0
    %v2024 = vmul.f32 %v2021, 0.125
    %v2025 = vsel %vm867, %v2024, -inf
    %2026 = vmax.xlane.f32.xlu0 %v2025
    %v2027 = vpop.xlane.xlu0 %2026
    %v2028 = vsub.f32 %v2024, %v2027
    %v2029 = vmul.f32 %v2028, 1.442695
    %v2030 = vpow.pop %v2029
    %v2031 = vsel %vm867, %v2030, 0.0
    %2032 = vadd.xlane.f32.xlu0 %v2031
    %v2033 = vpop.xlane.xlu0 %2032
    %v2034 = vrcp.pop %v2033
    %v2035 = vmul.f32 %v2030, %v2034
    %2037 = vrot.lane.b32.xlu0 %v787, 64
    %v2038 = vpop.permute.xlu0 %2037
    %v2041 = vsel %vm867, %v2035, 0
    %2043 = vmatprep.subr.mxu0 0.0
    %2044 = vmatpush1.msra.mxu0 %v2038
    %2045 = vmatprep.subr.mxu0 0.0
    %2046 = vmatpush1.msra.mxu0 0.0
    %2047 = vmatprep.subr.mxu0 0.0
    %2048 = vmatpush1.msra.mxu0 0.0
    %2049 = vmatprep.subr.mxu0 0.0
    %2050 = vmatpush1.msra.mxu0 0.0
    %2051 = vmatprep.subr.mxu0 0.0
    %2052 = vmatpush1.msra.mxu0 0.0
    %2053 = vmatprep.subr.mxu0 0.0
    %2054 = vmatpush1.msra.mxu0 0.0
    %2055 = vmatprep.subr.mxu0 0.0
    %2056 = vmatpush1.msra.mxu0 0.0
    %2057 = vmatprep.subr.mxu0 0.0
    %2058 = vmatpush1.msra.mxu0 0.0
    %2059 = vmatprep.subr.mxu0 0.0
    %2060 = vmatpush1.msra.mxu0 0.0
    %2061 = vmatprep.subr.mxu0 0.0
    %2062 = vmatpush1.msra.mxu0 0.0
    %2063 = vmatprep.subr.mxu0 0.0
    %2064 = vmatpush1.msra.mxu0 0.0
    %2065 = vmatprep.subr.mxu0 0.0
    %2066 = vmatpush1.msra.mxu0 0.0
    %2067 = vmatprep.subr.mxu0 0.0
    %2068 = vmatpush1.msra.mxu0 0.0
    %2069 = vmatprep.subr.mxu0 0.0
    %2070 = vmatpush1.msra.mxu0 0.0
    %2071 = vmatprep.subr.mxu0 0.0
    %2072 = vmatpush1.msra.mxu0 0.0
    %2073 = vmatprep.subr.mxu0 0.0
    %2074 = vmatpush1.msra.mxu0 0.0
    %2075 = vmatprep.subr.mxu0 0.0
    %2076 = vmatpush1.msra.mxu0 0.0
    %2077 = vmatprep.subr.mxu0 0.0
    %2078 = vmatpush1.msra.mxu0 0.0
    %2079 = vmatprep.subr.mxu0 0.0
    %2080 = vmatpush1.msra.mxu0 0.0
    %2081 = vmatprep.subr.mxu0 0.0
    %2082 = vmatpush1.msra.mxu0 0.0
    %2083 = vmatprep.subr.mxu0 0.0
    %2084 = vmatpush1.msra.mxu0 0.0
    %2085 = vmatprep.subr.mxu0 0.0
    %2086 = vmatpush1.msra.mxu0 0.0
    %2087 = vmatprep.subr.mxu0 0.0
    %2088 = vmatpush1.msra.mxu0 0.0
    %2089 = vmatprep.subr.mxu0 0.0
    %2090 = vmatpush1.msra.mxu0 0.0
    %2091 = vmatprep.subr.mxu0 0.0
    %2092 = vmatpush1.msra.mxu0 0.0
    %2093 = vmatprep.subr.mxu0 0.0
    %2094 = vmatpush1.msra.mxu0 0.0
    %2095 = vmatprep.subr.mxu0 0.0
    %2096 = vmatpush1.msra.mxu0 0.0
    %2097 = vmatprep.subr.mxu0 0.0
    %2098 = vmatpush1.msra.mxu0 0.0
    %2099 = vmatprep.subr.mxu0 0.0
    %2100 = vmatpush1.msra.mxu0 0.0
    %2101 = vmatprep.subr.mxu0 0.0
    %2102 = vmatpush1.msra.mxu0 0.0
    %2103 = vmatprep.subr.mxu0 0.0
    %2104 = vmatpush1.msra.mxu0 0.0
    %2105 = vmatprep.subr.mxu0 0.0
    %2106 = vmatpush1.msra.mxu0 0.0
    %2107 = vmatprep.mubr.f32.mxu0 0.0
    %2108 = vmatmul.mubr.f32.gmra.mrb[0].mxu0 %v2041
    %v2109 = vpop.f32.mrb[0].mxu0
    %v2110 = vadd.f32 0.0, %v2109
    %v2111 = vpop.f32.mrb[0].mxu0
    %2112 = vdwg.mxu0
    %2114 = vrot.lane.b32.xlu0 %v1782, 64
    %v2115 = vpop.permute.xlu0 %2114
    %2118 = vrot.lane.b32.xlu0 %v2110, 64
    %v2119 = vpop.permute.xlu0 %2118
    %v2121 = vsel %vm789, %v1615, %v2115
    %v2122 = vsel %vm789, %v1943, %v2119
    %v2123 = vpack.c.bf16 %v2121, %v1455
    %v2124 = vpack.c.bf16 %v2122, %v1456
    %v2125 = vld [vmem:[%s3] sm:$0xff]
    %v2126 = vld [vmem:[%s3 + $0x8] sm:$0xff]
    %v2127 = vld [vmem:[%s3 + $0x10] sm:$0xff]
    %v2128 = vld [vmem:[%s3 + $0x18] sm:$0xff]
    %v2129 = vld [vmem:[%s3 + $0x20] sm:$0xff]
    %v2130 = vld [vmem:[%s3 + $0x28] sm:$0xff]
    %v2131 = vld [vmem:[%s3 + $0x30] sm:$0xff]
    %v2132 = vld [vmem:[%s3 + $0x38] sm:$0xff]
    %v2133 = vld [vmem:[%s3 + $0x40] sm:$0xff]
    %v2134 = vld [vmem:[%s3 + $0x48] sm:$0xff]
    %v2135 = vld [vmem:[%s3 + $0x50] sm:$0xff]
    %v2136 = vld [vmem:[%s3 + $0x58] sm:$0xff]
    %v2137 = vld [vmem:[%s3 + $0x60] sm:$0xff]
    %v2138 = vld [vmem:[%s3 + $0x68] sm:$0xff]
    %v2139 = vld [vmem:[%s3 + $0x70] sm:$0xff]
    %v2140 = vld [vmem:[%s3 + $0x78] sm:$0xff]
    %v2141 = vld [vmem:[%s3 + $0x80] sm:$0xff]
    %v2142 = vld [vmem:[%s3 + $0x88] sm:$0xff]
    %v2143 = vld [vmem:[%s3 + $0x90] sm:$0xff]
    %v2144 = vld [vmem:[%s3 + $0x98] sm:$0xff]
    %v2145 = vld [vmem:[%s3 + $0xa0] sm:$0xff]
    %v2146 = vld [vmem:[%s3 + $0xa8] sm:$0xff]
    %v2147 = vld [vmem:[%s3 + $0xb0] sm:$0xff]
    %v2148 = vld [vmem:[%s3 + $0xb8] sm:$0xff]
    %v2149 = vld [vmem:[%s3 + $0xc0] sm:$0xff]
    %v2150 = vld [vmem:[%s3 + $0xc8] sm:$0xff]
    %v2151 = vld [vmem:[%s3 + $0xd0] sm:$0xff]
    %v2152 = vld [vmem:[%s3 + $0xd8] sm:$0xff]
    %v2153 = vld [vmem:[%s3 + $0xe0] sm:$0xff]
    %v2154 = vld [vmem:[%s3 + $0xe8] sm:$0xff]
    %v2155 = vld [vmem:[%s3 + $0xf0] sm:$0xff]
    %v2156 = vld [vmem:[%s3 + $0xf8] sm:$0xff]
    %v2157 = vld [vmem:[%s4] sm:$0x3]
    %v2159 = vlaneseq
    %v2160 = vshrl.u32 %v2159, 7
    %v2161 = vsub.s32 0, %v2160
    %v2162 = vrot.slane %v2157, %v2161
    %v2163 = vlaneseq
    %v2164 = vshrl.u32 %v2163, 7
    %v2165 = vsub.s32 1, %v2164
    %v2166 = vrot.slane %v2157, %v2165
    %v2201 = vunpack.c.l.b16 %v2125
    %v2202 = vunpack.c.h.b16 %v2125
    %v2203 = vunpack.c.l.b16 %v2126
    %v2204 = vunpack.c.h.b16 %v2126
    %v2205 = vunpack.c.l.b16 %v2127
    %v2206 = vunpack.c.h.b16 %v2127
    %v2207 = vunpack.c.l.b16 %v2128
    %v2208 = vunpack.c.h.b16 %v2128
    %v2209 = vunpack.c.l.b16 %v2129
    %v2210 = vunpack.c.h.b16 %v2129
    %v2211 = vunpack.c.l.b16 %v2130
    %v2212 = vunpack.c.h.b16 %v2130
    %v2213 = vunpack.c.l.b16 %v2131
    %v2214 = vunpack.c.h.b16 %v2131
    %v2215 = vunpack.c.l.b16 %v2132
    %v2216 = vunpack.c.h.b16 %v2132
    %v2217 = vunpack.c.l.b16 %v2133
    %v2218 = vunpack.c.h.b16 %v2133
    %v2219 = vunpack.c.l.b16 %v2134
    %v2220 = vunpack.c.h.b16 %v2134
    %v2221 = vunpack.c.l.b16 %v2135
    %v2222 = vunpack.c.h.b16 %v2135
    %v2223 = vunpack.c.l.b16 %v2136
    %v2224 = vunpack.c.h.b16 %v2136
    %v2225 = vunpack.c.l.b16 %v2137
    %v2226 = vunpack.c.h.b16 %v2137
    %v2227 = vunpack.c.l.b16 %v2138
    %v2228 = vunpack.c.h.b16 %v2138
    %v2229 = vunpack.c.l.b16 %v2139
    %v2230 = vunpack.c.h.b16 %v2139
    %v2231 = vunpack.c.l.b16 %v2140
    %v2232 = vunpack.c.h.b16 %v2140
    %v2233 = vunpack.c.l.b16 %v2141
    %v2234 = vunpack.c.h.b16 %v2141
    %v2235 = vunpack.c.l.b16 %v2142
    %v2236 = vunpack.c.h.b16 %v2142
    %v2237 = vunpack.c.l.b16 %v2143
    %v2238 = vunpack.c.h.b16 %v2143
    %v2239 = vunpack.c.l.b16 %v2144
    %v2240 = vunpack.c.h.b16 %v2144
    %v2241 = vunpack.c.l.b16 %v2145
    %v2242 = vunpack.c.h.b16 %v2145
    %v2243 = vunpack.c.l.b16 %v2146
    %v2244 = vunpack.c.h.b16 %v2146
    %v2245 = vunpack.c.l.b16 %v2147
    %v2246 = vunpack.c.h.b16 %v2147
    %v2247 = vunpack.c.l.b16 %v2148
    %v2248 = vunpack.c.h.b16 %v2148
    %v2249 = vunpack.c.l.b16 %v2149
    %v2250 = vunpack.c.h.b16 %v2149
    %v2251 = vunpack.c.l.b16 %v2150
    %v2252 = vunpack.c.h.b16 %v2150
    %v2253 = vunpack.c.l.b16 %v2151
    %v2254 = vunpack.c.h.b16 %v2151
    %v2255 = vunpack.c.l.b16 %v2152
    %v2256 = vunpack.c.h.b16 %v2152
    %v2257 = vunpack.c.l.b16 %v2153
    %v2258 = vunpack.c.h.b16 %v2153
    %v2259 = vunpack.c.l.b16 %v2154
    %v2260 = vunpack.c.h.b16 %v2154
    %v2261 = vunpack.c.l.b16 %v2155
    %v2262 = vunpack.c.h.b16 %v2155
    %v2263 = vunpack.c.l.b16 %v2156
    %v2264 = vunpack.c.h.b16 %v2156
    %v2265 = vpack.c.b16 %v2203, %v2201
    %v2266 = vpack.c.b16 %v2204, %v2202
    %v2267 = vpack.c.b16 %v2207, %v2205
    %v2268 = vpack.c.b16 %v2208, %v2206
    %v2269 = vpack.c.b16 %v2211, %v2209
    %v2270 = vpack.c.b16 %v2212, %v2210
    %v2271 = vpack.c.b16 %v2215, %v2213
    %v2272 = vpack.c.b16 %v2216, %v2214
    %v2273 = vpack.c.b16 %v2219, %v2217
    %v2274 = vpack.c.b16 %v2220, %v2218
    %v2275 = vpack.c.b16 %v2223, %v2221
    %v2276 = vpack.c.b16 %v2224, %v2222
    %v2277 = vpack.c.b16 %v2227, %v2225
    %v2278 = vpack.c.b16 %v2228, %v2226
    %v2279 = vpack.c.b16 %v2231, %v2229
    %v2280 = vpack.c.b16 %v2232, %v2230
    %v2281 = vpack.c.b16 %v2235, %v2233
    %v2282 = vpack.c.b16 %v2236, %v2234
    %v2283 = vpack.c.b16 %v2239, %v2237
    %v2284 = vpack.c.b16 %v2240, %v2238
    %v2285 = vpack.c.b16 %v2243, %v2241
    %v2286 = vpack.c.b16 %v2244, %v2242
    %v2287 = vpack.c.b16 %v2247, %v2245
    %v2288 = vpack.c.b16 %v2248, %v2246
    %v2289 = vpack.c.b16 %v2251, %v2249
    %v2290 = vpack.c.b16 %v2252, %v2250
    %v2291 = vpack.c.b16 %v2255, %v2253
    %v2292 = vpack.c.b16 %v2256, %v2254
    %v2293 = vpack.c.b16 %v2259, %v2257
    %v2294 = vpack.c.b16 %v2260, %v2258
    %v2295 = vpack.c.b16 %v2263, %v2261
    %v2296 = vpack.c.b16 %v2264, %v2262
    %2329 = vmatprep.subr.bf16.mxu0 %v2266
    %2330 = vmatpush1.bf16.msra.mxu0 %v2265
    %2331 = vmatprep.subr.bf16.mxu0 %v2268
    %2332 = vmatpush1.bf16.msra.mxu0 %v2267
    %2333 = vmatprep.subr.bf16.mxu0 %v2270
    %2334 = vmatpush1.bf16.msra.mxu0 %v2269
    %2335 = vmatprep.subr.bf16.mxu0 %v2272
    %2336 = vmatpush1.bf16.msra.mxu0 %v2271
    %2337 = vmatprep.subr.bf16.mxu0 %v2274
    %2338 = vmatpush1.bf16.msra.mxu0 %v2273
    %2339 = vmatprep.subr.bf16.mxu0 %v2276
    %2340 = vmatpush1.bf16.msra.mxu0 %v2275
    %2341 = vmatprep.subr.bf16.mxu0 %v2278
    %2342 = vmatpush1.bf16.msra.mxu0 %v2277
    %2343 = vmatprep.subr.bf16.mxu0 %v2280
    %2344 = vmatpush1.bf16.msra.mxu0 %v2279
    %2345 = vmatprep.subr.bf16.mxu0 %v2282
    %2346 = vmatpush1.bf16.msra.mxu0 %v2281
    %2347 = vmatprep.subr.bf16.mxu0 %v2284
    %2348 = vmatpush1.bf16.msra.mxu0 %v2283
    %2349 = vmatprep.subr.bf16.mxu0 %v2286
    %2350 = vmatpush1.bf16.msra.mxu0 %v2285
    %2351 = vmatprep.subr.bf16.mxu0 %v2288
    %2352 = vmatpush1.bf16.msra.mxu0 %v2287
    %2353 = vmatprep.subr.bf16.mxu0 %v2290
    %2354 = vmatpush1.bf16.msra.mxu0 %v2289
    %2355 = vmatprep.subr.bf16.mxu0 %v2292
    %2356 = vmatpush1.bf16.msra.mxu0 %v2291
    %2357 = vmatprep.subr.bf16.mxu0 %v2294
    %2358 = vmatpush1.bf16.msra.mxu0 %v2293
    %2359 = vmatprep.subr.bf16.mxu0 %v2296
    %2360 = vmatpush1.bf16.msra.mxu0 %v2295
    %2361 = vmatprep.mubr.bf16.mxu0 %v2124
    %2362 = vmatmul.mubr.bf16.gmra.mrb[0].mxu0 %v2123
    %v2363 = vpop.f32.mrb[0].mxu0
    %v2364 = vadd.f32 %v2162, %v2363
    %v2365 = vpop.f32.mrb[0].mxu0
    %v2366 = vadd.f32 %v2166, %v2365
    %v2367 = vpop.f32.mrb[0].mxu0
    %v2368 = vadd.f32 %v2162, %v2367
    %v2369 = vpop.f32.mrb[0].mxu0
    %v2370 = vadd.f32 %v2166, %v2369
    %2371 = vdwg.mxu0
    %v2372 = vrot.slane %v46, 4
    %v2373 = vadd.f32 %v46, %v2372
    %v2374 = vrot.slane %v2373, 2
    %v2375 = vadd.f32 %v2373, %v2374
    %v2376 = vrot.slane %v2375, 1
    %v2377 = vadd.f32 %v2375, %v2376
    %v2378 = vrot.slane %v47, 4
    %v2379 = vadd.f32 %v47, %v2378
    %v2380 = vrot.slane %v2379, 2
    %v2381 = vadd.f32 %v2379, %v2380
    %v2382 = vrot.slane %v2381, 1
    %v2383 = vadd.f32 %v2381, %v2382
    %v2384 = vrot.slane %v2364, 4
    %v2385 = vadd.f32 %v2364, %v2384
    %v2386 = vrot.slane %v2385, 2
    %v2387 = vadd.f32 %v2385, %v2386
    %v2388 = vrot.slane %v2387, 1
    %v2389 = vadd.f32 %v2387, %v2388
    %v2390 = vrot.slane %v2366, 4
    %v2391 = vadd.f32 %v2366, %v2390
    %v2392 = vrot.slane %v2391, 2
    %v2393 = vadd.f32 %v2391, %v2392
    %v2394 = vrot.slane %v2393, 1
    %v2395 = vadd.f32 %v2393, %v2394
    %v2396 = vadd.f32 %v2377, %v2389
    %v2397 = vadd.f32 %v2383, %v2395
    %v2398 = vmul.f32 %v2396, 0.125
    %v2399 = vmul.f32 %v2397, 0.125
    %v2400 = vrot.slane %v48, 4
    %v2401 = vadd.f32 %v48, %v2400
    %v2402 = vrot.slane %v2401, 2
    %v2403 = vadd.f32 %v2401, %v2402
    %v2404 = vrot.slane %v2403, 1
    %v2405 = vadd.f32 %v2403, %v2404
    %v2406 = vrot.slane %v49, 4
    %v2407 = vadd.f32 %v49, %v2406
    %v2408 = vrot.slane %v2407, 2
    %v2409 = vadd.f32 %v2407, %v2408
    %v2410 = vrot.slane %v2409, 1
    %v2411 = vadd.f32 %v2409, %v2410
    %v2412 = vrot.slane %v2368, 4
    %v2413 = vadd.f32 %v2368, %v2412
    %v2414 = vrot.slane %v2413, 2
    %v2415 = vadd.f32 %v2413, %v2414
    %v2416 = vrot.slane %v2415, 1
    %v2417 = vadd.f32 %v2415, %v2416
    %v2418 = vrot.slane %v2370, 4
    %v2419 = vadd.f32 %v2370, %v2418
    %v2420 = vrot.slane %v2419, 2
    %v2421 = vadd.f32 %v2419, %v2420
    %v2422 = vrot.slane %v2421, 1
    %v2423 = vadd.f32 %v2421, %v2422
    %v2424 = vadd.f32 %v2405, %v2417
    %v2425 = vadd.f32 %v2411, %v2423
    %v2426 = vmul.f32 %v2424, 0.125
    %v2427 = vmul.f32 %v2425, 0.125
    %vm2428 = vcmask 1040384
    %v2429 = vsel %vm2428, %v2398, %v2426
    %v2430 = vsel %vm2428, %v2399, %v2427
    %v2431 = vpack.c.bf16 %v2429, %v2429
    %v2432 = vpack.c.bf16 %v2430, %v2430
    %v2433 = vld [vmem:[%s5] sm:$0xf]
    %v2434 = vld [vmem:[%s5 + $0x4] sm:$0xf]
    %v2435 = vld [vmem:[%s5 + $0x8] sm:$0xf]
    %v2436 = vld [vmem:[%s5 + $0xc] sm:$0xf]
    %v2437 = vld [vmem:[%s5 + $0x10] sm:$0xf]
    %v2438 = vld [vmem:[%s5 + $0x14] sm:$0xf]
    %v2439 = vld [vmem:[%s5 + $0x18] sm:$0xf]
    %v2440 = vld [vmem:[%s5 + $0x1c] sm:$0xf]
    %v2441 = vld [vmem:[%s5 + $0x20] sm:$0xf]
    %v2442 = vld [vmem:[%s5 + $0x24] sm:$0xf]
    %v2443 = vld [vmem:[%s5 + $0x28] sm:$0xf]
    %v2444 = vld [vmem:[%s5 + $0x2c] sm:$0xf]
    %v2445 = vld [vmem:[%s5 + $0x30] sm:$0xf]
    %v2446 = vld [vmem:[%s5 + $0x34] sm:$0xf]
    %v2447 = vld [vmem:[%s5 + $0x38] sm:$0xf]
    %v2448 = vld [vmem:[%s5 + $0x3c] sm:$0xf]
    %v2449 = vld [vmem:[%s5 + $0x40] sm:$0xf]
    %v2450 = vld [vmem:[%s5 + $0x44] sm:$0xf]
    %v2451 = vld [vmem:[%s5 + $0x48] sm:$0xf]
    %v2452 = vld [vmem:[%s5 + $0x4c] sm:$0xf]
    %v2453 = vld [vmem:[%s5 + $0x50] sm:$0xf]
    %v2454 = vld [vmem:[%s5 + $0x54] sm:$0xf]
    %v2455 = vld [vmem:[%s5 + $0x58] sm:$0xf]
    %v2456 = vld [vmem:[%s5 + $0x5c] sm:$0xf]
    %v2457 = vld [vmem:[%s5 + $0x60] sm:$0xf]
    %v2458 = vld [vmem:[%s5 + $0x64] sm:$0xf]
    %v2459 = vld [vmem:[%s5 + $0x68] sm:$0xf]
    %v2460 = vld [vmem:[%s5 + $0x6c] sm:$0xf]
    %v2461 = vld [vmem:[%s5 + $0x70] sm:$0xf]
    %v2462 = vld [vmem:[%s5 + $0x74] sm:$0xf]
    %v2463 = vld [vmem:[%s5 + $0x78] sm:$0xf]
    %v2464 = vld [vmem:[%s5 + $0x7c] sm:$0xf]
    %v2465 = vld [vmem:[%s6] sm:$0x1]
    %v2467 = vlaneseq
    %v2468 = vshrl.u32 %v2467, 7
    %v2469 = vsub.s32 0, %v2468
    %v2470 = vrot.slane %v2465, %v2469
    %v2504 = vunpack.c.l.b16 %v2433
    %v2505 = vunpack.c.l.b16 %v2434
    %v2506 = vunpack.c.l.b16 %v2435
    %v2507 = vunpack.c.l.b16 %v2436
    %v2508 = vunpack.c.l.b16 %v2437
    %v2509 = vunpack.c.l.b16 %v2438
    %v2510 = vunpack.c.l.b16 %v2439
    %v2511 = vunpack.c.l.b16 %v2440
    %v2512 = vunpack.c.l.b16 %v2441
    %v2513 = vunpack.c.l.b16 %v2442
    %v2514 = vunpack.c.l.b16 %v2443
    %v2515 = vunpack.c.l.b16 %v2444
    %v2516 = vunpack.c.l.b16 %v2445
    %v2517 = vunpack.c.l.b16 %v2446
    %v2518 = vunpack.c.l.b16 %v2447
    %v2519 = vunpack.c.l.b16 %v2448
    %v2520 = vunpack.c.l.b16 %v2449
    %v2521 = vunpack.c.l.b16 %v2450
    %v2522 = vunpack.c.l.b16 %v2451
    %v2523 = vunpack.c.l.b16 %v2452
    %v2524 = vunpack.c.l.b16 %v2453
    %v2525 = vunpack.c.l.b16 %v2454
    %v2526 = vunpack.c.l.b16 %v2455
    %v2527 = vunpack.c.l.b16 %v2456
    %v2528 = vunpack.c.l.b16 %v2457
    %v2529 = vunpack.c.l.b16 %v2458
    %v2530 = vunpack.c.l.b16 %v2459
    %v2531 = vunpack.c.l.b16 %v2460
    %v2532 = vunpack.c.l.b16 %v2461
    %v2533 = vunpack.c.l.b16 %v2462
    %v2534 = vunpack.c.l.b16 %v2463
    %v2535 = vunpack.c.l.b16 %v2464
    %v2536 = vpack.c.b16 %v2505, %v2504
    %v2537 = vpack.c.b16 %v2507, %v2506
    %v2538 = vpack.c.b16 %v2509, %v2508
    %v2539 = vpack.c.b16 %v2511, %v2510
    %v2540 = vpack.c.b16 %v2513, %v2512
    %v2541 = vpack.c.b16 %v2515, %v2514
    %v2542 = vpack.c.b16 %v2517, %v2516
    %v2543 = vpack.c.b16 %v2519, %v2518
    %v2544 = vpack.c.b16 %v2521, %v2520
    %v2545 = vpack.c.b16 %v2523, %v2522
    %v2546 = vpack.c.b16 %v2525, %v2524
    %v2547 = vpack.c.b16 %v2527, %v2526
    %v2548 = vpack.c.b16 %v2529, %v2528
    %v2549 = vpack.c.b16 %v2531, %v2530
    %v2550 = vpack.c.b16 %v2533, %v2532
    %v2551 = vpack.c.b16 %v2535, %v2534
    %2568 = vmatprep.subr.bf16.mxu0 0
    %2569 = vmatpush1.bf16.msra.mxu0 %v2536
    %2570 = vmatprep.subr.bf16.mxu0 0
    %2571 = vmatpush1.bf16.msra.mxu0 %v2537
    %2572 = vmatprep.subr.bf16.mxu0 0
    %2573 = vmatpush1.bf16.msra.mxu0 %v2538
    %2574 = vmatprep.subr.bf16.mxu0 0
    %2575 = vmatpush1.bf16.msra.mxu0 %v2539
    %2576 = vmatprep.subr.bf16.mxu0 0
    %2577 = vmatpush1.bf16.msra.mxu0 %v2540
    %2578 = vmatprep.subr.bf16.mxu0 0
    %2579 = vmatpush1.bf16.msra.mxu0 %v2541
    %2580 = vmatprep.subr.bf16.mxu0 0
    %2581 = vmatpush1.bf16.msra.mxu0 %v2542
    %2582 = vmatprep.subr.bf16.mxu0 0
    %2583 = vmatpush1.bf16.msra.mxu0 %v2543
    %2584 = vmatprep.subr.bf16.mxu0 0
    %2585 = vmatpush1.bf16.msra.mxu0 %v2544
    %2586 = vmatprep.subr.bf16.mxu0 0
    %2587 = vmatpush1.bf16.msra.mxu0 %v2545
    %2588 = vmatprep.subr.bf16.mxu0 0
    %2589 = vmatpush1.bf16.msra.mxu0 %v2546
    %2590 = vmatprep.subr.bf16.mxu0 0
    %2591 = vmatpush1.bf16.msra.mxu0 %v2547
    %2592 = vmatprep.subr.bf16.mxu0 0
    %2593 = vmatpush1.bf16.msra.mxu0 %v2548
    %2594 = vmatprep.subr.bf16.mxu0 0
    %2595 = vmatpush1.bf16.msra.mxu0 %v2549
    %2596 = vmatprep.subr.bf16.mxu0 0
    %2597 = vmatpush1.bf16.msra.mxu0 %v2550
    %2598 = vmatprep.subr.bf16.mxu0 0
    %2599 = vmatpush1.bf16.msra.mxu0 %v2551
    %2600 = vmatprep.mubr.bf16.mxu0 %v2432
    %2601 = vmatmul.mubr.bf16.gmra.mrb[0].mxu0 %v2431
    %v2602 = vpop.f32.mrb[0].mxu0
    %v2603 = vadd.f32 %v2470, %v2602
    %v2604 = vpop.f32.mrb[0].mxu0
    %v2605 = vpop.f32.mrb[0].mxu0
    %v2606 = vpop.f32.mrb[0].mxu0
    %2607 = vdwg.mxu0
    %v2608 = vmax.f32 %v2603, 0.0
    %v2609 = vpack.c.bf16 %v2608, %v2608
    %v2610 = vld [vmem:[%s7] sm:$0xf]
    %v2611 = vld [vmem:[%s7 + $0x4] sm:$0xf]
    %v2612 = vld [vmem:[%s7 + $0x8] sm:$0xf]
    %v2613 = vld [vmem:[%s7 + $0xc] sm:$0xf]
    %v2614 = vld [vmem:[%s7 + $0x10] sm:$0xf]
    %v2615 = vld [vmem:[%s7 + $0x14] sm:$0xf]
    %v2616 = vld [vmem:[%s7 + $0x18] sm:$0xf]
    %v2617 = vld [vmem:[%s7 + $0x1c] sm:$0xf]
    %v2618 = vld [vmem:[%s7 + $0x20] sm:$0xf]
    %v2619 = vld [vmem:[%s7 + $0x24] sm:$0xf]
    %v2620 = vld [vmem:[%s7 + $0x28] sm:$0xf]
    %v2621 = vld [vmem:[%s7 + $0x2c] sm:$0xf]
    %v2622 = vld [vmem:[%s7 + $0x30] sm:$0xf]
    %v2623 = vld [vmem:[%s7 + $0x34] sm:$0xf]
    %v2624 = vld [vmem:[%s7 + $0x38] sm:$0xf]
    %v2625 = vld [vmem:[%s7 + $0x3c] sm:$0xf]
    %v2626 = vld [vmem:[%s8] sm:$0x1]
    %v2628 = vlaneseq
    %v2629 = vshrl.u32 %v2628, 7
    %v2630 = vsub.s32 0, %v2629
    %v2631 = vrot.slane %v2626, %v2630
    %v2649 = vunpack.c.l.b16 %v2610
    %v2650 = vunpack.c.l.b16 %v2611
    %v2651 = vunpack.c.l.b16 %v2612
    %v2652 = vunpack.c.l.b16 %v2613
    %v2653 = vunpack.c.l.b16 %v2614
    %v2654 = vunpack.c.l.b16 %v2615
    %v2655 = vunpack.c.l.b16 %v2616
    %v2656 = vunpack.c.l.b16 %v2617
    %v2657 = vunpack.c.l.b16 %v2618
    %v2658 = vunpack.c.l.b16 %v2619
    %v2659 = vunpack.c.l.b16 %v2620
    %v2660 = vunpack.c.l.b16 %v2621
    %v2661 = vunpack.c.l.b16 %v2622
    %v2662 = vunpack.c.l.b16 %v2623
    %v2663 = vunpack.c.l.b16 %v2624
    %v2664 = vunpack.c.l.b16 %v2625
    %v2665 = vpack.c.b16 %v2650, %v2649
    %v2666 = vpack.c.b16 %v2652, %v2651
    %v2667 = vpack.c.b16 %v2654, %v2653
    %v2668 = vpack.c.b16 %v2656, %v2655
    %v2669 = vpack.c.b16 %v2658, %v2657
    %v2670 = vpack.c.b16 %v2660, %v2659
    %v2671 = vpack.c.b16 %v2662, %v2661
    %v2672 = vpack.c.b16 %v2664, %v2663
    %2681 = vmatprep.subr.bf16.mxu0 0
    %2682 = vmatpush1.bf16.msra.mxu0 %v2665
    %2683 = vmatprep.subr.bf16.mxu0 0
    %2684 = vmatpush1.bf16.msra.mxu0 %v2666
    %2685 = vmatprep.subr.bf16.mxu0 0
    %2686 = vmatpush1.bf16.msra.mxu0 %v2667
    %2687 = vmatprep.subr.bf16.mxu0 0
    %2688 = vmatpush1.bf16.msra.mxu0 %v2668
    %2689 = vmatprep.subr.bf16.mxu0 0
    %2690 = vmatpush1.bf16.msra.mxu0 %v2669
    %2691 = vmatprep.subr.bf16.mxu0 0
    %2692 = vmatpush1.bf16.msra.mxu0 %v2670
    %2693 = vmatprep.subr.bf16.mxu0 0
    %2694 = vmatpush1.bf16.msra.mxu0 %v2671
    %2695 = vmatprep.subr.bf16.mxu0 0
    %2696 = vmatpush1.bf16.msra.mxu0 %v2672
    %2697 = vmatprep.subr.bf16.mxu0 0
    %2698 = vmatpush1.bf16.msra.mxu0 0
    %2699 = vmatprep.subr.bf16.mxu0 0
    %2700 = vmatpush1.bf16.msra.mxu0 0
    %2701 = vmatprep.subr.bf16.mxu0 0
    %2702 = vmatpush1.bf16.msra.mxu0 0
    %2703 = vmatprep.subr.bf16.mxu0 0
    %2704 = vmatpush1.bf16.msra.mxu0 0
    %2705 = vmatprep.subr.bf16.mxu0 0
    %2706 = vmatpush1.bf16.msra.mxu0 0
    %2707 = vmatprep.subr.bf16.mxu0 0
    %2708 = vmatpush1.bf16.msra.mxu0 0
    %2709 = vmatprep.subr.bf16.mxu0 0
    %2710 = vmatpush1.bf16.msra.mxu0 0
    %2711 = vmatprep.subr.bf16.mxu0 0
    %2712 = vmatpush1.bf16.msra.mxu0 0
    %2713 = vmatprep.mubr.bf16.mxu0 0
    %2714 = vmatmul.mubr.bf16.gmra.mrb[0].mxu0 %v2609
    %v2715 = vpop.f32.mrb[0].mxu0
    %v2716 = vadd.f32 %v2631, %v2715
    %v2717 = vpop.f32.mrb[0].mxu0
    %v2718 = vpop.f32.mrb[0].mxu0
    %v2719 = vpop.f32.mrb[0].mxu0
    %2720 = vdwg.mxu0
    %v2721 = vmax.f32 %v2716, 0.0
    %v2722 = vpack.c.bf16 %v2721, %v2721
    %v2723 = vld [vmem:[%s9] sm:$0xf]
    %v2724 = vld [vmem:[%s9 + $0x4] sm:$0xf]
    %v2725 = vld [vmem:[%s9 + $0x8] sm:$0xf]
    %v2726 = vld [vmem:[%s9 + $0xc] sm:$0xf]
    %v2727 = vld [vmem:[%s9 + $0x10] sm:$0xf]
    %v2728 = vld [vmem:[%s9 + $0x14] sm:$0xf]
    %v2729 = vld [vmem:[%s9 + $0x18] sm:$0xf]
    %v2730 = vld [vmem:[%s9 + $0x1c] sm:$0xf]
    %v2731 = vld [vmem:[%s10] sm:$0x1]
    %v2733 = vlaneseq
    %v2734 = vshrl.u32 %v2733, 7
    %v2735 = vsub.s32 0, %v2734
    %v2736 = vrot.slane %v2731, %v2735
    %v2746 = vunpack.c.l.b16 %v2723
    %v2747 = vunpack.c.l.b16 %v2724
    %v2748 = vunpack.c.l.b16 %v2725
    %v2749 = vunpack.c.l.b16 %v2726
    %v2750 = vunpack.c.l.b16 %v2727
    %v2751 = vunpack.c.l.b16 %v2728
    %v2752 = vunpack.c.l.b16 %v2729
    %v2753 = vunpack.c.l.b16 %v2730
    %v2754 = vpack.c.b16 %v2747, %v2746
    %v2755 = vpack.c.b16 %v2749, %v2748
    %v2756 = vpack.c.b16 %v2751, %v2750
    %v2757 = vpack.c.b16 %v2753, %v2752
    %v2763 = vsel %vm789, %v2722, 0
    %2765 = vmatprep.subr.bf16.mxu0 0
    %2766 = vmatpush1.bf16.msra.mxu0 %v2754
    %2767 = vmatprep.subr.bf16.mxu0 0
    %2768 = vmatpush1.bf16.msra.mxu0 %v2755
    %2769 = vmatprep.subr.bf16.mxu0 0
    %2770 = vmatpush1.bf16.msra.mxu0 %v2756
    %2771 = vmatprep.subr.bf16.mxu0 0
    %2772 = vmatpush1.bf16.msra.mxu0 %v2757
    %2773 = vmatprep.subr.bf16.mxu0 0
    %2774 = vmatpush1.bf16.msra.mxu0 0
    %2775 = vmatprep.subr.bf16.mxu0 0
    %2776 = vmatpush1.bf16.msra.mxu0 0
    %2777 = vmatprep.subr.bf16.mxu0 0
    %2778 = vmatpush1.bf16.msra.mxu0 0
    %2779 = vmatprep.subr.bf16.mxu0 0
    %2780 = vmatpush1.bf16.msra.mxu0 0
    %2781 = vmatprep.subr.bf16.mxu0 0
    %2782 = vmatpush1.bf16.msra.mxu0 0
    %2783 = vmatprep.subr.bf16.mxu0 0
    %2784 = vmatpush1.bf16.msra.mxu0 0
    %2785 = vmatprep.subr.bf16.mxu0 0
    %2786 = vmatpush1.bf16.msra.mxu0 0
    %2787 = vmatprep.subr.bf16.mxu0 0
    %2788 = vmatpush1.bf16.msra.mxu0 0
    %2789 = vmatprep.subr.bf16.mxu0 0
    %2790 = vmatpush1.bf16.msra.mxu0 0
    %2791 = vmatprep.subr.bf16.mxu0 0
    %2792 = vmatpush1.bf16.msra.mxu0 0
    %2793 = vmatprep.subr.bf16.mxu0 0
    %2794 = vmatpush1.bf16.msra.mxu0 0
    %2795 = vmatprep.subr.bf16.mxu0 0
    %2796 = vmatpush1.bf16.msra.mxu0 0
    %2797 = vmatprep.mubr.bf16.mxu0 0
    %2798 = vmatmul.mubr.bf16.gmra.mrb[0].mxu0 %v2763
    %v2799 = vpop.f32.mrb[0].mxu0
    %v2800 = vadd.f32 %v2736, %v2799
    %v2801 = vpop.f32.mrb[0].mxu0
    %v2802 = vpop.f32.mrb[0].mxu0
    %v2803 = vpop.f32.mrb[0].mxu0
    %2804 = vdwg.mxu0
    %v2805 = vmul.f32 %v2800, 0.999995
    %v2806 = vmax.f32 %v2805, 0.0
    %v2807 = vpack.c.bf16 %v2806, %v2806
    %v2808 = vld [vmem:[%s11] sm:$0xf]
    %v2809 = vld [vmem:[%s11 + $0x4] sm:$0xf]
    %v2810 = vld [vmem:[%s11 + $0x8] sm:$0xf]
    %v2811 = vld [vmem:[%s11 + $0xc] sm:$0xf]
    %v2812 = vld [vmem:[%s12] sm:$0x1]
    %v2814 = vlaneseq
    %v2815 = vshrl.u32 %v2814, 7
    %v2816 = vsub.s32 0, %v2815
    %v2817 = vrot.slane %v2812, %v2816
    %v2823 = vunpack.c.l.b16 %v2808
    %v2824 = vunpack.c.l.b16 %v2809
    %v2825 = vunpack.c.l.b16 %v2810
    %v2826 = vunpack.c.l.b16 %v2811
    %v2827 = vpack.c.b16 %v2824, %v2823
    %v2828 = vpack.c.b16 %v2826, %v2825
    %vm2831 = vcmask 261120
    %v2833 = vsel %vm2831, %v2807, 0
    %2835 = vmatprep.subr.bf16.mxu0 0
    %2836 = vmatpush1.bf16.msra.mxu0 %v2827
    %2837 = vmatprep.subr.bf16.mxu0 0
    %2838 = vmatpush1.bf16.msra.mxu0 %v2828
    %2839 = vmatprep.subr.bf16.mxu0 0
    %2840 = vmatpush1.bf16.msra.mxu0 0
    %2841 = vmatprep.subr.bf16.mxu0 0
    %2842 = vmatpush1.bf16.msra.mxu0 0
    %2843 = vmatprep.subr.bf16.mxu0 0
    %2844 = vmatpush1.bf16.msra.mxu0 0
    %2845 = vmatprep.subr.bf16.mxu0 0
    %2846 = vmatpush1.bf16.msra.mxu0 0
    %2847 = vmatprep.subr.bf16.mxu0 0
    %2848 = vmatpush1.bf16.msra.mxu0 0
    %2849 = vmatprep.subr.bf16.mxu0 0
    %2850 = vmatpush1.bf16.msra.mxu0 0
    %2851 = vmatprep.subr.bf16.mxu0 0
    %2852 = vmatpush1.bf16.msra.mxu0 0
    %2853 = vmatprep.subr.bf16.mxu0 0
    %2854 = vmatpush1.bf16.msra.mxu0 0
    %2855 = vmatprep.subr.bf16.mxu0 0
    %2856 = vmatpush1.bf16.msra.mxu0 0
    %2857 = vmatprep.subr.bf16.mxu0 0
    %2858 = vmatpush1.bf16.msra.mxu0 0
    %2859 = vmatprep.subr.bf16.mxu0 0
    %2860 = vmatpush1.bf16.msra.mxu0 0
    %2861 = vmatprep.subr.bf16.mxu0 0
    %2862 = vmatpush1.bf16.msra.mxu0 0
    %2863 = vmatprep.subr.bf16.mxu0 0
    %2864 = vmatpush1.bf16.msra.mxu0 0
    %2865 = vmatprep.subr.bf16.mxu0 0
    %2866 = vmatpush1.bf16.msra.mxu0 0
    %2867 = vmatprep.mubr.bf16.mxu0 0
    %2868 = vmatmul.mubr.bf16.gmra.mrb[0].mxu0 %v2833
    %v2869 = vpop.f32.mrb[0].mxu0
    %v2870 = vadd.f32 %v2817, %v2869
    %v2871 = vpop.f32.mrb[0].mxu0
    %v2872 = vpop.f32.mrb[0].mxu0
    %v2873 = vpop.f32.mrb[0].mxu0
    %2874 = vdwg.mxu0
    %2875 = vst [vmem:[#allocation2] sm:$0x3] %v2870
    // Predicated region
    $region54: #{forward.13} parent=1 // pred_check
      _
    $region55: #{forward.13} parent=1 // pred_check_branch
      %2877 = sbr.rel (0) target = $region57
    $region56: #{forward.13} parent=1 // pred_region
      %s2879 = ssub.s32 32, 32
      %2880 = vsyncadd [#allocation3], %s2879
      %s2882 = sshll.u32 [#allocation2], 4
      %s2883 = int_to_ptr.vmem [resolvable:$true] %s2882
      %2885 = dma.vmem_to_hbm [thread:$0]  %s2883, 32, %s13, [#allocation3]
    $region57: #{forward.13} parent=1 // pred_fallthru
      _
    // Predicated region
    $region58: #{forward.13} parent=1 // pred_check
      _
    $region59: #{forward.13} parent=1 // pred_check_branch
      %2887 = sbr.rel (0) target = $region61
    $region60: #{forward.13} parent=1 // pred_region
      %2888 = dma.done [#allocation3], 32
    $region61: #{forward.13} parent=1 // pred_fallthru
      _
    %2889 = vsyncpa [#allocation3], 1

</llo_original>
